<compile_context>
chip_gen: v7x
topology: tpu7x:2x2x1
jax: 0.10.0
libtpu: 0.0.40
codegen_flags: <defaults>
</compile_context>

<pallas_src>
import functools

import numpy as np
import jax
import jax.numpy as jnp
from jax.experimental import pallas as pl
from jax.experimental.pallas import tpu as pltpu

BF16 = jnp.bfloat16
F32 = jnp.float32

_STACK_KEYS = ("ln1_g", "ln1_b", "wqkv", "wo", "ln2_g", "ln2_b", "w1", "w2")


# --------------------------------------------------------------------------
# In-kernel helpers
# --------------------------------------------------------------------------
def _ln(x, g, b):
    mu = jnp.mean(x, axis=-1, keepdims=True)
    var = jnp.mean(jnp.square(x - mu), axis=-1, keepdims=True)
    return (x - mu) * jax.lax.rsqrt(var + 1e-5) * g + b


def _softmax_rows(s):
    m = jnp.max(s, axis=-1, keepdims=True)
    p = jnp.exp(s - m)
    return p * pl.reciprocal(jnp.sum(p, axis=-1, keepdims=True), approx=True)


def _tower_blocks(x, bias, wrefs, *, n_head, n_layers):
    """Run all residual blocks on packed rows x: (R, W) f32.  bias: (R, R) f32."""
    ln1_g, ln1_b, wqkv, wo, ln2_g, ln2_b, w1, w2 = wrefs
    R, W = x.shape
    d = W // n_head
    scale = 1.0 / (float(d) ** 0.5)

    for li in range(n_layers):                       # static, small layer count
        # ---- attention sub-block --------------------------------------------
        h = _ln(x, ln1_g[li], ln1_b[li])
        qkv = jnp.dot(h.astype(BF16), wqkv[li], preferred_element_type=F32)  # (R, 3W)
        heads = []
        for hi in range(n_head):                     # small static head count
            q_h = qkv[:, 0 * W + hi * d:0 * W + (hi + 1) * d].astype(BF16)
            k_h = qkv[:, 1 * W + hi * d:1 * W + (hi + 1) * d].astype(BF16)
            v_h = qkv[:, 2 * W + hi * d:2 * W + (hi + 1) * d].astype(BF16)
            s = jax.lax.dot_general(q_h, k_h, (((1,), (1,)), ((), ())),
                                    preferred_element_type=F32) * scale + bias
            p = _softmax_rows(s)
            heads.append(jnp.dot(p.astype(BF16), v_h, preferred_element_type=F32))
        o = jnp.concatenate(heads, axis=-1) if n_head > 1 else heads[0]      # (R, W)
        attn = jnp.dot(o.astype(BF16), wo[li], preferred_element_type=F32)   # single out-proj
        x = x + attn

        # ---- MLP sub-block ----------------------------------------------------
        h = _ln(x, ln2_g[li], ln2_b[li])
        h = jnp.dot(h.astype(BF16), w1[li], preferred_element_type=F32)
        h = h * jax.nn.sigmoid(1.702 * h)            # QuickGELU
        h = jnp.dot(h.astype(BF16), w2[li], preferred_element_type=F32)
        x = x + h
    return x


# --------------------------------------------------------------------------
# Fused tower kernels (one pallas_call per tower)
# --------------------------------------------------------------------------
def _vision_tower_kernel(aug_ref, pw_ref, pos_ref, bias_ref, lnpre_g, lnpre_b,
                         ln1_g, ln1_b, wqkv, wo, ln2_g, ln2_b, w1, w2,
                         lnpost_g, lnpost_b, vproj, o_ref, *, n_head, n_layers):
    # augmented patch matmul (row 0 of each sequence selects the class embedding)
    x = jnp.dot(aug_ref[0], pw_ref[...], preferred_element_type=F32)   # (Rb, vw)
    x = x + pos_ref[...]
    x = _ln(x, lnpre_g[...], lnpre_b[...])
    x = _tower_blocks(x, bias_ref[...],
                      (ln1_g, ln1_b, wqkv, wo, ln2_g, ln2_b, w1, w2),
                      n_head=n_head, n_layers=n_layers)
    # ln_post + projection on all rows (class row selected by the wrapper)
    x = _ln(x, lnpost_g[...], lnpost_b[...])
    o_ref[0] = jnp.dot(x.astype(BF16), vproj[...], preferred_element_type=F32)


def _text_tower_kernel(eot_ref, x_ref, bias_ref,
                       ln1_g, ln1_b, wqkv, wo, ln2_g, ln2_b, w1, w2,
                       lnf_g, lnf_b, tproj, o_ref,
                       *, n_head, n_layers, seq_len, seqs_per_block):
    x = x_ref[0].astype(F32)                                           # (Rb, tw)
    x = _tower_blocks(x, bias_ref[...],
                      (ln1_g, ln1_b, wqkv, wo, ln2_g, ln2_b, w1, w2),
                      n_head=n_head, n_layers=n_layers)
    # EOT pooling (scalar-prefetched indices) + ln_final + text projection, fused
    base = pl.program_id(0) * seqs_per_block
    R = seqs_per_block * seq_len
    ridx = jax.lax.broadcasted_iota(jnp.int32, (R, 1), 0)
    pooled = []
    for j in range(seqs_per_block):                  # static, tiny
        tgt = eot_ref[base + j] + j * seq_len
        sel = (ridx == tgt).astype(F32)
        pooled.append(jnp.sum(x * sel, axis=0, keepdims=True))         # (1, tw)
    pooled = pooled[0] if seqs_per_block == 1 else jnp.concatenate(pooled, axis=0)
    pooled = _ln(pooled, lnf_g[...], lnf_b[...])
    o_ref[0] = jnp.dot(pooled.astype(BF16), tproj[...], preferred_element_type=F32)


# --------------------------------------------------------------------------
# Host-side helpers
# --------------------------------------------------------------------------
def _ncores(n):
    # keep a 2-wide "parallel" grid so v7x's two TensorCores both get work
    return 2 if (n >= 2 and n % 2 == 0) else 1


def _attn_bias(n_seq, seq_len, causal):
    """Block-diagonal (+causal) additive bias for packed-sequence attention."""
    R = n_seq * seq_len
    idx = np.arange(R)
    ok = (idx[:, None] // seq_len) == (idx[None, :] // seq_len)
    if causal:
        ok = ok & (idx[None, :] <= idx[:, None])
    return jnp.asarray(np.where(ok, 0.0, -1e9), dtype=jnp.float32)


# --------------------------------------------------------------------------
# CLIP-style encoders
# --------------------------------------------------------------------------
def encode_image(images, params, cfg):
    # images: (N, C, H, W) float32
    N, C, H, Wi = images.shape
    P = cfg["patch"]
    gh, gw = H // P, Wi // P
    vw, E = cfg["vision_width"], cfg["embed_dim"]
    S = gh * gw + 1

    # im2col (glue) + augmentation: indicator column selects the class embedding (bf16 DMA)
    patches = images.reshape(N, C, gh, P, gw, P).transpose(0, 2, 4, 1, 3, 5)
    patches = patches.reshape(N, gh * gw, C * P * P)
    F = patches.shape[-1]
    F_pad = params["patch_w_aug"].shape[0]
    aug = jnp.zeros((N, S, F_pad), BF16)
    aug = aug.at[:, 1:, :F].set(patches.astype(BF16))
    aug = aug.at[:, 0, F].set(1.0)

    ncores = _ncores(N)
    Nb = N // ncores
    Rb = Nb * S
    aug = aug.reshape(ncores, Rb, F_pad)

    pos_tiled = jnp.tile(params["vis_pos_emb"], (Nb, 1))       # (Rb, vw) f32
    bias = _attn_bias(Nb, S, causal=False)                      # (Rb, Rb) f32
    stack = [params["vis_stack"][k] for k in _STACK_KEYS]

    def const_spec(a):
        nd = a.ndim
        return pl.BlockSpec(tuple(a.shape), lambda b, _nd=nd: (0,) * _nd)

    kernel = functools.partial(_vision_tower_kernel,
                               n_head=cfg["vision_heads"], n_layers=cfg["vision_layers"])

    out = pl.pallas_call(
        kernel,
        out_shape=jax.ShapeDtypeStruct((ncores, Rb, E), F32),
        grid_spec=pltpu.PrefetchScalarGridSpec(
            num_scalar_prefetch=0, grid=(ncores,),
            in_specs=[pl.BlockSpec((1, Rb, F_pad), lambda b: (b, 0, 0)),
                      const_spec(params["patch_w_aug"]),
                      const_spec(pos_tiled),
                      const_spec(bias),
                      const_spec(params["ln_pre_g"]),
                      const_spec(params["ln_pre_b"])]
                     + [const_spec(w) for w in stack]
                     + [const_spec(params["ln_post_g"]),
                        const_spec(params["ln_post_b"]),
                        const_spec(params["vis_proj"])],
            out_specs=pl.BlockSpec((1, Rb, E), lambda b: (b, 0, 0))),
        compiler_params=pltpu.CompilerParams(dimension_semantics=("parallel",)),
    )(aug, params["patch_w_aug"], pos_tiled, bias,
      params["ln_pre_g"], params["ln_pre_b"], *stack,
      params["ln_post_g"], params["ln_post_b"], params["vis_proj"])

    # class-token rows (row 0 of every sequence)
    return out.reshape(N, S, E)[:, 0, :]


def encode_text(text, params, cfg):
    # text: (M, L) int32 token ids
    M, L = text.shape
    tw, E = cfg["text_width"], cfg["embed_dim"]

    # TODO(synk): embedding-table gather kept in plain JAX (no clean small-scale Pallas gather).
    x = jnp.take(params["token_emb"], text, axis=0) + params["txt_pos_emb"][None]
    eot = jnp.argmax(text, axis=-1).astype(jnp.int32)           # CLIP EOT pooling indices

    ncores = _ncores(M)
    Mb = M // ncores
    Rb = Mb * L
    x = x.astype(BF16).reshape(ncores, Rb, tw)                   # bf16 DMA of residual input

    bias = _attn_bias(Mb, L, causal=True)                        # (Rb, Rb) f32
    stack = [params["txt_stack"][k] for k in _STACK_KEYS]

    def const_spec(a):
        nd = a.ndim
        return pl.BlockSpec(tuple(a.shape), lambda b, e, _nd=nd: (0,) * _nd)

    kernel = functools.partial(_text_tower_kernel,
                               n_head=cfg["text_heads"], n_layers=cfg["text_layers"],
                               seq_len=L, seqs_per_block=Mb)

    out = pl.pallas_call(
        kernel,
        out_shape=jax.ShapeDtypeStruct((ncores, Mb, E), F32),
        grid_spec=pltpu.PrefetchScalarGridSpec(
            num_scalar_prefetch=1, grid=(ncores,),
            in_specs=[pl.BlockSpec((1, Rb, tw), lambda b, e: (b, 0, 0)),
                      const_spec(bias)]
                     + [const_spec(w) for w in stack]
                     + [const_spec(params["ln_final_g"]),
                        const_spec(params["ln_final_b"]),
                        const_spec(params["text_proj"])],
            out_specs=pl.BlockSpec((1, Mb, E), lambda b, e: (b, 0, 0))),
        compiler_params=pltpu.CompilerParams(dimension_semantics=("parallel",)),
    )(eot, x, bias, *stack,
      params["ln_final_g"], params["ln_final_b"], params["text_proj"])

    return out.reshape(M, E)


def forward(images, text, params, cfg):
    # images: (B, T, C, H, W); text: (M, L)
    B, T = images.shape[:2]
    flat = images.reshape(B * T, *images.shape[2:])
    feats = encode_image(flat, params, cfg)
    feats = feats.reshape(B, T, -1).mean(axis=1)                 # mean over frames
    txt = encode_text(text, params, cfg)
    return jnp.concatenate([feats, txt], axis=0)                 # (B + M, embed_dim)


# --------------------------------------------------------------------------
# Deterministic parameter init (matmul weights stacked per tower, stored bf16)
# --------------------------------------------------------------------------
def _tower_stack(key, width, n_layers):
    ks = jax.random.split(key, 4)

    def w(k, shape):
        return (0.02 * jax.random.normal(k, shape, F32)).astype(BF16)

    # TODO(synk): attn/MLP biases omitted (all-zero in this random init, per perf review);
    #             real pretrained CLIP weights would require adding them back.
    return {
        "ln1_g": jnp.ones((n_layers, 1, width), F32),
        "ln1_b": jnp.zeros((n_layers, 1, width), F32),
        "wqkv": w(ks[0], (n_layers, width, 3 * width)),
        "wo": w(ks[1], (n_layers, width, width)),
        "ln2_g": jnp.ones((n_layers, 1, width), F32),
        "ln2_b": jnp.zeros((n_layers, 1, width), F32),
        "w1": w(ks[2], (n_layers, width, 4 * width)),
        "w2": w(ks[3], (n_layers, 4 * width, width)),
    }


def init_params(key, cfg):
    ks = iter(jax.random.split(key, 12))
    vw, tw, E, P = cfg["vision_width"], cfg["text_width"], cfg["embed_dim"], cfg["patch"]
    n_patch = (cfg["image_size"] // P) ** 2
    F = 3 * P * P
    F_pad = ((F + 1 + 127) // 128) * 128              # lane-aligned augmented K dim

    conv_w = 0.02 * jax.random.normal(next(ks), (F, vw), F32)
    class_emb = 0.02 * jax.random.normal(next(ks), (vw,), F32)
    patch_w_aug = jnp.zeros((F_pad, vw), F32).at[:F].set(conv_w).at[F].set(class_emb)

    return {
        "patch_w_aug": patch_w_aug.astype(BF16),
        "vis_pos_emb": 0.02 * jax.random.normal(next(ks), (n_patch + 1, vw), F32),
        "ln_pre_g": jnp.ones((1, vw), F32),
        "ln_pre_b": jnp.zeros((1, vw), F32),
        "vis_stack": _tower_stack(next(ks), vw, cfg["vision_layers"]),
        "ln_post_g": jnp.ones((1, vw), F32),
        "ln_post_b": jnp.zeros((1, vw), F32),
        "vis_proj": (0.02 * jax.random.normal(next(ks), (vw, E), F32)).astype(BF16),
        "token_emb": 0.02 * jax.random.normal(next(ks), (cfg["vocab"], tw), F32),
        "txt_pos_emb": 0.02 * jax.random.normal(next(ks), (cfg["context_length"], tw), F32),
        "txt_stack": _tower_stack(next(ks), tw, cfg["text_layers"]),
        "ln_final_g": jnp.ones((1, tw), F32),
        "ln_final_b": jnp.zeros((1, tw), F32),
        "text_proj": (0.02 * jax.random.normal(next(ks), (tw, E), F32)).astype(BF16),
    }


# --------------------------------------------------------------------------
if __name__ == "__main__":
    cfg = dict(
        image_size=32, patch=16,
        vision_width=128, vision_heads=2, vision_layers=2,
        text_width=128, text_heads=2, text_layers=2,
        vocab=64, context_length=8,
        embed_dim=128,                       # lane-dense (multiple of 128)
    )

    root = jax.random.PRNGKey(0)
    k_par, k_img, k_txt = jax.random.split(root, 3)
    params = init_params(k_par, cfg)

    B, T = 2, 2
    images = jax.random.normal(k_img, (B, T, 3, cfg["image_size"], cfg["image_size"]), F32)
    M = 2
    text = jax.random.randint(k_txt, (M, cfg["context_length"]), 1, cfg["vocab"] - 1,
                              dtype=jnp.int32)
    # emulate EOT token (highest id) at the last position, as CLIP's argmax pooling expects
    text = text.at[:, -1].set(cfg["vocab"] - 1)

    fwd = jax.jit(lambda imgs, txt, prms: forward(imgs, txt, prms, cfg))
    out = jax.block_until_ready(fwd(images, text, params))

    assert out.shape == (B + M, cfg["embed_dim"]), out.shape
    assert bool(jnp.all(jnp.isfinite(out)))
    print("KERNEL_OK")
</pallas_src>

<mosaic_0001>
module attributes {stable_mosaic.version = 11 : i64} {
  func.func @_text_tower_kernel(%arg0: i32, %arg1: memref<2xi32, #tpu.memory_space<smem>>, %arg2: memref<1x8x128xbf16, #tpu.memory_space<vmem>>, %arg3: memref<8x8xf32, #tpu.memory_space<vmem>>, %arg4: memref<2x1x128xf32, #tpu.memory_space<vmem>>, %arg5: memref<2x1x128xf32, #tpu.memory_space<vmem>>, %arg6: memref<2x128x384xbf16, #tpu.memory_space<vmem>>, %arg7: memref<2x128x128xbf16, #tpu.memory_space<vmem>>, %arg8: memref<2x1x128xf32, #tpu.memory_space<vmem>>, %arg9: memref<2x1x128xf32, #tpu.memory_space<vmem>>, %arg10: memref<2x128x512xbf16, #tpu.memory_space<vmem>>, %arg11: memref<2x512x128xbf16, #tpu.memory_space<vmem>>, %arg12: memref<1x128xf32, #tpu.memory_space<vmem>>, %arg13: memref<1x128xf32, #tpu.memory_space<vmem>>, %arg14: memref<128x128xbf16, #tpu.memory_space<vmem>>, %arg15: memref<1x1x128xf32, #tpu.memory_space<vmem>>) attributes {dimension_semantics = [#tpu.dimension_semantics<parallel>], iteration_bounds = array<i64: 2>, scalar_prefetch = 1 : i64, scratch_operands = 0 : i64, tpu.core_type = #tpu.core_type<tc>, window_params = [{transform_indices = @transform_0, window_bounds = array<i64: 1, 8, 128>}, {pipeline_mode = #tpu.pipeline_mode<synchronous>, transform_indices = @transform_1, window_bounds = array<i64: 8, 8>}, {pipeline_mode = #tpu.pipeline_mode<synchronous>, transform_indices = @transform_2, window_bounds = array<i64: 2, 1, 128>}, {pipeline_mode = #tpu.pipeline_mode<synchronous>, transform_indices = @transform_3, window_bounds = array<i64: 2, 1, 128>}, {pipeline_mode = #tpu.pipeline_mode<synchronous>, transform_indices = @transform_4, window_bounds = array<i64: 2, 128, 384>}, {pipeline_mode = #tpu.pipeline_mode<synchronous>, transform_indices = @transform_5, window_bounds = array<i64: 2, 128, 128>}, {pipeline_mode = #tpu.pipeline_mode<synchronous>, transform_indices = @transform_6, window_bounds = array<i64: 2, 1, 128>}, {pipeline_mode = #tpu.pipeline_mode<synchronous>, transform_indices = @transform_7, window_bounds = array<i64: 2, 1, 128>}, {pipeline_mode = #tpu.pipeline_mode<synchronous>, transform_indices = @transform_8, window_bounds = array<i64: 2, 128, 512>}, {pipeline_mode = #tpu.pipeline_mode<synchronous>, transform_indices = @transform_9, window_bounds = array<i64: 2, 512, 128>}, {pipeline_mode = #tpu.pipeline_mode<synchronous>, transform_indices = @transform_10, window_bounds = array<i64: 1, 128>}, {pipeline_mode = #tpu.pipeline_mode<synchronous>, transform_indices = @transform_11, window_bounds = array<i64: 1, 128>}, {pipeline_mode = #tpu.pipeline_mode<synchronous>, transform_indices = @transform_12, window_bounds = array<i64: 128, 128>}, {transform_indices = @transform_13, window_bounds = array<i64: 1, 1, 128>}]} {
    %c0 = arith.constant 0 : index
    %c0_0 = arith.constant 0 : index
    %c0_1 = arith.constant 0 : index
    %0 = vector.load %arg2[%c0, %c0_0, %c0_1] : memref<1x8x128xbf16, #tpu.memory_space<vmem>>, vector<1x8x128xbf16>
    %1 = vector.shape_cast %0 : vector<1x8x128xbf16> to vector<8x128xbf16>
    %2 = arith.extf %1 : vector<8x128xbf16> to vector<8x128xf32>
    %c0_2 = arith.constant 0 : index
    %c0_3 = arith.constant 0 : index
    %3 = vector.load %arg3[%c0_2, %c0_3] : memref<8x8xf32, #tpu.memory_space<vmem>>, vector<8x8xf32>
    %c0_4 = arith.constant 0 : index
    %c0_5 = arith.constant 0 : index
    %c0_6 = arith.constant 0 : index
    %4 = vector.load %arg4[%c0_4, %c0_5, %c0_6] : memref<2x1x128xf32, #tpu.memory_space<vmem>>, vector<1x1x128xf32>
    %5 = vector.shape_cast %4 : vector<1x1x128xf32> to vector<1x128xf32>
    %c0_7 = arith.constant 0 : index
    %c0_8 = arith.constant 0 : index
    %c0_9 = arith.constant 0 : index
    %6 = vector.load %arg5[%c0_7, %c0_8, %c0_9] : memref<2x1x128xf32, #tpu.memory_space<vmem>>, vector<1x1x128xf32>
    %7 = vector.shape_cast %6 : vector<1x1x128xf32> to vector<1x128xf32>
    %cst = arith.constant dense<0.000000e+00> : vector<8xf32>
    %8 = vector.multi_reduction <add>, %2, %cst [1] : vector<8x128xf32> to vector<8xf32>
    %9 = vector.shape_cast %8 : vector<8xf32> to vector<8x1xf32>
    %cst_10 = arith.constant 1.280000e+02 : f32
    %10 = vector.broadcast %cst_10 : f32 to vector<8x1xf32>
    %11 = arith.divf %9, %10 : vector<8x1xf32>
    %12 = vector.broadcast %11 : vector<8x1xf32> to vector<8x128xf32>
    %13 = arith.subf %2, %12 : vector<8x128xf32>
    %14 = arith.mulf %13, %13 : vector<8x128xf32>
    %cst_11 = arith.constant dense<0.000000e+00> : vector<8xf32>
    %15 = vector.multi_reduction <add>, %14, %cst_11 [1] : vector<8x128xf32> to vector<8xf32>
    %16 = vector.shape_cast %15 : vector<8xf32> to vector<8x1xf32>
    %cst_12 = arith.constant 1.280000e+02 : f32
    %17 = vector.broadcast %cst_12 : f32 to vector<8x1xf32>
    %18 = arith.divf %16, %17 : vector<8x1xf32>
    %19 = vector.broadcast %11 : vector<8x1xf32> to vector<8x128xf32>
    %20 = arith.subf %2, %19 : vector<8x128xf32>
    %cst_13 = arith.constant 9.99999974E-6 : f32
    %21 = vector.broadcast %cst_13 : f32 to vector<8x1xf32>
    %22 = arith.addf %18, %21 : vector<8x1xf32>
    %23 = math.rsqrt %22 : vector<8x1xf32>
    %24 = vector.broadcast %23 : vector<8x1xf32> to vector<8x128xf32>
    %25 = arith.mulf %20, %24 : vector<8x128xf32>
    %26 = vector.broadcast %5 : vector<1x128xf32> to vector<8x128xf32>
    %27 = arith.mulf %25, %26 : vector<8x128xf32>
    %28 = vector.broadcast %7 : vector<1x128xf32> to vector<8x128xf32>
    %29 = arith.addf %27, %28 : vector<8x128xf32>
    %30 = arith.truncf %29 : vector<8x128xf32> to vector<8x128xbf16>
    %c0_14 = arith.constant 0 : index
    %c0_15 = arith.constant 0 : index
    %c0_16 = arith.constant 0 : index
    %31 = vector.load %arg6[%c0_14, %c0_15, %c0_16] : memref<2x128x384xbf16, #tpu.memory_space<vmem>>, vector<1x128x384xbf16>
    %32 = vector.shape_cast %31 : vector<1x128x384xbf16> to vector<128x384xbf16>
    %cst_17 = arith.constant dense<0.000000e+00> : vector<8x384xf32>
    %33 = tpu.matmul %30, %32, %cst_17 {dimension_numbers = #tpu.dot_dimension_numbers<[1], [0], [0], [1], [0, 0, 1, 1], [], []>} : vector<8x128xbf16>, vector<128x384xbf16>, vector<8x384xf32> -> vector<8x384xf32>
    %34 = vector.extract_strided_slice %33 {offsets = [0, 0], sizes = [8, 64], strides = [1, 1]} : vector<8x384xf32> to vector<8x64xf32>
    %35 = arith.truncf %34 : vector<8x64xf32> to vector<8x64xbf16>
    %36 = vector.extract_strided_slice %33 {offsets = [0, 128], sizes = [8, 64], strides = [1, 1]} : vector<8x384xf32> to vector<8x64xf32>
    %37 = arith.truncf %36 : vector<8x64xf32> to vector<8x64xbf16>
    %38 = vector.extract_strided_slice %33 {offsets = [0, 256], sizes = [8, 64], strides = [1, 1]} : vector<8x384xf32> to vector<8x64xf32>
    %39 = arith.truncf %38 : vector<8x64xf32> to vector<8x64xbf16>
    %cst_18 = arith.constant dense<0.000000e+00> : vector<8x8xf32>
    %40 = tpu.matmul %35, %37, %cst_18 {dimension_numbers = #tpu.dot_dimension_numbers<[1], [1], [0], [0], [0, 0, 1, 0], [], []>} : vector<8x64xbf16>, vector<8x64xbf16>, vector<8x8xf32> -> vector<8x8xf32>
    %cst_19 = arith.constant 1.250000e-01 : f32
    %41 = vector.broadcast %cst_19 : f32 to vector<8x8xf32>
    %42 = arith.mulf %40, %41 : vector<8x8xf32>
    %43 = arith.addf %42, %3 : vector<8x8xf32>
    %cst_20 = arith.constant dense<0xFF800000> : vector<8xf32>
    %44 = vector.multi_reduction <maximumf>, %43, %cst_20 [1] : vector<8x8xf32> to vector<8xf32>
    %45 = vector.shape_cast %44 : vector<8xf32> to vector<8x1xf32>
    %46 = vector.broadcast %45 : vector<8x1xf32> to vector<8x8xf32>
    %47 = arith.subf %43, %46 : vector<8x8xf32>
    %48 = math.exp %47 : vector<8x8xf32>
    %cst_21 = arith.constant dense<0.000000e+00> : vector<8xf32>
    %49 = vector.multi_reduction <add>, %48, %cst_21 [1] : vector<8x8xf32> to vector<8xf32>
    %50 = vector.shape_cast %49 : vector<8xf32> to vector<8x1xf32>
    %51 = tpu.reciprocal %50 {approx = true} : vector<8x1xf32> -> vector<8x1xf32>
    %52 = vector.broadcast %51 : vector<8x1xf32> to vector<8x8xf32>
    %53 = arith.mulf %48, %52 : vector<8x8xf32>
    %54 = arith.truncf %53 : vector<8x8xf32> to vector<8x8xbf16>
    %cst_22 = arith.constant dense<0.000000e+00> : vector<8x64xf32>
    %55 = tpu.matmul %54, %39, %cst_22 {dimension_numbers = #tpu.dot_dimension_numbers<[1], [0], [0], [1], [0, 0, 1, 1], [], []>} : vector<8x8xbf16>, vector<8x64xbf16>, vector<8x64xf32> -> vector<8x64xf32>
    %56 = vector.extract_strided_slice %33 {offsets = [0, 64], sizes = [8, 64], strides = [1, 1]} : vector<8x384xf32> to vector<8x64xf32>
    %57 = arith.truncf %56 : vector<8x64xf32> to vector<8x64xbf16>
    %58 = vector.extract_strided_slice %33 {offsets = [0, 192], sizes = [8, 64], strides = [1, 1]} : vector<8x384xf32> to vector<8x64xf32>
    %59 = arith.truncf %58 : vector<8x64xf32> to vector<8x64xbf16>
    %60 = vector.extract_strided_slice %33 {offsets = [0, 320], sizes = [8, 64], strides = [1, 1]} : vector<8x384xf32> to vector<8x64xf32>
    %61 = arith.truncf %60 : vector<8x64xf32> to vector<8x64xbf16>
    %cst_23 = arith.constant dense<0.000000e+00> : vector<8x8xf32>
    %62 = tpu.matmul %57, %59, %cst_23 {dimension_numbers = #tpu.dot_dimension_numbers<[1], [1], [0], [0], [0, 0, 1, 0], [], []>} : vector<8x64xbf16>, vector<8x64xbf16>, vector<8x8xf32> -> vector<8x8xf32>
    %cst_24 = arith.constant 1.250000e-01 : f32
    %63 = vector.broadcast %cst_24 : f32 to vector<8x8xf32>
    %64 = arith.mulf %62, %63 : vector<8x8xf32>
    %65 = arith.addf %64, %3 : vector<8x8xf32>
    %cst_25 = arith.constant dense<0xFF800000> : vector<8xf32>
    %66 = vector.multi_reduction <maximumf>, %65, %cst_25 [1] : vector<8x8xf32> to vector<8xf32>
    %67 = vector.shape_cast %66 : vector<8xf32> to vector<8x1xf32>
    %68 = vector.broadcast %67 : vector<8x1xf32> to vector<8x8xf32>
    %69 = arith.subf %65, %68 : vector<8x8xf32>
    %70 = math.exp %69 : vector<8x8xf32>
    %cst_26 = arith.constant dense<0.000000e+00> : vector<8xf32>
    %71 = vector.multi_reduction <add>, %70, %cst_26 [1] : vector<8x8xf32> to vector<8xf32>
    %72 = vector.shape_cast %71 : vector<8xf32> to vector<8x1xf32>
    %73 = tpu.reciprocal %72 {approx = true} : vector<8x1xf32> -> vector<8x1xf32>
    %74 = vector.broadcast %73 : vector<8x1xf32> to vector<8x8xf32>
    %75 = arith.mulf %70, %74 : vector<8x8xf32>
    %76 = arith.truncf %75 : vector<8x8xf32> to vector<8x8xbf16>
    %cst_27 = arith.constant dense<0.000000e+00> : vector<8x64xf32>
    %77 = tpu.matmul %76, %61, %cst_27 {dimension_numbers = #tpu.dot_dimension_numbers<[1], [0], [0], [1], [0, 0, 1, 1], [], []>} : vector<8x8xbf16>, vector<8x64xbf16>, vector<8x64xf32> -> vector<8x64xf32>
    %78 = tpu.concatenate %55, %77 in 1 : vector<8x64xf32>, vector<8x64xf32> -> vector<8x128xf32>
    %79 = arith.truncf %78 : vector<8x128xf32> to vector<8x128xbf16>
    %c0_28 = arith.constant 0 : index
    %c0_29 = arith.constant 0 : index
    %c0_30 = arith.constant 0 : index
    %80 = vector.load %arg7[%c0_28, %c0_29, %c0_30] : memref<2x128x128xbf16, #tpu.memory_space<vmem>>, vector<1x128x128xbf16>
    %81 = vector.shape_cast %80 : vector<1x128x128xbf16> to vector<128x128xbf16>
    %cst_31 = arith.constant dense<0.000000e+00> : vector<8x128xf32>
    %82 = tpu.matmul %79, %81, %cst_31 {dimension_numbers = #tpu.dot_dimension_numbers<[1], [0], [0], [1], [0, 0, 1, 1], [], []>} : vector<8x128xbf16>, vector<128x128xbf16>, vector<8x128xf32> -> vector<8x128xf32>
    %83 = arith.addf %2, %82 : vector<8x128xf32>
    %c0_32 = arith.constant 0 : index
    %c0_33 = arith.constant 0 : index
    %c0_34 = arith.constant 0 : index
    %84 = vector.load %arg8[%c0_32, %c0_33, %c0_34] : memref<2x1x128xf32, #tpu.memory_space<vmem>>, vector<1x1x128xf32>
    %85 = vector.shape_cast %84 : vector<1x1x128xf32> to vector<1x128xf32>
    %c0_35 = arith.constant 0 : index
    %c0_36 = arith.constant 0 : index
    %c0_37 = arith.constant 0 : index
    %86 = vector.load %arg9[%c0_35, %c0_36, %c0_37] : memref<2x1x128xf32, #tpu.memory_space<vmem>>, vector<1x1x128xf32>
    %87 = vector.shape_cast %86 : vector<1x1x128xf32> to vector<1x128xf32>
    %cst_38 = arith.constant dense<0.000000e+00> : vector<8xf32>
    %88 = vector.multi_reduction <add>, %83, %cst_38 [1] : vector<8x128xf32> to vector<8xf32>
    %89 = vector.shape_cast %88 : vector<8xf32> to vector<8x1xf32>
    %cst_39 = arith.constant 1.280000e+02 : f32
    %90 = vector.broadcast %cst_39 : f32 to vector<8x1xf32>
    %91 = arith.divf %89, %90 : vector<8x1xf32>
    %92 = vector.broadcast %91 : vector<8x1xf32> to vector<8x128xf32>
    %93 = arith.subf %83, %92 : vector<8x128xf32>
    %94 = arith.mulf %93, %93 : vector<8x128xf32>
    %cst_40 = arith.constant dense<0.000000e+00> : vector<8xf32>
    %95 = vector.multi_reduction <add>, %94, %cst_40 [1] : vector<8x128xf32> to vector<8xf32>
    %96 = vector.shape_cast %95 : vector<8xf32> to vector<8x1xf32>
    %cst_41 = arith.constant 1.280000e+02 : f32
    %97 = vector.broadcast %cst_41 : f32 to vector<8x1xf32>
    %98 = arith.divf %96, %97 : vector<8x1xf32>
    %99 = vector.broadcast %91 : vector<8x1xf32> to vector<8x128xf32>
    %100 = arith.subf %83, %99 : vector<8x128xf32>
    %cst_42 = arith.constant 9.99999974E-6 : f32
    %101 = vector.broadcast %cst_42 : f32 to vector<8x1xf32>
    %102 = arith.addf %98, %101 : vector<8x1xf32>
    %103 = math.rsqrt %102 : vector<8x1xf32>
    %104 = vector.broadcast %103 : vector<8x1xf32> to vector<8x128xf32>
    %105 = arith.mulf %100, %104 : vector<8x128xf32>
    %106 = vector.broadcast %85 : vector<1x128xf32> to vector<8x128xf32>
    %107 = arith.mulf %105, %106 : vector<8x128xf32>
    %108 = vector.broadcast %87 : vector<1x128xf32> to vector<8x128xf32>
    %109 = arith.addf %107, %108 : vector<8x128xf32>
    %110 = arith.truncf %109 : vector<8x128xf32> to vector<8x128xbf16>
    %c0_43 = arith.constant 0 : index
    %c0_44 = arith.constant 0 : index
    %c0_45 = arith.constant 0 : index
    %111 = vector.load %arg10[%c0_43, %c0_44, %c0_45] : memref<2x128x512xbf16, #tpu.memory_space<vmem>>, vector<1x128x512xbf16>
    %112 = vector.shape_cast %111 : vector<1x128x512xbf16> to vector<128x512xbf16>
    %cst_46 = arith.constant dense<0.000000e+00> : vector<8x512xf32>
    %113 = tpu.matmul %110, %112, %cst_46 {dimension_numbers = #tpu.dot_dimension_numbers<[1], [0], [0], [1], [0, 0, 1, 1], [], []>} : vector<8x128xbf16>, vector<128x512xbf16>, vector<8x512xf32> -> vector<8x512xf32>
    %cst_47 = arith.constant 1.702000e+00 : f32
    %114 = vector.broadcast %cst_47 : f32 to vector<8x512xf32>
    %115 = arith.mulf %114, %113 : vector<8x512xf32>
    %116 = arith.negf %115 : vector<8x512xf32>
    %117 = math.exp %116 : vector<8x512xf32>
    %cst_48 = arith.constant 1.000000e+00 : f32
    %118 = vector.broadcast %cst_48 : f32 to vector<8x512xf32>
    %119 = arith.addf %118, %117 : vector<8x512xf32>
    %120 = arith.divf %118, %119 : vector<8x512xf32>
    %121 = arith.mulf %113, %120 : vector<8x512xf32>
    %122 = arith.truncf %121 : vector<8x512xf32> to vector<8x512xbf16>
    %c0_49 = arith.constant 0 : index
    %c0_50 = arith.constant 0 : index
    %c0_51 = arith.constant 0 : index
    %123 = vector.load %arg11[%c0_49, %c0_50, %c0_51] : memref<2x512x128xbf16, #tpu.memory_space<vmem>>, vector<1x512x128xbf16>
    %124 = vector.shape_cast %123 : vector<1x512x128xbf16> to vector<512x128xbf16>
    %cst_52 = arith.constant dense<0.000000e+00> : vector<8x128xf32>
    %125 = tpu.matmul %122, %124, %cst_52 {dimension_numbers = #tpu.dot_dimension_numbers<[1], [0], [0], [1], [0, 0, 1, 1], [], []>} : vector<8x512xbf16>, vector<512x128xbf16>, vector<8x128xf32> -> vector<8x128xf32>
    %126 = arith.addf %83, %125 : vector<8x128xf32>
    %c1 = arith.constant 1 : index
    %c0_53 = arith.constant 0 : index
    %c0_54 = arith.constant 0 : index
    %127 = vector.load %arg4[%c1, %c0_53, %c0_54] : memref<2x1x128xf32, #tpu.memory_space<vmem>>, vector<1x1x128xf32>
    %128 = vector.shape_cast %127 : vector<1x1x128xf32> to vector<1x128xf32>
    %c1_55 = arith.constant 1 : index
    %c0_56 = arith.constant 0 : index
    %c0_57 = arith.constant 0 : index
    %129 = vector.load %arg5[%c1_55, %c0_56, %c0_57] : memref<2x1x128xf32, #tpu.memory_space<vmem>>, vector<1x1x128xf32>
    %130 = vector.shape_cast %129 : vector<1x1x128xf32> to vector<1x128xf32>
    %cst_58 = arith.constant dense<0.000000e+00> : vector<8xf32>
    %131 = vector.multi_reduction <add>, %126, %cst_58 [1] : vector<8x128xf32> to vector<8xf32>
    %132 = vector.shape_cast %131 : vector<8xf32> to vector<8x1xf32>
    %cst_59 = arith.constant 1.280000e+02 : f32
    %133 = vector.broadcast %cst_59 : f32 to vector<8x1xf32>
    %134 = arith.divf %132, %133 : vector<8x1xf32>
    %135 = vector.broadcast %134 : vector<8x1xf32> to vector<8x128xf32>
    %136 = arith.subf %126, %135 : vector<8x128xf32>
    %137 = arith.mulf %136, %136 : vector<8x128xf32>
    %cst_60 = arith.constant dense<0.000000e+00> : vector<8xf32>
    %138 = vector.multi_reduction <add>, %137, %cst_60 [1] : vector<8x128xf32> to vector<8xf32>
    %139 = vector.shape_cast %138 : vector<8xf32> to vector<8x1xf32>
    %cst_61 = arith.constant 1.280000e+02 : f32
    %140 = vector.broadcast %cst_61 : f32 to vector<8x1xf32>
    %141 = arith.divf %139, %140 : vector<8x1xf32>
    %142 = vector.broadcast %134 : vector<8x1xf32> to vector<8x128xf32>
    %143 = arith.subf %126, %142 : vector<8x128xf32>
    %cst_62 = arith.constant 9.99999974E-6 : f32
    %144 = vector.broadcast %cst_62 : f32 to vector<8x1xf32>
    %145 = arith.addf %141, %144 : vector<8x1xf32>
    %146 = math.rsqrt %145 : vector<8x1xf32>
    %147 = vector.broadcast %146 : vector<8x1xf32> to vector<8x128xf32>
    %148 = arith.mulf %143, %147 : vector<8x128xf32>
    %149 = vector.broadcast %128 : vector<1x128xf32> to vector<8x128xf32>
    %150 = arith.mulf %148, %149 : vector<8x128xf32>
    %151 = vector.broadcast %130 : vector<1x128xf32> to vector<8x128xf32>
    %152 = arith.addf %150, %151 : vector<8x128xf32>
    %153 = arith.truncf %152 : vector<8x128xf32> to vector<8x128xbf16>
    %c1_63 = arith.constant 1 : index
    %c0_64 = arith.constant 0 : index
    %c0_65 = arith.constant 0 : index
    %154 = vector.load %arg6[%c1_63, %c0_64, %c0_65] : memref<2x128x384xbf16, #tpu.memory_space<vmem>>, vector<1x128x384xbf16>
    %155 = vector.shape_cast %154 : vector<1x128x384xbf16> to vector<128x384xbf16>
    %cst_66 = arith.constant dense<0.000000e+00> : vector<8x384xf32>
    %156 = tpu.matmul %153, %155, %cst_66 {dimension_numbers = #tpu.dot_dimension_numbers<[1], [0], [0], [1], [0, 0, 1, 1], [], []>} : vector<8x128xbf16>, vector<128x384xbf16>, vector<8x384xf32> -> vector<8x384xf32>
    %157 = vector.extract_strided_slice %156 {offsets = [0, 0], sizes = [8, 64], strides = [1, 1]} : vector<8x384xf32> to vector<8x64xf32>
    %158 = arith.truncf %157 : vector<8x64xf32> to vector<8x64xbf16>
    %159 = vector.extract_strided_slice %156 {offsets = [0, 128], sizes = [8, 64], strides = [1, 1]} : vector<8x384xf32> to vector<8x64xf32>
    %160 = arith.truncf %159 : vector<8x64xf32> to vector<8x64xbf16>
    %161 = vector.extract_strided_slice %156 {offsets = [0, 256], sizes = [8, 64], strides = [1, 1]} : vector<8x384xf32> to vector<8x64xf32>
    %162 = arith.truncf %161 : vector<8x64xf32> to vector<8x64xbf16>
    %cst_67 = arith.constant dense<0.000000e+00> : vector<8x8xf32>
    %163 = tpu.matmul %158, %160, %cst_67 {dimension_numbers = #tpu.dot_dimension_numbers<[1], [1], [0], [0], [0, 0, 1, 0], [], []>} : vector<8x64xbf16>, vector<8x64xbf16>, vector<8x8xf32> -> vector<8x8xf32>
    %cst_68 = arith.constant 1.250000e-01 : f32
    %164 = vector.broadcast %cst_68 : f32 to vector<8x8xf32>
    %165 = arith.mulf %163, %164 : vector<8x8xf32>
    %166 = arith.addf %165, %3 : vector<8x8xf32>
    %cst_69 = arith.constant dense<0xFF800000> : vector<8xf32>
    %167 = vector.multi_reduction <maximumf>, %166, %cst_69 [1] : vector<8x8xf32> to vector<8xf32>
    %168 = vector.shape_cast %167 : vector<8xf32> to vector<8x1xf32>
    %169 = vector.broadcast %168 : vector<8x1xf32> to vector<8x8xf32>
    %170 = arith.subf %166, %169 : vector<8x8xf32>
    %171 = math.exp %170 : vector<8x8xf32>
    %cst_70 = arith.constant dense<0.000000e+00> : vector<8xf32>
    %172 = vector.multi_reduction <add>, %171, %cst_70 [1] : vector<8x8xf32> to vector<8xf32>
    %173 = vector.shape_cast %172 : vector<8xf32> to vector<8x1xf32>
    %174 = tpu.reciprocal %173 {approx = true} : vector<8x1xf32> -> vector<8x1xf32>
    %175 = vector.broadcast %174 : vector<8x1xf32> to vector<8x8xf32>
    %176 = arith.mulf %171, %175 : vector<8x8xf32>
    %177 = arith.truncf %176 : vector<8x8xf32> to vector<8x8xbf16>
    %cst_71 = arith.constant dense<0.000000e+00> : vector<8x64xf32>
    %178 = tpu.matmul %177, %162, %cst_71 {dimension_numbers = #tpu.dot_dimension_numbers<[1], [0], [0], [1], [0, 0, 1, 1], [], []>} : vector<8x8xbf16>, vector<8x64xbf16>, vector<8x64xf32> -> vector<8x64xf32>
    %179 = vector.extract_strided_slice %156 {offsets = [0, 64], sizes = [8, 64], strides = [1, 1]} : vector<8x384xf32> to vector<8x64xf32>
    %180 = arith.truncf %179 : vector<8x64xf32> to vector<8x64xbf16>
    %181 = vector.extract_strided_slice %156 {offsets = [0, 192], sizes = [8, 64], strides = [1, 1]} : vector<8x384xf32> to vector<8x64xf32>
    %182 = arith.truncf %181 : vector<8x64xf32> to vector<8x64xbf16>
    %183 = vector.extract_strided_slice %156 {offsets = [0, 320], sizes = [8, 64], strides = [1, 1]} : vector<8x384xf32> to vector<8x64xf32>
    %184 = arith.truncf %183 : vector<8x64xf32> to vector<8x64xbf16>
    %cst_72 = arith.constant dense<0.000000e+00> : vector<8x8xf32>
    %185 = tpu.matmul %180, %182, %cst_72 {dimension_numbers = #tpu.dot_dimension_numbers<[1], [1], [0], [0], [0, 0, 1, 0], [], []>} : vector<8x64xbf16>, vector<8x64xbf16>, vector<8x8xf32> -> vector<8x8xf32>
    %cst_73 = arith.constant 1.250000e-01 : f32
    %186 = vector.broadcast %cst_73 : f32 to vector<8x8xf32>
    %187 = arith.mulf %185, %186 : vector<8x8xf32>
    %188 = arith.addf %187, %3 : vector<8x8xf32>
    %cst_74 = arith.constant dense<0xFF800000> : vector<8xf32>
    %189 = vector.multi_reduction <maximumf>, %188, %cst_74 [1] : vector<8x8xf32> to vector<8xf32>
    %190 = vector.shape_cast %189 : vector<8xf32> to vector<8x1xf32>
    %191 = vector.broadcast %190 : vector<8x1xf32> to vector<8x8xf32>
    %192 = arith.subf %188, %191 : vector<8x8xf32>
    %193 = math.exp %192 : vector<8x8xf32>
    %cst_75 = arith.constant dense<0.000000e+00> : vector<8xf32>
    %194 = vector.multi_reduction <add>, %193, %cst_75 [1] : vector<8x8xf32> to vector<8xf32>
    %195 = vector.shape_cast %194 : vector<8xf32> to vector<8x1xf32>
    %196 = tpu.reciprocal %195 {approx = true} : vector<8x1xf32> -> vector<8x1xf32>
    %197 = vector.broadcast %196 : vector<8x1xf32> to vector<8x8xf32>
    %198 = arith.mulf %193, %197 : vector<8x8xf32>
    %199 = arith.truncf %198 : vector<8x8xf32> to vector<8x8xbf16>
    %cst_76 = arith.constant dense<0.000000e+00> : vector<8x64xf32>
    %200 = tpu.matmul %199, %184, %cst_76 {dimension_numbers = #tpu.dot_dimension_numbers<[1], [0], [0], [1], [0, 0, 1, 1], [], []>} : vector<8x8xbf16>, vector<8x64xbf16>, vector<8x64xf32> -> vector<8x64xf32>
    %201 = tpu.concatenate %178, %200 in 1 : vector<8x64xf32>, vector<8x64xf32> -> vector<8x128xf32>
    %202 = arith.truncf %201 : vector<8x128xf32> to vector<8x128xbf16>
    %c1_77 = arith.constant 1 : index
    %c0_78 = arith.constant 0 : index
    %c0_79 = arith.constant 0 : index
    %203 = vector.load %arg7[%c1_77, %c0_78, %c0_79] : memref<2x128x128xbf16, #tpu.memory_space<vmem>>, vector<1x128x128xbf16>
    %204 = vector.shape_cast %203 : vector<1x128x128xbf16> to vector<128x128xbf16>
    %cst_80 = arith.constant dense<0.000000e+00> : vector<8x128xf32>
    %205 = tpu.matmul %202, %204, %cst_80 {dimension_numbers = #tpu.dot_dimension_numbers<[1], [0], [0], [1], [0, 0, 1, 1], [], []>} : vector<8x128xbf16>, vector<128x128xbf16>, vector<8x128xf32> -> vector<8x128xf32>
    %206 = arith.addf %126, %205 : vector<8x128xf32>
    %c1_81 = arith.constant 1 : index
    %c0_82 = arith.constant 0 : index
    %c0_83 = arith.constant 0 : index
    %207 = vector.load %arg8[%c1_81, %c0_82, %c0_83] : memref<2x1x128xf32, #tpu.memory_space<vmem>>, vector<1x1x128xf32>
    %208 = vector.shape_cast %207 : vector<1x1x128xf32> to vector<1x128xf32>
    %c1_84 = arith.constant 1 : index
    %c0_85 = arith.constant 0 : index
    %c0_86 = arith.constant 0 : index
    %209 = vector.load %arg9[%c1_84, %c0_85, %c0_86] : memref<2x1x128xf32, #tpu.memory_space<vmem>>, vector<1x1x128xf32>
    %210 = vector.shape_cast %209 : vector<1x1x128xf32> to vector<1x128xf32>
    %cst_87 = arith.constant dense<0.000000e+00> : vector<8xf32>
    %211 = vector.multi_reduction <add>, %206, %cst_87 [1] : vector<8x128xf32> to vector<8xf32>
    %212 = vector.shape_cast %211 : vector<8xf32> to vector<8x1xf32>
    %cst_88 = arith.constant 1.280000e+02 : f32
    %213 = vector.broadcast %cst_88 : f32 to vector<8x1xf32>
    %214 = arith.divf %212, %213 : vector<8x1xf32>
    %215 = vector.broadcast %214 : vector<8x1xf32> to vector<8x128xf32>
    %216 = arith.subf %206, %215 : vector<8x128xf32>
    %217 = arith.mulf %216, %216 : vector<8x128xf32>
    %cst_89 = arith.constant dense<0.000000e+00> : vector<8xf32>
    %218 = vector.multi_reduction <add>, %217, %cst_89 [1] : vector<8x128xf32> to vector<8xf32>
    %219 = vector.shape_cast %218 : vector<8xf32> to vector<8x1xf32>
    %cst_90 = arith.constant 1.280000e+02 : f32
    %220 = vector.broadcast %cst_90 : f32 to vector<8x1xf32>
    %221 = arith.divf %219, %220 : vector<8x1xf32>
    %222 = vector.broadcast %214 : vector<8x1xf32> to vector<8x128xf32>
    %223 = arith.subf %206, %222 : vector<8x128xf32>
    %cst_91 = arith.constant 9.99999974E-6 : f32
    %224 = vector.broadcast %cst_91 : f32 to vector<8x1xf32>
    %225 = arith.addf %221, %224 : vector<8x1xf32>
    %226 = math.rsqrt %225 : vector<8x1xf32>
    %227 = vector.broadcast %226 : vector<8x1xf32> to vector<8x128xf32>
    %228 = arith.mulf %223, %227 : vector<8x128xf32>
    %229 = vector.broadcast %208 : vector<1x128xf32> to vector<8x128xf32>
    %230 = arith.mulf %228, %229 : vector<8x128xf32>
    %231 = vector.broadcast %210 : vector<1x128xf32> to vector<8x128xf32>
    %232 = arith.addf %230, %231 : vector<8x128xf32>
    %233 = arith.truncf %232 : vector<8x128xf32> to vector<8x128xbf16>
    %c1_92 = arith.constant 1 : index
    %c0_93 = arith.constant 0 : index
    %c0_94 = arith.constant 0 : index
    %234 = vector.load %arg10[%c1_92, %c0_93, %c0_94] : memref<2x128x512xbf16, #tpu.memory_space<vmem>>, vector<1x128x512xbf16>
    %235 = vector.shape_cast %234 : vector<1x128x512xbf16> to vector<128x512xbf16>
    %cst_95 = arith.constant dense<0.000000e+00> : vector<8x512xf32>
    %236 = tpu.matmul %233, %235, %cst_95 {dimension_numbers = #tpu.dot_dimension_numbers<[1], [0], [0], [1], [0, 0, 1, 1], [], []>} : vector<8x128xbf16>, vector<128x512xbf16>, vector<8x512xf32> -> vector<8x512xf32>
    %cst_96 = arith.constant 1.702000e+00 : f32
    %237 = vector.broadcast %cst_96 : f32 to vector<8x512xf32>
    %238 = arith.mulf %237, %236 : vector<8x512xf32>
    %239 = arith.negf %238 : vector<8x512xf32>
    %240 = math.exp %239 : vector<8x512xf32>
    %cst_97 = arith.constant 1.000000e+00 : f32
    %241 = vector.broadcast %cst_97 : f32 to vector<8x512xf32>
    %242 = arith.addf %241, %240 : vector<8x512xf32>
    %243 = arith.divf %241, %242 : vector<8x512xf32>
    %244 = arith.mulf %236, %243 : vector<8x512xf32>
    %245 = arith.truncf %244 : vector<8x512xf32> to vector<8x512xbf16>
    %c1_98 = arith.constant 1 : index
    %c0_99 = arith.constant 0 : index
    %c0_100 = arith.constant 0 : index
    %246 = vector.load %arg11[%c1_98, %c0_99, %c0_100] : memref<2x512x128xbf16, #tpu.memory_space<vmem>>, vector<1x512x128xbf16>
    %247 = vector.shape_cast %246 : vector<1x512x128xbf16> to vector<512x128xbf16>
    %cst_101 = arith.constant dense<0.000000e+00> : vector<8x128xf32>
    %248 = tpu.matmul %245, %247, %cst_101 {dimension_numbers = #tpu.dot_dimension_numbers<[1], [0], [0], [1], [0, 0, 1, 1], [], []>} : vector<8x512xbf16>, vector<512x128xbf16>, vector<8x128xf32> -> vector<8x128xf32>
    %249 = arith.addf %206, %248 : vector<8x128xf32>
    %c1_i32 = arith.constant 1 : i32
    %250 = arith.muli %arg0, %c1_i32 : i32
    %251 = tpu.iota {dimensions = array<i32: 0>} : vector<8x1xi32>
    %c0_i32 = arith.constant 0 : i32
    %252 = arith.addi %250, %c0_i32 : i32
    %253 = arith.index_cast %252 : i32 to index
    %254 = memref.load %arg1[%253] : memref<2xi32, #tpu.memory_space<smem>>
    %c0_i32_102 = arith.constant 0 : i32
    %255 = arith.addi %254, %c0_i32_102 : i32
    %256 = vector.broadcast %255 : i32 to vector<8x1xi32>
    %257 = arith.cmpi eq, %251, %256 : vector<8x1xi32>
    %258 = arith.extui %257 : vector<8x1xi1> to vector<8x1xi32>
    %259 = arith.sitofp %258 : vector<8x1xi32> to vector<8x1xf32>
    %260 = vector.broadcast %259 : vector<8x1xf32> to vector<8x128xf32>
    %261 = arith.mulf %249, %260 : vector<8x128xf32>
    %cst_103 = arith.constant dense<0.000000e+00> : vector<128xf32>
    %262 = vector.multi_reduction <add>, %261, %cst_103 [0] : vector<8x128xf32> to vector<128xf32>
    %263 = vector.shape_cast %262 : vector<128xf32> to vector<1x128xf32>
    %c0_104 = arith.constant 0 : index
    %c0_105 = arith.constant 0 : index
    %264 = vector.load %arg12[%c0_104, %c0_105] : memref<1x128xf32, #tpu.memory_space<vmem>>, vector<1x128xf32>
    %c0_106 = arith.constant 0 : index
    %c0_107 = arith.constant 0 : index
    %265 = vector.load %arg13[%c0_106, %c0_107] : memref<1x128xf32, #tpu.memory_space<vmem>>, vector<1x128xf32>
    %cst_108 = arith.constant dense<0.000000e+00> : vector<1xf32>
    %266 = vector.multi_reduction <add>, %263, %cst_108 [1] : vector<1x128xf32> to vector<1xf32>
    %267 = vector.shape_cast %266 : vector<1xf32> to vector<1x1xf32>
    %cst_109 = arith.constant 1.280000e+02 : f32
    %268 = vector.broadcast %cst_109 : f32 to vector<1x1xf32>
    %269 = arith.divf %267, %268 : vector<1x1xf32>
    %270 = vector.broadcast %269 : vector<1x1xf32> to vector<1x128xf32>
    %271 = arith.subf %263, %270 : vector<1x128xf32>
    %272 = arith.mulf %271, %271 : vector<1x128xf32>
    %cst_110 = arith.constant dense<0.000000e+00> : vector<1xf32>
    %273 = vector.multi_reduction <add>, %272, %cst_110 [1] : vector<1x128xf32> to vector<1xf32>
    %274 = vector.shape_cast %273 : vector<1xf32> to vector<1x1xf32>
    %cst_111 = arith.constant 1.280000e+02 : f32
    %275 = vector.broadcast %cst_111 : f32 to vector<1x1xf32>
    %276 = arith.divf %274, %275 : vector<1x1xf32>
    %277 = vector.broadcast %269 : vector<1x1xf32> to vector<1x128xf32>
    %278 = arith.subf %263, %277 : vector<1x128xf32>
    %cst_112 = arith.constant 9.99999974E-6 : f32
    %279 = vector.broadcast %cst_112 : f32 to vector<1x1xf32>
    %280 = arith.addf %276, %279 : vector<1x1xf32>
    %281 = math.rsqrt %280 : vector<1x1xf32>
    %282 = vector.broadcast %281 : vector<1x1xf32> to vector<1x128xf32>
    %283 = arith.mulf %278, %282 : vector<1x128xf32>
    %284 = arith.mulf %283, %264 : vector<1x128xf32>
    %285 = arith.addf %284, %265 : vector<1x128xf32>
    %286 = arith.truncf %285 : vector<1x128xf32> to vector<1x128xbf16>
    %c0_113 = arith.constant 0 : index
    %c0_114 = arith.constant 0 : index
    %287 = vector.load %arg14[%c0_113, %c0_114] : memref<128x128xbf16, #tpu.memory_space<vmem>>, vector<128x128xbf16>
    %cst_115 = arith.constant dense<0.000000e+00> : vector<1x128xf32>
    %288 = tpu.matmul %286, %287, %cst_115 {dimension_numbers = #tpu.dot_dimension_numbers<[1], [0], [0], [1], [0, 0, 1, 1], [], []>} : vector<1x128xbf16>, vector<128x128xbf16>, vector<1x128xf32> -> vector<1x128xf32>
    %c0_116 = arith.constant 0 : index
    %c0_117 = arith.constant 0 : index
    %c0_118 = arith.constant 0 : index
    %289 = vector.load %arg15[%c0_116, %c0_117, %c0_118] : memref<1x1x128xf32, #tpu.memory_space<vmem>>, vector<1x1x128xf32>
    %290 = vector.shape_cast %289 : vector<1x1x128xf32> to vector<1x128xf32>
    %291 = vector.shape_cast %288 : vector<1x128xf32> to vector<1x1x128xf32>
    tpu.vector_store %arg15[%c0_116, %c0_117, %c0_118], %291 {strides = array<i32>} : memref<1x1x128xf32, #tpu.memory_space<vmem>>, vector<1x1x128xf32>,
    return
  }
  func.func @transform_0(%arg0: i32, %arg1: memref<2xi32, #tpu.memory_space<smem>>) -> (i32, i32, i32) {
    %c0_i32 = arith.constant 0 : i32
    %c0_i32_0 = arith.constant 0 : i32
    %c0_i32_1 = arith.constant 0 : i32
    return %arg0, %c0_i32, %c0_i32_0 : i32, i32, i32
  }
  func.func @transform_1(%arg0: i32, %arg1: memref<2xi32, #tpu.memory_space<smem>>) -> (i32, i32) {
    %c0_i32 = arith.constant 0 : i32
    %c0_i32_0 = arith.constant 0 : i32
    %c0_i32_1 = arith.constant 0 : i32
    return %c0_i32, %c0_i32_0 : i32, i32
  }
  func.func @transform_2(%arg0: i32, %arg1: memref<2xi32, #tpu.memory_space<smem>>) -> (i32, i32, i32) {
    %c0_i32 = arith.constant 0 : i32
    %c0_i32_0 = arith.constant 0 : i32
    %c0_i32_1 = arith.constant 0 : i32
    %c0_i32_2 = arith.constant 0 : i32
    return %c0_i32, %c0_i32_0, %c0_i32_1 : i32, i32, i32
  }
  func.func @transform_3(%arg0: i32, %arg1: memref<2xi32, #tpu.memory_space<smem>>) -> (i32, i32, i32) {
    %c0_i32 = arith.constant 0 : i32
    %c0_i32_0 = arith.constant 0 : i32
    %c0_i32_1 = arith.constant 0 : i32
    %c0_i32_2 = arith.constant 0 : i32
    return %c0_i32, %c0_i32_0, %c0_i32_1 : i32, i32, i32
  }
  func.func @transform_4(%arg0: i32, %arg1: memref<2xi32, #tpu.memory_space<smem>>) -> (i32, i32, i32) {
    %c0_i32 = arith.constant 0 : i32
    %c0_i32_0 = arith.constant 0 : i32
    %c0_i32_1 = arith.constant 0 : i32
    %c0_i32_2 = arith.constant 0 : i32
    return %c0_i32, %c0_i32_0, %c0_i32_1 : i32, i32, i32
  }
  func.func @transform_5(%arg0: i32, %arg1: memref<2xi32, #tpu.memory_space<smem>>) -> (i32, i32, i32) {
    %c0_i32 = arith.constant 0 : i32
    %c0_i32_0 = arith.constant 0 : i32
    %c0_i32_1 = arith.constant 0 : i32
    %c0_i32_2 = arith.constant 0 : i32
    return %c0_i32, %c0_i32_0, %c0_i32_1 : i32, i32, i32
  }
  func.func @transform_6(%arg0: i32, %arg1: memref<2xi32, #tpu.memory_space<smem>>) -> (i32, i32, i32) {
    %c0_i32 = arith.constant 0 : i32
    %c0_i32_0 = arith.constant 0 : i32
    %c0_i32_1 = arith.constant 0 : i32
    %c0_i32_2 = arith.constant 0 : i32
    return %c0_i32, %c0_i32_0, %c0_i32_1 : i32, i32, i32
  }
  func.func @transform_7(%arg0: i32, %arg1: memref<2xi32, #tpu.memory_space<smem>>) -> (i32, i32, i32) {
    %c0_i32 = arith.constant 0 : i32
    %c0_i32_0 = arith.constant 0 : i32
    %c0_i32_1 = arith.constant 0 : i32
    %c0_i32_2 = arith.constant 0 : i32
    return %c0_i32, %c0_i32_0, %c0_i32_1 : i32, i32, i32
  }
  func.func @transform_8(%arg0: i32, %arg1: memref<2xi32, #tpu.memory_space<smem>>) -> (i32, i32, i32) {
    %c0_i32 = arith.constant 0 : i32
    %c0_i32_0 = arith.constant 0 : i32
    %c0_i32_1 = arith.constant 0 : i32
    %c0_i32_2 = arith.constant 0 : i32
    return %c0_i32, %c0_i32_0, %c0_i32_1 : i32, i32, i32
  }
  func.func @transform_9(%arg0: i32, %arg1: memref<2xi32, #tpu.memory_space<smem>>) -> (i32, i32, i32) {
    %c0_i32 = arith.constant 0 : i32
    %c0_i32_0 = arith.constant 0 : i32
    %c0_i32_1 = arith.constant 0 : i32
    %c0_i32_2 = arith.constant 0 : i32
    return %c0_i32, %c0_i32_0, %c0_i32_1 : i32, i32, i32
  }
  func.func @transform_10(%arg0: i32, %arg1: memref<2xi32, #tpu.memory_space<smem>>) -> (i32, i32) {
    %c0_i32 = arith.constant 0 : i32
    %c0_i32_0 = arith.constant 0 : i32
    %c0_i32_1 = arith.constant 0 : i32
    return %c0_i32, %c0_i32_0 : i32, i32
  }
  func.func @transform_11(%arg0: i32, %arg1: memref<2xi32, #tpu.memory_space<smem>>) -> (i32, i32) {
    %c0_i32 = arith.constant 0 : i32
    %c0_i32_0 = arith.constant 0 : i32
    %c0_i32_1 = arith.constant 0 : i32
    return %c0_i32, %c0_i32_0 : i32, i32
  }
  func.func @transform_12(%arg0: i32, %arg1: memref<2xi32, #tpu.memory_space<smem>>) -> (i32, i32) {
    %c0_i32 = arith.constant 0 : i32
    %c0_i32_0 = arith.constant 0 : i32
    %c0_i32_1 = arith.constant 0 : i32
    return %c0_i32, %c0_i32_0 : i32, i32
  }
  func.func @transform_13(%arg0: i32, %arg1: memref<2xi32, #tpu.memory_space<smem>>) -> (i32, i32, i32) {
    %c0_i32 = arith.constant 0 : i32
    %c0_i32_0 = arith.constant 0 : i32
    %c0_i32_1 = arith.constant 0 : i32
    return %arg0, %c0_i32, %c0_i32_0 : i32, i32, i32
  }
}

module attributes {stable_mosaic.version = 11 : i64} {
  func.func @_vision_tower_kernel(%arg0: i32, %arg1: memref<1x10x896xbf16, #tpu.memory_space<vmem>>, %arg2: memref<896x128xbf16, #tpu.memory_space<vmem>>, %arg3: memref<10x128xf32, #tpu.memory_space<vmem>>, %arg4: memref<10x10xf32, #tpu.memory_space<vmem>>, %arg5: memref<1x128xf32, #tpu.memory_space<vmem>>, %arg6: memref<1x128xf32, #tpu.memory_space<vmem>>, %arg7: memref<2x1x128xf32, #tpu.memory_space<vmem>>, %arg8: memref<2x1x128xf32, #tpu.memory_space<vmem>>, %arg9: memref<2x128x384xbf16, #tpu.memory_space<vmem>>, %arg10: memref<2x128x128xbf16, #tpu.memory_space<vmem>>, %arg11: memref<2x1x128xf32, #tpu.memory_space<vmem>>, %arg12: memref<2x1x128xf32, #tpu.memory_space<vmem>>, %arg13: memref<2x128x512xbf16, #tpu.memory_space<vmem>>, %arg14: memref<2x512x128xbf16, #tpu.memory_space<vmem>>, %arg15: memref<1x128xf32, #tpu.memory_space<vmem>>, %arg16: memref<1x128xf32, #tpu.memory_space<vmem>>, %arg17: memref<128x128xbf16, #tpu.memory_space<vmem>>, %arg18: memref<1x10x128xf32, #tpu.memory_space<vmem>>) attributes {dimension_semantics = [#tpu.dimension_semantics<parallel>], iteration_bounds = array<i64: 2>, scalar_prefetch = 0 : i64, scratch_operands = 0 : i64, tpu.core_type = #tpu.core_type<tc>, window_params = [{transform_indices = @transform_0, window_bounds = array<i64: 1, 10, 896>}, {pipeline_mode = #tpu.pipeline_mode<synchronous>, transform_indices = @transform_1, window_bounds = array<i64: 896, 128>}, {pipeline_mode = #tpu.pipeline_mode<synchronous>, transform_indices = @transform_2, window_bounds = array<i64: 10, 128>}, {pipeline_mode = #tpu.pipeline_mode<synchronous>, transform_indices = @transform_3, window_bounds = array<i64: 10, 10>}, {pipeline_mode = #tpu.pipeline_mode<synchronous>, transform_indices = @transform_4, window_bounds = array<i64: 1, 128>}, {pipeline_mode = #tpu.pipeline_mode<synchronous>, transform_indices = @transform_5, window_bounds = array<i64: 1, 128>}, {pipeline_mode = #tpu.pipeline_mode<synchronous>, transform_indices = @transform_6, window_bounds = array<i64: 2, 1, 128>}, {pipeline_mode = #tpu.pipeline_mode<synchronous>, transform_indices = @transform_7, window_bounds = array<i64: 2, 1, 128>}, {pipeline_mode = #tpu.pipeline_mode<synchronous>, transform_indices = @transform_8, window_bounds = array<i64: 2, 128, 384>}, {pipeline_mode = #tpu.pipeline_mode<synchronous>, transform_indices = @transform_9, window_bounds = array<i64: 2, 128, 128>}, {pipeline_mode = #tpu.pipeline_mode<synchronous>, transform_indices = @transform_10, window_bounds = array<i64: 2, 1, 128>}, {pipeline_mode = #tpu.pipeline_mode<synchronous>, transform_indices = @transform_11, window_bounds = array<i64: 2, 1, 128>}, {pipeline_mode = #tpu.pipeline_mode<synchronous>, transform_indices = @transform_12, window_bounds = array<i64: 2, 128, 512>}, {pipeline_mode = #tpu.pipeline_mode<synchronous>, transform_indices = @transform_13, window_bounds = array<i64: 2, 512, 128>}, {pipeline_mode = #tpu.pipeline_mode<synchronous>, transform_indices = @transform_14, window_bounds = array<i64: 1, 128>}, {pipeline_mode = #tpu.pipeline_mode<synchronous>, transform_indices = @transform_15, window_bounds = array<i64: 1, 128>}, {pipeline_mode = #tpu.pipeline_mode<synchronous>, transform_indices = @transform_16, window_bounds = array<i64: 128, 128>}, {transform_indices = @transform_17, window_bounds = array<i64: 1, 10, 128>}]} {
    %c0 = arith.constant 0 : index
    %c0_0 = arith.constant 0 : index
    %c0_1 = arith.constant 0 : index
    %0 = vector.load %arg1[%c0, %c0_0, %c0_1] : memref<1x10x896xbf16, #tpu.memory_space<vmem>>, vector<1x10x896xbf16>
    %1 = vector.shape_cast %0 : vector<1x10x896xbf16> to vector<10x896xbf16>
    %c0_2 = arith.constant 0 : index
    %c0_3 = arith.constant 0 : index
    %2 = vector.load %arg2[%c0_2, %c0_3] : memref<896x128xbf16, #tpu.memory_space<vmem>>, vector<896x128xbf16>
    %cst = arith.constant dense<0.000000e+00> : vector<10x128xf32>
    %3 = tpu.matmul %1, %2, %cst {dimension_numbers = #tpu.dot_dimension_numbers<[1], [0], [0], [1], [0, 0, 1, 1], [], []>} : vector<10x896xbf16>, vector<896x128xbf16>, vector<10x128xf32> -> vector<10x128xf32>
    %c0_4 = arith.constant 0 : index
    %c0_5 = arith.constant 0 : index
    %4 = vector.load %arg3[%c0_4, %c0_5] : memref<10x128xf32, #tpu.memory_space<vmem>>, vector<10x128xf32>
    %5 = arith.addf %3, %4 : vector<10x128xf32>
    %c0_6 = arith.constant 0 : index
    %c0_7 = arith.constant 0 : index
    %6 = vector.load %arg5[%c0_6, %c0_7] : memref<1x128xf32, #tpu.memory_space<vmem>>, vector<1x128xf32>
    %c0_8 = arith.constant 0 : index
    %c0_9 = arith.constant 0 : index
    %7 = vector.load %arg6[%c0_8, %c0_9] : memref<1x128xf32, #tpu.memory_space<vmem>>, vector<1x128xf32>
    %cst_10 = arith.constant dense<0.000000e+00> : vector<10xf32>
    %8 = vector.multi_reduction <add>, %5, %cst_10 [1] : vector<10x128xf32> to vector<10xf32>
    %9 = vector.shape_cast %8 : vector<10xf32> to vector<10x1xf32>
    %cst_11 = arith.constant 1.280000e+02 : f32
    %10 = vector.broadcast %cst_11 : f32 to vector<10x1xf32>
    %11 = arith.divf %9, %10 : vector<10x1xf32>
    %12 = vector.broadcast %11 : vector<10x1xf32> to vector<10x128xf32>
    %13 = arith.subf %5, %12 : vector<10x128xf32>
    %14 = arith.mulf %13, %13 : vector<10x128xf32>
    %cst_12 = arith.constant dense<0.000000e+00> : vector<10xf32>
    %15 = vector.multi_reduction <add>, %14, %cst_12 [1] : vector<10x128xf32> to vector<10xf32>
    %16 = vector.shape_cast %15 : vector<10xf32> to vector<10x1xf32>
    %cst_13 = arith.constant 1.280000e+02 : f32
    %17 = vector.broadcast %cst_13 : f32 to vector<10x1xf32>
    %18 = arith.divf %16, %17 : vector<10x1xf32>
    %19 = vector.broadcast %11 : vector<10x1xf32> to vector<10x128xf32>
    %20 = arith.subf %5, %19 : vector<10x128xf32>
    %cst_14 = arith.constant 9.99999974E-6 : f32
    %21 = vector.broadcast %cst_14 : f32 to vector<10x1xf32>
    %22 = arith.addf %18, %21 : vector<10x1xf32>
    %23 = math.rsqrt %22 : vector<10x1xf32>
    %24 = vector.broadcast %23 : vector<10x1xf32> to vector<10x128xf32>
    %25 = arith.mulf %20, %24 : vector<10x128xf32>
    %26 = vector.broadcast %6 : vector<1x128xf32> to vector<10x128xf32>
    %27 = arith.mulf %25, %26 : vector<10x128xf32>
    %28 = vector.broadcast %7 : vector<1x128xf32> to vector<10x128xf32>
    %29 = arith.addf %27, %28 : vector<10x128xf32>
    %c0_15 = arith.constant 0 : index
    %c0_16 = arith.constant 0 : index
    %30 = vector.load %arg4[%c0_15, %c0_16] : memref<10x10xf32, #tpu.memory_space<vmem>>, vector<10x10xf32>
    %c0_17 = arith.constant 0 : index
    %c0_18 = arith.constant 0 : index
    %c0_19 = arith.constant 0 : index
    %31 = vector.load %arg7[%c0_17, %c0_18, %c0_19] : memref<2x1x128xf32, #tpu.memory_space<vmem>>, vector<1x1x128xf32>
    %32 = vector.shape_cast %31 : vector<1x1x128xf32> to vector<1x128xf32>
    %c0_20 = arith.constant 0 : index
    %c0_21 = arith.constant 0 : index
    %c0_22 = arith.constant 0 : index
    %33 = vector.load %arg8[%c0_20, %c0_21, %c0_22] : memref<2x1x128xf32, #tpu.memory_space<vmem>>, vector<1x1x128xf32>
    %34 = vector.shape_cast %33 : vector<1x1x128xf32> to vector<1x128xf32>
    %cst_23 = arith.constant dense<0.000000e+00> : vector<10xf32>
    %35 = vector.multi_reduction <add>, %29, %cst_23 [1] : vector<10x128xf32> to vector<10xf32>
    %36 = vector.shape_cast %35 : vector<10xf32> to vector<10x1xf32>
    %cst_24 = arith.constant 1.280000e+02 : f32
    %37 = vector.broadcast %cst_24 : f32 to vector<10x1xf32>
    %38 = arith.divf %36, %37 : vector<10x1xf32>
    %39 = vector.broadcast %38 : vector<10x1xf32> to vector<10x128xf32>
    %40 = arith.subf %29, %39 : vector<10x128xf32>
    %41 = arith.mulf %40, %40 : vector<10x128xf32>
    %cst_25 = arith.constant dense<0.000000e+00> : vector<10xf32>
    %42 = vector.multi_reduction <add>, %41, %cst_25 [1] : vector<10x128xf32> to vector<10xf32>
    %43 = vector.shape_cast %42 : vector<10xf32> to vector<10x1xf32>
    %cst_26 = arith.constant 1.280000e+02 : f32
    %44 = vector.broadcast %cst_26 : f32 to vector<10x1xf32>
    %45 = arith.divf %43, %44 : vector<10x1xf32>
    %46 = vector.broadcast %38 : vector<10x1xf32> to vector<10x128xf32>
    %47 = arith.subf %29, %46 : vector<10x128xf32>
    %cst_27 = arith.constant 9.99999974E-6 : f32
    %48 = vector.broadcast %cst_27 : f32 to vector<10x1xf32>
    %49 = arith.addf %45, %48 : vector<10x1xf32>
    %50 = math.rsqrt %49 : vector<10x1xf32>
    %51 = vector.broadcast %50 : vector<10x1xf32> to vector<10x128xf32>
    %52 = arith.mulf %47, %51 : vector<10x128xf32>
    %53 = vector.broadcast %32 : vector<1x128xf32> to vector<10x128xf32>
    %54 = arith.mulf %52, %53 : vector<10x128xf32>
    %55 = vector.broadcast %34 : vector<1x128xf32> to vector<10x128xf32>
    %56 = arith.addf %54, %55 : vector<10x128xf32>
    %57 = arith.truncf %56 : vector<10x128xf32> to vector<10x128xbf16>
    %c0_28 = arith.constant 0 : index
    %c0_29 = arith.constant 0 : index
    %c0_30 = arith.constant 0 : index
    %58 = vector.load %arg9[%c0_28, %c0_29, %c0_30] : memref<2x128x384xbf16, #tpu.memory_space<vmem>>, vector<1x128x384xbf16>
    %59 = vector.shape_cast %58 : vector<1x128x384xbf16> to vector<128x384xbf16>
    %cst_31 = arith.constant dense<0.000000e+00> : vector<10x384xf32>
    %60 = tpu.matmul %57, %59, %cst_31 {dimension_numbers = #tpu.dot_dimension_numbers<[1], [0], [0], [1], [0, 0, 1, 1], [], []>} : vector<10x128xbf16>, vector<128x384xbf16>, vector<10x384xf32> -> vector<10x384xf32>
    %61 = vector.extract_strided_slice %60 {offsets = [0, 0], sizes = [10, 64], strides = [1, 1]} : vector<10x384xf32> to vector<10x64xf32>
    %62 = arith.truncf %61 : vector<10x64xf32> to vector<10x64xbf16>
    %63 = vector.extract_strided_slice %60 {offsets = [0, 128], sizes = [10, 64], strides = [1, 1]} : vector<10x384xf32> to vector<10x64xf32>
    %64 = arith.truncf %63 : vector<10x64xf32> to vector<10x64xbf16>
    %65 = vector.extract_strided_slice %60 {offsets = [0, 256], sizes = [10, 64], strides = [1, 1]} : vector<10x384xf32> to vector<10x64xf32>
    %66 = arith.truncf %65 : vector<10x64xf32> to vector<10x64xbf16>
    %cst_32 = arith.constant dense<0.000000e+00> : vector<10x10xf32>
    %67 = tpu.matmul %62, %64, %cst_32 {dimension_numbers = #tpu.dot_dimension_numbers<[1], [1], [0], [0], [0, 0, 1, 0], [], []>} : vector<10x64xbf16>, vector<10x64xbf16>, vector<10x10xf32> -> vector<10x10xf32>
    %cst_33 = arith.constant 1.250000e-01 : f32
    %68 = vector.broadcast %cst_33 : f32 to vector<10x10xf32>
    %69 = arith.mulf %67, %68 : vector<10x10xf32>
    %70 = arith.addf %69, %30 : vector<10x10xf32>
    %cst_34 = arith.constant dense<0xFF800000> : vector<10xf32>
    %71 = vector.multi_reduction <maximumf>, %70, %cst_34 [1] : vector<10x10xf32> to vector<10xf32>
    %72 = vector.shape_cast %71 : vector<10xf32> to vector<10x1xf32>
    %73 = vector.broadcast %72 : vector<10x1xf32> to vector<10x10xf32>
    %74 = arith.subf %70, %73 : vector<10x10xf32>
    %75 = math.exp %74 : vector<10x10xf32>
    %cst_35 = arith.constant dense<0.000000e+00> : vector<10xf32>
    %76 = vector.multi_reduction <add>, %75, %cst_35 [1] : vector<10x10xf32> to vector<10xf32>
    %77 = vector.shape_cast %76 : vector<10xf32> to vector<10x1xf32>
    %78 = tpu.reciprocal %77 {approx = true} : vector<10x1xf32> -> vector<10x1xf32>
    %79 = vector.broadcast %78 : vector<10x1xf32> to vector<10x10xf32>
    %80 = arith.mulf %75, %79 : vector<10x10xf32>
    %81 = arith.truncf %80 : vector<10x10xf32> to vector<10x10xbf16>
    %cst_36 = arith.constant dense<0.000000e+00> : vector<10x64xf32>
    %82 = tpu.matmul %81, %66, %cst_36 {dimension_numbers = #tpu.dot_dimension_numbers<[1], [0], [0], [1], [0, 0, 1, 1], [], []>} : vector<10x10xbf16>, vector<10x64xbf16>, vector<10x64xf32> -> vector<10x64xf32>
    %83 = vector.extract_strided_slice %60 {offsets = [0, 64], sizes = [10, 64], strides = [1, 1]} : vector<10x384xf32> to vector<10x64xf32>
    %84 = arith.truncf %83 : vector<10x64xf32> to vector<10x64xbf16>
    %85 = vector.extract_strided_slice %60 {offsets = [0, 192], sizes = [10, 64], strides = [1, 1]} : vector<10x384xf32> to vector<10x64xf32>
    %86 = arith.truncf %85 : vector<10x64xf32> to vector<10x64xbf16>
    %87 = vector.extract_strided_slice %60 {offsets = [0, 320], sizes = [10, 64], strides = [1, 1]} : vector<10x384xf32> to vector<10x64xf32>
    %88 = arith.truncf %87 : vector<10x64xf32> to vector<10x64xbf16>
    %cst_37 = arith.constant dense<0.000000e+00> : vector<10x10xf32>
    %89 = tpu.matmul %84, %86, %cst_37 {dimension_numbers = #tpu.dot_dimension_numbers<[1], [1], [0], [0], [0, 0, 1, 0], [], []>} : vector<10x64xbf16>, vector<10x64xbf16>, vector<10x10xf32> -> vector<10x10xf32>
    %cst_38 = arith.constant 1.250000e-01 : f32
    %90 = vector.broadcast %cst_38 : f32 to vector<10x10xf32>
    %91 = arith.mulf %89, %90 : vector<10x10xf32>
    %92 = arith.addf %91, %30 : vector<10x10xf32>
    %cst_39 = arith.constant dense<0xFF800000> : vector<10xf32>
    %93 = vector.multi_reduction <maximumf>, %92, %cst_39 [1] : vector<10x10xf32> to vector<10xf32>
    %94 = vector.shape_cast %93 : vector<10xf32> to vector<10x1xf32>
    %95 = vector.broadcast %94 : vector<10x1xf32> to vector<10x10xf32>
    %96 = arith.subf %92, %95 : vector<10x10xf32>
    %97 = math.exp %96 : vector<10x10xf32>
    %cst_40 = arith.constant dense<0.000000e+00> : vector<10xf32>
    %98 = vector.multi_reduction <add>, %97, %cst_40 [1] : vector<10x10xf32> to vector<10xf32>
    %99 = vector.shape_cast %98 : vector<10xf32> to vector<10x1xf32>
    %100 = tpu.reciprocal %99 {approx = true} : vector<10x1xf32> -> vector<10x1xf32>
    %101 = vector.broadcast %100 : vector<10x1xf32> to vector<10x10xf32>
    %102 = arith.mulf %97, %101 : vector<10x10xf32>
    %103 = arith.truncf %102 : vector<10x10xf32> to vector<10x10xbf16>
    %cst_41 = arith.constant dense<0.000000e+00> : vector<10x64xf32>
    %104 = tpu.matmul %103, %88, %cst_41 {dimension_numbers = #tpu.dot_dimension_numbers<[1], [0], [0], [1], [0, 0, 1, 1], [], []>} : vector<10x10xbf16>, vector<10x64xbf16>, vector<10x64xf32> -> vector<10x64xf32>
    %105 = tpu.concatenate %82, %104 in 1 : vector<10x64xf32>, vector<10x64xf32> -> vector<10x128xf32>
    %106 = arith.truncf %105 : vector<10x128xf32> to vector<10x128xbf16>
    %c0_42 = arith.constant 0 : index
    %c0_43 = arith.constant 0 : index
    %c0_44 = arith.constant 0 : index
    %107 = vector.load %arg10[%c0_42, %c0_43, %c0_44] : memref<2x128x128xbf16, #tpu.memory_space<vmem>>, vector<1x128x128xbf16>
    %108 = vector.shape_cast %107 : vector<1x128x128xbf16> to vector<128x128xbf16>
    %cst_45 = arith.constant dense<0.000000e+00> : vector<10x128xf32>
    %109 = tpu.matmul %106, %108, %cst_45 {dimension_numbers = #tpu.dot_dimension_numbers<[1], [0], [0], [1], [0, 0, 1, 1], [], []>} : vector<10x128xbf16>, vector<128x128xbf16>, vector<10x128xf32> -> vector<10x128xf32>
    %110 = arith.addf %29, %109 : vector<10x128xf32>
    %c0_46 = arith.constant 0 : index
    %c0_47 = arith.constant 0 : index
    %c0_48 = arith.constant 0 : index
    %111 = vector.load %arg11[%c0_46, %c0_47, %c0_48] : memref<2x1x128xf32, #tpu.memory_space<vmem>>, vector<1x1x128xf32>
    %112 = vector.shape_cast %111 : vector<1x1x128xf32> to vector<1x128xf32>
    %c0_49 = arith.constant 0 : index
    %c0_50 = arith.constant 0 : index
    %c0_51 = arith.constant 0 : index
    %113 = vector.load %arg12[%c0_49, %c0_50, %c0_51] : memref<2x1x128xf32, #tpu.memory_space<vmem>>, vector<1x1x128xf32>
    %114 = vector.shape_cast %113 : vector<1x1x128xf32> to vector<1x128xf32>
    %cst_52 = arith.constant dense<0.000000e+00> : vector<10xf32>
    %115 = vector.multi_reduction <add>, %110, %cst_52 [1] : vector<10x128xf32> to vector<10xf32>
    %116 = vector.shape_cast %115 : vector<10xf32> to vector<10x1xf32>
    %cst_53 = arith.constant 1.280000e+02 : f32
    %117 = vector.broadcast %cst_53 : f32 to vector<10x1xf32>
    %118 = arith.divf %116, %117 : vector<10x1xf32>
    %119 = vector.broadcast %118 : vector<10x1xf32> to vector<10x128xf32>
    %120 = arith.subf %110, %119 : vector<10x128xf32>
    %121 = arith.mulf %120, %120 : vector<10x128xf32>
    %cst_54 = arith.constant dense<0.000000e+00> : vector<10xf32>
    %122 = vector.multi_reduction <add>, %121, %cst_54 [1] : vector<10x128xf32> to vector<10xf32>
    %123 = vector.shape_cast %122 : vector<10xf32> to vector<10x1xf32>
    %cst_55 = arith.constant 1.280000e+02 : f32
    %124 = vector.broadcast %cst_55 : f32 to vector<10x1xf32>
    %125 = arith.divf %123, %124 : vector<10x1xf32>
    %126 = vector.broadcast %118 : vector<10x1xf32> to vector<10x128xf32>
    %127 = arith.subf %110, %126 : vector<10x128xf32>
    %cst_56 = arith.constant 9.99999974E-6 : f32
    %128 = vector.broadcast %cst_56 : f32 to vector<10x1xf32>
    %129 = arith.addf %125, %128 : vector<10x1xf32>
    %130 = math.rsqrt %129 : vector<10x1xf32>
    %131 = vector.broadcast %130 : vector<10x1xf32> to vector<10x128xf32>
    %132 = arith.mulf %127, %131 : vector<10x128xf32>
    %133 = vector.broadcast %112 : vector<1x128xf32> to vector<10x128xf32>
    %134 = arith.mulf %132, %133 : vector<10x128xf32>
    %135 = vector.broadcast %114 : vector<1x128xf32> to vector<10x128xf32>
    %136 = arith.addf %134, %135 : vector<10x128xf32>
    %137 = arith.truncf %136 : vector<10x128xf32> to vector<10x128xbf16>
    %c0_57 = arith.constant 0 : index
    %c0_58 = arith.constant 0 : index
    %c0_59 = arith.constant 0 : index
    %138 = vector.load %arg13[%c0_57, %c0_58, %c0_59] : memref<2x128x512xbf16, #tpu.memory_space<vmem>>, vector<1x128x512xbf16>
    %139 = vector.shape_cast %138 : vector<1x128x512xbf16> to vector<128x512xbf16>
    %cst_60 = arith.constant dense<0.000000e+00> : vector<10x512xf32>
    %140 = tpu.matmul %137, %139, %cst_60 {dimension_numbers = #tpu.dot_dimension_numbers<[1], [0], [0], [1], [0, 0, 1, 1], [], []>} : vector<10x128xbf16>, vector<128x512xbf16>, vector<10x512xf32> -> vector<10x512xf32>
    %cst_61 = arith.constant 1.702000e+00 : f32
    %141 = vector.broadcast %cst_61 : f32 to vector<10x512xf32>
    %142 = arith.mulf %141, %140 : vector<10x512xf32>
    %143 = arith.negf %142 : vector<10x512xf32>
    %144 = math.exp %143 : vector<10x512xf32>
    %cst_62 = arith.constant 1.000000e+00 : f32
    %145 = vector.broadcast %cst_62 : f32 to vector<10x512xf32>
    %146 = arith.addf %145, %144 : vector<10x512xf32>
    %147 = arith.divf %145, %146 : vector<10x512xf32>
    %148 = arith.mulf %140, %147 : vector<10x512xf32>
    %149 = arith.truncf %148 : vector<10x512xf32> to vector<10x512xbf16>
    %c0_63 = arith.constant 0 : index
    %c0_64 = arith.constant 0 : index
    %c0_65 = arith.constant 0 : index
    %150 = vector.load %arg14[%c0_63, %c0_64, %c0_65] : memref<2x512x128xbf16, #tpu.memory_space<vmem>>, vector<1x512x128xbf16>
    %151 = vector.shape_cast %150 : vector<1x512x128xbf16> to vector<512x128xbf16>
    %cst_66 = arith.constant dense<0.000000e+00> : vector<10x128xf32>
    %152 = tpu.matmul %149, %151, %cst_66 {dimension_numbers = #tpu.dot_dimension_numbers<[1], [0], [0], [1], [0, 0, 1, 1], [], []>} : vector<10x512xbf16>, vector<512x128xbf16>, vector<10x128xf32> -> vector<10x128xf32>
    %153 = arith.addf %110, %152 : vector<10x128xf32>
    %c1 = arith.constant 1 : index
    %c0_67 = arith.constant 0 : index
    %c0_68 = arith.constant 0 : index
    %154 = vector.load %arg7[%c1, %c0_67, %c0_68] : memref<2x1x128xf32, #tpu.memory_space<vmem>>, vector<1x1x128xf32>
    %155 = vector.shape_cast %154 : vector<1x1x128xf32> to vector<1x128xf32>
    %c1_69 = arith.constant 1 : index
    %c0_70 = arith.constant 0 : index
    %c0_71 = arith.constant 0 : index
    %156 = vector.load %arg8[%c1_69, %c0_70, %c0_71] : memref<2x1x128xf32, #tpu.memory_space<vmem>>, vector<1x1x128xf32>
    %157 = vector.shape_cast %156 : vector<1x1x128xf32> to vector<1x128xf32>
    %cst_72 = arith.constant dense<0.000000e+00> : vector<10xf32>
    %158 = vector.multi_reduction <add>, %153, %cst_72 [1] : vector<10x128xf32> to vector<10xf32>
    %159 = vector.shape_cast %158 : vector<10xf32> to vector<10x1xf32>
    %cst_73 = arith.constant 1.280000e+02 : f32
    %160 = vector.broadcast %cst_73 : f32 to vector<10x1xf32>
    %161 = arith.divf %159, %160 : vector<10x1xf32>
    %162 = vector.broadcast %161 : vector<10x1xf32> to vector<10x128xf32>
    %163 = arith.subf %153, %162 : vector<10x128xf32>
    %164 = arith.mulf %163, %163 : vector<10x128xf32>
    %cst_74 = arith.constant dense<0.000000e+00> : vector<10xf32>
    %165 = vector.multi_reduction <add>, %164, %cst_74 [1] : vector<10x128xf32> to vector<10xf32>
    %166 = vector.shape_cast %165 : vector<10xf32> to vector<10x1xf32>
    %cst_75 = arith.constant 1.280000e+02 : f32
    %167 = vector.broadcast %cst_75 : f32 to vector<10x1xf32>
    %168 = arith.divf %166, %167 : vector<10x1xf32>
    %169 = vector.broadcast %161 : vector<10x1xf32> to vector<10x128xf32>
    %170 = arith.subf %153, %169 : vector<10x128xf32>
    %cst_76 = arith.constant 9.99999974E-6 : f32
    %171 = vector.broadcast %cst_76 : f32 to vector<10x1xf32>
    %172 = arith.addf %168, %171 : vector<10x1xf32>
    %173 = math.rsqrt %172 : vector<10x1xf32>
    %174 = vector.broadcast %173 : vector<10x1xf32> to vector<10x128xf32>
    %175 = arith.mulf %170, %174 : vector<10x128xf32>
    %176 = vector.broadcast %155 : vector<1x128xf32> to vector<10x128xf32>
    %177 = arith.mulf %175, %176 : vector<10x128xf32>
    %178 = vector.broadcast %157 : vector<1x128xf32> to vector<10x128xf32>
    %179 = arith.addf %177, %178 : vector<10x128xf32>
    %180 = arith.truncf %179 : vector<10x128xf32> to vector<10x128xbf16>
    %c1_77 = arith.constant 1 : index
    %c0_78 = arith.constant 0 : index
    %c0_79 = arith.constant 0 : index
    %181 = vector.load %arg9[%c1_77, %c0_78, %c0_79] : memref<2x128x384xbf16, #tpu.memory_space<vmem>>, vector<1x128x384xbf16>
    %182 = vector.shape_cast %181 : vector<1x128x384xbf16> to vector<128x384xbf16>
    %cst_80 = arith.constant dense<0.000000e+00> : vector<10x384xf32>
    %183 = tpu.matmul %180, %182, %cst_80 {dimension_numbers = #tpu.dot_dimension_numbers<[1], [0], [0], [1], [0, 0, 1, 1], [], []>} : vector<10x128xbf16>, vector<128x384xbf16>, vector<10x384xf32> -> vector<10x384xf32>
    %184 = vector.extract_strided_slice %183 {offsets = [0, 0], sizes = [10, 64], strides = [1, 1]} : vector<10x384xf32> to vector<10x64xf32>
    %185 = arith.truncf %184 : vector<10x64xf32> to vector<10x64xbf16>
    %186 = vector.extract_strided_slice %183 {offsets = [0, 128], sizes = [10, 64], strides = [1, 1]} : vector<10x384xf32> to vector<10x64xf32>
    %187 = arith.truncf %186 : vector<10x64xf32> to vector<10x64xbf16>
    %188 = vector.extract_strided_slice %183 {offsets = [0, 256], sizes = [10, 64], strides = [1, 1]} : vector<10x384xf32> to vector<10x64xf32>
    %189 = arith.truncf %188 : vector<10x64xf32> to vector<10x64xbf16>
    %cst_81 = arith.constant dense<0.000000e+00> : vector<10x10xf32>
    %190 = tpu.matmul %185, %187, %cst_81 {dimension_numbers = #tpu.dot_dimension_numbers<[1], [1], [0], [0], [0, 0, 1, 0], [], []>} : vector<10x64xbf16>, vector<10x64xbf16>, vector<10x10xf32> -> vector<10x10xf32>
    %cst_82 = arith.constant 1.250000e-01 : f32
    %191 = vector.broadcast %cst_82 : f32 to vector<10x10xf32>
    %192 = arith.mulf %190, %191 : vector<10x10xf32>
    %193 = arith.addf %192, %30 : vector<10x10xf32>
    %cst_83 = arith.constant dense<0xFF800000> : vector<10xf32>
    %194 = vector.multi_reduction <maximumf>, %193, %cst_83 [1] : vector<10x10xf32> to vector<10xf32>
    %195 = vector.shape_cast %194 : vector<10xf32> to vector<10x1xf32>
    %196 = vector.broadcast %195 : vector<10x1xf32> to vector<10x10xf32>
    %197 = arith.subf %193, %196 : vector<10x10xf32>
    %198 = math.exp %197 : vector<10x10xf32>
    %cst_84 = arith.constant dense<0.000000e+00> : vector<10xf32>
    %199 = vector.multi_reduction <add>, %198, %cst_84 [1] : vector<10x10xf32> to vector<10xf32>
    %200 = vector.shape_cast %199 : vector<10xf32> to vector<10x1xf32>
    %201 = tpu.reciprocal %200 {approx = true} : vector<10x1xf32> -> vector<10x1xf32>
    %202 = vector.broadcast %201 : vector<10x1xf32> to vector<10x10xf32>
    %203 = arith.mulf %198, %202 : vector<10x10xf32>
    %204 = arith.truncf %203 : vector<10x10xf32> to vector<10x10xbf16>
    %cst_85 = arith.constant dense<0.000000e+00> : vector<10x64xf32>
    %205 = tpu.matmul %204, %189, %cst_85 {dimension_numbers = #tpu.dot_dimension_numbers<[1], [0], [0], [1], [0, 0, 1, 1], [], []>} : vector<10x10xbf16>, vector<10x64xbf16>, vector<10x64xf32> -> vector<10x64xf32>
    %206 = vector.extract_strided_slice %183 {offsets = [0, 64], sizes = [10, 64], strides = [1, 1]} : vector<10x384xf32> to vector<10x64xf32>
    %207 = arith.truncf %206 : vector<10x64xf32> to vector<10x64xbf16>
    %208 = vector.extract_strided_slice %183 {offsets = [0, 192], sizes = [10, 64], strides = [1, 1]} : vector<10x384xf32> to vector<10x64xf32>
    %209 = arith.truncf %208 : vector<10x64xf32> to vector<10x64xbf16>
    %210 = vector.extract_strided_slice %183 {offsets = [0, 320], sizes = [10, 64], strides = [1, 1]} : vector<10x384xf32> to vector<10x64xf32>
    %211 = arith.truncf %210 : vector<10x64xf32> to vector<10x64xbf16>
    %cst_86 = arith.constant dense<0.000000e+00> : vector<10x10xf32>
    %212 = tpu.matmul %207, %209, %cst_86 {dimension_numbers = #tpu.dot_dimension_numbers<[1], [1], [0], [0], [0, 0, 1, 0], [], []>} : vector<10x64xbf16>, vector<10x64xbf16>, vector<10x10xf32> -> vector<10x10xf32>
    %cst_87 = arith.constant 1.250000e-01 : f32
    %213 = vector.broadcast %cst_87 : f32 to vector<10x10xf32>
    %214 = arith.mulf %212, %213 : vector<10x10xf32>
    %215 = arith.addf %214, %30 : vector<10x10xf32>
    %cst_88 = arith.constant dense<0xFF800000> : vector<10xf32>
    %216 = vector.multi_reduction <maximumf>, %215, %cst_88 [1] : vector<10x10xf32> to vector<10xf32>
    %217 = vector.shape_cast %216 : vector<10xf32> to vector<10x1xf32>
    %218 = vector.broadcast %217 : vector<10x1xf32> to vector<10x10xf32>
    %219 = arith.subf %215, %218 : vector<10x10xf32>
    %220 = math.exp %219 : vector<10x10xf32>
    %cst_89 = arith.constant dense<0.000000e+00> : vector<10xf32>
    %221 = vector.multi_reduction <add>, %220, %cst_89 [1] : vector<10x10xf32> to vector<10xf32>
    %222 = vector.shape_cast %221 : vector<10xf32> to vector<10x1xf32>
    %223 = tpu.reciprocal %222 {approx = true} : vector<10x1xf32> -> vector<10x1xf32>
    %224 = vector.broadcast %223 : vector<10x1xf32> to vector<10x10xf32>
    %225 = arith.mulf %220, %224 : vector<10x10xf32>
    %226 = arith.truncf %225 : vector<10x10xf32> to vector<10x10xbf16>
    %cst_90 = arith.constant dense<0.000000e+00> : vector<10x64xf32>
    %227 = tpu.matmul %226, %211, %cst_90 {dimension_numbers = #tpu.dot_dimension_numbers<[1], [0], [0], [1], [0, 0, 1, 1], [], []>} : vector<10x10xbf16>, vector<10x64xbf16>, vector<10x64xf32> -> vector<10x64xf32>
    %228 = tpu.concatenate %205, %227 in 1 : vector<10x64xf32>, vector<10x64xf32> -> vector<10x128xf32>
    %229 = arith.truncf %228 : vector<10x128xf32> to vector<10x128xbf16>
    %c1_91 = arith.constant 1 : index
    %c0_92 = arith.constant 0 : index
    %c0_93 = arith.constant 0 : index
    %230 = vector.load %arg10[%c1_91, %c0_92, %c0_93] : memref<2x128x128xbf16, #tpu.memory_space<vmem>>, vector<1x128x128xbf16>
    %231 = vector.shape_cast %230 : vector<1x128x128xbf16> to vector<128x128xbf16>
    %cst_94 = arith.constant dense<0.000000e+00> : vector<10x128xf32>
    %232 = tpu.matmul %229, %231, %cst_94 {dimension_numbers = #tpu.dot_dimension_numbers<[1], [0], [0], [1], [0, 0, 1, 1], [], []>} : vector<10x128xbf16>, vector<128x128xbf16>, vector<10x128xf32> -> vector<10x128xf32>
    %233 = arith.addf %153, %232 : vector<10x128xf32>
    %c1_95 = arith.constant 1 : index
    %c0_96 = arith.constant 0 : index
    %c0_97 = arith.constant 0 : index
    %234 = vector.load %arg11[%c1_95, %c0_96, %c0_97] : memref<2x1x128xf32, #tpu.memory_space<vmem>>, vector<1x1x128xf32>
    %235 = vector.shape_cast %234 : vector<1x1x128xf32> to vector<1x128xf32>
    %c1_98 = arith.constant 1 : index
    %c0_99 = arith.constant 0 : index
    %c0_100 = arith.constant 0 : index
    %236 = vector.load %arg12[%c1_98, %c0_99, %c0_100] : memref<2x1x128xf32, #tpu.memory_space<vmem>>, vector<1x1x128xf32>
    %237 = vector.shape_cast %236 : vector<1x1x128xf32> to vector<1x128xf32>
    %cst_101 = arith.constant dense<0.000000e+00> : vector<10xf32>
    %238 = vector.multi_reduction <add>, %233, %cst_101 [1] : vector<10x128xf32> to vector<10xf32>
    %239 = vector.shape_cast %238 : vector<10xf32> to vector<10x1xf32>
    %cst_102 = arith.constant 1.280000e+02 : f32
    %240 = vector.broadcast %cst_102 : f32 to vector<10x1xf32>
    %241 = arith.divf %239, %240 : vector<10x1xf32>
    %242 = vector.broadcast %241 : vector<10x1xf32> to vector<10x128xf32>
    %243 = arith.subf %233, %242 : vector<10x128xf32>
    %244 = arith.mulf %243, %243 : vector<10x128xf32>
    %cst_103 = arith.constant dense<0.000000e+00> : vector<10xf32>
    %245 = vector.multi_reduction <add>, %244, %cst_103 [1] : vector<10x128xf32> to vector<10xf32>
    %246 = vector.shape_cast %245 : vector<10xf32> to vector<10x1xf32>
    %cst_104 = arith.constant 1.280000e+02 : f32
    %247 = vector.broadcast %cst_104 : f32 to vector<10x1xf32>
    %248 = arith.divf %246, %247 : vector<10x1xf32>
    %249 = vector.broadcast %241 : vector<10x1xf32> to vector<10x128xf32>
    %250 = arith.subf %233, %249 : vector<10x128xf32>
    %cst_105 = arith.constant 9.99999974E-6 : f32
    %251 = vector.broadcast %cst_105 : f32 to vector<10x1xf32>
    %252 = arith.addf %248, %251 : vector<10x1xf32>
    %253 = math.rsqrt %252 : vector<10x1xf32>
    %254 = vector.broadcast %253 : vector<10x1xf32> to vector<10x128xf32>
    %255 = arith.mulf %250, %254 : vector<10x128xf32>
    %256 = vector.broadcast %235 : vector<1x128xf32> to vector<10x128xf32>
    %257 = arith.mulf %255, %256 : vector<10x128xf32>
    %258 = vector.broadcast %237 : vector<1x128xf32> to vector<10x128xf32>
    %259 = arith.addf %257, %258 : vector<10x128xf32>
    %260 = arith.truncf %259 : vector<10x128xf32> to vector<10x128xbf16>
    %c1_106 = arith.constant 1 : index
    %c0_107 = arith.constant 0 : index
    %c0_108 = arith.constant 0 : index
    %261 = vector.load %arg13[%c1_106, %c0_107, %c0_108] : memref<2x128x512xbf16, #tpu.memory_space<vmem>>, vector<1x128x512xbf16>
    %262 = vector.shape_cast %261 : vector<1x128x512xbf16> to vector<128x512xbf16>
    %cst_109 = arith.constant dense<0.000000e+00> : vector<10x512xf32>
    %263 = tpu.matmul %260, %262, %cst_109 {dimension_numbers = #tpu.dot_dimension_numbers<[1], [0], [0], [1], [0, 0, 1, 1], [], []>} : vector<10x128xbf16>, vector<128x512xbf16>, vector<10x512xf32> -> vector<10x512xf32>
    %cst_110 = arith.constant 1.702000e+00 : f32
    %264 = vector.broadcast %cst_110 : f32 to vector<10x512xf32>
    %265 = arith.mulf %264, %263 : vector<10x512xf32>
    %266 = arith.negf %265 : vector<10x512xf32>
    %267 = math.exp %266 : vector<10x512xf32>
    %cst_111 = arith.constant 1.000000e+00 : f32
    %268 = vector.broadcast %cst_111 : f32 to vector<10x512xf32>
    %269 = arith.addf %268, %267 : vector<10x512xf32>
    %270 = arith.divf %268, %269 : vector<10x512xf32>
    %271 = arith.mulf %263, %270 : vector<10x512xf32>
    %272 = arith.truncf %271 : vector<10x512xf32> to vector<10x512xbf16>
    %c1_112 = arith.constant 1 : index
    %c0_113 = arith.constant 0 : index
    %c0_114 = arith.constant 0 : index
    %273 = vector.load %arg14[%c1_112, %c0_113, %c0_114] : memref<2x512x128xbf16, #tpu.memory_space<vmem>>, vector<1x512x128xbf16>
    %274 = vector.shape_cast %273 : vector<1x512x128xbf16> to vector<512x128xbf16>
    %cst_115 = arith.constant dense<0.000000e+00> : vector<10x128xf32>
    %275 = tpu.matmul %272, %274, %cst_115 {dimension_numbers = #tpu.dot_dimension_numbers<[1], [0], [0], [1], [0, 0, 1, 1], [], []>} : vector<10x512xbf16>, vector<512x128xbf16>, vector<10x128xf32> -> vector<10x128xf32>
    %276 = arith.addf %233, %275 : vector<10x128xf32>
    %c0_116 = arith.constant 0 : index
    %c0_117 = arith.constant 0 : index
    %277 = vector.load %arg15[%c0_116, %c0_117] : memref<1x128xf32, #tpu.memory_space<vmem>>, vector<1x128xf32>
    %c0_118 = arith.constant 0 : index
    %c0_119 = arith.constant 0 : index
    %278 = vector.load %arg16[%c0_118, %c0_119] : memref<1x128xf32, #tpu.memory_space<vmem>>, vector<1x128xf32>
    %cst_120 = arith.constant dense<0.000000e+00> : vector<10xf32>
    %279 = vector.multi_reduction <add>, %276, %cst_120 [1] : vector<10x128xf32> to vector<10xf32>
    %280 = vector.shape_cast %279 : vector<10xf32> to vector<10x1xf32>
    %cst_121 = arith.constant 1.280000e+02 : f32
    %281 = vector.broadcast %cst_121 : f32 to vector<10x1xf32>
    %282 = arith.divf %280, %281 : vector<10x1xf32>
    %283 = vector.broadcast %282 : vector<10x1xf32> to vector<10x128xf32>
    %284 = arith.subf %276, %283 : vector<10x128xf32>
    %285 = arith.mulf %284, %284 : vector<10x128xf32>
    %cst_122 = arith.constant dense<0.000000e+00> : vector<10xf32>
    %286 = vector.multi_reduction <add>, %285, %cst_122 [1] : vector<10x128xf32> to vector<10xf32>
    %287 = vector.shape_cast %286 : vector<10xf32> to vector<10x1xf32>
    %cst_123 = arith.constant 1.280000e+02 : f32
    %288 = vector.broadcast %cst_123 : f32 to vector<10x1xf32>
    %289 = arith.divf %287, %288 : vector<10x1xf32>
    %290 = vector.broadcast %282 : vector<10x1xf32> to vector<10x128xf32>
    %291 = arith.subf %276, %290 : vector<10x128xf32>
    %cst_124 = arith.constant 9.99999974E-6 : f32
    %292 = vector.broadcast %cst_124 : f32 to vector<10x1xf32>
    %293 = arith.addf %289, %292 : vector<10x1xf32>
    %294 = math.rsqrt %293 : vector<10x1xf32>
    %295 = vector.broadcast %294 : vector<10x1xf32> to vector<10x128xf32>
    %296 = arith.mulf %291, %295 : vector<10x128xf32>
    %297 = vector.broadcast %277 : vector<1x128xf32> to vector<10x128xf32>
    %298 = arith.mulf %296, %297 : vector<10x128xf32>
    %299 = vector.broadcast %278 : vector<1x128xf32> to vector<10x128xf32>
    %300 = arith.addf %298, %299 : vector<10x128xf32>
    %301 = arith.truncf %300 : vector<10x128xf32> to vector<10x128xbf16>
    %c0_125 = arith.constant 0 : index
    %c0_126 = arith.constant 0 : index
    %302 = vector.load %arg17[%c0_125, %c0_126] : memref<128x128xbf16, #tpu.memory_space<vmem>>, vector<128x128xbf16>
    %cst_127 = arith.constant dense<0.000000e+00> : vector<10x128xf32>
    %303 = tpu.matmul %301, %302, %cst_127 {dimension_numbers = #tpu.dot_dimension_numbers<[1], [0], [0], [1], [0, 0, 1, 1], [], []>} : vector<10x128xbf16>, vector<128x128xbf16>, vector<10x128xf32> -> vector<10x128xf32>
    %c0_128 = arith.constant 0 : index
    %c0_129 = arith.constant 0 : index
    %c0_130 = arith.constant 0 : index
    %304 = vector.load %arg18[%c0_128, %c0_129, %c0_130] : memref<1x10x128xf32, #tpu.memory_space<vmem>>, vector<1x10x128xf32>
    %305 = vector.shape_cast %304 : vector<1x10x128xf32> to vector<10x128xf32>
    %306 = vector.shape_cast %303 : vector<10x128xf32> to vector<1x10x128xf32>
    tpu.vector_store %arg18[%c0_128, %c0_129, %c0_130], %306 {strides = array<i32>} : memref<1x10x128xf32, #tpu.memory_space<vmem>>, vector<1x10x128xf32>,
    return
  }
  func.func @transform_0(%arg0: i32) -> (i32, i32, i32) {
    %c0_i32 = arith.constant 0 : i32
    %c0_i32_0 = arith.constant 0 : i32
    %c0_i32_1 = arith.constant 0 : i32
    return %arg0, %c0_i32, %c0_i32_0 : i32, i32, i32
  }
  func.func @transform_1(%arg0: i32) -> (i32, i32) {
    %c0_i32 = arith.constant 0 : i32
    %c0_i32_0 = arith.constant 0 : i32
    %c0_i32_1 = arith.constant 0 : i32
    return %c0_i32, %c0_i32_0 : i32, i32
  }
  func.func @transform_2(%arg0: i32) -> (i32, i32) {
    %c0_i32 = arith.constant 0 : i32
    %c0_i32_0 = arith.constant 0 : i32
    %c0_i32_1 = arith.constant 0 : i32
    return %c0_i32, %c0_i32_0 : i32, i32
  }
  func.func @transform_3(%arg0: i32) -> (i32, i32) {
    %c0_i32 = arith.constant 0 : i32
    %c0_i32_0 = arith.constant 0 : i32
    %c0_i32_1 = arith.constant 0 : i32
    return %c0_i32, %c0_i32_0 : i32, i32
  }
  func.func @transform_4(%arg0: i32) -> (i32, i32) {
    %c0_i32 = arith.constant 0 : i32
    %c0_i32_0 = arith.constant 0 : i32
    %c0_i32_1 = arith.constant 0 : i32
    return %c0_i32, %c0_i32_0 : i32, i32
  }
  func.func @transform_5(%arg0: i32) -> (i32, i32) {
    %c0_i32 = arith.constant 0 : i32
    %c0_i32_0 = arith.constant 0 : i32
    %c0_i32_1 = arith.constant 0 : i32
    return %c0_i32, %c0_i32_0 : i32, i32
  }
  func.func @transform_6(%arg0: i32) -> (i32, i32, i32) {
    %c0_i32 = arith.constant 0 : i32
    %c0_i32_0 = arith.constant 0 : i32
    %c0_i32_1 = arith.constant 0 : i32
    %c0_i32_2 = arith.constant 0 : i32
    return %c0_i32, %c0_i32_0, %c0_i32_1 : i32, i32, i32
  }
  func.func @transform_7(%arg0: i32) -> (i32, i32, i32) {
    %c0_i32 = arith.constant 0 : i32
    %c0_i32_0 = arith.constant 0 : i32
    %c0_i32_1 = arith.constant 0 : i32
    %c0_i32_2 = arith.constant 0 : i32
    return %c0_i32, %c0_i32_0, %c0_i32_1 : i32, i32, i32
  }
  func.func @transform_8(%arg0: i32) -> (i32, i32, i32) {
    %c0_i32 = arith.constant 0 : i32
    %c0_i32_0 = arith.constant 0 : i32
    %c0_i32_1 = arith.constant 0 : i32
    %c0_i32_2 = arith.constant 0 : i32
    return %c0_i32, %c0_i32_0, %c0_i32_1 : i32, i32, i32
  }
  func.func @transform_9(%arg0: i32) -> (i32, i32, i32) {
    %c0_i32 = arith.constant 0 : i32
    %c0_i32_0 = arith.constant 0 : i32
    %c0_i32_1 = arith.constant 0 : i32
    %c0_i32_2 = arith.constant 0 : i32
    return %c0_i32, %c0_i32_0, %c0_i32_1 : i32, i32, i32
  }
  func.func @transform_10(%arg0: i32) -> (i32, i32, i32) {
    %c0_i32 = arith.constant 0 : i32
    %c0_i32_0 = arith.constant 0 : i32
    %c0_i32_1 = arith.constant 0 : i32
    %c0_i32_2 = arith.constant 0 : i32
    return %c0_i32, %c0_i32_0, %c0_i32_1 : i32, i32, i32
  }
  func.func @transform_11(%arg0: i32) -> (i32, i32, i32) {
    %c0_i32 = arith.constant 0 : i32
    %c0_i32_0 = arith.constant 0 : i32
    %c0_i32_1 = arith.constant 0 : i32
    %c0_i32_2 = arith.constant 0 : i32
    return %c0_i32, %c0_i32_0, %c0_i32_1 : i32, i32, i32
  }
  func.func @transform_12(%arg0: i32) -> (i32, i32, i32) {
    %c0_i32 = arith.constant 0 : i32
    %c0_i32_0 = arith.constant 0 : i32
    %c0_i32_1 = arith.constant 0 : i32
    %c0_i32_2 = arith.constant 0 : i32
    return %c0_i32, %c0_i32_0, %c0_i32_1 : i32, i32, i32
  }
  func.func @transform_13(%arg0: i32) -> (i32, i32, i32) {
    %c0_i32 = arith.constant 0 : i32
    %c0_i32_0 = arith.constant 0 : i32
    %c0_i32_1 = arith.constant 0 : i32
    %c0_i32_2 = arith.constant 0 : i32
    return %c0_i32, %c0_i32_0, %c0_i32_1 : i32, i32, i32
  }
  func.func @transform_14(%arg0: i32) -> (i32, i32) {
    %c0_i32 = arith.constant 0 : i32
    %c0_i32_0 = arith.constant 0 : i32
    %c0_i32_1 = arith.constant 0 : i32
    return %c0_i32, %c0_i32_0 : i32, i32
  }
  func.func @transform_15(%arg0: i32) -> (i32, i32) {
    %c0_i32 = arith.constant 0 : i32
    %c0_i32_0 = arith.constant 0 : i32
    %c0_i32_1 = arith.constant 0 : i32
    return %c0_i32, %c0_i32_0 : i32, i32
  }
  func.func @transform_16(%arg0: i32) -> (i32, i32) {
    %c0_i32 = arith.constant 0 : i32
    %c0_i32_0 = arith.constant 0 : i32
    %c0_i32_1 = arith.constant 0 : i32
    return %c0_i32, %c0_i32_0 : i32, i32
  }
  func.func @transform_17(%arg0: i32) -> (i32, i32, i32) {
    %c0_i32 = arith.constant 0 : i32
    %c0_i32_0 = arith.constant 0 : i32
    %c0_i32_1 = arith.constant 0 : i32
    return %arg0, %c0_i32, %c0_i32_0 : i32, i32, i32
  }
}

</mosaic_0001>

<llo_original>
// kernel: tile.9
$region0: #{tile.9}
  %s0 = inlined_call_operand.vmem [shape: f32[2,5,128], index: 0, kind: input, shape index: {}]
  %s1 = inlined_call_operand.vmem [shape: f32[10,128], index: 1, kind: output, shape index: {}]
  %v2 = vld [vmem:[%s0] sm:$0x1f]
  %3 = vst [vmem:[%s1] sm:$0x1f] %v2
  %s4 = scalar_lea.vmem %s0, 8
  %v5 = vld [vmem:[%s4] sm:$0x1f]
  %s6 = scalar_lea.vmem %s1, 5
  %7 = vst [vmem:[%s6] sm:$0x1f] %v5

// kernel: _lambda_.3
$region0: #{_lambda_.3}
  #allocation0 [shape = 'u32[]', space=smem, size = 0x4, offset = 0x4, fixed_abs, tag = 'smem constant byte address 0x4 - core index']
  #allocation1 [shape = 'u32[144,128]{1,0:T(1,128)}', space=vmem, size = 0x12000, scoped, tag = 'internal scratch']
  #allocation2 [shape = 's32[1]{0}', space=sflag, size = 0x4, scoped, tag = 'scoped memory for _lambda_.3']
  #allocation3 [shape = 'u8[512]{0}', space=smem, size = 0x200, scoped, tag = 'prefetched SMEM operand 0']
  %s0 = inlined_call_operand.vmem [shape: s32[2], index: 0, kind: input, shape index: {}]
  %s1 = inlined_call_operand.vmem [shape: bf16[2,8,128], index: 1, kind: input, shape index: {}]
  %s2 = inlined_call_operand.vmem [shape: f32[8,8], index: 2, kind: input, shape index: {}]
  %s3 = inlined_call_operand.vmem [shape: f32[2,1,128], index: 3, kind: input, shape index: {}]
  %s4 = inlined_call_operand.vmem [shape: f32[2,1,128], index: 4, kind: input, shape index: {}]
  %s5 = inlined_call_operand.hbm [shape: bf16[2,128,384], index: 5, kind: input, shape index: {}]
  %s6 = inlined_call_operand.vmem [shape: bf16[2,128,128], index: 6, kind: input, shape index: {}]
  %s7 = inlined_call_operand.vmem [shape: f32[2,1,128], index: 7, kind: input, shape index: {}]
  %s8 = inlined_call_operand.vmem [shape: f32[2,1,128], index: 8, kind: input, shape index: {}]
  %s9 = inlined_call_operand.hbm [shape: bf16[2,128,512], index: 9, kind: input, shape index: {}]
  %s10 = inlined_call_operand.hbm [shape: bf16[2,512,128], index: 10, kind: input, shape index: {}]
  %s11 = inlined_call_operand.vmem [shape: f32[1,128], index: 11, kind: input, shape index: {}]
  %s12 = inlined_call_operand.vmem [shape: f32[1,128], index: 12, kind: input, shape index: {}]
  %s13 = inlined_call_operand.vmem [shape: bf16[128,128], index: 13, kind: input, shape index: {}]
  %s14 = inlined_call_operand.vmem [shape: f32[2,1,128], index: 14, kind: output, shape index: {}]
  %s15 = sld [smem:[#allocation0]]
  $region97: #{_lambda_.3} parent=0
    _
  %s17 = ssub.s32 1, %s15
  %s18 = scalar_select 0, %s17, %s15
  %s19 = sshll.u32 %s0, 4
  %s20 = int_to_ptr.vmem [resolvable:$true] %s19
  %22 = dma.vmem_to_smem %s20, 16, [#allocation3], [#allocation2]
  %23 = dma.done [#allocation2], 16
  %24 = sfence
  $region1: #{_lambda_.3} parent=0
    #allocation4 [shape = 'u8[196608]{0}', space=vmem, size = 0x30000, scoped, tag = 'input window, operand 5, single buffered']
    #allocation5 [shape = 's32[2]{0}', space=sflag, size = 0x8, scoped, tag = 'scoped memory for _lambda_.3']
    #allocation6 [shape = 'u8[262144]{0}', space=vmem, size = 0x40000, scoped, tag = 'input window, operand 9, single buffered']
    #allocation7 [shape = 's32[1]{0}', space=sflag, size = 0x4, scoped, tag = 'scoped memory for _lambda_.3']
    #allocation8 [shape = 'u8[262144]{0}', space=vmem, size = 0x40000, scoped, tag = 'input window, operand 10, single buffered']
    %25 = vsyncpa [#allocation5], 0
    %26 = vsyncpa [#allocation7], 0
    loop: start=0, step=1, limit=4
    $region2: #{_lambda_.3} parent=1 // loop_pre_header
      _
    $region3: #{_lambda_.3} parent=1 // loop_header
      %s28 = sphi 0, %s32
      %p29 = scmp.ge.s32.totalorder %s28, 4
      %s38 = sphi 0, %s40
      %s41 = sphi 0, %s38
      %s42 = sphi 0, %s41
      %s58 = sphi 0, %s42
      %s62 = sphi 0, %s62
      %s64 = sphi 0, %s62
      %s65 = sphi 0, %s64
      %s79 = sphi 0, %s65
      %s83 = sphi 0, %s83
      %s85 = sphi 0, %s83
      %s86 = sphi 0, %s85
      %s100 = sphi 0, %s86
      %s104 = sphi 0, %s104
      %s106 = sphi 0, %s104
      %s107 = sphi 0, %s106
      %s121 = sphi 0, %s107
      %s125 = sphi 0, %s125
      %s127 = sphi 0, %s125
      %s128 = sphi 0, %s127
      %s142 = sphi 0, %s128
      %s146 = sphi 0, %s146
      %s148 = sphi 0, %s146
      %s149 = sphi 0, %s148
      %s163 = sphi 0, %s149
      %s167 = sphi 0, %s167
      %s169 = sphi 0, %s167
      %s170 = sphi 0, %s169
      %s184 = sphi 0, %s170
      %s188 = sphi 0, %s188
      %s190 = sphi 0, %s188
      %s191 = sphi 0, %s190
      %s205 = sphi 0, %s191
      %s209 = sphi 0, %s209
      %s211 = sphi 0, %s209
      %s212 = sphi 0, %s211
      %s226 = sphi 0, %s212
      %s230 = sphi 0, %s230
      %s232 = sphi 0, %s230
      %s233 = sphi 0, %s232
      %s247 = sphi 0, %s233
      %s251 = sphi 0, %s251
      %s253 = sphi 0, %s251
      %s254 = sphi 0, %s253
      %s268 = sphi 0, %s254
      %s272 = sphi 0, %s272
      %s274 = sphi 0, %s272
      %s275 = sphi 0, %s274
      %s289 = sphi 0, %s275
      %s293 = sphi 0, %s293
      %s295 = sphi 0, %s293
      %s296 = sphi 0, %s295
      %s310 = sphi 0, %s296
      %s316 = sphi 0, %s318
      %s319 = sphi 0, %s316
      %s320 = sphi 0, %s319
      %s336 = sphi 0, %s320
    $region4: #{_lambda_.3} parent=1 // loop_header_branch
      %31 = sbr.rel (%p29) target = $region8
    $region5: #{_lambda_.3} parent=1 // loop_body
      %s33 = ssub.s32 %s28, 1
      %s34 = ssub.s32 %s28, 2
      %s35 = sadd.s32 %s28, 1
      %s36 = ssub.s32 %s28, %s35
      %p37 = scmp.eq.s32.totalorder %s36, 0
      %s39 = sadd.s32 %s38, 1
      %s40 = scalar_select %p37, %s38, %s39
      %p43 = pneg %p37
      %p44 = scmp.eq.s32.totalorder %s28, 1
      %p45 = por %p43, %p44
      %p46 = scmp.ne.s32.totalorder %s38, %s41
      %p47 = scmp.eq.s32.totalorder %s28, 0
      %p48 = por %p46, %p47
      %p49 = scmp.ne.s32.totalorder %s38, %s41
      %p50 = scmp.eq.s32.totalorder %s33, 1
      %p51 = por %p49, %p50
      %p52 = scmp.ne.s32.totalorder %s41, %s42
      %p53 = scmp.eq.s32.totalorder %s33, 0
      %p54 = por %p52, %p53
      %p55 = scmp.ne.s32.totalorder %s41, %s42
      %p56 = scmp.eq.s32.totalorder %s34, 1
      %p57 = por %p55, %p56
      %p59 = scmp.ne.s32.totalorder %s42, %s58
      %p60 = scmp.eq.s32.totalorder %s34, 0
      %p61 = por %p59, %p60
      %s63 = sadd.s32 %s62, 1
      %p66 = scmp.eq.s32.totalorder %s28, 1
      %p67 = scmp.ne.s32.totalorder %s62, %s64
      %p68 = scmp.eq.s32.totalorder %s28, 0
      %p69 = por %p67, %p68
      %p70 = scmp.ne.s32.totalorder %s62, %s64
      %p71 = scmp.eq.s32.totalorder %s33, 1
      %p72 = por %p70, %p71
      %p73 = scmp.ne.s32.totalorder %s64, %s65
      %p74 = scmp.eq.s32.totalorder %s33, 0
      %p75 = por %p73, %p74
      %p76 = scmp.ne.s32.totalorder %s64, %s65
      %p77 = scmp.eq.s32.totalorder %s34, 1
      %p78 = por %p76, %p77
      %p80 = scmp.ne.s32.totalorder %s65, %s79
      %p81 = scmp.eq.s32.totalorder %s34, 0
      %p82 = por %p80, %p81
      %s84 = sadd.s32 %s83, 1
      %p87 = scmp.eq.s32.totalorder %s28, 1
      %p88 = scmp.ne.s32.totalorder %s83, %s85
      %p89 = scmp.eq.s32.totalorder %s28, 0
      %p90 = por %p88, %p89
      %p91 = scmp.ne.s32.totalorder %s83, %s85
      %p92 = scmp.eq.s32.totalorder %s33, 1
      %p93 = por %p91, %p92
      %p94 = scmp.ne.s32.totalorder %s85, %s86
      %p95 = scmp.eq.s32.totalorder %s33, 0
      %p96 = por %p94, %p95
      %p97 = scmp.ne.s32.totalorder %s85, %s86
      %p98 = scmp.eq.s32.totalorder %s34, 1
      %p99 = por %p97, %p98
      %p101 = scmp.ne.s32.totalorder %s86, %s100
      %p102 = scmp.eq.s32.totalorder %s34, 0
      %p103 = por %p101, %p102
      %s105 = sadd.s32 %s104, 1
      %p108 = scmp.eq.s32.totalorder %s28, 1
      %p109 = scmp.ne.s32.totalorder %s104, %s106
      %p110 = scmp.eq.s32.totalorder %s28, 0
      %p111 = por %p109, %p110
      %p112 = scmp.ne.s32.totalorder %s104, %s106
      %p113 = scmp.eq.s32.totalorder %s33, 1
      %p114 = por %p112, %p113
      %p115 = scmp.ne.s32.totalorder %s106, %s107
      %p116 = scmp.eq.s32.totalorder %s33, 0
      %p117 = por %p115, %p116
      %p118 = scmp.ne.s32.totalorder %s106, %s107
      %p119 = scmp.eq.s32.totalorder %s34, 1
      %p120 = por %p118, %p119
      %p122 = scmp.ne.s32.totalorder %s107, %s121
      %p123 = scmp.eq.s32.totalorder %s34, 0
      %p124 = por %p122, %p123
      %s126 = sadd.s32 %s125, 1
      %p129 = scmp.eq.s32.totalorder %s28, 1
      %p130 = scmp.ne.s32.totalorder %s125, %s127
      %p131 = scmp.eq.s32.totalorder %s28, 0
      %p132 = por %p130, %p131
      %p133 = scmp.ne.s32.totalorder %s125, %s127
      %p134 = scmp.eq.s32.totalorder %s33, 1
      %p135 = por %p133, %p134
      %p136 = scmp.ne.s32.totalorder %s127, %s128
      %p137 = scmp.eq.s32.totalorder %s33, 0
      %p138 = por %p136, %p137
      %p139 = scmp.ne.s32.totalorder %s127, %s128
      %p140 = scmp.eq.s32.totalorder %s34, 1
      %p141 = por %p139, %p140
      %p143 = scmp.ne.s32.totalorder %s128, %s142
      %p144 = scmp.eq.s32.totalorder %s34, 0
      %p145 = por %p143, %p144
      %s147 = sadd.s32 %s146, 1
      %p150 = scmp.eq.s32.totalorder %s28, 1
      %p151 = scmp.ne.s32.totalorder %s146, %s148
      %p152 = scmp.eq.s32.totalorder %s28, 0
      %p153 = por %p151, %p152
      %p154 = scmp.ne.s32.totalorder %s146, %s148
      %p155 = scmp.eq.s32.totalorder %s33, 1
      %p156 = por %p154, %p155
      %p157 = scmp.ne.s32.totalorder %s148, %s149
      %p158 = scmp.eq.s32.totalorder %s33, 0
      %p159 = por %p157, %p158
      %p160 = scmp.ne.s32.totalorder %s148, %s149
      %p161 = scmp.eq.s32.totalorder %s34, 1
      %p162 = por %p160, %p161
      %p164 = scmp.ne.s32.totalorder %s149, %s163
      %p165 = scmp.eq.s32.totalorder %s34, 0
      %p166 = por %p164, %p165
      %s168 = sadd.s32 %s167, 1
      %p171 = scmp.eq.s32.totalorder %s28, 1
      %p172 = scmp.ne.s32.totalorder %s167, %s169
      %p173 = scmp.eq.s32.totalorder %s28, 0
      %p174 = por %p172, %p173
      %p175 = scmp.ne.s32.totalorder %s167, %s169
      %p176 = scmp.eq.s32.totalorder %s33, 1
      %p177 = por %p175, %p176
      %p178 = scmp.ne.s32.totalorder %s169, %s170
      %p179 = scmp.eq.s32.totalorder %s33, 0
      %p180 = por %p178, %p179
      %p181 = scmp.ne.s32.totalorder %s169, %s170
      %p182 = scmp.eq.s32.totalorder %s34, 1
      %p183 = por %p181, %p182
      %p185 = scmp.ne.s32.totalorder %s170, %s184
      %p186 = scmp.eq.s32.totalorder %s34, 0
      %p187 = por %p185, %p186
      %s189 = sadd.s32 %s188, 1
      %p192 = scmp.eq.s32.totalorder %s28, 1
      %p193 = scmp.ne.s32.totalorder %s188, %s190
      %p194 = scmp.eq.s32.totalorder %s28, 0
      %p195 = por %p193, %p194
      %p196 = scmp.ne.s32.totalorder %s188, %s190
      %p197 = scmp.eq.s32.totalorder %s33, 1
      %p198 = por %p196, %p197
      %p199 = scmp.ne.s32.totalorder %s190, %s191
      %p200 = scmp.eq.s32.totalorder %s33, 0
      %p201 = por %p199, %p200
      %p202 = scmp.ne.s32.totalorder %s190, %s191
      %p203 = scmp.eq.s32.totalorder %s34, 1
      %p204 = por %p202, %p203
      %p206 = scmp.ne.s32.totalorder %s191, %s205
      %p207 = scmp.eq.s32.totalorder %s34, 0
      %p208 = por %p206, %p207
      %s210 = sadd.s32 %s209, 1
      %p213 = scmp.eq.s32.totalorder %s28, 1
      %p214 = scmp.ne.s32.totalorder %s209, %s211
      %p215 = scmp.eq.s32.totalorder %s28, 0
      %p216 = por %p214, %p215
      %p217 = scmp.ne.s32.totalorder %s209, %s211
      %p218 = scmp.eq.s32.totalorder %s33, 1
      %p219 = por %p217, %p218
      %p220 = scmp.ne.s32.totalorder %s211, %s212
      %p221 = scmp.eq.s32.totalorder %s33, 0
      %p222 = por %p220, %p221
      %p223 = scmp.ne.s32.totalorder %s211, %s212
      %p224 = scmp.eq.s32.totalorder %s34, 1
      %p225 = por %p223, %p224
      %p227 = scmp.ne.s32.totalorder %s212, %s226
      %p228 = scmp.eq.s32.totalorder %s34, 0
      %p229 = por %p227, %p228
      %s231 = sadd.s32 %s230, 1
      %p234 = scmp.eq.s32.totalorder %s28, 1
      %p235 = scmp.ne.s32.totalorder %s230, %s232
      %p236 = scmp.eq.s32.totalorder %s28, 0
      %p237 = por %p235, %p236
      %p238 = scmp.ne.s32.totalorder %s230, %s232
      %p239 = scmp.eq.s32.totalorder %s33, 1
      %p240 = por %p238, %p239
      %p241 = scmp.ne.s32.totalorder %s232, %s233
      %p242 = scmp.eq.s32.totalorder %s33, 0
      %p243 = por %p241, %p242
      %p244 = scmp.ne.s32.totalorder %s232, %s233
      %p245 = scmp.eq.s32.totalorder %s34, 1
      %p246 = por %p244, %p245
      %p248 = scmp.ne.s32.totalorder %s233, %s247
      %p249 = scmp.eq.s32.totalorder %s34, 0
      %p250 = por %p248, %p249
      %s252 = sadd.s32 %s251, 1
      %p255 = scmp.eq.s32.totalorder %s28, 1
      %p256 = scmp.ne.s32.totalorder %s251, %s253
      %p257 = scmp.eq.s32.totalorder %s28, 0
      %p258 = por %p256, %p257
      %p259 = scmp.ne.s32.totalorder %s251, %s253
      %p260 = scmp.eq.s32.totalorder %s33, 1
      %p261 = por %p259, %p260
      %p262 = scmp.ne.s32.totalorder %s253, %s254
      %p263 = scmp.eq.s32.totalorder %s33, 0
      %p264 = por %p262, %p263
      %p265 = scmp.ne.s32.totalorder %s253, %s254
      %p266 = scmp.eq.s32.totalorder %s34, 1
      %p267 = por %p265, %p266
      %p269 = scmp.ne.s32.totalorder %s254, %s268
      %p270 = scmp.eq.s32.totalorder %s34, 0
      %p271 = por %p269, %p270
      %s273 = sadd.s32 %s272, 1
      %p276 = scmp.eq.s32.totalorder %s28, 1
      %p277 = scmp.ne.s32.totalorder %s272, %s274
      %p278 = scmp.eq.s32.totalorder %s28, 0
      %p279 = por %p277, %p278
      %p280 = scmp.ne.s32.totalorder %s272, %s274
      %p281 = scmp.eq.s32.totalorder %s33, 1
      %p282 = por %p280, %p281
      %p283 = scmp.ne.s32.totalorder %s274, %s275
      %p284 = scmp.eq.s32.totalorder %s33, 0
      %p285 = por %p283, %p284
      %p286 = scmp.ne.s32.totalorder %s274, %s275
      %p287 = scmp.eq.s32.totalorder %s34, 1
      %p288 = por %p286, %p287
      %p290 = scmp.ne.s32.totalorder %s275, %s289
      %p291 = scmp.eq.s32.totalorder %s34, 0
      %p292 = por %p290, %p291
      %s294 = sadd.s32 %s293, 1
      %p297 = scmp.eq.s32.totalorder %s28, 1
      %p298 = scmp.ne.s32.totalorder %s293, %s295
      %p299 = scmp.eq.s32.totalorder %s28, 0
      %p300 = por %p298, %p299
      %p301 = scmp.ne.s32.totalorder %s293, %s295
      %p302 = scmp.eq.s32.totalorder %s33, 1
      %p303 = por %p301, %p302
      %p304 = scmp.ne.s32.totalorder %s295, %s296
      %p305 = scmp.eq.s32.totalorder %s33, 0
      %p306 = por %p304, %p305
      %p307 = scmp.ne.s32.totalorder %s295, %s296
      %p308 = scmp.eq.s32.totalorder %s34, 1
      %p309 = por %p307, %p308
      %p311 = scmp.ne.s32.totalorder %s296, %s310
      %p312 = scmp.eq.s32.totalorder %s34, 0
      %p313 = por %p311, %p312
      %s314 = ssub.s32 %s28, %s35
      %p315 = scmp.eq.s32.totalorder %s314, 0
      %s317 = sadd.s32 %s316, 1
      %s318 = scalar_select %p315, %s316, %s317
      %p321 = pneg %p315
      %p322 = scmp.eq.s32.totalorder %s28, 1
      %p323 = por %p321, %p322
      %p324 = scmp.ne.s32.totalorder %s316, %s319
      %p325 = scmp.eq.s32.totalorder %s28, 0
      %p326 = por %p324, %p325
      %p327 = scmp.ne.s32.totalorder %s316, %s319
      %p328 = scmp.eq.s32.totalorder %s33, 1
      %p329 = por %p327, %p328
      %p330 = scmp.ne.s32.totalorder %s319, %s320
      %p331 = scmp.eq.s32.totalorder %s33, 0
      %p332 = por %p330, %p331
      %p333 = scmp.ne.s32.totalorder %s319, %s320
      %p334 = scmp.eq.s32.totalorder %s34, 1
      %p335 = por %p333, %p334
      %p337 = scmp.ne.s32.totalorder %s320, %s336
      %p338 = scmp.eq.s32.totalorder %s34, 0
      %p339 = por %p337, %p338
      %p340 = scmp.le.s32.totalorder 1, %s28
      %p341 = scmp.lt.s32.totalorder %s28, 3
      %p342 = pnand %p340, %p341
      %p343 = pneg %p342
      // Predicated region
      $region9: #{_lambda_.3} parent=5 // pred_check
        _
      $region10: #{_lambda_.3} parent=5 // pred_check_branch
        %345 = sbr.rel (%p342) target = $region12
      $region11: #{_lambda_.3} parent=5 // pred_region
        %s346 = ssub.s32 %s28, 1
        // Predicated region
        $region13: #{_lambda_.3} parent=11 // pred_check
          %p347 = pneg %p75
        $region14: #{_lambda_.3} parent=11 // pred_check_branch
          %349 = sbr.rel (%p347) target = $region16
        $region15: #{_lambda_.3} parent=11 // pred_region
          _
        $region16: #{_lambda_.3} parent=11 // pred_fallthru
          _
        // Predicated region
        $region17: #{_lambda_.3} parent=11 // pred_check
          %p350 = pneg %p96
        $region18: #{_lambda_.3} parent=11 // pred_check_branch
          %352 = sbr.rel (%p350) target = $region20
        $region19: #{_lambda_.3} parent=11 // pred_region
          _
        $region20: #{_lambda_.3} parent=11 // pred_fallthru
          _
        // Predicated region
        $region21: #{_lambda_.3} parent=11 // pred_check
          %p353 = pneg %p117
        $region22: #{_lambda_.3} parent=11 // pred_check_branch
          %355 = sbr.rel (%p353) target = $region24
        $region23: #{_lambda_.3} parent=11 // pred_region
          _
        $region24: #{_lambda_.3} parent=11 // pred_fallthru
          _
        // Predicated region
        $region25: #{_lambda_.3} parent=11 // pred_check
          %p356 = pneg %p138
        $region26: #{_lambda_.3} parent=11 // pred_check_branch
          %358 = sbr.rel (%p356) target = $region28
        $region27: #{_lambda_.3} parent=11 // pred_region
          %s360 = ssub.s32 6144, 6144
          %361 = vsyncadd [#allocation5], %s360
          %s362 = sshll.u32 [#allocation4], 4
          %s363 = int_to_ptr.vmem [resolvable:$true] %s362
          %368 = dma.hbm_to_vmem [thread:$0]  %s5, 6144, %s363, [#allocation5], 192, 192, 12
        $region28: #{_lambda_.3} parent=11 // pred_fallthru
          _
        // Predicated region
        $region29: #{_lambda_.3} parent=11 // pred_check
          %p369 = pneg %p159
        $region30: #{_lambda_.3} parent=11 // pred_check_branch
          %371 = sbr.rel (%p369) target = $region32
        $region31: #{_lambda_.3} parent=11 // pred_region
          _
        $region32: #{_lambda_.3} parent=11 // pred_fallthru
          _
        // Predicated region
        $region33: #{_lambda_.3} parent=11 // pred_check
          %p372 = pneg %p180
        $region34: #{_lambda_.3} parent=11 // pred_check_branch
          %374 = sbr.rel (%p372) target = $region36
        $region35: #{_lambda_.3} parent=11 // pred_region
          _
        $region36: #{_lambda_.3} parent=11 // pred_fallthru
          _
        // Predicated region
        $region37: #{_lambda_.3} parent=11 // pred_check
          %p375 = pneg %p201
        $region38: #{_lambda_.3} parent=11 // pred_check_branch
          %377 = sbr.rel (%p375) target = $region40
        $region39: #{_lambda_.3} parent=11 // pred_region
          _
        $region40: #{_lambda_.3} parent=11 // pred_fallthru
          _
        // Predicated region
        $region41: #{_lambda_.3} parent=11 // pred_check
          %p378 = pneg %p222
        $region42: #{_lambda_.3} parent=11 // pred_check_branch
          %380 = sbr.rel (%p378) target = $region44
        $region43: #{_lambda_.3} parent=11 // pred_region
          %s382 = ssub.s32 8192, 8192
          %383 = vsyncadd [#allocation7], %s382
          %s384 = sshll.u32 [#allocation6], 4
          %s385 = int_to_ptr.vmem [resolvable:$true] %s384
          %390 = dma.hbm_to_vmem [thread:$0]  %s9, 8192, %s385, [#allocation7], 256, 256, 16
        $region44: #{_lambda_.3} parent=11 // pred_fallthru
          _
        // Predicated region
        $region45: #{_lambda_.3} parent=11 // pred_check
          %p391 = pneg %p243
        $region46: #{_lambda_.3} parent=11 // pred_check_branch
          %393 = sbr.rel (%p391) target = $region48
        $region47: #{_lambda_.3} parent=11 // pred_region
          %s395 = ssub.s32 8192, 8192
          %396 = vsyncadd [#allocation7], %s395
          %s397 = sshll.u32 [#allocation8], 4
          %s398 = int_to_ptr.vmem [resolvable:$true] %s397
          %403 = dma.hbm_to_vmem [thread:$0]  %s10, 8192, %s398, [#allocation7], 64, 64, 4
        $region48: #{_lambda_.3} parent=11 // pred_fallthru
          _
        // Predicated region
        $region49: #{_lambda_.3} parent=11 // pred_check
          %p404 = pneg %p264
        $region50: #{_lambda_.3} parent=11 // pred_check_branch
          %406 = sbr.rel (%p404) target = $region52
        $region51: #{_lambda_.3} parent=11 // pred_region
          _
        $region52: #{_lambda_.3} parent=11 // pred_fallthru
          _
        // Predicated region
        $region53: #{_lambda_.3} parent=11 // pred_check
          %p407 = pneg %p285
        $region54: #{_lambda_.3} parent=11 // pred_check_branch
          %409 = sbr.rel (%p407) target = $region56
        $region55: #{_lambda_.3} parent=11 // pred_region
          _
        $region56: #{_lambda_.3} parent=11 // pred_fallthru
          _
        // Predicated region
        $region57: #{_lambda_.3} parent=11 // pred_check
          %p410 = pneg %p306
        $region58: #{_lambda_.3} parent=11 // pred_check_branch
          %412 = sbr.rel (%p410) target = $region60
        $region59: #{_lambda_.3} parent=11 // pred_region
          _
        $region60: #{_lambda_.3} parent=11 // pred_fallthru
          _
      $region12: #{_lambda_.3} parent=5 // pred_fallthru
        _
      %p413 = scmp.lt.s32.totalorder %s28, 2
      // Predicated region
      $region61: #{_lambda_.3} parent=5 // pred_check
        %p414 = pneg %p413
      $region62: #{_lambda_.3} parent=5 // pred_check_branch
        %416 = sbr.rel (%p414) target = $region64
      $region63: #{_lambda_.3} parent=5 // pred_region
        // Predicated region
        $region65: #{_lambda_.3} parent=63 // pred_check
          %p417 = pneg %p48
        $region66: #{_lambda_.3} parent=63 // pred_check_branch
          %419 = sbr.rel (%p417) target = $region68
        $region67: #{_lambda_.3} parent=63 // pred_region
          %p420 = scmp.lt.s32.totalorder %s28, 1
          %s421 = scalar_select %p420, %s28, 1
          %s422 = smul.addr %s421, 4
          %s423 = scalar_lea.vmem %s1, %s422
        $region68: #{_lambda_.3} parent=63 // pred_fallthru
          _
      $region64: #{_lambda_.3} parent=5 // pred_fallthru
        _
      %p424 = scmp.le.s32.totalorder 1, %s28
      %p425 = scmp.lt.s32.totalorder %s28, 3
      %p426 = pnand %p424, %p425
      %p427 = pneg %p426
      // Predicated region
      $region69: #{_lambda_.3} parent=5 // pred_check
        _
      $region70: #{_lambda_.3} parent=5 // pred_check_branch
        %429 = sbr.rel (%p426) target = $region72
      $region71: #{_lambda_.3} parent=5 // pred_region
        %s430 = ssub.s32 %s28, 1
        // Predicated region
        $region73: #{_lambda_.3} parent=71 // pred_check
          %p431 = pneg %p138
        $region74: #{_lambda_.3} parent=71 // pred_check_branch
          %433 = sbr.rel (%p431) target = $region76
        $region75: #{_lambda_.3} parent=71 // pred_region
          %434 = dma.done [#allocation5], 6144
        $region76: #{_lambda_.3} parent=71 // pred_fallthru
          _
        // Predicated region
        $region77: #{_lambda_.3} parent=71 // pred_check
          %p435 = pneg %p222
        $region78: #{_lambda_.3} parent=71 // pred_check_branch
          %437 = sbr.rel (%p435) target = $region80
        $region79: #{_lambda_.3} parent=71 // pred_region
          %438 = dma.done [#allocation7], 8192
        $region80: #{_lambda_.3} parent=71 // pred_fallthru
          _
        // Predicated region
        $region81: #{_lambda_.3} parent=71 // pred_check
          %p439 = pneg %p243
        $region82: #{_lambda_.3} parent=71 // pred_check_branch
          %441 = sbr.rel (%p439) target = $region84
        $region83: #{_lambda_.3} parent=71 // pred_region
          %442 = dma.done [#allocation7], 8192
        $region84: #{_lambda_.3} parent=71 // pred_fallthru
          _
        %p443 = scmp.lt.s32.totalorder %s33, 1
        %s444 = scalar_select %p443, %s33, 1
        %s445 = smul.addr %s444, 4
        %s446 = scalar_lea.vmem %s1, %s445
        %p447 = pneg %p54
        %p448 = pneg %p51
        %p449 = pneg %p75
        %p450 = pneg %p72
        %p451 = pneg %p96
        %p452 = pneg %p93
        %p453 = pneg %p117
        %p454 = pneg %p114
        %p455 = pneg %p138
        %p456 = pneg %p135
        %p457 = pneg %p159
        %p458 = pneg %p156
        %p459 = pneg %p180
        %p460 = pneg %p177
        %p461 = pneg %p201
        %p462 = pneg %p198
        %p463 = pneg %p222
        %p464 = pneg %p219
        %p465 = pneg %p243
        %p466 = pneg %p240
        %p467 = pneg %p264
        %p468 = pneg %p261
        %p469 = pneg %p285
        %p470 = pneg %p282
        %p471 = pneg %p306
        %p472 = pneg %p303
        %p473 = pneg %p332
        %p474 = pneg %p329
        %p475 = scmp.lt.s32.totalorder %s33, 1
        %s476 = scalar_select %p475, %s33, 1
        %s477 = scalar_lea.vmem %s14, %s476
        %p478 = scmp.lt.s32.totalorder %s33, 1
        %s479 = scalar_select %p478, %s33, 1
        %s480 = smul.addr %s479, 4
        %s481 = scalar_lea.vmem %s1, %s480
        %p482 = scmp.lt.s32.totalorder %s33, 1
        %s483 = scalar_select %p482, %s33, 1
        %s484 = scalar_lea.vmem %s14, %s483
        %v486 = vld [vmem:[%s481] sm:$0xf]
        %v487 = vunpack.c.l.bf16 %v486
        %v488 = vld [vmem:[%s2] sm:$0xff]
        %v489 = vld [vmem:[%s3] sm:$0x1]
        %v490 = vld [vmem:[%s4] sm:$0x1]
        %491 = vadd.xlane.f32.xlu0 %v487
        %v492 = vpop.xlane.xlu0 %491
        %v493 = vrcp.pop 128.0
        %v494 = vmul.f32 %v492, %v493
        %v495 = vsub.f32 %v487, %v494
        %v496 = vmul.f32 %v495, %v495
        %497 = vadd.xlane.f32.xlu0 %v496
        %v498 = vpop.xlane.xlu0 %497
        %v499 = vmul.f32 %v498, %v493
        %v500 = vadd.f32 %v499, 1e-05
        %v501 = vrsqrt.pop %v500
        %v502 = vmul.f32 %v495, %v501
        %v504 = vlaneseq
        %v505 = vshrl.u32 %v504, 7
        %v506 = vsub.s32 0, %v505
        %v507 = vrot.slane %v489, %v506
        %v509 = vmul.f32 %v502, %v507
        %v511 = vlaneseq
        %v512 = vshrl.u32 %v511, 7
        %v513 = vsub.s32 0, %v512
        %v514 = vrot.slane %v490, %v513
        %v516 = vadd.f32 %v509, %v514
        %v517 = vpack.c.bf16 %v516, %v516
        %v518 = vld [vmem:[#allocation4] sm:$0xff]
        %v519 = vld [vmem:[#allocation4 + $0x8] sm:$0xf]
        %v520 = vld [vmem:[#allocation4 + $0xc] sm:$0xff]
        %v521 = vld [vmem:[#allocation4 + $0x14] sm:$0xf]
        %v522 = vld [vmem:[#allocation4 + $0x18] sm:$0xff]
        %v523 = vld [vmem:[#allocation4 + $0x20] sm:$0xf]
        %v524 = vld [vmem:[#allocation4 + $0x24] sm:$0xff]
        %v525 = vld [vmem:[#allocation4 + $0x2c] sm:$0xf]
        %v526 = vld [vmem:[#allocation4 + $0x30] sm:$0xff]
        %v527 = vld [vmem:[#allocation4 + $0x38] sm:$0xf]
        %v528 = vld [vmem:[#allocation4 + $0x3c] sm:$0xff]
        %v529 = vld [vmem:[#allocation4 + $0x44] sm:$0xf]
        %v530 = vld [vmem:[#allocation4 + $0x48] sm:$0xff]
        %v531 = vld [vmem:[#allocation4 + $0x50] sm:$0xf]
        %v532 = vld [vmem:[#allocation4 + $0x54] sm:$0xff]
        %v533 = vld [vmem:[#allocation4 + $0x5c] sm:$0xf]
        %v534 = vld [vmem:[#allocation4 + $0x60] sm:$0xff]
        %v535 = vld [vmem:[#allocation4 + $0x68] sm:$0xf]
        %v536 = vld [vmem:[#allocation4 + $0x6c] sm:$0xff]
        %v537 = vld [vmem:[#allocation4 + $0x74] sm:$0xf]
        %v538 = vld [vmem:[#allocation4 + $0x78] sm:$0xff]
        %v539 = vld [vmem:[#allocation4 + $0x80] sm:$0xf]
        %v540 = vld [vmem:[#allocation4 + $0x84] sm:$0xff]
        %v541 = vld [vmem:[#allocation4 + $0x8c] sm:$0xf]
        %v542 = vld [vmem:[#allocation4 + $0x90] sm:$0xff]
        %v543 = vld [vmem:[#allocation4 + $0x98] sm:$0xf]
        %v544 = vld [vmem:[#allocation4 + $0x9c] sm:$0xff]
        %v545 = vld [vmem:[#allocation4 + $0xa4] sm:$0xf]
        %v546 = vld [vmem:[#allocation4 + $0xa8] sm:$0xff]
        %v547 = vld [vmem:[#allocation4 + $0xb0] sm:$0xf]
        %v548 = vld [vmem:[#allocation4 + $0xb4] sm:$0xff]
        %v549 = vld [vmem:[#allocation4 + $0xbc] sm:$0xf]
        %v582 = vunpack.c.l.b16 %v518
        %v583 = vunpack.c.h.b16 %v518
        %v584 = vunpack.c.l.b16 %v519
        %v585 = vunpack.c.l.b16 %v520
        %v586 = vunpack.c.h.b16 %v520
        %v587 = vunpack.c.l.b16 %v521
        %v588 = vunpack.c.l.b16 %v522
        %v589 = vunpack.c.h.b16 %v522
        %v590 = vunpack.c.l.b16 %v523
        %v591 = vunpack.c.l.b16 %v524
        %v592 = vunpack.c.h.b16 %v524
        %v593 = vunpack.c.l.b16 %v525
        %v594 = vunpack.c.l.b16 %v526
        %v595 = vunpack.c.h.b16 %v526
        %v596 = vunpack.c.l.b16 %v527
        %v597 = vunpack.c.l.b16 %v528
        %v598 = vunpack.c.h.b16 %v528
        %v599 = vunpack.c.l.b16 %v529
        %v600 = vunpack.c.l.b16 %v530
        %v601 = vunpack.c.h.b16 %v530
        %v602 = vunpack.c.l.b16 %v531
        %v603 = vunpack.c.l.b16 %v532
        %v604 = vunpack.c.h.b16 %v532
        %v605 = vunpack.c.l.b16 %v533
        %v606 = vunpack.c.l.b16 %v534
        %v607 = vunpack.c.h.b16 %v534
        %v608 = vunpack.c.l.b16 %v535
        %v609 = vunpack.c.l.b16 %v536
        %v610 = vunpack.c.h.b16 %v536
        %v611 = vunpack.c.l.b16 %v537
        %v612 = vunpack.c.l.b16 %v538
        %v613 = vunpack.c.h.b16 %v538
        %v614 = vunpack.c.l.b16 %v539
        %v615 = vunpack.c.l.b16 %v540
        %v616 = vunpack.c.h.b16 %v540
        %v617 = vunpack.c.l.b16 %v541
        %v618 = vunpack.c.l.b16 %v542
        %v619 = vunpack.c.h.b16 %v542
        %v620 = vunpack.c.l.b16 %v543
        %v621 = vunpack.c.l.b16 %v544
        %v622 = vunpack.c.h.b16 %v544
        %v623 = vunpack.c.l.b16 %v545
        %v624 = vunpack.c.l.b16 %v546
        %v625 = vunpack.c.h.b16 %v546
        %v626 = vunpack.c.l.b16 %v547
        %v627 = vunpack.c.l.b16 %v548
        %v628 = vunpack.c.h.b16 %v548
        %v629 = vunpack.c.l.b16 %v549
        %v630 = vpack.c.b16 %v585, %v582
        %v631 = vpack.c.b16 %v586, %v583
        %v632 = vpack.c.b16 %v587, %v584
        %v633 = vpack.c.b16 %v591, %v588
        %v634 = vpack.c.b16 %v592, %v589
        %v635 = vpack.c.b16 %v593, %v590
        %v636 = vpack.c.b16 %v597, %v594
        %v637 = vpack.c.b16 %v598, %v595
        %v638 = vpack.c.b16 %v599, %v596
        %v639 = vpack.c.b16 %v603, %v600
        %v640 = vpack.c.b16 %v604, %v601
        %v641 = vpack.c.b16 %v605, %v602
        %v642 = vpack.c.b16 %v609, %v606
        %v643 = vpack.c.b16 %v610, %v607
        %v644 = vpack.c.b16 %v611, %v608
        %v645 = vpack.c.b16 %v615, %v612
        %v646 = vpack.c.b16 %v616, %v613
        %v647 = vpack.c.b16 %v617, %v614
        %v648 = vpack.c.b16 %v621, %v618
        %v649 = vpack.c.b16 %v622, %v619
        %v650 = vpack.c.b16 %v623, %v620
        %v651 = vpack.c.b16 %v627, %v624
        %v652 = vpack.c.b16 %v628, %v625
        %v653 = vpack.c.b16 %v629, %v626
        %678 = vmatprep.subr.bf16.mxu0 %v631
        %679 = vmatpush1.bf16.msra.mxu0 %v630
        %680 = vmatprep.subr.bf16.mxu0 %v634
        %681 = vmatpush1.bf16.msra.mxu0 %v633
        %682 = vmatprep.subr.bf16.mxu0 %v637
        %683 = vmatpush1.bf16.msra.mxu0 %v636
        %684 = vmatprep.subr.bf16.mxu0 %v640
        %685 = vmatpush1.bf16.msra.mxu0 %v639
        %686 = vmatprep.subr.bf16.mxu0 %v643
        %687 = vmatpush1.bf16.msra.mxu0 %v642
        %688 = vmatprep.subr.bf16.mxu0 %v646
        %689 = vmatpush1.bf16.msra.mxu0 %v645
        %690 = vmatprep.subr.bf16.mxu0 %v649
        %691 = vmatpush1.bf16.msra.mxu0 %v648
        %692 = vmatprep.subr.bf16.mxu0 %v652
        %693 = vmatpush1.bf16.msra.mxu0 %v651
        %694 = vmatprep.subr.bf16.mxu0 0
        %695 = vmatpush1.bf16.msra.mxu0 0
        %696 = vmatprep.subr.bf16.mxu0 0
        %697 = vmatpush1.bf16.msra.mxu0 0
        %698 = vmatprep.subr.bf16.mxu0 0
        %699 = vmatpush1.bf16.msra.mxu0 0
        %700 = vmatprep.subr.bf16.mxu0 0
        %701 = vmatpush1.bf16.msra.mxu0 0
        %702 = vmatprep.subr.bf16.mxu0 0
        %703 = vmatpush1.bf16.msra.mxu0 0
        %704 = vmatprep.subr.bf16.mxu0 0
        %705 = vmatpush1.bf16.msra.mxu0 0
        %706 = vmatprep.subr.bf16.mxu0 0
        %707 = vmatpush1.bf16.msra.mxu0 0
        %708 = vmatprep.subr.bf16.mxu0 0
        %709 = vmatpush1.bf16.msra.mxu0 0
        %710 = vmatprep.mubr.bf16.mxu0 0
        %711 = vmatmul.mubr.bf16.gmra.mrb[0].mxu0 %v517
        %v712 = vpop.f32.mrb[0].mxu0
        %v713 = vadd.f32 0.0, %v712
        %v714 = vpop.f32.mrb[0].mxu0
        %v715 = vadd.f32 0.0, %v714
        %v716 = vpop.f32.mrb[0].mxu0
        %v717 = vpop.f32.mrb[0].mxu0
        %718 = vdwg.mxu0
        %719 = vmatprep.subr.bf16.mxu0 0
        %720 = vmatpush1.bf16.msra.mxu0 %v632
        %721 = vmatprep.subr.bf16.mxu0 0
        %722 = vmatpush1.bf16.msra.mxu0 %v635
        %723 = vmatprep.subr.bf16.mxu0 0
        %724 = vmatpush1.bf16.msra.mxu0 %v638
        %725 = vmatprep.subr.bf16.mxu0 0
        %726 = vmatpush1.bf16.msra.mxu0 %v641
        %727 = vmatprep.subr.bf16.mxu0 0
        %728 = vmatpush1.bf16.msra.mxu0 %v644
        %729 = vmatprep.subr.bf16.mxu0 0
        %730 = vmatpush1.bf16.msra.mxu0 %v647
        %731 = vmatprep.subr.bf16.mxu0 0
        %732 = vmatpush1.bf16.msra.mxu0 %v650
        %733 = vmatprep.subr.bf16.mxu0 0
        %734 = vmatpush1.bf16.msra.mxu0 %v653
        %735 = vmatprep.subr.bf16.mxu0 0
        %736 = vmatpush1.bf16.msra.mxu0 0
        %737 = vmatprep.subr.bf16.mxu0 0
        %738 = vmatpush1.bf16.msra.mxu0 0
        %739 = vmatprep.subr.bf16.mxu0 0
        %740 = vmatpush1.bf16.msra.mxu0 0
        %741 = vmatprep.subr.bf16.mxu0 0
        %742 = vmatpush1.bf16.msra.mxu0 0
        %743 = vmatprep.subr.bf16.mxu0 0
        %744 = vmatpush1.bf16.msra.mxu0 0
        %745 = vmatprep.subr.bf16.mxu0 0
        %746 = vmatpush1.bf16.msra.mxu0 0
        %747 = vmatprep.subr.bf16.mxu0 0
        %748 = vmatpush1.bf16.msra.mxu0 0
        %749 = vmatprep.subr.bf16.mxu0 0
        %750 = vmatpush1.bf16.msra.mxu0 0
        %751 = vmatprep.mubr.bf16.mxu0 0
        %752 = vmatmul.mubr.bf16.gmra.mrb[0].mxu0 %v517
        %v753 = vpop.f32.mrb[0].mxu0
        %v754 = vadd.f32 0.0, %v753
        %v755 = vpop.f32.mrb[0].mxu0
        %v756 = vpop.f32.mrb[0].mxu0
        %v757 = vpop.f32.mrb[0].mxu0
        %758 = vdwg.mxu0
        %v759 = vpack.c.bf16 %v713, %v713
        %v760 = vpack.c.bf16 %v715, %v715
        %v761 = vpack.c.bf16 %v754, %v754
        %vm762 = vcmask 523264
        %v764 = vsel %vm762, %v759, 0
        %v767 = vsel %vm762, %v760, 0
        %769 = vmatprep.subr.bf16.mxu0 0
        %770 = vmatpush1.bf16.xpose.msra.mxu0 %v767
        %771 = vmatprep.subr.bf16.mxu0 0
        %772 = vmatpush1.bf16.xpose.msra.mxu0 0
        %773 = vmatprep.subr.bf16.mxu0 0
        %774 = vmatpush1.bf16.xpose.msra.mxu0 0
        %775 = vmatprep.subr.bf16.mxu0 0
        %776 = vmatpush1.bf16.xpose.msra.mxu0 0
        %777 = vmatprep.subr.bf16.mxu0 0
        %778 = vmatpush1.bf16.xpose.msra.mxu0 0
        %779 = vmatprep.subr.bf16.mxu0 0
        %780 = vmatpush1.bf16.xpose.msra.mxu0 0
        %781 = vmatprep.subr.bf16.mxu0 0
        %782 = vmatpush1.bf16.xpose.msra.mxu0 0
        %783 = vmatprep.subr.bf16.mxu0 0
        %784 = vmatpush1.bf16.xpose.msra.mxu0 0
        %785 = vmatprep.subr.bf16.mxu0 0
        %786 = vmatpush1.bf16.xpose.msra.mxu0 0
        %787 = vmatprep.subr.bf16.mxu0 0
        %788 = vmatpush1.bf16.xpose.msra.mxu0 0
        %789 = vmatprep.subr.bf16.mxu0 0
        %790 = vmatpush1.bf16.xpose.msra.mxu0 0
        %791 = vmatprep.subr.bf16.mxu0 0
        %792 = vmatpush1.bf16.xpose.msra.mxu0 0
        %793 = vmatprep.subr.bf16.mxu0 0
        %794 = vmatpush1.bf16.xpose.msra.mxu0 0
        %795 = vmatprep.subr.bf16.mxu0 0
        %796 = vmatpush1.bf16.xpose.msra.mxu0 0
        %797 = vmatprep.subr.bf16.mxu0 0
        %798 = vmatpush1.bf16.xpose.msra.mxu0 0
        %799 = vmatprep.subr.bf16.mxu0 0
        %800 = vmatpush1.bf16.xpose.msra.mxu0 0
        %801 = vmatprep.mubr.bf16.mxu0 0
        %802 = vmatmul.mubr.bf16.gmra.mrb[0].mxu0 %v764
        %v803 = vpop.f32.mrb[0].mxu0
        %v804 = vadd.f32 0.0, %v803
        %v805 = vpop.f32.mrb[0].mxu0
        %v806 = vpop.f32.mrb[0].mxu0
        %v807 = vpop.f32.mrb[0].mxu0
        %808 = vdwg.mxu0
        %v809 = vmul.f32 %v804, 0.125
        %v810 = vadd.f32 %v809, %v488
        %vm811 = vcmask 64512
        %v812 = vsel %vm811, %v810, -inf
        %813 = vmax.xlane.f32.xlu0 %v812
        %v814 = vpop.xlane.xlu0 %813
        %v815 = vsub.f32 %v810, %v814
        %v816 = vmul.f32 %v815, 1.442695
        %v817 = vpow.pop %v816
        %v818 = vsel %vm811, %v817, 0.0
        %819 = vadd.xlane.f32.xlu0 %v818
        %v820 = vpop.xlane.xlu0 %819
        %v821 = vrcp.pop %v820
        %v822 = vmul.f32 %v817, %v821
        %v823 = vpack.c.bf16 %v822, %v822
        %v825 = vsel %vm811, %v823, 0
        %vm827 = vcmask 1043456
        %v829 = vsel %vm827, %v761, 0
        %831 = vmatprep.subr.bf16.mxu0 0
        %832 = vmatpush1.bf16.msra.mxu0 %v829
        %833 = vmatprep.subr.bf16.mxu0 0
        %834 = vmatpush1.bf16.msra.mxu0 0
        %835 = vmatprep.subr.bf16.mxu0 0
        %836 = vmatpush1.bf16.msra.mxu0 0
        %837 = vmatprep.subr.bf16.mxu0 0
        %838 = vmatpush1.bf16.msra.mxu0 0
        %839 = vmatprep.subr.bf16.mxu0 0
        %840 = vmatpush1.bf16.msra.mxu0 0
        %841 = vmatprep.subr.bf16.mxu0 0
        %842 = vmatpush1.bf16.msra.mxu0 0
        %843 = vmatprep.subr.bf16.mxu0 0
        %844 = vmatpush1.bf16.msra.mxu0 0
        %845 = vmatprep.subr.bf16.mxu0 0
        %846 = vmatpush1.bf16.msra.mxu0 0
        %847 = vmatprep.subr.bf16.mxu0 0
        %848 = vmatpush1.bf16.msra.mxu0 0
        %849 = vmatprep.subr.bf16.mxu0 0
        %850 = vmatpush1.bf16.msra.mxu0 0
        %851 = vmatprep.subr.bf16.mxu0 0
        %852 = vmatpush1.bf16.msra.mxu0 0
        %853 = vmatprep.subr.bf16.mxu0 0
        %854 = vmatpush1.bf16.msra.mxu0 0
        %855 = vmatprep.subr.bf16.mxu0 0
        %856 = vmatpush1.bf16.msra.mxu0 0
        %857 = vmatprep.subr.bf16.mxu0 0
        %858 = vmatpush1.bf16.msra.mxu0 0
        %859 = vmatprep.subr.bf16.mxu0 0
        %860 = vmatpush1.bf16.msra.mxu0 0
        %861 = vmatprep.subr.bf16.mxu0 0
        %862 = vmatpush1.bf16.msra.mxu0 0
        %863 = vmatprep.mubr.bf16.mxu0 0
        %864 = vmatmul.mubr.bf16.gmra.mrb[0].mxu0 %v825
        %v865 = vpop.f32.mrb[0].mxu0
        %v866 = vadd.f32 0.0, %v865
        %v867 = vpop.f32.mrb[0].mxu0
        %v868 = vpop.f32.mrb[0].mxu0
        %v869 = vpop.f32.mrb[0].mxu0
        %870 = vdwg.mxu0
        %872 = vrot.lane.b32.xlu0 %v759, 64
        %v873 = vpop.permute.xlu0 %872
        %875 = vrot.lane.b32.xlu0 %v760, 64
        %v876 = vpop.permute.xlu0 %875
        %v878 = vsel %vm762, %v873, 0
        %v881 = vsel %vm762, %v876, 0
        %883 = vmatprep.subr.bf16.mxu0 0
        %884 = vmatpush1.bf16.xpose.msra.mxu0 %v881
        %885 = vmatprep.subr.bf16.mxu0 0
        %886 = vmatpush1.bf16.xpose.msra.mxu0 0
        %887 = vmatprep.subr.bf16.mxu0 0
        %888 = vmatpush1.bf16.xpose.msra.mxu0 0
        %889 = vmatprep.subr.bf16.mxu0 0
        %890 = vmatpush1.bf16.xpose.msra.mxu0 0
        %891 = vmatprep.subr.bf16.mxu0 0
        %892 = vmatpush1.bf16.xpose.msra.mxu0 0
        %893 = vmatprep.subr.bf16.mxu0 0
        %894 = vmatpush1.bf16.xpose.msra.mxu0 0
        %895 = vmatprep.subr.bf16.mxu0 0
        %896 = vmatpush1.bf16.xpose.msra.mxu0 0
        %897 = vmatprep.subr.bf16.mxu0 0
        %898 = vmatpush1.bf16.xpose.msra.mxu0 0
        %899 = vmatprep.subr.bf16.mxu0 0
        %900 = vmatpush1.bf16.xpose.msra.mxu0 0
        %901 = vmatprep.subr.bf16.mxu0 0
        %902 = vmatpush1.bf16.xpose.msra.mxu0 0
        %903 = vmatprep.subr.bf16.mxu0 0
        %904 = vmatpush1.bf16.xpose.msra.mxu0 0
        %905 = vmatprep.subr.bf16.mxu0 0
        %906 = vmatpush1.bf16.xpose.msra.mxu0 0
        %907 = vmatprep.subr.bf16.mxu0 0
        %908 = vmatpush1.bf16.xpose.msra.mxu0 0
        %909 = vmatprep.subr.bf16.mxu0 0
        %910 = vmatpush1.bf16.xpose.msra.mxu0 0
        %911 = vmatprep.subr.bf16.mxu0 0
        %912 = vmatpush1.bf16.xpose.msra.mxu0 0
        %913 = vmatprep.subr.bf16.mxu0 0
        %914 = vmatpush1.bf16.xpose.msra.mxu0 0
        %915 = vmatprep.mubr.bf16.mxu0 0
        %916 = vmatmul.mubr.bf16.gmra.mrb[0].mxu0 %v878
        %v917 = vpop.f32.mrb[0].mxu0
        %v918 = vadd.f32 0.0, %v917
        %v919 = vpop.f32.mrb[0].mxu0
        %v920 = vpop.f32.mrb[0].mxu0
        %v921 = vpop.f32.mrb[0].mxu0
        %922 = vdwg.mxu0
        %v923 = vmul.f32 %v918, 0.125
        %v924 = vadd.f32 %v923, %v488
        %v925 = vsel %vm811, %v924, -inf
        %926 = vmax.xlane.f32.xlu0 %v925
        %v927 = vpop.xlane.xlu0 %926
        %v928 = vsub.f32 %v924, %v927
        %v929 = vmul.f32 %v928, 1.442695
        %v930 = vpow.pop %v929
        %v931 = vsel %vm811, %v930, 0.0
        %932 = vadd.xlane.f32.xlu0 %v931
        %v933 = vpop.xlane.xlu0 %932
        %v934 = vrcp.pop %v933
        %v935 = vmul.f32 %v930, %v934
        %v936 = vpack.c.bf16 %v935, %v935
        %938 = vrot.lane.b32.xlu0 %v761, 64
        %v939 = vpop.permute.xlu0 %938
        %v941 = vsel %vm811, %v936, 0
        %v944 = vsel %vm827, %v939, 0
        %946 = vmatprep.subr.bf16.mxu0 0
        %947 = vmatpush1.bf16.msra.mxu0 %v944
        %948 = vmatprep.subr.bf16.mxu0 0
        %949 = vmatpush1.bf16.msra.mxu0 0
        %950 = vmatprep.subr.bf16.mxu0 0
        %951 = vmatpush1.bf16.msra.mxu0 0
        %952 = vmatprep.subr.bf16.mxu0 0
        %953 = vmatpush1.bf16.msra.mxu0 0
        %954 = vmatprep.subr.bf16.mxu0 0
        %955 = vmatpush1.bf16.msra.mxu0 0
        %956 = vmatprep.subr.bf16.mxu0 0
        %957 = vmatpush1.bf16.msra.mxu0 0
        %958 = vmatprep.subr.bf16.mxu0 0
        %959 = vmatpush1.bf16.msra.mxu0 0
        %960 = vmatprep.subr.bf16.mxu0 0
        %961 = vmatpush1.bf16.msra.mxu0 0
        %962 = vmatprep.subr.bf16.mxu0 0
        %963 = vmatpush1.bf16.msra.mxu0 0
        %964 = vmatprep.subr.bf16.mxu0 0
        %965 = vmatpush1.bf16.msra.mxu0 0
        %966 = vmatprep.subr.bf16.mxu0 0
        %967 = vmatpush1.bf16.msra.mxu0 0
        %968 = vmatprep.subr.bf16.mxu0 0
        %969 = vmatpush1.bf16.msra.mxu0 0
        %970 = vmatprep.subr.bf16.mxu0 0
        %971 = vmatpush1.bf16.msra.mxu0 0
        %972 = vmatprep.subr.bf16.mxu0 0
        %973 = vmatpush1.bf16.msra.mxu0 0
        %974 = vmatprep.subr.bf16.mxu0 0
        %975 = vmatpush1.bf16.msra.mxu0 0
        %976 = vmatprep.subr.bf16.mxu0 0
        %977 = vmatpush1.bf16.msra.mxu0 0
        %978 = vmatprep.mubr.bf16.mxu0 0
        %979 = vmatmul.mubr.bf16.gmra.mrb[0].mxu0 %v941
        %v980 = vpop.f32.mrb[0].mxu0
        %v981 = vadd.f32 0.0, %v980
        %v982 = vpop.f32.mrb[0].mxu0
        %v983 = vpop.f32.mrb[0].mxu0
        %v984 = vpop.f32.mrb[0].mxu0
        %985 = vdwg.mxu0
        %987 = vrot.lane.b32.xlu0 %v981, 64
        %v988 = vpop.permute.xlu0 %987
        %v990 = vsel %vm762, %v866, %v988
        %v991 = vpack.c.bf16 %v990, %v990
        %v992 = vld [vmem:[%s6] sm:$0xf]
        %v993 = vld [vmem:[%s6 + $0x4] sm:$0xf]
        %v994 = vld [vmem:[%s6 + $0x8] sm:$0xf]
        %v995 = vld [vmem:[%s6 + $0xc] sm:$0xf]
        %v996 = vld [vmem:[%s6 + $0x10] sm:$0xf]
        %v997 = vld [vmem:[%s6 + $0x14] sm:$0xf]
        %v998 = vld [vmem:[%s6 + $0x18] sm:$0xf]
        %v999 = vld [vmem:[%s6 + $0x1c] sm:$0xf]
        %v1000 = vld [vmem:[%s6 + $0x20] sm:$0xf]
        %v1001 = vld [vmem:[%s6 + $0x24] sm:$0xf]
        %v1002 = vld [vmem:[%s6 + $0x28] sm:$0xf]
        %v1003 = vld [vmem:[%s6 + $0x2c] sm:$0xf]
        %v1004 = vld [vmem:[%s6 + $0x30] sm:$0xf]
        %v1005 = vld [vmem:[%s6 + $0x34] sm:$0xf]
        %v1006 = vld [vmem:[%s6 + $0x38] sm:$0xf]
        %v1007 = vld [vmem:[%s6 + $0x3c] sm:$0xf]
        %v1024 = vunpack.c.l.b16 %v992
        %v1025 = vunpack.c.l.b16 %v993
        %v1026 = vunpack.c.l.b16 %v994
        %v1027 = vunpack.c.l.b16 %v995
        %v1028 = vunpack.c.l.b16 %v996
        %v1029 = vunpack.c.l.b16 %v997
        %v1030 = vunpack.c.l.b16 %v998
        %v1031 = vunpack.c.l.b16 %v999
        %v1032 = vunpack.c.l.b16 %v1000
        %v1033 = vunpack.c.l.b16 %v1001
        %v1034 = vunpack.c.l.b16 %v1002
        %v1035 = vunpack.c.l.b16 %v1003
        %v1036 = vunpack.c.l.b16 %v1004
        %v1037 = vunpack.c.l.b16 %v1005
        %v1038 = vunpack.c.l.b16 %v1006
        %v1039 = vunpack.c.l.b16 %v1007
        %v1040 = vpack.c.b16 %v1025, %v1024
        %v1041 = vpack.c.b16 %v1027, %v1026
        %v1042 = vpack.c.b16 %v1029, %v1028
        %v1043 = vpack.c.b16 %v1031, %v1030
        %v1044 = vpack.c.b16 %v1033, %v1032
        %v1045 = vpack.c.b16 %v1035, %v1034
        %v1046 = vpack.c.b16 %v1037, %v1036
        %v1047 = vpack.c.b16 %v1039, %v1038
        %1056 = vmatprep.subr.bf16.mxu0 0
        %1057 = vmatpush1.bf16.msra.mxu0 %v1040
        %1058 = vmatprep.subr.bf16.mxu0 0
        %1059 = vmatpush1.bf16.msra.mxu0 %v1041
        %1060 = vmatprep.subr.bf16.mxu0 0
        %1061 = vmatpush1.bf16.msra.mxu0 %v1042
        %1062 = vmatprep.subr.bf16.mxu0 0
        %1063 = vmatpush1.bf16.msra.mxu0 %v1043
        %1064 = vmatprep.subr.bf16.mxu0 0
        %1065 = vmatpush1.bf16.msra.mxu0 %v1044
        %1066 = vmatprep.subr.bf16.mxu0 0
        %1067 = vmatpush1.bf16.msra.mxu0 %v1045
        %1068 = vmatprep.subr.bf16.mxu0 0
        %1069 = vmatpush1.bf16.msra.mxu0 %v1046
        %1070 = vmatprep.subr.bf16.mxu0 0
        %1071 = vmatpush1.bf16.msra.mxu0 %v1047
        %1072 = vmatprep.subr.bf16.mxu0 0
        %1073 = vmatpush1.bf16.msra.mxu0 0
        %1074 = vmatprep.subr.bf16.mxu0 0
        %1075 = vmatpush1.bf16.msra.mxu0 0
        %1076 = vmatprep.subr.bf16.mxu0 0
        %1077 = vmatpush1.bf16.msra.mxu0 0
        %1078 = vmatprep.subr.bf16.mxu0 0
        %1079 = vmatpush1.bf16.msra.mxu0 0
        %1080 = vmatprep.subr.bf16.mxu0 0
        %1081 = vmatpush1.bf16.msra.mxu0 0
        %1082 = vmatprep.subr.bf16.mxu0 0
        %1083 = vmatpush1.bf16.msra.mxu0 0
        %1084 = vmatprep.subr.bf16.mxu0 0
        %1085 = vmatpush1.bf16.msra.mxu0 0
        %1086 = vmatprep.subr.bf16.mxu0 0
        %1087 = vmatpush1.bf16.msra.mxu0 0
        %1088 = vmatprep.mubr.bf16.mxu0 0
        %1089 = vmatmul.mubr.bf16.gmra.mrb[0].mxu0 %v991
        %v1090 = vpop.f32.mrb[0].mxu0
        %v1091 = vadd.f32 0.0, %v1090
        %v1092 = vpop.f32.mrb[0].mxu0
        %v1093 = vpop.f32.mrb[0].mxu0
        %v1094 = vpop.f32.mrb[0].mxu0
        %1095 = vdwg.mxu0
        %v1096 = vadd.f32 %v487, %v1091
        %v1097 = vld [vmem:[%s7] sm:$0x1]
        %v1098 = vld [vmem:[%s8] sm:$0x1]
        %1099 = vadd.xlane.f32.xlu0 %v1096
        %v1100 = vpop.xlane.xlu0 %1099
        %v1101 = vmul.f32 %v1100, %v493
        %v1102 = vsub.f32 %v1096, %v1101
        %v1103 = vmul.f32 %v1102, %v1102
        %1104 = vadd.xlane.f32.xlu0 %v1103
        %v1105 = vpop.xlane.xlu0 %1104
        %v1106 = vmul.f32 %v1105, %v493
        %v1107 = vadd.f32 %v1106, 1e-05
        %v1108 = vrsqrt.pop %v1107
        %v1109 = vmul.f32 %v1102, %v1108
        %v1111 = vlaneseq
        %v1112 = vshrl.u32 %v1111, 7
        %v1113 = vsub.s32 0, %v1112
        %v1114 = vrot.slane %v1097, %v1113
        %v1116 = vmul.f32 %v1109, %v1114
        %v1118 = vlaneseq
        %v1119 = vshrl.u32 %v1118, 7
        %v1120 = vsub.s32 0, %v1119
        %v1121 = vrot.slane %v1098, %v1120
        %v1123 = vadd.f32 %v1116, %v1121
        %v1124 = vpack.c.bf16 %v1123, %v1123
        %v1125 = vld [vmem:[#allocation6] sm:$0xff]
        %v1126 = vld [vmem:[#allocation6 + $0x8] sm:$0xff]
        %v1127 = vld [vmem:[#allocation6 + $0x10] sm:$0xff]
        %v1128 = vld [vmem:[#allocation6 + $0x18] sm:$0xff]
        %v1129 = vld [vmem:[#allocation6 + $0x20] sm:$0xff]
        %v1130 = vld [vmem:[#allocation6 + $0x28] sm:$0xff]
        %v1131 = vld [vmem:[#allocation6 + $0x30] sm:$0xff]
        %v1132 = vld [vmem:[#allocation6 + $0x38] sm:$0xff]
        %v1133 = vld [vmem:[#allocation6 + $0x40] sm:$0xff]
        %v1134 = vld [vmem:[#allocation6 + $0x48] sm:$0xff]
        %v1135 = vld [vmem:[#allocation6 + $0x50] sm:$0xff]
        %v1136 = vld [vmem:[#allocation6 + $0x58] sm:$0xff]
        %v1137 = vld [vmem:[#allocation6 + $0x60] sm:$0xff]
        %v1138 = vld [vmem:[#allocation6 + $0x68] sm:$0xff]
        %v1139 = vld [vmem:[#allocation6 + $0x70] sm:$0xff]
        %v1140 = vld [vmem:[#allocation6 + $0x78] sm:$0xff]
        %v1141 = vld [vmem:[#allocation6 + $0x80] sm:$0xff]
        %v1142 = vld [vmem:[#allocation6 + $0x88] sm:$0xff]
        %v1143 = vld [vmem:[#allocation6 + $0x90] sm:$0xff]
        %v1144 = vld [vmem:[#allocation6 + $0x98] sm:$0xff]
        %v1145 = vld [vmem:[#allocation6 + $0xa0] sm:$0xff]
        %v1146 = vld [vmem:[#allocation6 + $0xa8] sm:$0xff]
        %v1147 = vld [vmem:[#allocation6 + $0xb0] sm:$0xff]
        %v1148 = vld [vmem:[#allocation6 + $0xb8] sm:$0xff]
        %v1149 = vld [vmem:[#allocation6 + $0xc0] sm:$0xff]
        %v1150 = vld [vmem:[#allocation6 + $0xc8] sm:$0xff]
        %v1151 = vld [vmem:[#allocation6 + $0xd0] sm:$0xff]
        %v1152 = vld [vmem:[#allocation6 + $0xd8] sm:$0xff]
        %v1153 = vld [vmem:[#allocation6 + $0xe0] sm:$0xff]
        %v1154 = vld [vmem:[#allocation6 + $0xe8] sm:$0xff]
        %v1155 = vld [vmem:[#allocation6 + $0xf0] sm:$0xff]
        %v1156 = vld [vmem:[#allocation6 + $0xf8] sm:$0xff]
        %v1189 = vunpack.c.l.b16 %v1125
        %v1190 = vunpack.c.h.b16 %v1125
        %v1191 = vunpack.c.l.b16 %v1126
        %v1192 = vunpack.c.h.b16 %v1126
        %v1193 = vunpack.c.l.b16 %v1127
        %v1194 = vunpack.c.h.b16 %v1127
        %v1195 = vunpack.c.l.b16 %v1128
        %v1196 = vunpack.c.h.b16 %v1128
        %v1197 = vunpack.c.l.b16 %v1129
        %v1198 = vunpack.c.h.b16 %v1129
        %v1199 = vunpack.c.l.b16 %v1130
        %v1200 = vunpack.c.h.b16 %v1130
        %v1201 = vunpack.c.l.b16 %v1131
        %v1202 = vunpack.c.h.b16 %v1131
        %v1203 = vunpack.c.l.b16 %v1132
        %v1204 = vunpack.c.h.b16 %v1132
        %v1205 = vunpack.c.l.b16 %v1133
        %v1206 = vunpack.c.h.b16 %v1133
        %v1207 = vunpack.c.l.b16 %v1134
        %v1208 = vunpack.c.h.b16 %v1134
        %v1209 = vunpack.c.l.b16 %v1135
        %v1210 = vunpack.c.h.b16 %v1135
        %v1211 = vunpack.c.l.b16 %v1136
        %v1212 = vunpack.c.h.b16 %v1136
        %v1213 = vunpack.c.l.b16 %v1137
        %v1214 = vunpack.c.h.b16 %v1137
        %v1215 = vunpack.c.l.b16 %v1138
        %v1216 = vunpack.c.h.b16 %v1138
        %v1217 = vunpack.c.l.b16 %v1139
        %v1218 = vunpack.c.h.b16 %v1139
        %v1219 = vunpack.c.l.b16 %v1140
        %v1220 = vunpack.c.h.b16 %v1140
        %v1221 = vunpack.c.l.b16 %v1141
        %v1222 = vunpack.c.h.b16 %v1141
        %v1223 = vunpack.c.l.b16 %v1142
        %v1224 = vunpack.c.h.b16 %v1142
        %v1225 = vunpack.c.l.b16 %v1143
        %v1226 = vunpack.c.h.b16 %v1143
        %v1227 = vunpack.c.l.b16 %v1144
        %v1228 = vunpack.c.h.b16 %v1144
        %v1229 = vunpack.c.l.b16 %v1145
        %v1230 = vunpack.c.h.b16 %v1145
        %v1231 = vunpack.c.l.b16 %v1146
        %v1232 = vunpack.c.h.b16 %v1146
        %v1233 = vunpack.c.l.b16 %v1147
        %v1234 = vunpack.c.h.b16 %v1147
        %v1235 = vunpack.c.l.b16 %v1148
        %v1236 = vunpack.c.h.b16 %v1148
        %v1237 = vunpack.c.l.b16 %v1149
        %v1238 = vunpack.c.h.b16 %v1149
        %v1239 = vunpack.c.l.b16 %v1150
        %v1240 = vunpack.c.h.b16 %v1150
        %v1241 = vunpack.c.l.b16 %v1151
        %v1242 = vunpack.c.h.b16 %v1151
        %v1243 = vunpack.c.l.b16 %v1152
        %v1244 = vunpack.c.h.b16 %v1152
        %v1245 = vunpack.c.l.b16 %v1153
        %v1246 = vunpack.c.h.b16 %v1153
        %v1247 = vunpack.c.l.b16 %v1154
        %v1248 = vunpack.c.h.b16 %v1154
        %v1249 = vunpack.c.l.b16 %v1155
        %v1250 = vunpack.c.h.b16 %v1155
        %v1251 = vunpack.c.l.b16 %v1156
        %v1252 = vunpack.c.h.b16 %v1156
        %v1253 = vpack.c.b16 %v1193, %v1189
        %v1254 = vpack.c.b16 %v1194, %v1190
        %v1255 = vpack.c.b16 %v1195, %v1191
        %v1256 = vpack.c.b16 %v1196, %v1192
        %v1257 = vpack.c.b16 %v1201, %v1197
        %v1258 = vpack.c.b16 %v1202, %v1198
        %v1259 = vpack.c.b16 %v1203, %v1199
        %v1260 = vpack.c.b16 %v1204, %v1200
        %v1261 = vpack.c.b16 %v1209, %v1205
        %v1262 = vpack.c.b16 %v1210, %v1206
        %v1263 = vpack.c.b16 %v1211, %v1207
        %v1264 = vpack.c.b16 %v1212, %v1208
        %v1265 = vpack.c.b16 %v1217, %v1213
        %v1266 = vpack.c.b16 %v1218, %v1214
        %v1267 = vpack.c.b16 %v1219, %v1215
        %v1268 = vpack.c.b16 %v1220, %v1216
        %v1269 = vpack.c.b16 %v1225, %v1221
        %v1270 = vpack.c.b16 %v1226, %v1222
        %v1271 = vpack.c.b16 %v1227, %v1223
        %v1272 = vpack.c.b16 %v1228, %v1224
        %v1273 = vpack.c.b16 %v1233, %v1229
        %v1274 = vpack.c.b16 %v1234, %v1230
        %v1275 = vpack.c.b16 %v1235, %v1231
        %v1276 = vpack.c.b16 %v1236, %v1232
        %v1277 = vpack.c.b16 %v1241, %v1237
        %v1278 = vpack.c.b16 %v1242, %v1238
        %v1279 = vpack.c.b16 %v1243, %v1239
        %v1280 = vpack.c.b16 %v1244, %v1240
        %v1281 = vpack.c.b16 %v1249, %v1245
        %v1282 = vpack.c.b16 %v1250, %v1246
        %v1283 = vpack.c.b16 %v1251, %v1247
        %v1284 = vpack.c.b16 %v1252, %v1248
        %1317 = vmatprep.subr.bf16.mxu0 %v1254
        %1318 = vmatpush1.bf16.msra.mxu0 %v1253
        %1319 = vmatprep.subr.bf16.mxu0 %v1258
        %1320 = vmatpush1.bf16.msra.mxu0 %v1257
        %1321 = vmatprep.subr.bf16.mxu0 %v1262
        %1322 = vmatpush1.bf16.msra.mxu0 %v1261
        %1323 = vmatprep.subr.bf16.mxu0 %v1266
        %1324 = vmatpush1.bf16.msra.mxu0 %v1265
        %1325 = vmatprep.subr.bf16.mxu0 %v1270
        %1326 = vmatpush1.bf16.msra.mxu0 %v1269
        %1327 = vmatprep.subr.bf16.mxu0 %v1274
        %1328 = vmatpush1.bf16.msra.mxu0 %v1273
        %1329 = vmatprep.subr.bf16.mxu0 %v1278
        %1330 = vmatpush1.bf16.msra.mxu0 %v1277
        %1331 = vmatprep.subr.bf16.mxu0 %v1282
        %1332 = vmatpush1.bf16.msra.mxu0 %v1281
        %1333 = vmatprep.subr.bf16.mxu0 0
        %1334 = vmatpush1.bf16.msra.mxu0 0
        %1335 = vmatprep.subr.bf16.mxu0 0
        %1336 = vmatpush1.bf16.msra.mxu0 0
        %1337 = vmatprep.subr.bf16.mxu0 0
        %1338 = vmatpush1.bf16.msra.mxu0 0
        %1339 = vmatprep.subr.bf16.mxu0 0
        %1340 = vmatpush1.bf16.msra.mxu0 0
        %1341 = vmatprep.subr.bf16.mxu0 0
        %1342 = vmatpush1.bf16.msra.mxu0 0
        %1343 = vmatprep.subr.bf16.mxu0 0
        %1344 = vmatpush1.bf16.msra.mxu0 0
        %1345 = vmatprep.subr.bf16.mxu0 0
        %1346 = vmatpush1.bf16.msra.mxu0 0
        %1347 = vmatprep.subr.bf16.mxu0 0
        %1348 = vmatpush1.bf16.msra.mxu0 0
        %1349 = vmatprep.mubr.bf16.mxu0 0
        %1350 = vmatmul.mubr.bf16.gmra.mrb[0].mxu0 %v1124
        %v1351 = vpop.f32.mrb[0].mxu0
        %v1352 = vadd.f32 0.0, %v1351
        %v1353 = vpop.f32.mrb[0].mxu0
        %v1354 = vadd.f32 0.0, %v1353
        %v1355 = vpop.f32.mrb[0].mxu0
        %v1356 = vpop.f32.mrb[0].mxu0
        %1357 = vdwg.mxu0
        %1358 = vmatprep.subr.bf16.mxu0 %v1256
        %1359 = vmatpush1.bf16.msra.mxu0 %v1255
        %1360 = vmatprep.subr.bf16.mxu0 %v1260
        %1361 = vmatpush1.bf16.msra.mxu0 %v1259
        %1362 = vmatprep.subr.bf16.mxu0 %v1264
        %1363 = vmatpush1.bf16.msra.mxu0 %v1263
        %1364 = vmatprep.subr.bf16.mxu0 %v1268
        %1365 = vmatpush1.bf16.msra.mxu0 %v1267
        %1366 = vmatprep.subr.bf16.mxu0 %v1272
        %1367 = vmatpush1.bf16.msra.mxu0 %v1271
        %1368 = vmatprep.subr.bf16.mxu0 %v1276
        %1369 = vmatpush1.bf16.msra.mxu0 %v1275
        %1370 = vmatprep.subr.bf16.mxu0 %v1280
        %1371 = vmatpush1.bf16.msra.mxu0 %v1279
        %1372 = vmatprep.subr.bf16.mxu0 %v1284
        %1373 = vmatpush1.bf16.msra.mxu0 %v1283
        %1374 = vmatprep.subr.bf16.mxu0 0
        %1375 = vmatpush1.bf16.msra.mxu0 0
        %1376 = vmatprep.subr.bf16.mxu0 0
        %1377 = vmatpush1.bf16.msra.mxu0 0
        %1378 = vmatprep.subr.bf16.mxu0 0
        %1379 = vmatpush1.bf16.msra.mxu0 0
        %1380 = vmatprep.subr.bf16.mxu0 0
        %1381 = vmatpush1.bf16.msra.mxu0 0
        %1382 = vmatprep.subr.bf16.mxu0 0
        %1383 = vmatpush1.bf16.msra.mxu0 0
        %1384 = vmatprep.subr.bf16.mxu0 0
        %1385 = vmatpush1.bf16.msra.mxu0 0
        %1386 = vmatprep.subr.bf16.mxu0 0
        %1387 = vmatpush1.bf16.msra.mxu0 0
        %1388 = vmatprep.subr.bf16.mxu0 0
        %1389 = vmatpush1.bf16.msra.mxu0 0
        %1390 = vmatprep.mubr.bf16.mxu0 0
        %1391 = vmatmul.mubr.bf16.gmra.mrb[0].mxu0 %v1124
        %v1392 = vpop.f32.mrb[0].mxu0
        %v1393 = vadd.f32 0.0, %v1392
        %v1394 = vpop.f32.mrb[0].mxu0
        %v1395 = vadd.f32 0.0, %v1394
        %v1396 = vpop.f32.mrb[0].mxu0
        %v1397 = vpop.f32.mrb[0].mxu0
        %1398 = vdwg.mxu0
        %v1399 = vmul.f32 %v1352, 1.702
        %v1400 = vmul.f32 %v1354, 1.702
        %v1401 = vmul.f32 %v1393, 1.702
        %v1402 = vmul.f32 %v1395, 1.702
        %v1403 = vxor.u32 %v1399, 2147483648
        %v1404 = vxor.u32 %v1400, 2147483648
        %v1405 = vxor.u32 %v1401, 2147483648
        %v1406 = vxor.u32 %v1402, 2147483648
        %v1407 = vmul.f32 %v1403, 1.442695
        %v1408 = vpow.pop %v1407
        %v1409 = vmul.f32 %v1404, 1.442695
        %v1410 = vpow.pop %v1409
        %v1411 = vmul.f32 %v1405, 1.442695
        %v1412 = vpow.pop %v1411
        %v1413 = vmul.f32 %v1406, 1.442695
        %v1414 = vpow.pop %v1413
        %v1415 = vadd.f32 %v1408, 1.0
        %v1416 = vadd.f32 %v1410, 1.0
        %v1417 = vadd.f32 %v1412, 1.0
        %v1418 = vadd.f32 %v1414, 1.0
        %v1419 = vrcp.pop %v1415
        %v1420 = vmul.f32 1.0, %v1419
        %v1421 = vrcp.pop %v1416
        %v1422 = vmul.f32 1.0, %v1421
        %v1423 = vrcp.pop %v1417
        %v1424 = vmul.f32 1.0, %v1423
        %v1425 = vrcp.pop %v1418
        %v1426 = vmul.f32 1.0, %v1425
        %v1427 = vmul.f32 %v1352, %v1420
        %v1428 = vmul.f32 %v1354, %v1422
        %v1429 = vmul.f32 %v1393, %v1424
        %v1430 = vmul.f32 %v1395, %v1426
        %v1431 = vpack.c.bf16 %v1427, %v1427
        %v1432 = vpack.c.bf16 %v1428, %v1428
        %v1433 = vpack.c.bf16 %v1429, %v1429
        %v1434 = vpack.c.bf16 %v1430, %v1430
        %v1435 = vld [vmem:[#allocation8] sm:$0xf]
        %v1436 = vld [vmem:[#allocation8 + $0x4] sm:$0xf]
        %v1437 = vld [vmem:[#allocation8 + $0x8] sm:$0xf]
        %v1438 = vld [vmem:[#allocation8 + $0xc] sm:$0xf]
        %v1439 = vld [vmem:[#allocation8 + $0x10] sm:$0xf]
        %v1440 = vld [vmem:[#allocation8 + $0x14] sm:$0xf]
        %v1441 = vld [vmem:[#allocation8 + $0x18] sm:$0xf]
        %v1442 = vld [vmem:[#allocation8 + $0x1c] sm:$0xf]
        %v1443 = vld [vmem:[#allocation8 + $0x20] sm:$0xf]
        %v1444 = vld [vmem:[#allocation8 + $0x24] sm:$0xf]
        %v1445 = vld [vmem:[#allocation8 + $0x28] sm:$0xf]
        %v1446 = vld [vmem:[#allocation8 + $0x2c] sm:$0xf]
        %v1447 = vld [vmem:[#allocation8 + $0x30] sm:$0xf]
        %v1448 = vld [vmem:[#allocation8 + $0x34] sm:$0xf]
        %v1449 = vld [vmem:[#allocation8 + $0x38] sm:$0xf]
        %v1450 = vld [vmem:[#allocation8 + $0x3c] sm:$0xf]
        %v1451 = vld [vmem:[#allocation8 + $0x40] sm:$0xf]
        %v1452 = vld [vmem:[#allocation8 + $0x44] sm:$0xf]
        %v1453 = vld [vmem:[#allocation8 + $0x48] sm:$0xf]
        %v1454 = vld [vmem:[#allocation8 + $0x4c] sm:$0xf]
        %v1455 = vld [vmem:[#allocation8 + $0x50] sm:$0xf]
        %v1456 = vld [vmem:[#allocation8 + $0x54] sm:$0xf]
        %v1457 = vld [vmem:[#allocation8 + $0x58] sm:$0xf]
        %v1458 = vld [vmem:[#allocation8 + $0x5c] sm:$0xf]
        %v1459 = vld [vmem:[#allocation8 + $0x60] sm:$0xf]
        %v1460 = vld [vmem:[#allocation8 + $0x64] sm:$0xf]
        %v1461 = vld [vmem:[#allocation8 + $0x68] sm:$0xf]
        %v1462 = vld [vmem:[#allocation8 + $0x6c] sm:$0xf]
        %v1463 = vld [vmem:[#allocation8 + $0x70] sm:$0xf]
        %v1464 = vld [vmem:[#allocation8 + $0x74] sm:$0xf]
        %v1465 = vld [vmem:[#allocation8 + $0x78] sm:$0xf]
        %v1466 = vld [vmem:[#allocation8 + $0x7c] sm:$0xf]
        %v1467 = vld [vmem:[#allocation8 + $0x80] sm:$0xf]
        %v1468 = vld [vmem:[#allocation8 + $0x84] sm:$0xf]
        %v1469 = vld [vmem:[#allocation8 + $0x88] sm:$0xf]
        %v1470 = vld [vmem:[#allocation8 + $0x8c] sm:$0xf]
        %v1471 = vld [vmem:[#allocation8 + $0x90] sm:$0xf]
        %v1472 = vld [vmem:[#allocation8 + $0x94] sm:$0xf]
        %v1473 = vld [vmem:[#allocation8 + $0x98] sm:$0xf]
        %v1474 = vld [vmem:[#allocation8 + $0x9c] sm:$0xf]
        %v1475 = vld [vmem:[#allocation8 + $0xa0] sm:$0xf]
        %v1476 = vld [vmem:[#allocation8 + $0xa4] sm:$0xf]
        %v1477 = vld [vmem:[#allocation8 + $0xa8] sm:$0xf]
        %v1478 = vld [vmem:[#allocation8 + $0xac] sm:$0xf]
        %v1479 = vld [vmem:[#allocation8 + $0xb0] sm:$0xf]
        %v1480 = vld [vmem:[#allocation8 + $0xb4] sm:$0xf]
        %v1481 = vld [vmem:[#allocation8 + $0xb8] sm:$0xf]
        %v1482 = vld [vmem:[#allocation8 + $0xbc] sm:$0xf]
        %v1483 = vld [vmem:[#allocation8 + $0xc0] sm:$0xf]
        %v1484 = vld [vmem:[#allocation8 + $0xc4] sm:$0xf]
        %v1485 = vld [vmem:[#allocation8 + $0xc8] sm:$0xf]
        %v1486 = vld [vmem:[#allocation8 + $0xcc] sm:$0xf]
        %v1487 = vld [vmem:[#allocation8 + $0xd0] sm:$0xf]
        %v1488 = vld [vmem:[#allocation8 + $0xd4] sm:$0xf]
        %v1489 = vld [vmem:[#allocation8 + $0xd8] sm:$0xf]
        %v1490 = vld [vmem:[#allocation8 + $0xdc] sm:$0xf]
        %v1491 = vld [vmem:[#allocation8 + $0xe0] sm:$0xf]
        %v1492 = vld [vmem:[#allocation8 + $0xe4] sm:$0xf]
        %v1493 = vld [vmem:[#allocation8 + $0xe8] sm:$0xf]
        %v1494 = vld [vmem:[#allocation8 + $0xec] sm:$0xf]
        %v1495 = vld [vmem:[#allocation8 + $0xf0] sm:$0xf]
        %v1496 = vld [vmem:[#allocation8 + $0xf4] sm:$0xf]
        %v1497 = vld [vmem:[#allocation8 + $0xf8] sm:$0xf]
        %v1498 = vld [vmem:[#allocation8 + $0xfc] sm:$0xf]
        %v1563 = vunpack.c.l.b16 %v1435
        %v1564 = vunpack.c.l.b16 %v1436
        %v1565 = vunpack.c.l.b16 %v1437
        %v1566 = vunpack.c.l.b16 %v1438
        %v1567 = vunpack.c.l.b16 %v1439
        %v1568 = vunpack.c.l.b16 %v1440
        %v1569 = vunpack.c.l.b16 %v1441
        %v1570 = vunpack.c.l.b16 %v1442
        %v1571 = vunpack.c.l.b16 %v1443
        %v1572 = vunpack.c.l.b16 %v1444
        %v1573 = vunpack.c.l.b16 %v1445
        %v1574 = vunpack.c.l.b16 %v1446
        %v1575 = vunpack.c.l.b16 %v1447
        %v1576 = vunpack.c.l.b16 %v1448
        %v1577 = vunpack.c.l.b16 %v1449
        %v1578 = vunpack.c.l.b16 %v1450
        %v1579 = vunpack.c.l.b16 %v1451
        %v1580 = vunpack.c.l.b16 %v1452
        %v1581 = vunpack.c.l.b16 %v1453
        %v1582 = vunpack.c.l.b16 %v1454
        %v1583 = vunpack.c.l.b16 %v1455
        %v1584 = vunpack.c.l.b16 %v1456
        %v1585 = vunpack.c.l.b16 %v1457
        %v1586 = vunpack.c.l.b16 %v1458
        %v1587 = vunpack.c.l.b16 %v1459
        %v1588 = vunpack.c.l.b16 %v1460
        %v1589 = vunpack.c.l.b16 %v1461
        %v1590 = vunpack.c.l.b16 %v1462
        %v1591 = vunpack.c.l.b16 %v1463
        %v1592 = vunpack.c.l.b16 %v1464
        %v1593 = vunpack.c.l.b16 %v1465
        %v1594 = vunpack.c.l.b16 %v1466
        %v1595 = vunpack.c.l.b16 %v1467
        %v1596 = vunpack.c.l.b16 %v1468
        %v1597 = vunpack.c.l.b16 %v1469
        %v1598 = vunpack.c.l.b16 %v1470
        %v1599 = vunpack.c.l.b16 %v1471
        %v1600 = vunpack.c.l.b16 %v1472
        %v1601 = vunpack.c.l.b16 %v1473
        %v1602 = vunpack.c.l.b16 %v1474
        %v1603 = vunpack.c.l.b16 %v1475
        %v1604 = vunpack.c.l.b16 %v1476
        %v1605 = vunpack.c.l.b16 %v1477
        %v1606 = vunpack.c.l.b16 %v1478
        %v1607 = vunpack.c.l.b16 %v1479
        %v1608 = vunpack.c.l.b16 %v1480
        %v1609 = vunpack.c.l.b16 %v1481
        %v1610 = vunpack.c.l.b16 %v1482
        %v1611 = vunpack.c.l.b16 %v1483
        %v1612 = vunpack.c.l.b16 %v1484
        %v1613 = vunpack.c.l.b16 %v1485
        %v1614 = vunpack.c.l.b16 %v1486
        %v1615 = vunpack.c.l.b16 %v1487
        %v1616 = vunpack.c.l.b16 %v1488
        %v1617 = vunpack.c.l.b16 %v1489
        %v1618 = vunpack.c.l.b16 %v1490
        %v1619 = vunpack.c.l.b16 %v1491
        %v1620 = vunpack.c.l.b16 %v1492
        %v1621 = vunpack.c.l.b16 %v1493
        %v1622 = vunpack.c.l.b16 %v1494
        %v1623 = vunpack.c.l.b16 %v1495
        %v1624 = vunpack.c.l.b16 %v1496
        %v1625 = vunpack.c.l.b16 %v1497
        %v1626 = vunpack.c.l.b16 %v1498
        %v1627 = vpack.c.b16 %v1564, %v1563
        %v1628 = vpack.c.b16 %v1566, %v1565
        %v1629 = vpack.c.b16 %v1568, %v1567
        %v1630 = vpack.c.b16 %v1570, %v1569
        %v1631 = vpack.c.b16 %v1572, %v1571
        %v1632 = vpack.c.b16 %v1574, %v1573
        %v1633 = vpack.c.b16 %v1576, %v1575
        %v1634 = vpack.c.b16 %v1578, %v1577
        %v1635 = vpack.c.b16 %v1580, %v1579
        %v1636 = vpack.c.b16 %v1582, %v1581
        %v1637 = vpack.c.b16 %v1584, %v1583
        %v1638 = vpack.c.b16 %v1586, %v1585
        %v1639 = vpack.c.b16 %v1588, %v1587
        %v1640 = vpack.c.b16 %v1590, %v1589
        %v1641 = vpack.c.b16 %v1592, %v1591
        %v1642 = vpack.c.b16 %v1594, %v1593
        %v1643 = vpack.c.b16 %v1596, %v1595
        %v1644 = vpack.c.b16 %v1598, %v1597
        %v1645 = vpack.c.b16 %v1600, %v1599
        %v1646 = vpack.c.b16 %v1602, %v1601
        %v1647 = vpack.c.b16 %v1604, %v1603
        %v1648 = vpack.c.b16 %v1606, %v1605
        %v1649 = vpack.c.b16 %v1608, %v1607
        %v1650 = vpack.c.b16 %v1610, %v1609
        %v1651 = vpack.c.b16 %v1612, %v1611
        %v1652 = vpack.c.b16 %v1614, %v1613
        %v1653 = vpack.c.b16 %v1616, %v1615
        %v1654 = vpack.c.b16 %v1618, %v1617
        %v1655 = vpack.c.b16 %v1620, %v1619
        %v1656 = vpack.c.b16 %v1622, %v1621
        %v1657 = vpack.c.b16 %v1624, %v1623
        %v1658 = vpack.c.b16 %v1626, %v1625
        %1691 = vmatprep.subr.bf16.mxu0 0
        %1692 = vmatpush1.bf16.msra.mxu0 %v1627
        %1693 = vmatprep.subr.bf16.mxu0 0
        %1694 = vmatpush1.bf16.msra.mxu0 %v1628
        %1695 = vmatprep.subr.bf16.mxu0 0
        %1696 = vmatpush1.bf16.msra.mxu0 %v1629
        %1697 = vmatprep.subr.bf16.mxu0 0
        %1698 = vmatpush1.bf16.msra.mxu0 %v1630
        %1699 = vmatprep.subr.bf16.mxu0 0
        %1700 = vmatpush1.bf16.msra.mxu0 %v1631
        %1701 = vmatprep.subr.bf16.mxu0 0
        %1702 = vmatpush1.bf16.msra.mxu0 %v1632
        %1703 = vmatprep.subr.bf16.mxu0 0
        %1704 = vmatpush1.bf16.msra.mxu0 %v1633
        %1705 = vmatprep.subr.bf16.mxu0 0
        %1706 = vmatpush1.bf16.msra.mxu0 %v1634
        %1707 = vmatprep.subr.bf16.mxu0 0
        %1708 = vmatpush1.bf16.msra.mxu0 %v1635
        %1709 = vmatprep.subr.bf16.mxu0 0
        %1710 = vmatpush1.bf16.msra.mxu0 %v1636
        %1711 = vmatprep.subr.bf16.mxu0 0
        %1712 = vmatpush1.bf16.msra.mxu0 %v1637
        %1713 = vmatprep.subr.bf16.mxu0 0
        %1714 = vmatpush1.bf16.msra.mxu0 %v1638
        %1715 = vmatprep.subr.bf16.mxu0 0
        %1716 = vmatpush1.bf16.msra.mxu0 %v1639
        %1717 = vmatprep.subr.bf16.mxu0 0
        %1718 = vmatpush1.bf16.msra.mxu0 %v1640
        %1719 = vmatprep.subr.bf16.mxu0 0
        %1720 = vmatpush1.bf16.msra.mxu0 %v1641
        %1721 = vmatprep.subr.bf16.mxu0 0
        %1722 = vmatpush1.bf16.msra.mxu0 %v1642
        %1723 = vmatprep.mubr.bf16.mxu0 %v1432
        %1724 = vmatmul.mubr.bf16.gmra.mrb[0].mxu0 %v1431
        %v1725 = vpop.f32.mrb[0].mxu0
        %v1726 = vadd.f32 0.0, %v1725
        %v1727 = vpop.f32.mrb[0].mxu0
        %v1728 = vpop.f32.mrb[0].mxu0
        %v1729 = vpop.f32.mrb[0].mxu0
        %1730 = vdwg.mxu0
        %1731 = vmatprep.subr.bf16.mxu0 0
        %1732 = vmatpush1.bf16.msra.mxu0 %v1643
        %1733 = vmatprep.subr.bf16.mxu0 0
        %1734 = vmatpush1.bf16.msra.mxu0 %v1644
        %1735 = vmatprep.subr.bf16.mxu0 0
        %1736 = vmatpush1.bf16.msra.mxu0 %v1645
        %1737 = vmatprep.subr.bf16.mxu0 0
        %1738 = vmatpush1.bf16.msra.mxu0 %v1646
        %1739 = vmatprep.subr.bf16.mxu0 0
        %1740 = vmatpush1.bf16.msra.mxu0 %v1647
        %1741 = vmatprep.subr.bf16.mxu0 0
        %1742 = vmatpush1.bf16.msra.mxu0 %v1648
        %1743 = vmatprep.subr.bf16.mxu0 0
        %1744 = vmatpush1.bf16.msra.mxu0 %v1649
        %1745 = vmatprep.subr.bf16.mxu0 0
        %1746 = vmatpush1.bf16.msra.mxu0 %v1650
        %1747 = vmatprep.subr.bf16.mxu0 0
        %1748 = vmatpush1.bf16.msra.mxu0 %v1651
        %1749 = vmatprep.subr.bf16.mxu0 0
        %1750 = vmatpush1.bf16.msra.mxu0 %v1652
        %1751 = vmatprep.subr.bf16.mxu0 0
        %1752 = vmatpush1.bf16.msra.mxu0 %v1653
        %1753 = vmatprep.subr.bf16.mxu0 0
        %1754 = vmatpush1.bf16.msra.mxu0 %v1654
        %1755 = vmatprep.subr.bf16.mxu0 0
        %1756 = vmatpush1.bf16.msra.mxu0 %v1655
        %1757 = vmatprep.subr.bf16.mxu0 0
        %1758 = vmatpush1.bf16.msra.mxu0 %v1656
        %1759 = vmatprep.subr.bf16.mxu0 0
        %1760 = vmatpush1.bf16.msra.mxu0 %v1657
        %1761 = vmatprep.subr.bf16.mxu0 0
        %1762 = vmatpush1.bf16.msra.mxu0 %v1658
        %1763 = vmatprep.mubr.bf16.mxu0 %v1434
        %1764 = vmatmul.mubr.bf16.gmra.mrb[0].mxu0 %v1433
        %v1765 = vpop.f32.mrb[0].mxu0
        %v1766 = vadd.f32 %v1726, %v1765
        %v1767 = vpop.f32.mrb[0].mxu0
        %v1768 = vpop.f32.mrb[0].mxu0
        %v1769 = vpop.f32.mrb[0].mxu0
        %1770 = vdwg.mxu0
        %v1771 = vadd.f32 %v1096, %v1766
        %s1772 = scalar_lea.vmem %s3, 1
        %v1773 = vld [vmem:[%s1772] sm:$0x1]
        %s1774 = scalar_lea.vmem %s4, 1
        %v1775 = vld [vmem:[%s1774] sm:$0x1]
        %1776 = vadd.xlane.f32.xlu0 %v1771
        %v1777 = vpop.xlane.xlu0 %1776
        %v1778 = vmul.f32 %v1777, %v493
        %v1779 = vsub.f32 %v1771, %v1778
        %v1780 = vmul.f32 %v1779, %v1779
        %1781 = vadd.xlane.f32.xlu0 %v1780
        %v1782 = vpop.xlane.xlu0 %1781
        %v1783 = vmul.f32 %v1782, %v493
        %v1784 = vadd.f32 %v1783, 1e-05
        %v1785 = vrsqrt.pop %v1784
        %v1786 = vmul.f32 %v1779, %v1785
        %v1788 = vlaneseq
        %v1789 = vshrl.u32 %v1788, 7
        %v1790 = vsub.s32 0, %v1789
        %v1791 = vrot.slane %v1773, %v1790
        %v1793 = vmul.f32 %v1786, %v1791
        %v1795 = vlaneseq
        %v1796 = vshrl.u32 %v1795, 7
        %v1797 = vsub.s32 0, %v1796
        %v1798 = vrot.slane %v1775, %v1797
        %v1800 = vadd.f32 %v1793, %v1798
        %v1801 = vpack.c.bf16 %v1800, %v1800
        %s1802 = scalar_lea.vmem [#allocation4], 192
        %v1803 = vld [vmem:[%s1802] sm:$0xff]
        %v1804 = vld [vmem:[%s1802 + $0x8] sm:$0xf]
        %v1805 = vld [vmem:[%s1802 + $0xc] sm:$0xff]
        %v1806 = vld [vmem:[%s1802 + $0x14] sm:$0xf]
        %v1807 = vld [vmem:[%s1802 + $0x18] sm:$0xff]
        %v1808 = vld [vmem:[%s1802 + $0x20] sm:$0xf]
        %v1809 = vld [vmem:[%s1802 + $0x24] sm:$0xff]
        %v1810 = vld [vmem:[%s1802 + $0x2c] sm:$0xf]
        %v1811 = vld [vmem:[%s1802 + $0x30] sm:$0xff]
        %v1812 = vld [vmem:[%s1802 + $0x38] sm:$0xf]
        %v1813 = vld [vmem:[%s1802 + $0x3c] sm:$0xff]
        %v1814 = vld [vmem:[%s1802 + $0x44] sm:$0xf]
        %v1815 = vld [vmem:[%s1802 + $0x48] sm:$0xff]
        %v1816 = vld [vmem:[%s1802 + $0x50] sm:$0xf]
        %v1817 = vld [vmem:[%s1802 + $0x54] sm:$0xff]
        %v1818 = vld [vmem:[%s1802 + $0x5c] sm:$0xf]
        %v1819 = vld [vmem:[%s1802 + $0x60] sm:$0xff]
        %v1820 = vld [vmem:[%s1802 + $0x68] sm:$0xf]
        %v1821 = vld [vmem:[%s1802 + $0x6c] sm:$0xff]
        %v1822 = vld [vmem:[%s1802 + $0x74] sm:$0xf]
        %v1823 = vld [vmem:[%s1802 + $0x78] sm:$0xff]
        %v1824 = vld [vmem:[%s1802 + $0x80] sm:$0xf]
        %v1825 = vld [vmem:[%s1802 + $0x84] sm:$0xff]
        %v1826 = vld [vmem:[%s1802 + $0x8c] sm:$0xf]
        %v1827 = vld [vmem:[%s1802 + $0x90] sm:$0xff]
        %v1828 = vld [vmem:[%s1802 + $0x98] sm:$0xf]
        %v1829 = vld [vmem:[%s1802 + $0x9c] sm:$0xff]
        %v1830 = vld [vmem:[%s1802 + $0xa4] sm:$0xf]
        %v1831 = vld [vmem:[%s1802 + $0xa8] sm:$0xff]
        %v1832 = vld [vmem:[%s1802 + $0xb0] sm:$0xf]
        %v1833 = vld [vmem:[%s1802 + $0xb4] sm:$0xff]
        %v1834 = vld [vmem:[%s1802 + $0xbc] sm:$0xf]
        %v1867 = vunpack.c.l.b16 %v1803
        %v1868 = vunpack.c.h.b16 %v1803
        %v1869 = vunpack.c.l.b16 %v1804
        %v1870 = vunpack.c.l.b16 %v1805
        %v1871 = vunpack.c.h.b16 %v1805
        %v1872 = vunpack.c.l.b16 %v1806
        %v1873 = vunpack.c.l.b16 %v1807
        %v1874 = vunpack.c.h.b16 %v1807
        %v1875 = vunpack.c.l.b16 %v1808
        %v1876 = vunpack.c.l.b16 %v1809
        %v1877 = vunpack.c.h.b16 %v1809
        %v1878 = vunpack.c.l.b16 %v1810
        %v1879 = vunpack.c.l.b16 %v1811
        %v1880 = vunpack.c.h.b16 %v1811
        %v1881 = vunpack.c.l.b16 %v1812
        %v1882 = vunpack.c.l.b16 %v1813
        %v1883 = vunpack.c.h.b16 %v1813
        %v1884 = vunpack.c.l.b16 %v1814
        %v1885 = vunpack.c.l.b16 %v1815
        %v1886 = vunpack.c.h.b16 %v1815
        %v1887 = vunpack.c.l.b16 %v1816
        %v1888 = vunpack.c.l.b16 %v1817
        %v1889 = vunpack.c.h.b16 %v1817
        %v1890 = vunpack.c.l.b16 %v1818
        %v1891 = vunpack.c.l.b16 %v1819
        %v1892 = vunpack.c.h.b16 %v1819
        %v1893 = vunpack.c.l.b16 %v1820
        %v1894 = vunpack.c.l.b16 %v1821
        %v1895 = vunpack.c.h.b16 %v1821
        %v1896 = vunpack.c.l.b16 %v1822
        %v1897 = vunpack.c.l.b16 %v1823
        %v1898 = vunpack.c.h.b16 %v1823
        %v1899 = vunpack.c.l.b16 %v1824
        %v1900 = vunpack.c.l.b16 %v1825
        %v1901 = vunpack.c.h.b16 %v1825
        %v1902 = vunpack.c.l.b16 %v1826
        %v1903 = vunpack.c.l.b16 %v1827
        %v1904 = vunpack.c.h.b16 %v1827
        %v1905 = vunpack.c.l.b16 %v1828
        %v1906 = vunpack.c.l.b16 %v1829
        %v1907 = vunpack.c.h.b16 %v1829
        %v1908 = vunpack.c.l.b16 %v1830
        %v1909 = vunpack.c.l.b16 %v1831
        %v1910 = vunpack.c.h.b16 %v1831
        %v1911 = vunpack.c.l.b16 %v1832
        %v1912 = vunpack.c.l.b16 %v1833
        %v1913 = vunpack.c.h.b16 %v1833
        %v1914 = vunpack.c.l.b16 %v1834
        %v1915 = vpack.c.b16 %v1870, %v1867
        %v1916 = vpack.c.b16 %v1871, %v1868
        %v1917 = vpack.c.b16 %v1872, %v1869
        %v1918 = vpack.c.b16 %v1876, %v1873
        %v1919 = vpack.c.b16 %v1877, %v1874
        %v1920 = vpack.c.b16 %v1878, %v1875
        %v1921 = vpack.c.b16 %v1882, %v1879
        %v1922 = vpack.c.b16 %v1883, %v1880
        %v1923 = vpack.c.b16 %v1884, %v1881
        %v1924 = vpack.c.b16 %v1888, %v1885
        %v1925 = vpack.c.b16 %v1889, %v1886
        %v1926 = vpack.c.b16 %v1890, %v1887
        %v1927 = vpack.c.b16 %v1894, %v1891
        %v1928 = vpack.c.b16 %v1895, %v1892
        %v1929 = vpack.c.b16 %v1896, %v1893
        %v1930 = vpack.c.b16 %v1900, %v1897
        %v1931 = vpack.c.b16 %v1901, %v1898
        %v1932 = vpack.c.b16 %v1902, %v1899
        %v1933 = vpack.c.b16 %v1906, %v1903
        %v1934 = vpack.c.b16 %v1907, %v1904
        %v1935 = vpack.c.b16 %v1908, %v1905
        %v1936 = vpack.c.b16 %v1912, %v1909
        %v1937 = vpack.c.b16 %v1913, %v1910
        %v1938 = vpack.c.b16 %v1914, %v1911
        %1963 = vmatprep.subr.bf16.mxu0 %v1916
        %1964 = vmatpush1.bf16.msra.mxu0 %v1915
        %1965 = vmatprep.subr.bf16.mxu0 %v1919
        %1966 = vmatpush1.bf16.msra.mxu0 %v1918
        %1967 = vmatprep.subr.bf16.mxu0 %v1922
        %1968 = vmatpush1.bf16.msra.mxu0 %v1921
        %1969 = vmatprep.subr.bf16.mxu0 %v1925
        %1970 = vmatpush1.bf16.msra.mxu0 %v1924
        %1971 = vmatprep.subr.bf16.mxu0 %v1928
        %1972 = vmatpush1.bf16.msra.mxu0 %v1927
        %1973 = vmatprep.subr.bf16.mxu0 %v1931
        %1974 = vmatpush1.bf16.msra.mxu0 %v1930
        %1975 = vmatprep.subr.bf16.mxu0 %v1934
        %1976 = vmatpush1.bf16.msra.mxu0 %v1933
        %1977 = vmatprep.subr.bf16.mxu0 %v1937
        %1978 = vmatpush1.bf16.msra.mxu0 %v1936
        %1979 = vmatprep.subr.bf16.mxu0 0
        %1980 = vmatpush1.bf16.msra.mxu0 0
        %1981 = vmatprep.subr.bf16.mxu0 0
        %1982 = vmatpush1.bf16.msra.mxu0 0
        %1983 = vmatprep.subr.bf16.mxu0 0
        %1984 = vmatpush1.bf16.msra.mxu0 0
        %1985 = vmatprep.subr.bf16.mxu0 0
        %1986 = vmatpush1.bf16.msra.mxu0 0
        %1987 = vmatprep.subr.bf16.mxu0 0
        %1988 = vmatpush1.bf16.msra.mxu0 0
        %1989 = vmatprep.subr.bf16.mxu0 0
        %1990 = vmatpush1.bf16.msra.mxu0 0
        %1991 = vmatprep.subr.bf16.mxu0 0
        %1992 = vmatpush1.bf16.msra.mxu0 0
        %1993 = vmatprep.subr.bf16.mxu0 0
        %1994 = vmatpush1.bf16.msra.mxu0 0
        %1995 = vmatprep.mubr.bf16.mxu0 0
        %1996 = vmatmul.mubr.bf16.gmra.mrb[0].mxu0 %v1801
        %v1997 = vpop.f32.mrb[0].mxu0
        %v1998 = vadd.f32 0.0, %v1997
        %v1999 = vpop.f32.mrb[0].mxu0
        %v2000 = vadd.f32 0.0, %v1999
        %v2001 = vpop.f32.mrb[0].mxu0
        %v2002 = vpop.f32.mrb[0].mxu0
        %2003 = vdwg.mxu0
        %2004 = vmatprep.subr.bf16.mxu0 0
        %2005 = vmatpush1.bf16.msra.mxu0 %v1917
        %2006 = vmatprep.subr.bf16.mxu0 0
        %2007 = vmatpush1.bf16.msra.mxu0 %v1920
        %2008 = vmatprep.subr.bf16.mxu0 0
        %2009 = vmatpush1.bf16.msra.mxu0 %v1923
        %2010 = vmatprep.subr.bf16.mxu0 0
        %2011 = vmatpush1.bf16.msra.mxu0 %v1926
        %2012 = vmatprep.subr.bf16.mxu0 0
        %2013 = vmatpush1.bf16.msra.mxu0 %v1929
        %2014 = vmatprep.subr.bf16.mxu0 0
        %2015 = vmatpush1.bf16.msra.mxu0 %v1932
        %2016 = vmatprep.subr.bf16.mxu0 0
        %2017 = vmatpush1.bf16.msra.mxu0 %v1935
        %2018 = vmatprep.subr.bf16.mxu0 0
        %2019 = vmatpush1.bf16.msra.mxu0 %v1938
        %2020 = vmatprep.subr.bf16.mxu0 0
        %2021 = vmatpush1.bf16.msra.mxu0 0
        %2022 = vmatprep.subr.bf16.mxu0 0
        %2023 = vmatpush1.bf16.msra.mxu0 0
        %2024 = vmatprep.subr.bf16.mxu0 0
        %2025 = vmatpush1.bf16.msra.mxu0 0
        %2026 = vmatprep.subr.bf16.mxu0 0
        %2027 = vmatpush1.bf16.msra.mxu0 0
        %2028 = vmatprep.subr.bf16.mxu0 0
        %2029 = vmatpush1.bf16.msra.mxu0 0
        %2030 = vmatprep.subr.bf16.mxu0 0
        %2031 = vmatpush1.bf16.msra.mxu0 0
        %2032 = vmatprep.subr.bf16.mxu0 0
        %2033 = vmatpush1.bf16.msra.mxu0 0
        %2034 = vmatprep.subr.bf16.mxu0 0
        %2035 = vmatpush1.bf16.msra.mxu0 0
        %2036 = vmatprep.mubr.bf16.mxu0 0
        %2037 = vmatmul.mubr.bf16.gmra.mrb[0].mxu0 %v1801
        %v2038 = vpop.f32.mrb[0].mxu0
        %v2039 = vadd.f32 0.0, %v2038
        %v2040 = vpop.f32.mrb[0].mxu0
        %v2041 = vpop.f32.mrb[0].mxu0
        %v2042 = vpop.f32.mrb[0].mxu0
        %2043 = vdwg.mxu0
        %v2044 = vpack.c.bf16 %v1998, %v1998
        %v2045 = vpack.c.bf16 %v2000, %v2000
        %v2046 = vpack.c.bf16 %v2039, %v2039
        %v2048 = vsel %vm762, %v2044, 0
        %v2051 = vsel %vm762, %v2045, 0
        %2053 = vmatprep.subr.bf16.mxu0 0
        %2054 = vmatpush1.bf16.xpose.msra.mxu0 %v2051
        %2055 = vmatprep.subr.bf16.mxu0 0
        %2056 = vmatpush1.bf16.xpose.msra.mxu0 0
        %2057 = vmatprep.subr.bf16.mxu0 0
        %2058 = vmatpush1.bf16.xpose.msra.mxu0 0
        %2059 = vmatprep.subr.bf16.mxu0 0
        %2060 = vmatpush1.bf16.xpose.msra.mxu0 0
        %2061 = vmatprep.subr.bf16.mxu0 0
        %2062 = vmatpush1.bf16.xpose.msra.mxu0 0
        %2063 = vmatprep.subr.bf16.mxu0 0
        %2064 = vmatpush1.bf16.xpose.msra.mxu0 0
        %2065 = vmatprep.subr.bf16.mxu0 0
        %2066 = vmatpush1.bf16.xpose.msra.mxu0 0
        %2067 = vmatprep.subr.bf16.mxu0 0
        %2068 = vmatpush1.bf16.xpose.msra.mxu0 0
        %2069 = vmatprep.subr.bf16.mxu0 0
        %2070 = vmatpush1.bf16.xpose.msra.mxu0 0
        %2071 = vmatprep.subr.bf16.mxu0 0
        %2072 = vmatpush1.bf16.xpose.msra.mxu0 0
        %2073 = vmatprep.subr.bf16.mxu0 0
        %2074 = vmatpush1.bf16.xpose.msra.mxu0 0
        %2075 = vmatprep.subr.bf16.mxu0 0
        %2076 = vmatpush1.bf16.xpose.msra.mxu0 0
        %2077 = vmatprep.subr.bf16.mxu0 0
        %2078 = vmatpush1.bf16.xpose.msra.mxu0 0
        %2079 = vmatprep.subr.bf16.mxu0 0
        %2080 = vmatpush1.bf16.xpose.msra.mxu0 0
        %2081 = vmatprep.subr.bf16.mxu0 0
        %2082 = vmatpush1.bf16.xpose.msra.mxu0 0
        %2083 = vmatprep.subr.bf16.mxu0 0
        %2084 = vmatpush1.bf16.xpose.msra.mxu0 0
        %2085 = vmatprep.mubr.bf16.mxu0 0
        %2086 = vmatmul.mubr.bf16.gmra.mrb[0].mxu0 %v2048
        %v2087 = vpop.f32.mrb[0].mxu0
        %v2088 = vadd.f32 0.0, %v2087
        %v2089 = vpop.f32.mrb[0].mxu0
        %v2090 = vpop.f32.mrb[0].mxu0
        %v2091 = vpop.f32.mrb[0].mxu0
        %2092 = vdwg.mxu0
        %v2093 = vmul.f32 %v2088, 0.125
        %v2094 = vadd.f32 %v2093, %v488
        %v2095 = vsel %vm811, %v2094, -inf
        %2096 = vmax.xlane.f32.xlu0 %v2095
        %v2097 = vpop.xlane.xlu0 %2096
        %v2098 = vsub.f32 %v2094, %v2097
        %v2099 = vmul.f32 %v2098, 1.442695
        %v2100 = vpow.pop %v2099
        %v2101 = vsel %vm811, %v2100, 0.0
        %2102 = vadd.xlane.f32.xlu0 %v2101
        %v2103 = vpop.xlane.xlu0 %2102
        %v2104 = vrcp.pop %v2103
        %v2105 = vmul.f32 %v2100, %v2104
        %v2106 = vpack.c.bf16 %v2105, %v2105
        %v2108 = vsel %vm811, %v2106, 0
        %v2111 = vsel %vm827, %v2046, 0
        %2113 = vmatprep.subr.bf16.mxu0 0
        %2114 = vmatpush1.bf16.msra.mxu0 %v2111
        %2115 = vmatprep.subr.bf16.mxu0 0
        %2116 = vmatpush1.bf16.msra.mxu0 0
        %2117 = vmatprep.subr.bf16.mxu0 0
        %2118 = vmatpush1.bf16.msra.mxu0 0
        %2119 = vmatprep.subr.bf16.mxu0 0
        %2120 = vmatpush1.bf16.msra.mxu0 0
        %2121 = vmatprep.subr.bf16.mxu0 0
        %2122 = vmatpush1.bf16.msra.mxu0 0
        %2123 = vmatprep.subr.bf16.mxu0 0
        %2124 = vmatpush1.bf16.msra.mxu0 0
        %2125 = vmatprep.subr.bf16.mxu0 0
        %2126 = vmatpush1.bf16.msra.mxu0 0
        %2127 = vmatprep.subr.bf16.mxu0 0
        %2128 = vmatpush1.bf16.msra.mxu0 0
        %2129 = vmatprep.subr.bf16.mxu0 0
        %2130 = vmatpush1.bf16.msra.mxu0 0
        %2131 = vmatprep.subr.bf16.mxu0 0
        %2132 = vmatpush1.bf16.msra.mxu0 0
        %2133 = vmatprep.subr.bf16.mxu0 0
        %2134 = vmatpush1.bf16.msra.mxu0 0
        %2135 = vmatprep.subr.bf16.mxu0 0
        %2136 = vmatpush1.bf16.msra.mxu0 0
        %2137 = vmatprep.subr.bf16.mxu0 0
        %2138 = vmatpush1.bf16.msra.mxu0 0
        %2139 = vmatprep.subr.bf16.mxu0 0
        %2140 = vmatpush1.bf16.msra.mxu0 0
        %2141 = vmatprep.subr.bf16.mxu0 0
        %2142 = vmatpush1.bf16.msra.mxu0 0
        %2143 = vmatprep.subr.bf16.mxu0 0
        %2144 = vmatpush1.bf16.msra.mxu0 0
        %2145 = vmatprep.mubr.bf16.mxu0 0
        %2146 = vmatmul.mubr.bf16.gmra.mrb[0].mxu0 %v2108
        %v2147 = vpop.f32.mrb[0].mxu0
        %v2148 = vadd.f32 0.0, %v2147
        %v2149 = vpop.f32.mrb[0].mxu0
        %v2150 = vpop.f32.mrb[0].mxu0
        %v2151 = vpop.f32.mrb[0].mxu0
        %2152 = vdwg.mxu0
        %2154 = vrot.lane.b32.xlu0 %v2044, 64
        %v2155 = vpop.permute.xlu0 %2154
        %2157 = vrot.lane.b32.xlu0 %v2045, 64
        %v2158 = vpop.permute.xlu0 %2157
        %v2160 = vsel %vm762, %v2155, 0
        %v2163 = vsel %vm762, %v2158, 0
        %2165 = vmatprep.subr.bf16.mxu0 0
        %2166 = vmatpush1.bf16.xpose.msra.mxu0 %v2163
        %2167 = vmatprep.subr.bf16.mxu0 0
        %2168 = vmatpush1.bf16.xpose.msra.mxu0 0
        %2169 = vmatprep.subr.bf16.mxu0 0
        %2170 = vmatpush1.bf16.xpose.msra.mxu0 0
        %2171 = vmatprep.subr.bf16.mxu0 0
        %2172 = vmatpush1.bf16.xpose.msra.mxu0 0
        %2173 = vmatprep.subr.bf16.mxu0 0
        %2174 = vmatpush1.bf16.xpose.msra.mxu0 0
        %2175 = vmatprep.subr.bf16.mxu0 0
        %2176 = vmatpush1.bf16.xpose.msra.mxu0 0
        %2177 = vmatprep.subr.bf16.mxu0 0
        %2178 = vmatpush1.bf16.xpose.msra.mxu0 0
        %2179 = vmatprep.subr.bf16.mxu0 0
        %2180 = vmatpush1.bf16.xpose.msra.mxu0 0
        %2181 = vmatprep.subr.bf16.mxu0 0
        %2182 = vmatpush1.bf16.xpose.msra.mxu0 0
        %2183 = vmatprep.subr.bf16.mxu0 0
        %2184 = vmatpush1.bf16.xpose.msra.mxu0 0
        %2185 = vmatprep.subr.bf16.mxu0 0
        %2186 = vmatpush1.bf16.xpose.msra.mxu0 0
        %2187 = vmatprep.subr.bf16.mxu0 0
        %2188 = vmatpush1.bf16.xpose.msra.mxu0 0
        %2189 = vmatprep.subr.bf16.mxu0 0
        %2190 = vmatpush1.bf16.xpose.msra.mxu0 0
        %2191 = vmatprep.subr.bf16.mxu0 0
        %2192 = vmatpush1.bf16.xpose.msra.mxu0 0
        %2193 = vmatprep.subr.bf16.mxu0 0
        %2194 = vmatpush1.bf16.xpose.msra.mxu0 0
        %2195 = vmatprep.subr.bf16.mxu0 0
        %2196 = vmatpush1.bf16.xpose.msra.mxu0 0
        %2197 = vmatprep.mubr.bf16.mxu0 0
        %2198 = vmatmul.mubr.bf16.gmra.mrb[0].mxu0 %v2160
        %v2199 = vpop.f32.mrb[0].mxu0
        %v2200 = vadd.f32 0.0, %v2199
        %v2201 = vpop.f32.mrb[0].mxu0
        %v2202 = vpop.f32.mrb[0].mxu0
        %v2203 = vpop.f32.mrb[0].mxu0
        %2204 = vdwg.mxu0
        %v2205 = vmul.f32 %v2200, 0.125
        %v2206 = vadd.f32 %v2205, %v488
        %v2207 = vsel %vm811, %v2206, -inf
        %2208 = vmax.xlane.f32.xlu0 %v2207
        %v2209 = vpop.xlane.xlu0 %2208
        %v2210 = vsub.f32 %v2206, %v2209
        %v2211 = vmul.f32 %v2210, 1.442695
        %v2212 = vpow.pop %v2211
        %v2213 = vsel %vm811, %v2212, 0.0
        %2214 = vadd.xlane.f32.xlu0 %v2213
        %v2215 = vpop.xlane.xlu0 %2214
        %v2216 = vrcp.pop %v2215
        %v2217 = vmul.f32 %v2212, %v2216
        %v2218 = vpack.c.bf16 %v2217, %v2217
        %2220 = vrot.lane.b32.xlu0 %v2046, 64
        %v2221 = vpop.permute.xlu0 %2220
        %v2223 = vsel %vm811, %v2218, 0
        %v2226 = vsel %vm827, %v2221, 0
        %2228 = vmatprep.subr.bf16.mxu0 0
        %2229 = vmatpush1.bf16.msra.mxu0 %v2226
        %2230 = vmatprep.subr.bf16.mxu0 0
        %2231 = vmatpush1.bf16.msra.mxu0 0
        %2232 = vmatprep.subr.bf16.mxu0 0
        %2233 = vmatpush1.bf16.msra.mxu0 0
        %2234 = vmatprep.subr.bf16.mxu0 0
        %2235 = vmatpush1.bf16.msra.mxu0 0
        %2236 = vmatprep.subr.bf16.mxu0 0
        %2237 = vmatpush1.bf16.msra.mxu0 0
        %2238 = vmatprep.subr.bf16.mxu0 0
        %2239 = vmatpush1.bf16.msra.mxu0 0
        %2240 = vmatprep.subr.bf16.mxu0 0
        %2241 = vmatpush1.bf16.msra.mxu0 0
        %2242 = vmatprep.subr.bf16.mxu0 0
        %2243 = vmatpush1.bf16.msra.mxu0 0
        %2244 = vmatprep.subr.bf16.mxu0 0
        %2245 = vmatpush1.bf16.msra.mxu0 0
        %2246 = vmatprep.subr.bf16.mxu0 0
        %2247 = vmatpush1.bf16.msra.mxu0 0
        %2248 = vmatprep.subr.bf16.mxu0 0
        %2249 = vmatpush1.bf16.msra.mxu0 0
        %2250 = vmatprep.subr.bf16.mxu0 0
        %2251 = vmatpush1.bf16.msra.mxu0 0
        %2252 = vmatprep.subr.bf16.mxu0 0
        %2253 = vmatpush1.bf16.msra.mxu0 0
        %2254 = vmatprep.subr.bf16.mxu0 0
        %2255 = vmatpush1.bf16.msra.mxu0 0
        %2256 = vmatprep.subr.bf16.mxu0 0
        %2257 = vmatpush1.bf16.msra.mxu0 0
        %2258 = vmatprep.subr.bf16.mxu0 0
        %2259 = vmatpush1.bf16.msra.mxu0 0
        %2260 = vmatprep.mubr.bf16.mxu0 0
        %2261 = vmatmul.mubr.bf16.gmra.mrb[0].mxu0 %v2223
        %v2262 = vpop.f32.mrb[0].mxu0
        %v2263 = vadd.f32 0.0, %v2262
        %v2264 = vpop.f32.mrb[0].mxu0
        %v2265 = vpop.f32.mrb[0].mxu0
        %v2266 = vpop.f32.mrb[0].mxu0
        %2267 = vdwg.mxu0
        %2269 = vrot.lane.b32.xlu0 %v2263, 64
        %v2270 = vpop.permute.xlu0 %2269
        %v2272 = vsel %vm762, %v2148, %v2270
        %v2273 = vpack.c.bf16 %v2272, %v2272
        %s2274 = scalar_lea.vmem %s6, 64
        %v2275 = vld [vmem:[%s2274] sm:$0xf]
        %v2276 = vld [vmem:[%s2274 + $0x4] sm:$0xf]
        %v2277 = vld [vmem:[%s2274 + $0x8] sm:$0xf]
        %v2278 = vld [vmem:[%s2274 + $0xc] sm:$0xf]
        %v2279 = vld [vmem:[%s2274 + $0x10] sm:$0xf]
        %v2280 = vld [vmem:[%s2274 + $0x14] sm:$0xf]
        %v2281 = vld [vmem:[%s2274 + $0x18] sm:$0xf]
        %v2282 = vld [vmem:[%s2274 + $0x1c] sm:$0xf]
        %v2283 = vld [vmem:[%s2274 + $0x20] sm:$0xf]
        %v2284 = vld [vmem:[%s2274 + $0x24] sm:$0xf]
        %v2285 = vld [vmem:[%s2274 + $0x28] sm:$0xf]
        %v2286 = vld [vmem:[%s2274 + $0x2c] sm:$0xf]
        %v2287 = vld [vmem:[%s2274 + $0x30] sm:$0xf]
        %v2288 = vld [vmem:[%s2274 + $0x34] sm:$0xf]
        %v2289 = vld [vmem:[%s2274 + $0x38] sm:$0xf]
        %v2290 = vld [vmem:[%s2274 + $0x3c] sm:$0xf]
        %v2307 = vunpack.c.l.b16 %v2275
        %v2308 = vunpack.c.l.b16 %v2276
        %v2309 = vunpack.c.l.b16 %v2277
        %v2310 = vunpack.c.l.b16 %v2278
        %v2311 = vunpack.c.l.b16 %v2279
        %v2312 = vunpack.c.l.b16 %v2280
        %v2313 = vunpack.c.l.b16 %v2281
        %v2314 = vunpack.c.l.b16 %v2282
        %v2315 = vunpack.c.l.b16 %v2283
        %v2316 = vunpack.c.l.b16 %v2284
        %v2317 = vunpack.c.l.b16 %v2285
        %v2318 = vunpack.c.l.b16 %v2286
        %v2319 = vunpack.c.l.b16 %v2287
        %v2320 = vunpack.c.l.b16 %v2288
        %v2321 = vunpack.c.l.b16 %v2289
        %v2322 = vunpack.c.l.b16 %v2290
        %v2323 = vpack.c.b16 %v2308, %v2307
        %v2324 = vpack.c.b16 %v2310, %v2309
        %v2325 = vpack.c.b16 %v2312, %v2311
        %v2326 = vpack.c.b16 %v2314, %v2313
        %v2327 = vpack.c.b16 %v2316, %v2315
        %v2328 = vpack.c.b16 %v2318, %v2317
        %v2329 = vpack.c.b16 %v2320, %v2319
        %v2330 = vpack.c.b16 %v2322, %v2321
        %2339 = vmatprep.subr.bf16.mxu0 0
        %2340 = vmatpush1.bf16.msra.mxu0 %v2323
        %2341 = vmatprep.subr.bf16.mxu0 0
        %2342 = vmatpush1.bf16.msra.mxu0 %v2324
        %2343 = vmatprep.subr.bf16.mxu0 0
        %2344 = vmatpush1.bf16.msra.mxu0 %v2325
        %2345 = vmatprep.subr.bf16.mxu0 0
        %2346 = vmatpush1.bf16.msra.mxu0 %v2326
        %2347 = vmatprep.subr.bf16.mxu0 0
        %2348 = vmatpush1.bf16.msra.mxu0 %v2327
        %2349 = vmatprep.subr.bf16.mxu0 0
        %2350 = vmatpush1.bf16.msra.mxu0 %v2328
        %2351 = vmatprep.subr.bf16.mxu0 0
        %2352 = vmatpush1.bf16.msra.mxu0 %v2329
        %2353 = vmatprep.subr.bf16.mxu0 0
        %2354 = vmatpush1.bf16.msra.mxu0 %v2330
        %2355 = vmatprep.subr.bf16.mxu0 0
        %2356 = vmatpush1.bf16.msra.mxu0 0
        %2357 = vmatprep.subr.bf16.mxu0 0
        %2358 = vmatpush1.bf16.msra.mxu0 0
        %2359 = vmatprep.subr.bf16.mxu0 0
        %2360 = vmatpush1.bf16.msra.mxu0 0
        %2361 = vmatprep.subr.bf16.mxu0 0
        %2362 = vmatpush1.bf16.msra.mxu0 0
        %2363 = vmatprep.subr.bf16.mxu0 0
        %2364 = vmatpush1.bf16.msra.mxu0 0
        %2365 = vmatprep.subr.bf16.mxu0 0
        %2366 = vmatpush1.bf16.msra.mxu0 0
        %2367 = vmatprep.subr.bf16.mxu0 0
        %2368 = vmatpush1.bf16.msra.mxu0 0
        %2369 = vmatprep.subr.bf16.mxu0 0
        %2370 = vmatpush1.bf16.msra.mxu0 0
        %2371 = vmatprep.mubr.bf16.mxu0 0
        %2372 = vmatmul.mubr.bf16.gmra.mrb[0].mxu0 %v2273
        %v2373 = vpop.f32.mrb[0].mxu0
        %v2374 = vadd.f32 0.0, %v2373
        %v2375 = vpop.f32.mrb[0].mxu0
        %v2376 = vpop.f32.mrb[0].mxu0
        %v2377 = vpop.f32.mrb[0].mxu0
        %2378 = vdwg.mxu0
        %v2379 = vadd.f32 %v1771, %v2374
        %s2380 = scalar_lea.vmem %s7, 1
        %v2381 = vld [vmem:[%s2380] sm:$0x1]
        %s2382 = scalar_lea.vmem %s8, 1
        %v2383 = vld [vmem:[%s2382] sm:$0x1]
        %2384 = vadd.xlane.f32.xlu0 %v2379
        %v2385 = vpop.xlane.xlu0 %2384
        %v2386 = vmul.f32 %v2385, %v493
        %v2387 = vsub.f32 %v2379, %v2386
        %v2388 = vmul.f32 %v2387, %v2387
        %2389 = vadd.xlane.f32.xlu0 %v2388
        %v2390 = vpop.xlane.xlu0 %2389
        %v2391 = vmul.f32 %v2390, %v493
        %v2392 = vadd.f32 %v2391, 1e-05
        %v2393 = vrsqrt.pop %v2392
        %v2394 = vmul.f32 %v2387, %v2393
        %v2396 = vlaneseq
        %v2397 = vshrl.u32 %v2396, 7
        %v2398 = vsub.s32 0, %v2397
        %v2399 = vrot.slane %v2381, %v2398
        %v2401 = vmul.f32 %v2394, %v2399
        %v2403 = vlaneseq
        %v2404 = vshrl.u32 %v2403, 7
        %v2405 = vsub.s32 0, %v2404
        %v2406 = vrot.slane %v2383, %v2405
        %v2408 = vadd.f32 %v2401, %v2406
        %v2409 = vpack.c.bf16 %v2408, %v2408
        %s2410 = scalar_lea.vmem [#allocation6], 256
        %v2411 = vld [vmem:[%s2410] sm:$0xff]
        %v2412 = vld [vmem:[%s2410 + $0x8] sm:$0xff]
        %v2413 = vld [vmem:[%s2410 + $0x10] sm:$0xff]
        %v2414 = vld [vmem:[%s2410 + $0x18] sm:$0xff]
        %v2415 = vld [vmem:[%s2410 + $0x20] sm:$0xff]
        %v2416 = vld [vmem:[%s2410 + $0x28] sm:$0xff]
        %v2417 = vld [vmem:[%s2410 + $0x30] sm:$0xff]
        %v2418 = vld [vmem:[%s2410 + $0x38] sm:$0xff]
        %v2419 = vld [vmem:[%s2410 + $0x40] sm:$0xff]
        %v2420 = vld [vmem:[%s2410 + $0x48] sm:$0xff]
        %v2421 = vld [vmem:[%s2410 + $0x50] sm:$0xff]
        %v2422 = vld [vmem:[%s2410 + $0x58] sm:$0xff]
        %v2423 = vld [vmem:[%s2410 + $0x60] sm:$0xff]
        %v2424 = vld [vmem:[%s2410 + $0x68] sm:$0xff]
        %v2425 = vld [vmem:[%s2410 + $0x70] sm:$0xff]
        %v2426 = vld [vmem:[%s2410 + $0x78] sm:$0xff]
        %v2427 = vld [vmem:[%s2410 + $0x80] sm:$0xff]
        %v2428 = vld [vmem:[%s2410 + $0x88] sm:$0xff]
        %v2429 = vld [vmem:[%s2410 + $0x90] sm:$0xff]
        %v2430 = vld [vmem:[%s2410 + $0x98] sm:$0xff]
        %v2431 = vld [vmem:[%s2410 + $0xa0] sm:$0xff]
        %v2432 = vld [vmem:[%s2410 + $0xa8] sm:$0xff]
        %v2433 = vld [vmem:[%s2410 + $0xb0] sm:$0xff]
        %v2434 = vld [vmem:[%s2410 + $0xb8] sm:$0xff]
        %v2435 = vld [vmem:[%s2410 + $0xc0] sm:$0xff]
        %v2436 = vld [vmem:[%s2410 + $0xc8] sm:$0xff]
        %v2437 = vld [vmem:[%s2410 + $0xd0] sm:$0xff]
        %v2438 = vld [vmem:[%s2410 + $0xd8] sm:$0xff]
        %v2439 = vld [vmem:[%s2410 + $0xe0] sm:$0xff]
        %v2440 = vld [vmem:[%s2410 + $0xe8] sm:$0xff]
        %v2441 = vld [vmem:[%s2410 + $0xf0] sm:$0xff]
        %v2442 = vld [vmem:[%s2410 + $0xf8] sm:$0xff]
        %v2475 = vunpack.c.l.b16 %v2411
        %v2476 = vunpack.c.h.b16 %v2411
        %v2477 = vunpack.c.l.b16 %v2412
        %v2478 = vunpack.c.h.b16 %v2412
        %v2479 = vunpack.c.l.b16 %v2413
        %v2480 = vunpack.c.h.b16 %v2413
        %v2481 = vunpack.c.l.b16 %v2414
        %v2482 = vunpack.c.h.b16 %v2414
        %v2483 = vunpack.c.l.b16 %v2415
        %v2484 = vunpack.c.h.b16 %v2415
        %v2485 = vunpack.c.l.b16 %v2416
        %v2486 = vunpack.c.h.b16 %v2416
        %v2487 = vunpack.c.l.b16 %v2417
        %v2488 = vunpack.c.h.b16 %v2417
        %v2489 = vunpack.c.l.b16 %v2418
        %v2490 = vunpack.c.h.b16 %v2418
        %v2491 = vunpack.c.l.b16 %v2419
        %v2492 = vunpack.c.h.b16 %v2419
        %v2493 = vunpack.c.l.b16 %v2420
        %v2494 = vunpack.c.h.b16 %v2420
        %v2495 = vunpack.c.l.b16 %v2421
        %v2496 = vunpack.c.h.b16 %v2421
        %v2497 = vunpack.c.l.b16 %v2422
        %v2498 = vunpack.c.h.b16 %v2422
        %v2499 = vunpack.c.l.b16 %v2423
        %v2500 = vunpack.c.h.b16 %v2423
        %v2501 = vunpack.c.l.b16 %v2424
        %v2502 = vunpack.c.h.b16 %v2424
        %v2503 = vunpack.c.l.b16 %v2425
        %v2504 = vunpack.c.h.b16 %v2425
        %v2505 = vunpack.c.l.b16 %v2426
        %v2506 = vunpack.c.h.b16 %v2426
        %v2507 = vunpack.c.l.b16 %v2427
        %v2508 = vunpack.c.h.b16 %v2427
        %v2509 = vunpack.c.l.b16 %v2428
        %v2510 = vunpack.c.h.b16 %v2428
        %v2511 = vunpack.c.l.b16 %v2429
        %v2512 = vunpack.c.h.b16 %v2429
        %v2513 = vunpack.c.l.b16 %v2430
        %v2514 = vunpack.c.h.b16 %v2430
        %v2515 = vunpack.c.l.b16 %v2431
        %v2516 = vunpack.c.h.b16 %v2431
        %v2517 = vunpack.c.l.b16 %v2432
        %v2518 = vunpack.c.h.b16 %v2432
        %v2519 = vunpack.c.l.b16 %v2433
        %v2520 = vunpack.c.h.b16 %v2433
        %v2521 = vunpack.c.l.b16 %v2434
        %v2522 = vunpack.c.h.b16 %v2434
        %v2523 = vunpack.c.l.b16 %v2435
        %v2524 = vunpack.c.h.b16 %v2435
        %v2525 = vunpack.c.l.b16 %v2436
        %v2526 = vunpack.c.h.b16 %v2436
        %v2527 = vunpack.c.l.b16 %v2437
        %v2528 = vunpack.c.h.b16 %v2437
        %v2529 = vunpack.c.l.b16 %v2438
        %v2530 = vunpack.c.h.b16 %v2438
        %v2531 = vunpack.c.l.b16 %v2439
        %v2532 = vunpack.c.h.b16 %v2439
        %v2533 = vunpack.c.l.b16 %v2440
        %v2534 = vunpack.c.h.b16 %v2440
        %v2535 = vunpack.c.l.b16 %v2441
        %v2536 = vunpack.c.h.b16 %v2441
        %v2537 = vunpack.c.l.b16 %v2442
        %v2538 = vunpack.c.h.b16 %v2442
        %v2539 = vpack.c.b16 %v2479, %v2475
        %v2540 = vpack.c.b16 %v2480, %v2476
        %v2541 = vpack.c.b16 %v2481, %v2477
        %v2542 = vpack.c.b16 %v2482, %v2478
        %v2543 = vpack.c.b16 %v2487, %v2483
        %v2544 = vpack.c.b16 %v2488, %v2484
        %v2545 = vpack.c.b16 %v2489, %v2485
        %v2546 = vpack.c.b16 %v2490, %v2486
        %v2547 = vpack.c.b16 %v2495, %v2491
        %v2548 = vpack.c.b16 %v2496, %v2492
        %v2549 = vpack.c.b16 %v2497, %v2493
        %v2550 = vpack.c.b16 %v2498, %v2494
        %v2551 = vpack.c.b16 %v2503, %v2499
        %v2552 = vpack.c.b16 %v2504, %v2500
        %v2553 = vpack.c.b16 %v2505, %v2501
        %v2554 = vpack.c.b16 %v2506, %v2502
        %v2555 = vpack.c.b16 %v2511, %v2507
        %v2556 = vpack.c.b16 %v2512, %v2508
        %v2557 = vpack.c.b16 %v2513, %v2509
        %v2558 = vpack.c.b16 %v2514, %v2510
        %v2559 = vpack.c.b16 %v2519, %v2515
        %v2560 = vpack.c.b16 %v2520, %v2516
        %v2561 = vpack.c.b16 %v2521, %v2517
        %v2562 = vpack.c.b16 %v2522, %v2518
        %v2563 = vpack.c.b16 %v2527, %v2523
        %v2564 = vpack.c.b16 %v2528, %v2524
        %v2565 = vpack.c.b16 %v2529, %v2525
        %v2566 = vpack.c.b16 %v2530, %v2526
        %v2567 = vpack.c.b16 %v2535, %v2531
        %v2568 = vpack.c.b16 %v2536, %v2532
        %v2569 = vpack.c.b16 %v2537, %v2533
        %v2570 = vpack.c.b16 %v2538, %v2534
        %2603 = vmatprep.subr.bf16.mxu0 %v2540
        %2604 = vmatpush1.bf16.msra.mxu0 %v2539
        %2605 = vmatprep.subr.bf16.mxu0 %v2544
        %2606 = vmatpush1.bf16.msra.mxu0 %v2543
        %2607 = vmatprep.subr.bf16.mxu0 %v2548
        %2608 = vmatpush1.bf16.msra.mxu0 %v2547
        %2609 = vmatprep.subr.bf16.mxu0 %v2552
        %2610 = vmatpush1.bf16.msra.mxu0 %v2551
        %2611 = vmatprep.subr.bf16.mxu0 %v2556
        %2612 = vmatpush1.bf16.msra.mxu0 %v2555
        %2613 = vmatprep.subr.bf16.mxu0 %v2560
        %2614 = vmatpush1.bf16.msra.mxu0 %v2559
        %2615 = vmatprep.subr.bf16.mxu0 %v2564
        %2616 = vmatpush1.bf16.msra.mxu0 %v2563
        %2617 = vmatprep.subr.bf16.mxu0 %v2568
        %2618 = vmatpush1.bf16.msra.mxu0 %v2567
        %2619 = vmatprep.subr.bf16.mxu0 0
        %2620 = vmatpush1.bf16.msra.mxu0 0
        %2621 = vmatprep.subr.bf16.mxu0 0
        %2622 = vmatpush1.bf16.msra.mxu0 0
        %2623 = vmatprep.subr.bf16.mxu0 0
        %2624 = vmatpush1.bf16.msra.mxu0 0
        %2625 = vmatprep.subr.bf16.mxu0 0
        %2626 = vmatpush1.bf16.msra.mxu0 0
        %2627 = vmatprep.subr.bf16.mxu0 0
        %2628 = vmatpush1.bf16.msra.mxu0 0
        %2629 = vmatprep.subr.bf16.mxu0 0
        %2630 = vmatpush1.bf16.msra.mxu0 0
        %2631 = vmatprep.subr.bf16.mxu0 0
        %2632 = vmatpush1.bf16.msra.mxu0 0
        %2633 = vmatprep.subr.bf16.mxu0 0
        %2634 = vmatpush1.bf16.msra.mxu0 0
        %2635 = vmatprep.mubr.bf16.mxu0 0
        %2636 = vmatmul.mubr.bf16.gmra.mrb[0].mxu0 %v2409
        %v2637 = vpop.f32.mrb[0].mxu0
        %v2638 = vadd.f32 0.0, %v2637
        %v2639 = vpop.f32.mrb[0].mxu0
        %v2640 = vadd.f32 0.0, %v2639
        %v2641 = vpop.f32.mrb[0].mxu0
        %v2642 = vpop.f32.mrb[0].mxu0
        %2643 = vdwg.mxu0
        %2644 = vmatprep.subr.bf16.mxu0 %v2542
        %2645 = vmatpush1.bf16.msra.mxu0 %v2541
        %2646 = vmatprep.subr.bf16.mxu0 %v2546
        %2647 = vmatpush1.bf16.msra.mxu0 %v2545
        %2648 = vmatprep.subr.bf16.mxu0 %v2550
        %2649 = vmatpush1.bf16.msra.mxu0 %v2549
        %2650 = vmatprep.subr.bf16.mxu0 %v2554
        %2651 = vmatpush1.bf16.msra.mxu0 %v2553
        %2652 = vmatprep.subr.bf16.mxu0 %v2558
        %2653 = vmatpush1.bf16.msra.mxu0 %v2557
        %2654 = vmatprep.subr.bf16.mxu0 %v2562
        %2655 = vmatpush1.bf16.msra.mxu0 %v2561
        %2656 = vmatprep.subr.bf16.mxu0 %v2566
        %2657 = vmatpush1.bf16.msra.mxu0 %v2565
        %2658 = vmatprep.subr.bf16.mxu0 %v2570
        %2659 = vmatpush1.bf16.msra.mxu0 %v2569
        %2660 = vmatprep.subr.bf16.mxu0 0
        %2661 = vmatpush1.bf16.msra.mxu0 0
        %2662 = vmatprep.subr.bf16.mxu0 0
        %2663 = vmatpush1.bf16.msra.mxu0 0
        %2664 = vmatprep.subr.bf16.mxu0 0
        %2665 = vmatpush1.bf16.msra.mxu0 0
        %2666 = vmatprep.subr.bf16.mxu0 0
        %2667 = vmatpush1.bf16.msra.mxu0 0
        %2668 = vmatprep.subr.bf16.mxu0 0
        %2669 = vmatpush1.bf16.msra.mxu0 0
        %2670 = vmatprep.subr.bf16.mxu0 0
        %2671 = vmatpush1.bf16.msra.mxu0 0
        %2672 = vmatprep.subr.bf16.mxu0 0
        %2673 = vmatpush1.bf16.msra.mxu0 0
        %2674 = vmatprep.subr.bf16.mxu0 0
        %2675 = vmatpush1.bf16.msra.mxu0 0
        %2676 = vmatprep.mubr.bf16.mxu0 0
        %2677 = vmatmul.mubr.bf16.gmra.mrb[0].mxu0 %v2409
        %v2678 = vpop.f32.mrb[0].mxu0
        %v2679 = vadd.f32 0.0, %v2678
        %v2680 = vpop.f32.mrb[0].mxu0
        %v2681 = vadd.f32 0.0, %v2680
        %v2682 = vpop.f32.mrb[0].mxu0
        %v2683 = vpop.f32.mrb[0].mxu0
        %2684 = vdwg.mxu0
        %v2685 = vmul.f32 %v2638, 1.702
        %v2686 = vmul.f32 %v2640, 1.702
        %v2687 = vmul.f32 %v2679, 1.702
        %v2688 = vmul.f32 %v2681, 1.702
        %v2689 = vxor.u32 %v2685, 2147483648
        %v2690 = vxor.u32 %v2686, 2147483648
        %v2691 = vxor.u32 %v2687, 2147483648
        %v2692 = vxor.u32 %v2688, 2147483648
        %v2693 = vmul.f32 %v2689, 1.442695
        %v2694 = vpow.pop %v2693
        %v2695 = vmul.f32 %v2690, 1.442695
        %v2696 = vpow.pop %v2695
        %v2697 = vmul.f32 %v2691, 1.442695
        %v2698 = vpow.pop %v2697
        %v2699 = vmul.f32 %v2692, 1.442695
        %v2700 = vpow.pop %v2699
        %v2701 = vadd.f32 %v2694, 1.0
        %v2702 = vadd.f32 %v2696, 1.0
        %v2703 = vadd.f32 %v2698, 1.0
        %v2704 = vadd.f32 %v2700, 1.0
        %v2705 = vrcp.pop %v2701
        %v2706 = vmul.f32 1.0, %v2705
        %v2707 = vrcp.pop %v2702
        %v2708 = vmul.f32 1.0, %v2707
        %v2709 = vrcp.pop %v2703
        %v2710 = vmul.f32 1.0, %v2709
        %v2711 = vrcp.pop %v2704
        %v2712 = vmul.f32 1.0, %v2711
        %v2713 = vmul.f32 %v2638, %v2706
        %v2714 = vmul.f32 %v2640, %v2708
        %v2715 = vmul.f32 %v2679, %v2710
        %v2716 = vmul.f32 %v2681, %v2712
        %v2717 = vpack.c.bf16 %v2713, %v2713
        %v2718 = vpack.c.bf16 %v2714, %v2714
        %v2719 = vpack.c.bf16 %v2715, %v2715
        %v2720 = vpack.c.bf16 %v2716, %v2716
        %s2721 = scalar_lea.vmem [#allocation8], 256
        %v2722 = vld [vmem:[%s2721] sm:$0xf]
        %v2723 = vld [vmem:[%s2721 + $0x4] sm:$0xf]
        %v2724 = vld [vmem:[%s2721 + $0x8] sm:$0xf]
        %v2725 = vld [vmem:[%s2721 + $0xc] sm:$0xf]
        %v2726 = vld [vmem:[%s2721 + $0x10] sm:$0xf]
        %v2727 = vld [vmem:[%s2721 + $0x14] sm:$0xf]
        %v2728 = vld [vmem:[%s2721 + $0x18] sm:$0xf]
        %v2729 = vld [vmem:[%s2721 + $0x1c] sm:$0xf]
        %v2730 = vld [vmem:[%s2721 + $0x20] sm:$0xf]
        %v2731 = vld [vmem:[%s2721 + $0x24] sm:$0xf]
        %v2732 = vld [vmem:[%s2721 + $0x28] sm:$0xf]
        %v2733 = vld [vmem:[%s2721 + $0x2c] sm:$0xf]
        %v2734 = vld [vmem:[%s2721 + $0x30] sm:$0xf]
        %v2735 = vld [vmem:[%s2721 + $0x34] sm:$0xf]
        %v2736 = vld [vmem:[%s2721 + $0x38] sm:$0xf]
        %v2737 = vld [vmem:[%s2721 + $0x3c] sm:$0xf]
        %v2738 = vld [vmem:[%s2721 + $0x40] sm:$0xf]
        %v2739 = vld [vmem:[%s2721 + $0x44] sm:$0xf]
        %v2740 = vld [vmem:[%s2721 + $0x48] sm:$0xf]
        %v2741 = vld [vmem:[%s2721 + $0x4c] sm:$0xf]
        %v2742 = vld [vmem:[%s2721 + $0x50] sm:$0xf]
        %v2743 = vld [vmem:[%s2721 + $0x54] sm:$0xf]
        %v2744 = vld [vmem:[%s2721 + $0x58] sm:$0xf]
        %v2745 = vld [vmem:[%s2721 + $0x5c] sm:$0xf]
        %v2746 = vld [vmem:[%s2721 + $0x60] sm:$0xf]
        %v2747 = vld [vmem:[%s2721 + $0x64] sm:$0xf]
        %v2748 = vld [vmem:[%s2721 + $0x68] sm:$0xf]
        %v2749 = vld [vmem:[%s2721 + $0x6c] sm:$0xf]
        %v2750 = vld [vmem:[%s2721 + $0x70] sm:$0xf]
        %v2751 = vld [vmem:[%s2721 + $0x74] sm:$0xf]
        %v2752 = vld [vmem:[%s2721 + $0x78] sm:$0xf]
        %v2753 = vld [vmem:[%s2721 + $0x7c] sm:$0xf]
        %v2754 = vld [vmem:[%s2721 + $0x80] sm:$0xf]
        %v2755 = vld [vmem:[%s2721 + $0x84] sm:$0xf]
        %v2756 = vld [vmem:[%s2721 + $0x88] sm:$0xf]
        %v2757 = vld [vmem:[%s2721 + $0x8c] sm:$0xf]
        %v2758 = vld [vmem:[%s2721 + $0x90] sm:$0xf]
        %v2759 = vld [vmem:[%s2721 + $0x94] sm:$0xf]
        %v2760 = vld [vmem:[%s2721 + $0x98] sm:$0xf]
        %v2761 = vld [vmem:[%s2721 + $0x9c] sm:$0xf]
        %v2762 = vld [vmem:[%s2721 + $0xa0] sm:$0xf]
        %v2763 = vld [vmem:[%s2721 + $0xa4] sm:$0xf]
        %v2764 = vld [vmem:[%s2721 + $0xa8] sm:$0xf]
        %v2765 = vld [vmem:[%s2721 + $0xac] sm:$0xf]
        %v2766 = vld [vmem:[%s2721 + $0xb0] sm:$0xf]
        %v2767 = vld [vmem:[%s2721 + $0xb4] sm:$0xf]
        %v2768 = vld [vmem:[%s2721 + $0xb8] sm:$0xf]
        %v2769 = vld [vmem:[%s2721 + $0xbc] sm:$0xf]
        %v2770 = vld [vmem:[%s2721 + $0xc0] sm:$0xf]
        %v2771 = vld [vmem:[%s2721 + $0xc4] sm:$0xf]
        %v2772 = vld [vmem:[%s2721 + $0xc8] sm:$0xf]
        %v2773 = vld [vmem:[%s2721 + $0xcc] sm:$0xf]
        %v2774 = vld [vmem:[%s2721 + $0xd0] sm:$0xf]
        %v2775 = vld [vmem:[%s2721 + $0xd4] sm:$0xf]
        %v2776 = vld [vmem:[%s2721 + $0xd8] sm:$0xf]
        %v2777 = vld [vmem:[%s2721 + $0xdc] sm:$0xf]
        %v2778 = vld [vmem:[%s2721 + $0xe0] sm:$0xf]
        %v2779 = vld [vmem:[%s2721 + $0xe4] sm:$0xf]
        %v2780 = vld [vmem:[%s2721 + $0xe8] sm:$0xf]
        %v2781 = vld [vmem:[%s2721 + $0xec] sm:$0xf]
        %v2782 = vld [vmem:[%s2721 + $0xf0] sm:$0xf]
        %v2783 = vld [vmem:[%s2721 + $0xf4] sm:$0xf]
        %v2784 = vld [vmem:[%s2721 + $0xf8] sm:$0xf]
        %v2785 = vld [vmem:[%s2721 + $0xfc] sm:$0xf]
        %v2850 = vunpack.c.l.b16 %v2722
        %v2851 = vunpack.c.l.b16 %v2723
        %v2852 = vunpack.c.l.b16 %v2724
        %v2853 = vunpack.c.l.b16 %v2725
        %v2854 = vunpack.c.l.b16 %v2726
        %v2855 = vunpack.c.l.b16 %v2727
        %v2856 = vunpack.c.l.b16 %v2728
        %v2857 = vunpack.c.l.b16 %v2729
        %v2858 = vunpack.c.l.b16 %v2730
        %v2859 = vunpack.c.l.b16 %v2731
        %v2860 = vunpack.c.l.b16 %v2732
        %v2861 = vunpack.c.l.b16 %v2733
        %v2862 = vunpack.c.l.b16 %v2734
        %v2863 = vunpack.c.l.b16 %v2735
        %v2864 = vunpack.c.l.b16 %v2736
        %v2865 = vunpack.c.l.b16 %v2737
        %v2866 = vunpack.c.l.b16 %v2738
        %v2867 = vunpack.c.l.b16 %v2739
        %v2868 = vunpack.c.l.b16 %v2740
        %v2869 = vunpack.c.l.b16 %v2741
        %v2870 = vunpack.c.l.b16 %v2742
        %v2871 = vunpack.c.l.b16 %v2743
        %v2872 = vunpack.c.l.b16 %v2744
        %v2873 = vunpack.c.l.b16 %v2745
        %v2874 = vunpack.c.l.b16 %v2746
        %v2875 = vunpack.c.l.b16 %v2747
        %v2876 = vunpack.c.l.b16 %v2748
        %v2877 = vunpack.c.l.b16 %v2749
        %v2878 = vunpack.c.l.b16 %v2750
        %v2879 = vunpack.c.l.b16 %v2751
        %v2880 = vunpack.c.l.b16 %v2752
        %v2881 = vunpack.c.l.b16 %v2753
        %v2882 = vunpack.c.l.b16 %v2754
        %v2883 = vunpack.c.l.b16 %v2755
        %v2884 = vunpack.c.l.b16 %v2756
        %v2885 = vunpack.c.l.b16 %v2757
        %v2886 = vunpack.c.l.b16 %v2758
        %v2887 = vunpack.c.l.b16 %v2759
        %v2888 = vunpack.c.l.b16 %v2760
        %v2889 = vunpack.c.l.b16 %v2761
        %v2890 = vunpack.c.l.b16 %v2762
        %v2891 = vunpack.c.l.b16 %v2763
        %v2892 = vunpack.c.l.b16 %v2764
        %v2893 = vunpack.c.l.b16 %v2765
        %v2894 = vunpack.c.l.b16 %v2766
        %v2895 = vunpack.c.l.b16 %v2767
        %v2896 = vunpack.c.l.b16 %v2768
        %v2897 = vunpack.c.l.b16 %v2769
        %v2898 = vunpack.c.l.b16 %v2770
        %v2899 = vunpack.c.l.b16 %v2771
        %v2900 = vunpack.c.l.b16 %v2772
        %v2901 = vunpack.c.l.b16 %v2773
        %v2902 = vunpack.c.l.b16 %v2774
        %v2903 = vunpack.c.l.b16 %v2775
        %v2904 = vunpack.c.l.b16 %v2776
        %v2905 = vunpack.c.l.b16 %v2777
        %v2906 = vunpack.c.l.b16 %v2778
        %v2907 = vunpack.c.l.b16 %v2779
        %v2908 = vunpack.c.l.b16 %v2780
        %v2909 = vunpack.c.l.b16 %v2781
        %v2910 = vunpack.c.l.b16 %v2782
        %v2911 = vunpack.c.l.b16 %v2783
        %v2912 = vunpack.c.l.b16 %v2784
        %v2913 = vunpack.c.l.b16 %v2785
        %v2914 = vpack.c.b16 %v2851, %v2850
        %v2915 = vpack.c.b16 %v2853, %v2852
        %v2916 = vpack.c.b16 %v2855, %v2854
        %v2917 = vpack.c.b16 %v2857, %v2856
        %v2918 = vpack.c.b16 %v2859, %v2858
        %v2919 = vpack.c.b16 %v2861, %v2860
        %v2920 = vpack.c.b16 %v2863, %v2862
        %v2921 = vpack.c.b16 %v2865, %v2864
        %v2922 = vpack.c.b16 %v2867, %v2866
        %v2923 = vpack.c.b16 %v2869, %v2868
        %v2924 = vpack.c.b16 %v2871, %v2870
        %v2925 = vpack.c.b16 %v2873, %v2872
        %v2926 = vpack.c.b16 %v2875, %v2874
        %v2927 = vpack.c.b16 %v2877, %v2876
        %v2928 = vpack.c.b16 %v2879, %v2878
        %v2929 = vpack.c.b16 %v2881, %v2880
        %v2930 = vpack.c.b16 %v2883, %v2882
        %v2931 = vpack.c.b16 %v2885, %v2884
        %v2932 = vpack.c.b16 %v2887, %v2886
        %v2933 = vpack.c.b16 %v2889, %v2888
        %v2934 = vpack.c.b16 %v2891, %v2890
        %v2935 = vpack.c.b16 %v2893, %v2892
        %v2936 = vpack.c.b16 %v2895, %v2894
        %v2937 = vpack.c.b16 %v2897, %v2896
        %v2938 = vpack.c.b16 %v2899, %v2898
        %v2939 = vpack.c.b16 %v2901, %v2900
        %v2940 = vpack.c.b16 %v2903, %v2902
        %v2941 = vpack.c.b16 %v2905, %v2904
        %v2942 = vpack.c.b16 %v2907, %v2906
        %v2943 = vpack.c.b16 %v2909, %v2908
        %v2944 = vpack.c.b16 %v2911, %v2910
        %v2945 = vpack.c.b16 %v2913, %v2912
        %2978 = vmatprep.subr.bf16.mxu0 0
        %2979 = vmatpush1.bf16.msra.mxu0 %v2914
        %2980 = vmatprep.subr.bf16.mxu0 0
        %2981 = vmatpush1.bf16.msra.mxu0 %v2915
        %2982 = vmatprep.subr.bf16.mxu0 0
        %2983 = vmatpush1.bf16.msra.mxu0 %v2916
        %2984 = vmatprep.subr.bf16.mxu0 0
        %2985 = vmatpush1.bf16.msra.mxu0 %v2917
        %2986 = vmatprep.subr.bf16.mxu0 0
        %2987 = vmatpush1.bf16.msra.mxu0 %v2918
        %2988 = vmatprep.subr.bf16.mxu0 0
        %2989 = vmatpush1.bf16.msra.mxu0 %v2919
        %2990 = vmatprep.subr.bf16.mxu0 0
        %2991 = vmatpush1.bf16.msra.mxu0 %v2920
        %2992 = vmatprep.subr.bf16.mxu0 0
        %2993 = vmatpush1.bf16.msra.mxu0 %v2921
        %2994 = vmatprep.subr.bf16.mxu0 0
        %2995 = vmatpush1.bf16.msra.mxu0 %v2922
        %2996 = vmatprep.subr.bf16.mxu0 0
        %2997 = vmatpush1.bf16.msra.mxu0 %v2923
        %2998 = vmatprep.subr.bf16.mxu0 0
        %2999 = vmatpush1.bf16.msra.mxu0 %v2924
        %3000 = vmatprep.subr.bf16.mxu0 0
        %3001 = vmatpush1.bf16.msra.mxu0 %v2925
        %3002 = vmatprep.subr.bf16.mxu0 0
        %3003 = vmatpush1.bf16.msra.mxu0 %v2926
        %3004 = vmatprep.subr.bf16.mxu0 0
        %3005 = vmatpush1.bf16.msra.mxu0 %v2927
        %3006 = vmatprep.subr.bf16.mxu0 0
        %3007 = vmatpush1.bf16.msra.mxu0 %v2928
        %3008 = vmatprep.subr.bf16.mxu0 0
        %3009 = vmatpush1.bf16.msra.mxu0 %v2929
        %3010 = vmatprep.mubr.bf16.mxu0 %v2718
        %3011 = vmatmul.mubr.bf16.gmra.mrb[0].mxu0 %v2717
        %v3012 = vpop.f32.mrb[0].mxu0
        %v3013 = vadd.f32 0.0, %v3012
        %v3014 = vpop.f32.mrb[0].mxu0
        %v3015 = vpop.f32.mrb[0].mxu0
        %v3016 = vpop.f32.mrb[0].mxu0
        %3017 = vdwg.mxu0
        %3018 = vmatprep.subr.bf16.mxu0 0
        %3019 = vmatpush1.bf16.msra.mxu0 %v2930
        %3020 = vmatprep.subr.bf16.mxu0 0
        %3021 = vmatpush1.bf16.msra.mxu0 %v2931
        %3022 = vmatprep.subr.bf16.mxu0 0
        %3023 = vmatpush1.bf16.msra.mxu0 %v2932
        %3024 = vmatprep.subr.bf16.mxu0 0
        %3025 = vmatpush1.bf16.msra.mxu0 %v2933
        %3026 = vmatprep.subr.bf16.mxu0 0
        %3027 = vmatpush1.bf16.msra.mxu0 %v2934
        %3028 = vmatprep.subr.bf16.mxu0 0
        %3029 = vmatpush1.bf16.msra.mxu0 %v2935
        %3030 = vmatprep.subr.bf16.mxu0 0
        %3031 = vmatpush1.bf16.msra.mxu0 %v2936
        %3032 = vmatprep.subr.bf16.mxu0 0
        %3033 = vmatpush1.bf16.msra.mxu0 %v2937
        %3034 = vmatprep.subr.bf16.mxu0 0
        %3035 = vmatpush1.bf16.msra.mxu0 %v2938
        %3036 = vmatprep.subr.bf16.mxu0 0
        %3037 = vmatpush1.bf16.msra.mxu0 %v2939
        %3038 = vmatprep.subr.bf16.mxu0 0
        %3039 = vmatpush1.bf16.msra.mxu0 %v2940
        %3040 = vmatprep.subr.bf16.mxu0 0
        %3041 = vmatpush1.bf16.msra.mxu0 %v2941
        %3042 = vmatprep.subr.bf16.mxu0 0
        %3043 = vmatpush1.bf16.msra.mxu0 %v2942
        %3044 = vmatprep.subr.bf16.mxu0 0
        %3045 = vmatpush1.bf16.msra.mxu0 %v2943
        %3046 = vmatprep.subr.bf16.mxu0 0
        %3047 = vmatpush1.bf16.msra.mxu0 %v2944
        %3048 = vmatprep.subr.bf16.mxu0 0
        %3049 = vmatpush1.bf16.msra.mxu0 %v2945
        %3050 = vmatprep.mubr.bf16.mxu0 %v2720
        %3051 = vmatmul.mubr.bf16.gmra.mrb[0].mxu0 %v2719
        %v3052 = vpop.f32.mrb[0].mxu0
        %v3053 = vadd.f32 %v3013, %v3052
        %v3054 = vpop.f32.mrb[0].mxu0
        %v3055 = vpop.f32.mrb[0].mxu0
        %v3056 = vpop.f32.mrb[0].mxu0
        %3057 = vdwg.mxu0
        %v3058 = vadd.f32 %v2379, %v3053
        %v3059 = vlaneseq
        %v3060 = vshrl.u32 %v3059, 7
        %s3061 = sld [smem:[#allocation3 + %s33]]
        %v3062 = vstv %s3061
        %vm3063 = vcmp.eq.s32.totalorder %v3060, %v3062
        %v3064 = vsel %vm3063, 1, 0
        %v3065 = vcvt.s32.f32 %v3064
        %v3066 = vmul.f32 %v3058, %v3065
        %v3067 = vrot.slane %v3066, 4
        %v3068 = vadd.f32 %v3066, %v3067
        %v3069 = vrot.slane %v3068, 2
        %v3070 = vadd.f32 %v3068, %v3069
        %v3071 = vrot.slane %v3070, 1
        %v3072 = vadd.f32 %v3070, %v3071
        %v3073 = vld [vmem:[%s11] sm:$0x1]
        %v3074 = vld [vmem:[%s12] sm:$0x1]
        %3075 = vadd.xlane.f32.xlu0 %v3072
        %v3076 = vpop.xlane.xlu0 %3075
        %v3077 = vmul.f32 %v3076, %v493
        %v3078 = vsub.f32 %v3072, %v3077
        %v3079 = vmul.f32 %v3078, %v3078
        %3080 = vadd.xlane.f32.xlu0 %v3079
        %v3081 = vpop.xlane.xlu0 %3080
        %v3082 = vmul.f32 %v3081, %v493
        %v3083 = vadd.f32 %v3082, 1e-05
        %v3084 = vrsqrt.pop %v3083
        %v3085 = vmul.f32 %v3078, %v3084
        %v3086 = vmul.f32 %v3085, %v3073
        %v3087 = vadd.f32 %v3086, %v3074
        %v3088 = vpack.c.bf16 %v3087, %v3087
        %v3089 = vld [vmem:[%s13] sm:$0xf]
        %v3090 = vld [vmem:[%s13 + $0x4] sm:$0xf]
        %v3091 = vld [vmem:[%s13 + $0x8] sm:$0xf]
        %v3092 = vld [vmem:[%s13 + $0xc] sm:$0xf]
        %v3093 = vld [vmem:[%s13 + $0x10] sm:$0xf]
        %v3094 = vld [vmem:[%s13 + $0x14] sm:$0xf]
        %v3095 = vld [vmem:[%s13 + $0x18] sm:$0xf]
        %v3096 = vld [vmem:[%s13 + $0x1c] sm:$0xf]
        %v3097 = vld [vmem:[%s13 + $0x20] sm:$0xf]
        %v3098 = vld [vmem:[%s13 + $0x24] sm:$0xf]
        %v3099 = vld [vmem:[%s13 + $0x28] sm:$0xf]
        %v3100 = vld [vmem:[%s13 + $0x2c] sm:$0xf]
        %v3101 = vld [vmem:[%s13 + $0x30] sm:$0xf]
        %v3102 = vld [vmem:[%s13 + $0x34] sm:$0xf]
        %v3103 = vld [vmem:[%s13 + $0x38] sm:$0xf]
        %v3104 = vld [vmem:[%s13 + $0x3c] sm:$0xf]
        %v3121 = vunpack.c.l.b16 %v3089
        %v3122 = vunpack.c.l.b16 %v3090
        %v3123 = vunpack.c.l.b16 %v3091
        %v3124 = vunpack.c.l.b16 %v3092
        %v3125 = vunpack.c.l.b16 %v3093
        %v3126 = vunpack.c.l.b16 %v3094
        %v3127 = vunpack.c.l.b16 %v3095
        %v3128 = vunpack.c.l.b16 %v3096
        %v3129 = vunpack.c.l.b16 %v3097
        %v3130 = vunpack.c.l.b16 %v3098
        %v3131 = vunpack.c.l.b16 %v3099
        %v3132 = vunpack.c.l.b16 %v3100
        %v3133 = vunpack.c.l.b16 %v3101
        %v3134 = vunpack.c.l.b16 %v3102
        %v3135 = vunpack.c.l.b16 %v3103
        %v3136 = vunpack.c.l.b16 %v3104
        %v3137 = vpack.c.b16 %v3122, %v3121
        %v3138 = vpack.c.b16 %v3124, %v3123
        %v3139 = vpack.c.b16 %v3126, %v3125
        %v3140 = vpack.c.b16 %v3128, %v3127
        %v3141 = vpack.c.b16 %v3130, %v3129
        %v3142 = vpack.c.b16 %v3132, %v3131
        %v3143 = vpack.c.b16 %v3134, %v3133
        %v3144 = vpack.c.b16 %v3136, %v3135
        %3153 = vmatprep.subr.bf16.mxu0 0
        %3154 = vmatpush1.bf16.msra.mxu0 %v3137
        %3155 = vmatprep.subr.bf16.mxu0 0
        %3156 = vmatpush1.bf16.msra.mxu0 %v3138
        %3157 = vmatprep.subr.bf16.mxu0 0
        %3158 = vmatpush1.bf16.msra.mxu0 %v3139
        %3159 = vmatprep.subr.bf16.mxu0 0
        %3160 = vmatpush1.bf16.msra.mxu0 %v3140
        %3161 = vmatprep.subr.bf16.mxu0 0
        %3162 = vmatpush1.bf16.msra.mxu0 %v3141
        %3163 = vmatprep.subr.bf16.mxu0 0
        %3164 = vmatpush1.bf16.msra.mxu0 %v3142
        %3165 = vmatprep.subr.bf16.mxu0 0
        %3166 = vmatpush1.bf16.msra.mxu0 %v3143
        %3167 = vmatprep.subr.bf16.mxu0 0
        %3168 = vmatpush1.bf16.msra.mxu0 %v3144
        %3169 = vmatprep.subr.bf16.mxu0 0
        %3170 = vmatpush1.bf16.msra.mxu0 0
        %3171 = vmatprep.subr.bf16.mxu0 0
        %3172 = vmatpush1.bf16.msra.mxu0 0
        %3173 = vmatprep.subr.bf16.mxu0 0
        %3174 = vmatpush1.bf16.msra.mxu0 0
        %3175 = vmatprep.subr.bf16.mxu0 0
        %3176 = vmatpush1.bf16.msra.mxu0 0
        %3177 = vmatprep.subr.bf16.mxu0 0
        %3178 = vmatpush1.bf16.msra.mxu0 0
        %3179 = vmatprep.subr.bf16.mxu0 0
        %3180 = vmatpush1.bf16.msra.mxu0 0
        %3181 = vmatprep.subr.bf16.mxu0 0
        %3182 = vmatpush1.bf16.msra.mxu0 0
        %3183 = vmatprep.subr.bf16.mxu0 0
        %3184 = vmatpush1.bf16.msra.mxu0 0
        %3185 = vmatprep.mubr.bf16.mxu0 0
        %3186 = vmatmul.mubr.bf16.gmra.mrb[0].mxu0 %v3088
        %v3187 = vpop.f32.mrb[0].mxu0
        %v3188 = vadd.f32 0.0, %v3187
        %v3189 = vpop.f32.mrb[0].mxu0
        %v3190 = vpop.f32.mrb[0].mxu0
        %v3191 = vpop.f32.mrb[0].mxu0
        %3192 = vdwg.mxu0
        %3193 = vst [vmem:[%s484] sm:$0x1] %v3188
        %p3194 = scmp.lt.s32.totalorder %s33, 1
        %s3195 = scalar_select %p3194, %s33, 1
        %s3196 = scalar_lea.vmem %s14, %s3195
        // Predicated region
        $region85: #{_lambda_.3} parent=71 // pred_check
          %p3197 = pneg %p329
        $region86: #{_lambda_.3} parent=71 // pred_check_branch
          %3199 = sbr.rel (%p3197) target = $region88
        $region87: #{_lambda_.3} parent=71 // pred_region
          _
        $region88: #{_lambda_.3} parent=71 // pred_fallthru
          _
      $region72: #{_lambda_.3} parent=5 // pred_fallthru
        _
      %p3200 = scmp.le.s32.totalorder 2, %s28
      // Predicated region
      $region89: #{_lambda_.3} parent=5 // pred_check
        %p3201 = pneg %p3200
      $region90: #{_lambda_.3} parent=5 // pred_check_branch
        %3203 = sbr.rel (%p3201) target = $region92
      $region91: #{_lambda_.3} parent=5 // pred_region
        %s3204 = ssub.s32 %s28, 2
        // Predicated region
        $region93: #{_lambda_.3} parent=91 // pred_check
          %p3205 = pneg %p335
        $region94: #{_lambda_.3} parent=91 // pred_check_branch
          %3207 = sbr.rel (%p3205) target = $region96
        $region95: #{_lambda_.3} parent=91 // pred_region
          %p3208 = scmp.lt.s32.totalorder %s34, 1
          %s3209 = scalar_select %p3208, %s34, 1
          %s3210 = scalar_lea.vmem %s14, %s3209
        $region96: #{_lambda_.3} parent=91 // pred_fallthru
          _
      $region92: #{_lambda_.3} parent=5 // pred_fallthru
        _
    $region6: #{_lambda_.3} parent=1 // loop_footer
      %s32 = sadd.s32 1, %s28
    $region7: #{_lambda_.3} parent=1 // loop_footer_branch
      %27 = sbr.rel target = $region3
    $region8: #{_lambda_.3} parent=1 // loop_exit
      _
    %3211 = vsyncpa [#allocation5], 1
    %s3212 = scalar_lea.sflag [#allocation5], 1
    %3213 = vsyncpa %s3212, 1
    %3214 = vsyncpa [#allocation7], 1

// kernel: _lambda_.2
$region0: #{_lambda_.2}
  #allocation0 [shape = 'u32[]', space=smem, size = 0x4, offset = 0x4, fixed_abs, tag = 'smem constant byte address 0x4 - core index']
  #allocation1 [shape = 'u32[144,128]{1,0:T(1,128)}', space=vmem, size = 0x12000, scoped, tag = 'internal scratch']
  %s0 = inlined_call_operand.vmem [shape: bf16[2,10,896], index: 0, kind: input, shape index: {}]
  %s1 = inlined_call_operand.vmem [shape: bf16[896,128], index: 1, kind: input, shape index: {}]
  %s2 = inlined_call_operand.vmem [shape: f32[10,128], index: 2, kind: input, shape index: {}]
  %s3 = inlined_call_operand.vmem [shape: f32[10,10], index: 3, kind: input, shape index: {}]
  %s4 = inlined_call_operand.vmem [shape: f32[1,128], index: 4, kind: input, shape index: {}]
  %s5 = inlined_call_operand.vmem [shape: f32[1,128], index: 5, kind: input, shape index: {}]
  %s6 = inlined_call_operand.vmem [shape: f32[2,1,128], index: 6, kind: input, shape index: {}]
  %s7 = inlined_call_operand.vmem [shape: f32[2,1,128], index: 7, kind: input, shape index: {}]
  %s8 = inlined_call_operand.vmem [shape: bf16[2,128,384], index: 8, kind: input, shape index: {}]
  %s9 = inlined_call_operand.vmem [shape: bf16[2,128,128], index: 9, kind: input, shape index: {}]
  %s10 = inlined_call_operand.vmem [shape: f32[2,1,128], index: 10, kind: input, shape index: {}]
  %s11 = inlined_call_operand.vmem [shape: f32[2,1,128], index: 11, kind: input, shape index: {}]
  %s12 = inlined_call_operand.vmem [shape: bf16[2,128,512], index: 12, kind: input, shape index: {}]
  %s13 = inlined_call_operand.vmem [shape: bf16[2,512,128], index: 13, kind: input, shape index: {}]
  %s14 = inlined_call_operand.vmem [shape: f32[1,128], index: 14, kind: input, shape index: {}]
  %s15 = inlined_call_operand.vmem [shape: f32[1,128], index: 15, kind: input, shape index: {}]
  %s16 = inlined_call_operand.vmem [shape: bf16[128,128], index: 16, kind: input, shape index: {}]
  %s17 = inlined_call_operand.vmem [shape: f32[2,10,128], index: 17, kind: output, shape index: {}]
  %s18 = sld [smem:[#allocation0]]
  $region101: #{_lambda_.2} parent=0
    _
  %s20 = ssub.s32 1, %s18
  %s21 = scalar_select 0, %s20, %s18
  loop: start=0, step=1, limit=4
  $region2: #{_lambda_.2} parent=0 // loop_pre_header
    _
  $region3: #{_lambda_.2} parent=0 // loop_header
    %s23 = sphi 0, %s27
    %p24 = scmp.ge.s32.totalorder %s23, 4
    %s33 = sphi 0, %s35
    %s36 = sphi 0, %s33
    %s37 = sphi 0, %s36
    %s53 = sphi 0, %s37
    %s57 = sphi 0, %s57
    %s59 = sphi 0, %s57
    %s60 = sphi 0, %s59
    %s74 = sphi 0, %s60
    %s78 = sphi 0, %s78
    %s80 = sphi 0, %s78
    %s81 = sphi 0, %s80
    %s95 = sphi 0, %s81
    %s99 = sphi 0, %s99
    %s101 = sphi 0, %s99
    %s102 = sphi 0, %s101
    %s116 = sphi 0, %s102
    %s120 = sphi 0, %s120
    %s122 = sphi 0, %s120
    %s123 = sphi 0, %s122
    %s137 = sphi 0, %s123
    %s141 = sphi 0, %s141
    %s143 = sphi 0, %s141
    %s144 = sphi 0, %s143
    %s158 = sphi 0, %s144
    %s162 = sphi 0, %s162
    %s164 = sphi 0, %s162
    %s165 = sphi 0, %s164
    %s179 = sphi 0, %s165
    %s183 = sphi 0, %s183
    %s185 = sphi 0, %s183
    %s186 = sphi 0, %s185
    %s200 = sphi 0, %s186
    %s204 = sphi 0, %s204
    %s206 = sphi 0, %s204
    %s207 = sphi 0, %s206
    %s221 = sphi 0, %s207
    %s225 = sphi 0, %s225
    %s227 = sphi 0, %s225
    %s228 = sphi 0, %s227
    %s242 = sphi 0, %s228
    %s246 = sphi 0, %s246
    %s248 = sphi 0, %s246
    %s249 = sphi 0, %s248
    %s263 = sphi 0, %s249
    %s267 = sphi 0, %s267
    %s269 = sphi 0, %s267
    %s270 = sphi 0, %s269
    %s284 = sphi 0, %s270
    %s288 = sphi 0, %s288
    %s290 = sphi 0, %s288
    %s291 = sphi 0, %s290
    %s305 = sphi 0, %s291
    %s309 = sphi 0, %s309
    %s311 = sphi 0, %s309
    %s312 = sphi 0, %s311
    %s326 = sphi 0, %s312
    %s330 = sphi 0, %s330
    %s332 = sphi 0, %s330
    %s333 = sphi 0, %s332
    %s347 = sphi 0, %s333
    %s351 = sphi 0, %s351
    %s353 = sphi 0, %s351
    %s354 = sphi 0, %s353
    %s368 = sphi 0, %s354
    %s372 = sphi 0, %s372
    %s374 = sphi 0, %s372
    %s375 = sphi 0, %s374
    %s389 = sphi 0, %s375
    %s395 = sphi 0, %s397
    %s398 = sphi 0, %s395
    %s399 = sphi 0, %s398
    %s415 = sphi 0, %s399
  $region4: #{_lambda_.2} parent=0 // loop_header_branch
    %26 = sbr.rel (%p24) target = $region8
  $region5: #{_lambda_.2} parent=0 // loop_body
    %s28 = ssub.s32 %s23, 1
    %s29 = ssub.s32 %s23, 2
    %s30 = sadd.s32 %s23, 1
    %s31 = ssub.s32 %s23, %s30
    %p32 = scmp.eq.s32.totalorder %s31, 0
    %s34 = sadd.s32 %s33, 1
    %s35 = scalar_select %p32, %s33, %s34
    %p38 = pneg %p32
    %p39 = scmp.eq.s32.totalorder %s23, 1
    %p40 = por %p38, %p39
    %p41 = scmp.ne.s32.totalorder %s33, %s36
    %p42 = scmp.eq.s32.totalorder %s23, 0
    %p43 = por %p41, %p42
    %p44 = scmp.ne.s32.totalorder %s33, %s36
    %p45 = scmp.eq.s32.totalorder %s28, 1
    %p46 = por %p44, %p45
    %p47 = scmp.ne.s32.totalorder %s36, %s37
    %p48 = scmp.eq.s32.totalorder %s28, 0
    %p49 = por %p47, %p48
    %p50 = scmp.ne.s32.totalorder %s36, %s37
    %p51 = scmp.eq.s32.totalorder %s29, 1
    %p52 = por %p50, %p51
    %p54 = scmp.ne.s32.totalorder %s37, %s53
    %p55 = scmp.eq.s32.totalorder %s29, 0
    %p56 = por %p54, %p55
    %s58 = sadd.s32 %s57, 1
    %p61 = scmp.eq.s32.totalorder %s23, 1
    %p62 = scmp.ne.s32.totalorder %s57, %s59
    %p63 = scmp.eq.s32.totalorder %s23, 0
    %p64 = por %p62, %p63
    %p65 = scmp.ne.s32.totalorder %s57, %s59
    %p66 = scmp.eq.s32.totalorder %s28, 1
    %p67 = por %p65, %p66
    %p68 = scmp.ne.s32.totalorder %s59, %s60
    %p69 = scmp.eq.s32.totalorder %s28, 0
    %p70 = por %p68, %p69
    %p71 = scmp.ne.s32.totalorder %s59, %s60
    %p72 = scmp.eq.s32.totalorder %s29, 1
    %p73 = por %p71, %p72
    %p75 = scmp.ne.s32.totalorder %s60, %s74
    %p76 = scmp.eq.s32.totalorder %s29, 0
    %p77 = por %p75, %p76
    %s79 = sadd.s32 %s78, 1
    %p82 = scmp.eq.s32.totalorder %s23, 1
    %p83 = scmp.ne.s32.totalorder %s78, %s80
    %p84 = scmp.eq.s32.totalorder %s23, 0
    %p85 = por %p83, %p84
    %p86 = scmp.ne.s32.totalorder %s78, %s80
    %p87 = scmp.eq.s32.totalorder %s28, 1
    %p88 = por %p86, %p87
    %p89 = scmp.ne.s32.totalorder %s80, %s81
    %p90 = scmp.eq.s32.totalorder %s28, 0
    %p91 = por %p89, %p90
    %p92 = scmp.ne.s32.totalorder %s80, %s81
    %p93 = scmp.eq.s32.totalorder %s29, 1
    %p94 = por %p92, %p93
    %p96 = scmp.ne.s32.totalorder %s81, %s95
    %p97 = scmp.eq.s32.totalorder %s29, 0
    %p98 = por %p96, %p97
    %s100 = sadd.s32 %s99, 1
    %p103 = scmp.eq.s32.totalorder %s23, 1
    %p104 = scmp.ne.s32.totalorder %s99, %s101
    %p105 = scmp.eq.s32.totalorder %s23, 0
    %p106 = por %p104, %p105
    %p107 = scmp.ne.s32.totalorder %s99, %s101
    %p108 = scmp.eq.s32.totalorder %s28, 1
    %p109 = por %p107, %p108
    %p110 = scmp.ne.s32.totalorder %s101, %s102
    %p111 = scmp.eq.s32.totalorder %s28, 0
    %p112 = por %p110, %p111
    %p113 = scmp.ne.s32.totalorder %s101, %s102
    %p114 = scmp.eq.s32.totalorder %s29, 1
    %p115 = por %p113, %p114
    %p117 = scmp.ne.s32.totalorder %s102, %s116
    %p118 = scmp.eq.s32.totalorder %s29, 0
    %p119 = por %p117, %p118
    %s121 = sadd.s32 %s120, 1
    %p124 = scmp.eq.s32.totalorder %s23, 1
    %p125 = scmp.ne.s32.totalorder %s120, %s122
    %p126 = scmp.eq.s32.totalorder %s23, 0
    %p127 = por %p125, %p126
    %p128 = scmp.ne.s32.totalorder %s120, %s122
    %p129 = scmp.eq.s32.totalorder %s28, 1
    %p130 = por %p128, %p129
    %p131 = scmp.ne.s32.totalorder %s122, %s123
    %p132 = scmp.eq.s32.totalorder %s28, 0
    %p133 = por %p131, %p132
    %p134 = scmp.ne.s32.totalorder %s122, %s123
    %p135 = scmp.eq.s32.totalorder %s29, 1
    %p136 = por %p134, %p135
    %p138 = scmp.ne.s32.totalorder %s123, %s137
    %p139 = scmp.eq.s32.totalorder %s29, 0
    %p140 = por %p138, %p139
    %s142 = sadd.s32 %s141, 1
    %p145 = scmp.eq.s32.totalorder %s23, 1
    %p146 = scmp.ne.s32.totalorder %s141, %s143
    %p147 = scmp.eq.s32.totalorder %s23, 0
    %p148 = por %p146, %p147
    %p149 = scmp.ne.s32.totalorder %s141, %s143
    %p150 = scmp.eq.s32.totalorder %s28, 1
    %p151 = por %p149, %p150
    %p152 = scmp.ne.s32.totalorder %s143, %s144
    %p153 = scmp.eq.s32.totalorder %s28, 0
    %p154 = por %p152, %p153
    %p155 = scmp.ne.s32.totalorder %s143, %s144
    %p156 = scmp.eq.s32.totalorder %s29, 1
    %p157 = por %p155, %p156
    %p159 = scmp.ne.s32.totalorder %s144, %s158
    %p160 = scmp.eq.s32.totalorder %s29, 0
    %p161 = por %p159, %p160
    %s163 = sadd.s32 %s162, 1
    %p166 = scmp.eq.s32.totalorder %s23, 1
    %p167 = scmp.ne.s32.totalorder %s162, %s164
    %p168 = scmp.eq.s32.totalorder %s23, 0
    %p169 = por %p167, %p168
    %p170 = scmp.ne.s32.totalorder %s162, %s164
    %p171 = scmp.eq.s32.totalorder %s28, 1
    %p172 = por %p170, %p171
    %p173 = scmp.ne.s32.totalorder %s164, %s165
    %p174 = scmp.eq.s32.totalorder %s28, 0
    %p175 = por %p173, %p174
    %p176 = scmp.ne.s32.totalorder %s164, %s165
    %p177 = scmp.eq.s32.totalorder %s29, 1
    %p178 = por %p176, %p177
    %p180 = scmp.ne.s32.totalorder %s165, %s179
    %p181 = scmp.eq.s32.totalorder %s29, 0
    %p182 = por %p180, %p181
    %s184 = sadd.s32 %s183, 1
    %p187 = scmp.eq.s32.totalorder %s23, 1
    %p188 = scmp.ne.s32.totalorder %s183, %s185
    %p189 = scmp.eq.s32.totalorder %s23, 0
    %p190 = por %p188, %p189
    %p191 = scmp.ne.s32.totalorder %s183, %s185
    %p192 = scmp.eq.s32.totalorder %s28, 1
    %p193 = por %p191, %p192
    %p194 = scmp.ne.s32.totalorder %s185, %s186
    %p195 = scmp.eq.s32.totalorder %s28, 0
    %p196 = por %p194, %p195
    %p197 = scmp.ne.s32.totalorder %s185, %s186
    %p198 = scmp.eq.s32.totalorder %s29, 1
    %p199 = por %p197, %p198
    %p201 = scmp.ne.s32.totalorder %s186, %s200
    %p202 = scmp.eq.s32.totalorder %s29, 0
    %p203 = por %p201, %p202
    %s205 = sadd.s32 %s204, 1
    %p208 = scmp.eq.s32.totalorder %s23, 1
    %p209 = scmp.ne.s32.totalorder %s204, %s206
    %p210 = scmp.eq.s32.totalorder %s23, 0
    %p211 = por %p209, %p210
    %p212 = scmp.ne.s32.totalorder %s204, %s206
    %p213 = scmp.eq.s32.totalorder %s28, 1
    %p214 = por %p212, %p213
    %p215 = scmp.ne.s32.totalorder %s206, %s207
    %p216 = scmp.eq.s32.totalorder %s28, 0
    %p217 = por %p215, %p216
    %p218 = scmp.ne.s32.totalorder %s206, %s207
    %p219 = scmp.eq.s32.totalorder %s29, 1
    %p220 = por %p218, %p219
    %p222 = scmp.ne.s32.totalorder %s207, %s221
    %p223 = scmp.eq.s32.totalorder %s29, 0
    %p224 = por %p222, %p223
    %s226 = sadd.s32 %s225, 1
    %p229 = scmp.eq.s32.totalorder %s23, 1
    %p230 = scmp.ne.s32.totalorder %s225, %s227
    %p231 = scmp.eq.s32.totalorder %s23, 0
    %p232 = por %p230, %p231
    %p233 = scmp.ne.s32.totalorder %s225, %s227
    %p234 = scmp.eq.s32.totalorder %s28, 1
    %p235 = por %p233, %p234
    %p236 = scmp.ne.s32.totalorder %s227, %s228
    %p237 = scmp.eq.s32.totalorder %s28, 0
    %p238 = por %p236, %p237
    %p239 = scmp.ne.s32.totalorder %s227, %s228
    %p240 = scmp.eq.s32.totalorder %s29, 1
    %p241 = por %p239, %p240
    %p243 = scmp.ne.s32.totalorder %s228, %s242
    %p244 = scmp.eq.s32.totalorder %s29, 0
    %p245 = por %p243, %p244
    %s247 = sadd.s32 %s246, 1
    %p250 = scmp.eq.s32.totalorder %s23, 1
    %p251 = scmp.ne.s32.totalorder %s246, %s248
    %p252 = scmp.eq.s32.totalorder %s23, 0
    %p253 = por %p251, %p252
    %p254 = scmp.ne.s32.totalorder %s246, %s248
    %p255 = scmp.eq.s32.totalorder %s28, 1
    %p256 = por %p254, %p255
    %p257 = scmp.ne.s32.totalorder %s248, %s249
    %p258 = scmp.eq.s32.totalorder %s28, 0
    %p259 = por %p257, %p258
    %p260 = scmp.ne.s32.totalorder %s248, %s249
    %p261 = scmp.eq.s32.totalorder %s29, 1
    %p262 = por %p260, %p261
    %p264 = scmp.ne.s32.totalorder %s249, %s263
    %p265 = scmp.eq.s32.totalorder %s29, 0
    %p266 = por %p264, %p265
    %s268 = sadd.s32 %s267, 1
    %p271 = scmp.eq.s32.totalorder %s23, 1
    %p272 = scmp.ne.s32.totalorder %s267, %s269
    %p273 = scmp.eq.s32.totalorder %s23, 0
    %p274 = por %p272, %p273
    %p275 = scmp.ne.s32.totalorder %s267, %s269
    %p276 = scmp.eq.s32.totalorder %s28, 1
    %p277 = por %p275, %p276
    %p278 = scmp.ne.s32.totalorder %s269, %s270
    %p279 = scmp.eq.s32.totalorder %s28, 0
    %p280 = por %p278, %p279
    %p281 = scmp.ne.s32.totalorder %s269, %s270
    %p282 = scmp.eq.s32.totalorder %s29, 1
    %p283 = por %p281, %p282
    %p285 = scmp.ne.s32.totalorder %s270, %s284
    %p286 = scmp.eq.s32.totalorder %s29, 0
    %p287 = por %p285, %p286
    %s289 = sadd.s32 %s288, 1
    %p292 = scmp.eq.s32.totalorder %s23, 1
    %p293 = scmp.ne.s32.totalorder %s288, %s290
    %p294 = scmp.eq.s32.totalorder %s23, 0
    %p295 = por %p293, %p294
    %p296 = scmp.ne.s32.totalorder %s288, %s290
    %p297 = scmp.eq.s32.totalorder %s28, 1
    %p298 = por %p296, %p297
    %p299 = scmp.ne.s32.totalorder %s290, %s291
    %p300 = scmp.eq.s32.totalorder %s28, 0
    %p301 = por %p299, %p300
    %p302 = scmp.ne.s32.totalorder %s290, %s291
    %p303 = scmp.eq.s32.totalorder %s29, 1
    %p304 = por %p302, %p303
    %p306 = scmp.ne.s32.totalorder %s291, %s305
    %p307 = scmp.eq.s32.totalorder %s29, 0
    %p308 = por %p306, %p307
    %s310 = sadd.s32 %s309, 1
    %p313 = scmp.eq.s32.totalorder %s23, 1
    %p314 = scmp.ne.s32.totalorder %s309, %s311
    %p315 = scmp.eq.s32.totalorder %s23, 0
    %p316 = por %p314, %p315
    %p317 = scmp.ne.s32.totalorder %s309, %s311
    %p318 = scmp.eq.s32.totalorder %s28, 1
    %p319 = por %p317, %p318
    %p320 = scmp.ne.s32.totalorder %s311, %s312
    %p321 = scmp.eq.s32.totalorder %s28, 0
    %p322 = por %p320, %p321
    %p323 = scmp.ne.s32.totalorder %s311, %s312
    %p324 = scmp.eq.s32.totalorder %s29, 1
    %p325 = por %p323, %p324
    %p327 = scmp.ne.s32.totalorder %s312, %s326
    %p328 = scmp.eq.s32.totalorder %s29, 0
    %p329 = por %p327, %p328
    %s331 = sadd.s32 %s330, 1
    %p334 = scmp.eq.s32.totalorder %s23, 1
    %p335 = scmp.ne.s32.totalorder %s330, %s332
    %p336 = scmp.eq.s32.totalorder %s23, 0
    %p337 = por %p335, %p336
    %p338 = scmp.ne.s32.totalorder %s330, %s332
    %p339 = scmp.eq.s32.totalorder %s28, 1
    %p340 = por %p338, %p339
    %p341 = scmp.ne.s32.totalorder %s332, %s333
    %p342 = scmp.eq.s32.totalorder %s28, 0
    %p343 = por %p341, %p342
    %p344 = scmp.ne.s32.totalorder %s332, %s333
    %p345 = scmp.eq.s32.totalorder %s29, 1
    %p346 = por %p344, %p345
    %p348 = scmp.ne.s32.totalorder %s333, %s347
    %p349 = scmp.eq.s32.totalorder %s29, 0
    %p350 = por %p348, %p349
    %s352 = sadd.s32 %s351, 1
    %p355 = scmp.eq.s32.totalorder %s23, 1
    %p356 = scmp.ne.s32.totalorder %s351, %s353
    %p357 = scmp.eq.s32.totalorder %s23, 0
    %p358 = por %p356, %p357
    %p359 = scmp.ne.s32.totalorder %s351, %s353
    %p360 = scmp.eq.s32.totalorder %s28, 1
    %p361 = por %p359, %p360
    %p362 = scmp.ne.s32.totalorder %s353, %s354
    %p363 = scmp.eq.s32.totalorder %s28, 0
    %p364 = por %p362, %p363
    %p365 = scmp.ne.s32.totalorder %s353, %s354
    %p366 = scmp.eq.s32.totalorder %s29, 1
    %p367 = por %p365, %p366
    %p369 = scmp.ne.s32.totalorder %s354, %s368
    %p370 = scmp.eq.s32.totalorder %s29, 0
    %p371 = por %p369, %p370
    %s373 = sadd.s32 %s372, 1
    %p376 = scmp.eq.s32.totalorder %s23, 1
    %p377 = scmp.ne.s32.totalorder %s372, %s374
    %p378 = scmp.eq.s32.totalorder %s23, 0
    %p379 = por %p377, %p378
    %p380 = scmp.ne.s32.totalorder %s372, %s374
    %p381 = scmp.eq.s32.totalorder %s28, 1
    %p382 = por %p380, %p381
    %p383 = scmp.ne.s32.totalorder %s374, %s375
    %p384 = scmp.eq.s32.totalorder %s28, 0
    %p385 = por %p383, %p384
    %p386 = scmp.ne.s32.totalorder %s374, %s375
    %p387 = scmp.eq.s32.totalorder %s29, 1
    %p388 = por %p386, %p387
    %p390 = scmp.ne.s32.totalorder %s375, %s389
    %p391 = scmp.eq.s32.totalorder %s29, 0
    %p392 = por %p390, %p391
    %s393 = ssub.s32 %s23, %s30
    %p394 = scmp.eq.s32.totalorder %s393, 0
    %s396 = sadd.s32 %s395, 1
    %s397 = scalar_select %p394, %s395, %s396
    %p400 = pneg %p394
    %p401 = scmp.eq.s32.totalorder %s23, 1
    %p402 = por %p400, %p401
    %p403 = scmp.ne.s32.totalorder %s395, %s398
    %p404 = scmp.eq.s32.totalorder %s23, 0
    %p405 = por %p403, %p404
    %p406 = scmp.ne.s32.totalorder %s395, %s398
    %p407 = scmp.eq.s32.totalorder %s28, 1
    %p408 = por %p406, %p407
    %p409 = scmp.ne.s32.totalorder %s398, %s399
    %p410 = scmp.eq.s32.totalorder %s28, 0
    %p411 = por %p409, %p410
    %p412 = scmp.ne.s32.totalorder %s398, %s399
    %p413 = scmp.eq.s32.totalorder %s29, 1
    %p414 = por %p412, %p413
    %p416 = scmp.ne.s32.totalorder %s399, %s415
    %p417 = scmp.eq.s32.totalorder %s29, 0
    %p418 = por %p416, %p417
    %p419 = scmp.le.s32.totalorder 1, %s23
    %p420 = scmp.lt.s32.totalorder %s23, 3
    %p421 = pnand %p419, %p420
    %p422 = pneg %p421
    // Predicated region
    $region9: #{_lambda_.2} parent=5 // pred_check
      _
    $region10: #{_lambda_.2} parent=5 // pred_check_branch
      %424 = sbr.rel (%p421) target = $region12
    $region11: #{_lambda_.2} parent=5 // pred_region
      %s425 = ssub.s32 %s23, 1
      // Predicated region
      $region13: #{_lambda_.2} parent=11 // pred_check
        %p426 = pneg %p70
      $region14: #{_lambda_.2} parent=11 // pred_check_branch
        %428 = sbr.rel (%p426) target = $region16
      $region15: #{_lambda_.2} parent=11 // pred_region
        _
      $region16: #{_lambda_.2} parent=11 // pred_fallthru
        _
      // Predicated region
      $region17: #{_lambda_.2} parent=11 // pred_check
        %p429 = pneg %p91
      $region18: #{_lambda_.2} parent=11 // pred_check_branch
        %431 = sbr.rel (%p429) target = $region20
      $region19: #{_lambda_.2} parent=11 // pred_region
        _
      $region20: #{_lambda_.2} parent=11 // pred_fallthru
        _
      // Predicated region
      $region21: #{_lambda_.2} parent=11 // pred_check
        %p432 = pneg %p112
      $region22: #{_lambda_.2} parent=11 // pred_check_branch
        %434 = sbr.rel (%p432) target = $region24
      $region23: #{_lambda_.2} parent=11 // pred_region
        _
      $region24: #{_lambda_.2} parent=11 // pred_fallthru
        _
      // Predicated region
      $region25: #{_lambda_.2} parent=11 // pred_check
        %p435 = pneg %p133
      $region26: #{_lambda_.2} parent=11 // pred_check_branch
        %437 = sbr.rel (%p435) target = $region28
      $region27: #{_lambda_.2} parent=11 // pred_region
        _
      $region28: #{_lambda_.2} parent=11 // pred_fallthru
        _
      // Predicated region
      $region29: #{_lambda_.2} parent=11 // pred_check
        %p438 = pneg %p154
      $region30: #{_lambda_.2} parent=11 // pred_check_branch
        %440 = sbr.rel (%p438) target = $region32
      $region31: #{_lambda_.2} parent=11 // pred_region
        _
      $region32: #{_lambda_.2} parent=11 // pred_fallthru
        _
      // Predicated region
      $region33: #{_lambda_.2} parent=11 // pred_check
        %p441 = pneg %p175
      $region34: #{_lambda_.2} parent=11 // pred_check_branch
        %443 = sbr.rel (%p441) target = $region36
      $region35: #{_lambda_.2} parent=11 // pred_region
        _
      $region36: #{_lambda_.2} parent=11 // pred_fallthru
        _
      // Predicated region
      $region37: #{_lambda_.2} parent=11 // pred_check
        %p444 = pneg %p196
      $region38: #{_lambda_.2} parent=11 // pred_check_branch
        %446 = sbr.rel (%p444) target = $region40
      $region39: #{_lambda_.2} parent=11 // pred_region
        _
      $region40: #{_lambda_.2} parent=11 // pred_fallthru
        _
      // Predicated region
      $region41: #{_lambda_.2} parent=11 // pred_check
        %p447 = pneg %p217
      $region42: #{_lambda_.2} parent=11 // pred_check_branch
        %449 = sbr.rel (%p447) target = $region44
      $region43: #{_lambda_.2} parent=11 // pred_region
        _
      $region44: #{_lambda_.2} parent=11 // pred_fallthru
        _
      // Predicated region
      $region45: #{_lambda_.2} parent=11 // pred_check
        %p450 = pneg %p238
      $region46: #{_lambda_.2} parent=11 // pred_check_branch
        %452 = sbr.rel (%p450) target = $region48
      $region47: #{_lambda_.2} parent=11 // pred_region
        _
      $region48: #{_lambda_.2} parent=11 // pred_fallthru
        _
      // Predicated region
      $region49: #{_lambda_.2} parent=11 // pred_check
        %p453 = pneg %p259
      $region50: #{_lambda_.2} parent=11 // pred_check_branch
        %455 = sbr.rel (%p453) target = $region52
      $region51: #{_lambda_.2} parent=11 // pred_region
        _
      $region52: #{_lambda_.2} parent=11 // pred_fallthru
        _
      // Predicated region
      $region53: #{_lambda_.2} parent=11 // pred_check
        %p456 = pneg %p280
      $region54: #{_lambda_.2} parent=11 // pred_check_branch
        %458 = sbr.rel (%p456) target = $region56
      $region55: #{_lambda_.2} parent=11 // pred_region
        _
      $region56: #{_lambda_.2} parent=11 // pred_fallthru
        _
      // Predicated region
      $region57: #{_lambda_.2} parent=11 // pred_check
        %p459 = pneg %p301
      $region58: #{_lambda_.2} parent=11 // pred_check_branch
        %461 = sbr.rel (%p459) target = $region60
      $region59: #{_lambda_.2} parent=11 // pred_region
        _
      $region60: #{_lambda_.2} parent=11 // pred_fallthru
        _
      // Predicated region
      $region61: #{_lambda_.2} parent=11 // pred_check
        %p462 = pneg %p322
      $region62: #{_lambda_.2} parent=11 // pred_check_branch
        %464 = sbr.rel (%p462) target = $region64
      $region63: #{_lambda_.2} parent=11 // pred_region
        _
      $region64: #{_lambda_.2} parent=11 // pred_fallthru
        _
      // Predicated region
      $region65: #{_lambda_.2} parent=11 // pred_check
        %p465 = pneg %p343
      $region66: #{_lambda_.2} parent=11 // pred_check_branch
        %467 = sbr.rel (%p465) target = $region68
      $region67: #{_lambda_.2} parent=11 // pred_region
        _
      $region68: #{_lambda_.2} parent=11 // pred_fallthru
        _
      // Predicated region
      $region69: #{_lambda_.2} parent=11 // pred_check
        %p468 = pneg %p364
      $region70: #{_lambda_.2} parent=11 // pred_check_branch
        %470 = sbr.rel (%p468) target = $region72
      $region71: #{_lambda_.2} parent=11 // pred_region
        _
      $region72: #{_lambda_.2} parent=11 // pred_fallthru
        _
      // Predicated region
      $region73: #{_lambda_.2} parent=11 // pred_check
        %p471 = pneg %p385
      $region74: #{_lambda_.2} parent=11 // pred_check_branch
        %473 = sbr.rel (%p471) target = $region76
      $region75: #{_lambda_.2} parent=11 // pred_region
        _
      $region76: #{_lambda_.2} parent=11 // pred_fallthru
        _
    $region12: #{_lambda_.2} parent=5 // pred_fallthru
      _
    %p474 = scmp.lt.s32.totalorder %s23, 2
    // Predicated region
    $region77: #{_lambda_.2} parent=5 // pred_check
      %p475 = pneg %p474
    $region78: #{_lambda_.2} parent=5 // pred_check_branch
      %477 = sbr.rel (%p475) target = $region80
    $region79: #{_lambda_.2} parent=5 // pred_region
      // Predicated region
      $region81: #{_lambda_.2} parent=79 // pred_check
        %p478 = pneg %p43
      $region82: #{_lambda_.2} parent=79 // pred_check_branch
        %480 = sbr.rel (%p478) target = $region84
      $region83: #{_lambda_.2} parent=79 // pred_region
        %p481 = scmp.lt.s32.totalorder %s23, 1
        %s482 = scalar_select %p481, %s23, 1
        %s483 = smul.addr %s482, 14
        %s484 = smul.addr %s483, 4
        %s485 = scalar_lea.vmem %s0, %s484
      $region84: #{_lambda_.2} parent=79 // pred_fallthru
        _
    $region80: #{_lambda_.2} parent=5 // pred_fallthru
      _
    %p486 = scmp.le.s32.totalorder 1, %s23
    %p487 = scmp.lt.s32.totalorder %s23, 3
    %p488 = pnand %p486, %p487
    %p489 = pneg %p488
    // Predicated region
    $region85: #{_lambda_.2} parent=5 // pred_check
      _
    $region86: #{_lambda_.2} parent=5 // pred_check_branch
      %491 = sbr.rel (%p488) target = $region88
    $region87: #{_lambda_.2} parent=5 // pred_region
      %s492 = ssub.s32 %s23, 1
      %p493 = scmp.lt.s32.totalorder %s28, 1
      %s494 = scalar_select %p493, %s28, 1
      %s495 = smul.addr %s494, 14
      %s496 = smul.addr %s495, 4
      %s497 = scalar_lea.vmem %s0, %s496
      %p498 = pneg %p49
      %p499 = pneg %p46
      %p500 = pneg %p70
      %p501 = pneg %p67
      %p502 = pneg %p91
      %p503 = pneg %p88
      %p504 = pneg %p112
      %p505 = pneg %p109
      %p506 = pneg %p133
      %p507 = pneg %p130
      %p508 = pneg %p154
      %p509 = pneg %p151
      %p510 = pneg %p175
      %p511 = pneg %p172
      %p512 = pneg %p196
      %p513 = pneg %p193
      %p514 = pneg %p217
      %p515 = pneg %p214
      %p516 = pneg %p238
      %p517 = pneg %p235
      %p518 = pneg %p259
      %p519 = pneg %p256
      %p520 = pneg %p280
      %p521 = pneg %p277
      %p522 = pneg %p301
      %p523 = pneg %p298
      %p524 = pneg %p322
      %p525 = pneg %p319
      %p526 = pneg %p343
      %p527 = pneg %p340
      %p528 = pneg %p364
      %p529 = pneg %p361
      %p530 = pneg %p385
      %p531 = pneg %p382
      %p532 = pneg %p411
      %p533 = pneg %p408
      %p534 = scmp.lt.s32.totalorder %s28, 1
      %s535 = scalar_select %p534, %s28, 1
      %s536 = smul.addr %s535, 2
      %s537 = smul.addr %s536, 8
      %s538 = scalar_lea.vmem %s17, %s537
      %p539 = scmp.lt.s32.totalorder %s28, 1
      %s540 = scalar_select %p539, %s28, 1
      %s541 = smul.addr %s540, 14
      %s542 = smul.addr %s541, 4
      %s543 = scalar_lea.vmem %s0, %s542
      %p544 = scmp.lt.s32.totalorder %s28, 1
      %s545 = scalar_select %p544, %s28, 1
      %s546 = smul.addr %s545, 2
      %s547 = smul.addr %s546, 8
      %s548 = scalar_lea.vmem %s17, %s547
      %v550 = vld [vmem:[%s543] sm:$0xff]
      %v551 = vld [vmem:[%s543 + $0x8] sm:$0xff]
      %v552 = vld [vmem:[%s543 + $0x10] sm:$0xff]
      %v553 = vld [vmem:[%s543 + $0x18] sm:$0xf]
      %v554 = vld [vmem:[%s543 + $0x1c] sm:$0x11]
      %v555 = vld [vmem:[%s543 + $0x24] sm:$0x11]
      %v556 = vld [vmem:[%s543 + $0x2c] sm:$0x11]
      %v557 = vld [vmem:[%s543 + $0x34] sm:$0x1]
      %v558 = vld [vmem:[%s1] sm:$0xf]
      %v559 = vld [vmem:[%s1 + $0x4] sm:$0xf]
      %v560 = vld [vmem:[%s1 + $0x8] sm:$0xf]
      %v561 = vld [vmem:[%s1 + $0xc] sm:$0xf]
      %v562 = vld [vmem:[%s1 + $0x10] sm:$0xf]
      %v563 = vld [vmem:[%s1 + $0x14] sm:$0xf]
      %v564 = vld [vmem:[%s1 + $0x18] sm:$0xf]
      %v565 = vld [vmem:[%s1 + $0x1c] sm:$0xf]
      %v566 = vld [vmem:[%s1 + $0x20] sm:$0xf]
      %v567 = vld [vmem:[%s1 + $0x24] sm:$0xf]
      %v568 = vld [vmem:[%s1 + $0x28] sm:$0xf]
      %v569 = vld [vmem:[%s1 + $0x2c] sm:$0xf]
      %v570 = vld [vmem:[%s1 + $0x30] sm:$0xf]
      %v571 = vld [vmem:[%s1 + $0x34] sm:$0xf]
      %v572 = vld [vmem:[%s1 + $0x38] sm:$0xf]
      %v573 = vld [vmem:[%s1 + $0x3c] sm:$0xf]
      %v574 = vld [vmem:[%s1 + $0x40] sm:$0xf]
      %v575 = vld [vmem:[%s1 + $0x44] sm:$0xf]
      %v576 = vld [vmem:[%s1 + $0x48] sm:$0xf]
      %v577 = vld [vmem:[%s1 + $0x4c] sm:$0xf]
      %v578 = vld [vmem:[%s1 + $0x50] sm:$0xf]
      %v579 = vld [vmem:[%s1 + $0x54] sm:$0xf]
      %v580 = vld [vmem:[%s1 + $0x58] sm:$0xf]
      %v581 = vld [vmem:[%s1 + $0x5c] sm:$0xf]
      %v582 = vld [vmem:[%s1 + $0x60] sm:$0xf]
      %v583 = vld [vmem:[%s1 + $0x64] sm:$0xf]
      %v584 = vld [vmem:[%s1 + $0x68] sm:$0xf]
      %v585 = vld [vmem:[%s1 + $0x6c] sm:$0xf]
      %v586 = vld [vmem:[%s1 + $0x70] sm:$0xf]
      %v587 = vld [vmem:[%s1 + $0x74] sm:$0xf]
      %v588 = vld [vmem:[%s1 + $0x78] sm:$0xf]
      %v589 = vld [vmem:[%s1 + $0x7c] sm:$0xf]
      %v590 = vld [vmem:[%s1 + $0x80] sm:$0xf]
      %v591 = vld [vmem:[%s1 + $0x84] sm:$0xf]
      %v592 = vld [vmem:[%s1 + $0x88] sm:$0xf]
      %v593 = vld [vmem:[%s1 + $0x8c] sm:$0xf]
      %v594 = vld [vmem:[%s1 + $0x90] sm:$0xf]
      %v595 = vld [vmem:[%s1 + $0x94] sm:$0xf]
      %v596 = vld [vmem:[%s1 + $0x98] sm:$0xf]
      %v597 = vld [vmem:[%s1 + $0x9c] sm:$0xf]
      %v598 = vld [vmem:[%s1 + $0xa0] sm:$0xf]
      %v599 = vld [vmem:[%s1 + $0xa4] sm:$0xf]
      %v600 = vld [vmem:[%s1 + $0xa8] sm:$0xf]
      %v601 = vld [vmem:[%s1 + $0xac] sm:$0xf]
      %v602 = vld [vmem:[%s1 + $0xb0] sm:$0xf]
      %v603 = vld [vmem:[%s1 + $0xb4] sm:$0xf]
      %v604 = vld [vmem:[%s1 + $0xb8] sm:$0xf]
      %v605 = vld [vmem:[%s1 + $0xbc] sm:$0xf]
      %v606 = vld [vmem:[%s1 + $0xc0] sm:$0xf]
      %v607 = vld [vmem:[%s1 + $0xc4] sm:$0xf]
      %v608 = vld [vmem:[%s1 + $0xc8] sm:$0xf]
      %v609 = vld [vmem:[%s1 + $0xcc] sm:$0xf]
      %v610 = vld [vmem:[%s1 + $0xd0] sm:$0xf]
      %v611 = vld [vmem:[%s1 + $0xd4] sm:$0xf]
      %v612 = vld [vmem:[%s1 + $0xd8] sm:$0xf]
      %v613 = vld [vmem:[%s1 + $0xdc] sm:$0xf]
      %v614 = vld [vmem:[%s1 + $0xe0] sm:$0xf]
      %v615 = vld [vmem:[%s1 + $0xe4] sm:$0xf]
      %v616 = vld [vmem:[%s1 + $0xe8] sm:$0xf]
      %v617 = vld [vmem:[%s1 + $0xec] sm:$0xf]
      %v618 = vld [vmem:[%s1 + $0xf0] sm:$0xf]
      %v619 = vld [vmem:[%s1 + $0xf4] sm:$0xf]
      %v620 = vld [vmem:[%s1 + $0xf8] sm:$0xf]
      %v621 = vld [vmem:[%s1 + $0xfc] sm:$0xf]
      %v622 = vld [vmem:[%s1 + $0x100] sm:$0xf]
      %v623 = vld [vmem:[%s1 + $0x104] sm:$0xf]
      %v624 = vld [vmem:[%s1 + $0x108] sm:$0xf]
      %v625 = vld [vmem:[%s1 + $0x10c] sm:$0xf]
      %v626 = vld [vmem:[%s1 + $0x110] sm:$0xf]
      %v627 = vld [vmem:[%s1 + $0x114] sm:$0xf]
      %v628 = vld [vmem:[%s1 + $0x118] sm:$0xf]
      %v629 = vld [vmem:[%s1 + $0x11c] sm:$0xf]
      %v630 = vld [vmem:[%s1 + $0x120] sm:$0xf]
      %v631 = vld [vmem:[%s1 + $0x124] sm:$0xf]
      %v632 = vld [vmem:[%s1 + $0x128] sm:$0xf]
      %v633 = vld [vmem:[%s1 + $0x12c] sm:$0xf]
      %v634 = vld [vmem:[%s1 + $0x130] sm:$0xf]
      %v635 = vld [vmem:[%s1 + $0x134] sm:$0xf]
      %v636 = vld [vmem:[%s1 + $0x138] sm:$0xf]
      %v637 = vld [vmem:[%s1 + $0x13c] sm:$0xf]
      %v638 = vld [vmem:[%s1 + $0x140] sm:$0xf]
      %v639 = vld [vmem:[%s1 + $0x144] sm:$0xf]
      %v640 = vld [vmem:[%s1 + $0x148] sm:$0xf]
      %v641 = vld [vmem:[%s1 + $0x14c] sm:$0xf]
      %v642 = vld [vmem:[%s1 + $0x150] sm:$0xf]
      %v643 = vld [vmem:[%s1 + $0x154] sm:$0xf]
      %v644 = vld [vmem:[%s1 + $0x158] sm:$0xf]
      %v645 = vld [vmem:[%s1 + $0x15c] sm:$0xf]
      %v646 = vld [vmem:[%s1 + $0x160] sm:$0xf]
      %v647 = vld [vmem:[%s1 + $0x164] sm:$0xf]
      %v648 = vld [vmem:[%s1 + $0x168] sm:$0xf]
      %v649 = vld [vmem:[%s1 + $0x16c] sm:$0xf]
      %v650 = vld [vmem:[%s1 + $0x170] sm:$0xf]
      %v651 = vld [vmem:[%s1 + $0x174] sm:$0xf]
      %v652 = vld [vmem:[%s1 + $0x178] sm:$0xf]
      %v653 = vld [vmem:[%s1 + $0x17c] sm:$0xf]
      %v654 = vld [vmem:[%s1 + $0x180] sm:$0xf]
      %v655 = vld [vmem:[%s1 + $0x184] sm:$0xf]
      %v656 = vld [vmem:[%s1 + $0x188] sm:$0xf]
      %v657 = vld [vmem:[%s1 + $0x18c] sm:$0xf]
      %v658 = vld [vmem:[%s1 + $0x190] sm:$0xf]
      %v659 = vld [vmem:[%s1 + $0x194] sm:$0xf]
      %v660 = vld [vmem:[%s1 + $0x198] sm:$0xf]
      %v661 = vld [vmem:[%s1 + $0x19c] sm:$0xf]
      %v662 = vld [vmem:[%s1 + $0x1a0] sm:$0xf]
      %v663 = vld [vmem:[%s1 + $0x1a4] sm:$0xf]
      %v664 = vld [vmem:[%s1 + $0x1a8] sm:$0xf]
      %v665 = vld [vmem:[%s1 + $0x1ac] sm:$0xf]
      %v666 = vld [vmem:[%s1 + $0x1b0] sm:$0xf]
      %v667 = vld [vmem:[%s1 + $0x1b4] sm:$0xf]
      %v668 = vld [vmem:[%s1 + $0x1b8] sm:$0xf]
      %v669 = vld [vmem:[%s1 + $0x1bc] sm:$0xf]
      %v670 = vld [vmem:[%s2] sm:$0xff]
      %v671 = vld [vmem:[%s2 + $0x8] sm:$0x3]
      %v680 = vunpack.c.l.b16 %v550
      %v681 = vunpack.c.h.b16 %v550
      %v682 = vunpack.c.l.b16 %v551
      %v683 = vunpack.c.h.b16 %v551
      %v684 = vunpack.c.l.b16 %v552
      %v685 = vunpack.c.h.b16 %v552
      %v686 = vunpack.c.l.b16 %v553
      %v687 = vunpack.c.l.b16 %v554
      %v688 = vunpack.c.h.b16 %v554
      %v689 = vunpack.c.l.b16 %v555
      %v690 = vunpack.c.h.b16 %v555
      %v691 = vunpack.c.l.b16 %v556
      %v692 = vunpack.c.h.b16 %v556
      %v693 = vunpack.c.l.b16 %v557
      %v694 = vpack.c.b16 %v687, %v680
      %v695 = vpack.c.b16 %v688, %v681
      %v696 = vpack.c.b16 %v689, %v682
      %v697 = vpack.c.b16 %v690, %v683
      %v698 = vpack.c.b16 %v691, %v684
      %v699 = vpack.c.b16 %v692, %v685
      %v700 = vpack.c.b16 %v693, %v686
      %v820 = vunpack.c.l.b16 %v558
      %v821 = vunpack.c.l.b16 %v559
      %v822 = vunpack.c.l.b16 %v560
      %v823 = vunpack.c.l.b16 %v561
      %v824 = vunpack.c.l.b16 %v562
      %v825 = vunpack.c.l.b16 %v563
      %v826 = vunpack.c.l.b16 %v564
      %v827 = vunpack.c.l.b16 %v565
      %v828 = vunpack.c.l.b16 %v566
      %v829 = vunpack.c.l.b16 %v567
      %v830 = vunpack.c.l.b16 %v568
      %v831 = vunpack.c.l.b16 %v569
      %v832 = vunpack.c.l.b16 %v570
      %v833 = vunpack.c.l.b16 %v571
      %v834 = vunpack.c.l.b16 %v572
      %v835 = vunpack.c.l.b16 %v573
      %v836 = vunpack.c.l.b16 %v574
      %v837 = vunpack.c.l.b16 %v575
      %v838 = vunpack.c.l.b16 %v576
      %v839 = vunpack.c.l.b16 %v577
      %v840 = vunpack.c.l.b16 %v578
      %v841 = vunpack.c.l.b16 %v579
      %v842 = vunpack.c.l.b16 %v580
      %v843 = vunpack.c.l.b16 %v581
      %v844 = vunpack.c.l.b16 %v582
      %v845 = vunpack.c.l.b16 %v583
      %v846 = vunpack.c.l.b16 %v584
      %v847 = vunpack.c.l.b16 %v585
      %v848 = vunpack.c.l.b16 %v586
      %v849 = vunpack.c.l.b16 %v587
      %v850 = vunpack.c.l.b16 %v588
      %v851 = vunpack.c.l.b16 %v589
      %v852 = vunpack.c.l.b16 %v590
      %v853 = vunpack.c.l.b16 %v591
      %v854 = vunpack.c.l.b16 %v592
      %v855 = vunpack.c.l.b16 %v593
      %v856 = vunpack.c.l.b16 %v594
      %v857 = vunpack.c.l.b16 %v595
      %v858 = vunpack.c.l.b16 %v596
      %v859 = vunpack.c.l.b16 %v597
      %v860 = vunpack.c.l.b16 %v598
      %v861 = vunpack.c.l.b16 %v599
      %v862 = vunpack.c.l.b16 %v600
      %v863 = vunpack.c.l.b16 %v601
      %v864 = vunpack.c.l.b16 %v602
      %v865 = vunpack.c.l.b16 %v603
      %v866 = vunpack.c.l.b16 %v604
      %v867 = vunpack.c.l.b16 %v605
      %v868 = vunpack.c.l.b16 %v606
      %v869 = vunpack.c.l.b16 %v607
      %v870 = vunpack.c.l.b16 %v608
      %v871 = vunpack.c.l.b16 %v609
      %v872 = vunpack.c.l.b16 %v610
      %v873 = vunpack.c.l.b16 %v611
      %v874 = vunpack.c.l.b16 %v612
      %v875 = vunpack.c.l.b16 %v613
      %v876 = vunpack.c.l.b16 %v614
      %v877 = vunpack.c.l.b16 %v615
      %v878 = vunpack.c.l.b16 %v616
      %v879 = vunpack.c.l.b16 %v617
      %v880 = vunpack.c.l.b16 %v618
      %v881 = vunpack.c.l.b16 %v619
      %v882 = vunpack.c.l.b16 %v620
      %v883 = vunpack.c.l.b16 %v621
      %v884 = vunpack.c.l.b16 %v622
      %v885 = vunpack.c.l.b16 %v623
      %v886 = vunpack.c.l.b16 %v624
      %v887 = vunpack.c.l.b16 %v625
      %v888 = vunpack.c.l.b16 %v626
      %v889 = vunpack.c.l.b16 %v627
      %v890 = vunpack.c.l.b16 %v628
      %v891 = vunpack.c.l.b16 %v629
      %v892 = vunpack.c.l.b16 %v630
      %v893 = vunpack.c.l.b16 %v631
      %v894 = vunpack.c.l.b16 %v632
      %v895 = vunpack.c.l.b16 %v633
      %v896 = vunpack.c.l.b16 %v634
      %v897 = vunpack.c.l.b16 %v635
      %v898 = vunpack.c.l.b16 %v636
      %v899 = vunpack.c.l.b16 %v637
      %v900 = vunpack.c.l.b16 %v638
      %v901 = vunpack.c.l.b16 %v639
      %v902 = vunpack.c.l.b16 %v640
      %v903 = vunpack.c.l.b16 %v641
      %v904 = vunpack.c.l.b16 %v642
      %v905 = vunpack.c.l.b16 %v643
      %v906 = vunpack.c.l.b16 %v644
      %v907 = vunpack.c.l.b16 %v645
      %v908 = vunpack.c.l.b16 %v646
      %v909 = vunpack.c.l.b16 %v647
      %v910 = vunpack.c.l.b16 %v648
      %v911 = vunpack.c.l.b16 %v649
      %v912 = vunpack.c.l.b16 %v650
      %v913 = vunpack.c.l.b16 %v651
      %v914 = vunpack.c.l.b16 %v652
      %v915 = vunpack.c.l.b16 %v653
      %v916 = vunpack.c.l.b16 %v654
      %v917 = vunpack.c.l.b16 %v655
      %v918 = vunpack.c.l.b16 %v656
      %v919 = vunpack.c.l.b16 %v657
      %v920 = vunpack.c.l.b16 %v658
      %v921 = vunpack.c.l.b16 %v659
      %v922 = vunpack.c.l.b16 %v660
      %v923 = vunpack.c.l.b16 %v661
      %v924 = vunpack.c.l.b16 %v662
      %v925 = vunpack.c.l.b16 %v663
      %v926 = vunpack.c.l.b16 %v664
      %v927 = vunpack.c.l.b16 %v665
      %v928 = vunpack.c.l.b16 %v666
      %v929 = vunpack.c.l.b16 %v667
      %v930 = vunpack.c.l.b16 %v668
      %v931 = vunpack.c.l.b16 %v669
      %v932 = vpack.c.b16 %v821, %v820
      %v933 = vpack.c.b16 %v823, %v822
      %v934 = vpack.c.b16 %v825, %v824
      %v935 = vpack.c.b16 %v827, %v826
      %v936 = vpack.c.b16 %v829, %v828
      %v937 = vpack.c.b16 %v831, %v830
      %v938 = vpack.c.b16 %v833, %v832
      %v939 = vpack.c.b16 %v835, %v834
      %v940 = vpack.c.b16 %v837, %v836
      %v941 = vpack.c.b16 %v839, %v838
      %v942 = vpack.c.b16 %v841, %v840
      %v943 = vpack.c.b16 %v843, %v842
      %v944 = vpack.c.b16 %v845, %v844
      %v945 = vpack.c.b16 %v847, %v846
      %v946 = vpack.c.b16 %v849, %v848
      %v947 = vpack.c.b16 %v851, %v850
      %v948 = vpack.c.b16 %v853, %v852
      %v949 = vpack.c.b16 %v855, %v854
      %v950 = vpack.c.b16 %v857, %v856
      %v951 = vpack.c.b16 %v859, %v858
      %v952 = vpack.c.b16 %v861, %v860
      %v953 = vpack.c.b16 %v863, %v862
      %v954 = vpack.c.b16 %v865, %v864
      %v955 = vpack.c.b16 %v867, %v866
      %v956 = vpack.c.b16 %v869, %v868
      %v957 = vpack.c.b16 %v871, %v870
      %v958 = vpack.c.b16 %v873, %v872
      %v959 = vpack.c.b16 %v875, %v874
      %v960 = vpack.c.b16 %v877, %v876
      %v961 = vpack.c.b16 %v879, %v878
      %v962 = vpack.c.b16 %v881, %v880
      %v963 = vpack.c.b16 %v883, %v882
      %v964 = vpack.c.b16 %v885, %v884
      %v965 = vpack.c.b16 %v887, %v886
      %v966 = vpack.c.b16 %v889, %v888
      %v967 = vpack.c.b16 %v891, %v890
      %v968 = vpack.c.b16 %v893, %v892
      %v969 = vpack.c.b16 %v895, %v894
      %v970 = vpack.c.b16 %v897, %v896
      %v971 = vpack.c.b16 %v899, %v898
      %v972 = vpack.c.b16 %v901, %v900
      %v973 = vpack.c.b16 %v903, %v902
      %v974 = vpack.c.b16 %v905, %v904
      %v975 = vpack.c.b16 %v907, %v906
      %v976 = vpack.c.b16 %v909, %v908
      %v977 = vpack.c.b16 %v911, %v910
      %v978 = vpack.c.b16 %v913, %v912
      %v979 = vpack.c.b16 %v915, %v914
      %v980 = vpack.c.b16 %v917, %v916
      %v981 = vpack.c.b16 %v919, %v918
      %v982 = vpack.c.b16 %v921, %v920
      %v983 = vpack.c.b16 %v923, %v922
      %v984 = vpack.c.b16 %v925, %v924
      %v985 = vpack.c.b16 %v927, %v926
      %v986 = vpack.c.b16 %v929, %v928
      %v987 = vpack.c.b16 %v931, %v930
      %1044 = vmatprep.subr.bf16.mxu0 0
      %1045 = vmatpush1.bf16.msra.mxu0 %v932
      %1046 = vmatprep.subr.bf16.mxu0 0
      %1047 = vmatpush1.bf16.msra.mxu0 %v933
      %1048 = vmatprep.subr.bf16.mxu0 0
      %1049 = vmatpush1.bf16.msra.mxu0 %v934
      %1050 = vmatprep.subr.bf16.mxu0 0
      %1051 = vmatpush1.bf16.msra.mxu0 %v935
      %1052 = vmatprep.subr.bf16.mxu0 0
      %1053 = vmatpush1.bf16.msra.mxu0 %v936
      %1054 = vmatprep.subr.bf16.mxu0 0
      %1055 = vmatpush1.bf16.msra.mxu0 %v937
      %1056 = vmatprep.subr.bf16.mxu0 0
      %1057 = vmatpush1.bf16.msra.mxu0 %v938
      %1058 = vmatprep.subr.bf16.mxu0 0
      %1059 = vmatpush1.bf16.msra.mxu0 %v939
      %1060 = vmatprep.subr.bf16.mxu0 0
      %1061 = vmatpush1.bf16.msra.mxu0 %v940
      %1062 = vmatprep.subr.bf16.mxu0 0
      %1063 = vmatpush1.bf16.msra.mxu0 %v941
      %1064 = vmatprep.subr.bf16.mxu0 0
      %1065 = vmatpush1.bf16.msra.mxu0 %v942
      %1066 = vmatprep.subr.bf16.mxu0 0
      %1067 = vmatpush1.bf16.msra.mxu0 %v943
      %1068 = vmatprep.subr.bf16.mxu0 0
      %1069 = vmatpush1.bf16.msra.mxu0 %v944
      %1070 = vmatprep.subr.bf16.mxu0 0
      %1071 = vmatpush1.bf16.msra.mxu0 %v945
      %1072 = vmatprep.subr.bf16.mxu0 0
      %1073 = vmatpush1.bf16.msra.mxu0 %v946
      %1074 = vmatprep.subr.bf16.mxu0 0
      %1075 = vmatpush1.bf16.msra.mxu0 %v947
      %1076 = vmatprep.mubr.bf16.mxu0 %v695
      %1077 = vmatmul.mubr.bf16.gmra.mrb[0].mxu0 %v694
      %v1078 = vpop.f32.mrb[0].mxu0
      %v1079 = vadd.f32 %v670, %v1078
      %v1080 = vpop.f32.mrb[0].mxu0
      %v1081 = vpop.f32.mrb[0].mxu0
      %v1082 = vadd.f32 %v671, %v1081
      %v1083 = vpop.f32.mrb[0].mxu0
      %1084 = vdwg.mxu0
      %1085 = vmatprep.subr.bf16.mxu0 0
      %1086 = vmatpush1.bf16.msra.mxu0 %v948
      %1087 = vmatprep.subr.bf16.mxu0 0
      %1088 = vmatpush1.bf16.msra.mxu0 %v949
      %1089 = vmatprep.subr.bf16.mxu0 0
      %1090 = vmatpush1.bf16.msra.mxu0 %v950
      %1091 = vmatprep.subr.bf16.mxu0 0
      %1092 = vmatpush1.bf16.msra.mxu0 %v951
      %1093 = vmatprep.subr.bf16.mxu0 0
      %1094 = vmatpush1.bf16.msra.mxu0 %v952
      %1095 = vmatprep.subr.bf16.mxu0 0
      %1096 = vmatpush1.bf16.msra.mxu0 %v953
      %1097 = vmatprep.subr.bf16.mxu0 0
      %1098 = vmatpush1.bf16.msra.mxu0 %v954
      %1099 = vmatprep.subr.bf16.mxu0 0
      %1100 = vmatpush1.bf16.msra.mxu0 %v955
      %1101 = vmatprep.subr.bf16.mxu0 0
      %1102 = vmatpush1.bf16.msra.mxu0 %v956
      %1103 = vmatprep.subr.bf16.mxu0 0
      %1104 = vmatpush1.bf16.msra.mxu0 %v957
      %1105 = vmatprep.subr.bf16.mxu0 0
      %1106 = vmatpush1.bf16.msra.mxu0 %v958
      %1107 = vmatprep.subr.bf16.mxu0 0
      %1108 = vmatpush1.bf16.msra.mxu0 %v959
      %1109 = vmatprep.subr.bf16.mxu0 0
      %1110 = vmatpush1.bf16.msra.mxu0 %v960
      %1111 = vmatprep.subr.bf16.mxu0 0
      %1112 = vmatpush1.bf16.msra.mxu0 %v961
      %1113 = vmatprep.subr.bf16.mxu0 0
      %1114 = vmatpush1.bf16.msra.mxu0 %v962
      %1115 = vmatprep.subr.bf16.mxu0 0
      %1116 = vmatpush1.bf16.msra.mxu0 %v963
      %1117 = vmatprep.mubr.bf16.mxu0 %v697
      %1118 = vmatmul.mubr.bf16.gmra.mrb[0].mxu0 %v696
      %v1119 = vpop.f32.mrb[0].mxu0
      %v1120 = vadd.f32 %v1079, %v1119
      %v1121 = vpop.f32.mrb[0].mxu0
      %v1122 = vpop.f32.mrb[0].mxu0
      %v1123 = vadd.f32 %v1082, %v1122
      %v1124 = vpop.f32.mrb[0].mxu0
      %1125 = vdwg.mxu0
      %1126 = vmatprep.subr.bf16.mxu0 0
      %1127 = vmatpush1.bf16.msra.mxu0 %v964
      %1128 = vmatprep.subr.bf16.mxu0 0
      %1129 = vmatpush1.bf16.msra.mxu0 %v965
      %1130 = vmatprep.subr.bf16.mxu0 0
      %1131 = vmatpush1.bf16.msra.mxu0 %v966
      %1132 = vmatprep.subr.bf16.mxu0 0
      %1133 = vmatpush1.bf16.msra.mxu0 %v967
      %1134 = vmatprep.subr.bf16.mxu0 0
      %1135 = vmatpush1.bf16.msra.mxu0 %v968
      %1136 = vmatprep.subr.bf16.mxu0 0
      %1137 = vmatpush1.bf16.msra.mxu0 %v969
      %1138 = vmatprep.subr.bf16.mxu0 0
      %1139 = vmatpush1.bf16.msra.mxu0 %v970
      %1140 = vmatprep.subr.bf16.mxu0 0
      %1141 = vmatpush1.bf16.msra.mxu0 %v971
      %1142 = vmatprep.subr.bf16.mxu0 0
      %1143 = vmatpush1.bf16.msra.mxu0 %v972
      %1144 = vmatprep.subr.bf16.mxu0 0
      %1145 = vmatpush1.bf16.msra.mxu0 %v973
      %1146 = vmatprep.subr.bf16.mxu0 0
      %1147 = vmatpush1.bf16.msra.mxu0 %v974
      %1148 = vmatprep.subr.bf16.mxu0 0
      %1149 = vmatpush1.bf16.msra.mxu0 %v975
      %1150 = vmatprep.subr.bf16.mxu0 0
      %1151 = vmatpush1.bf16.msra.mxu0 %v976
      %1152 = vmatprep.subr.bf16.mxu0 0
      %1153 = vmatpush1.bf16.msra.mxu0 %v977
      %1154 = vmatprep.subr.bf16.mxu0 0
      %1155 = vmatpush1.bf16.msra.mxu0 %v978
      %1156 = vmatprep.subr.bf16.mxu0 0
      %1157 = vmatpush1.bf16.msra.mxu0 %v979
      %1158 = vmatprep.mubr.bf16.mxu0 %v699
      %1159 = vmatmul.mubr.bf16.gmra.mrb[0].mxu0 %v698
      %v1160 = vpop.f32.mrb[0].mxu0
      %v1161 = vadd.f32 %v1120, %v1160
      %v1162 = vpop.f32.mrb[0].mxu0
      %v1163 = vpop.f32.mrb[0].mxu0
      %v1164 = vadd.f32 %v1123, %v1163
      %v1165 = vpop.f32.mrb[0].mxu0
      %1166 = vdwg.mxu0
      %1167 = vmatprep.subr.bf16.mxu0 0
      %1168 = vmatpush1.bf16.msra.mxu0 %v980
      %1169 = vmatprep.subr.bf16.mxu0 0
      %1170 = vmatpush1.bf16.msra.mxu0 %v981
      %1171 = vmatprep.subr.bf16.mxu0 0
      %1172 = vmatpush1.bf16.msra.mxu0 %v982
      %1173 = vmatprep.subr.bf16.mxu0 0
      %1174 = vmatpush1.bf16.msra.mxu0 %v983
      %1175 = vmatprep.subr.bf16.mxu0 0
      %1176 = vmatpush1.bf16.msra.mxu0 %v984
      %1177 = vmatprep.subr.bf16.mxu0 0
      %1178 = vmatpush1.bf16.msra.mxu0 %v985
      %1179 = vmatprep.subr.bf16.mxu0 0
      %1180 = vmatpush1.bf16.msra.mxu0 %v986
      %1181 = vmatprep.subr.bf16.mxu0 0
      %1182 = vmatpush1.bf16.msra.mxu0 %v987
      %1183 = vmatprep.subr.bf16.mxu0 0
      %1184 = vmatpush1.bf16.msra.mxu0 0
      %1185 = vmatprep.subr.bf16.mxu0 0
      %1186 = vmatpush1.bf16.msra.mxu0 0
      %1187 = vmatprep.subr.bf16.mxu0 0
      %1188 = vmatpush1.bf16.msra.mxu0 0
      %1189 = vmatprep.subr.bf16.mxu0 0
      %1190 = vmatpush1.bf16.msra.mxu0 0
      %1191 = vmatprep.subr.bf16.mxu0 0
      %1192 = vmatpush1.bf16.msra.mxu0 0
      %1193 = vmatprep.subr.bf16.mxu0 0
      %1194 = vmatpush1.bf16.msra.mxu0 0
      %1195 = vmatprep.subr.bf16.mxu0 0
      %1196 = vmatpush1.bf16.msra.mxu0 0
      %1197 = vmatprep.subr.bf16.mxu0 0
      %1198 = vmatpush1.bf16.msra.mxu0 0
      %1199 = vmatprep.mubr.bf16.mxu0 0
      %1200 = vmatmul.mubr.bf16.gmra.mrb[0].mxu0 %v700
      %v1201 = vpop.f32.mrb[0].mxu0
      %v1202 = vadd.f32 %v1161, %v1201
      %v1203 = vpop.f32.mrb[0].mxu0
      %v1204 = vpop.f32.mrb[0].mxu0
      %v1205 = vadd.f32 %v1164, %v1204
      %v1206 = vpop.f32.mrb[0].mxu0
      %1207 = vdwg.mxu0
      %v1208 = vld [vmem:[%s4] sm:$0x1]
      %v1209 = vld [vmem:[%s5] sm:$0x1]
      %1210 = vadd.xlane.f32.xlu0 %v1202
      %v1211 = vpop.xlane.xlu0 %1210
      %vm1212 = vcmask 1041408
      %v1213 = vsel %vm1212, %v1205, 0.0
      %1214 = vadd.xlane.f32.xlu0 %v1213
      %v1215 = vpop.xlane.xlu0 %1214
      %v1216 = vrcp.pop 128.0
      %v1217 = vmul.f32 %v1211, %v1216
      %v1218 = vmul.f32 %v1215, %v1216
      %v1219 = vsub.f32 %v1202, %v1217
      %v1220 = vsub.f32 %v1205, %v1218
      %v1221 = vmul.f32 %v1219, %v1219
      %v1222 = vmul.f32 %v1220, %v1220
      %1223 = vadd.xlane.f32.xlu0 %v1221
      %v1224 = vpop.xlane.xlu0 %1223
      %v1225 = vsel %vm1212, %v1222, 0.0
      %1226 = vadd.xlane.f32.xlu0 %v1225
      %v1227 = vpop.xlane.xlu0 %1226
      %v1228 = vmul.f32 %v1224, %v1216
      %v1229 = vmul.f32 %v1227, %v1216
      %v1230 = vadd.f32 %v1228, 1e-05
      %v1231 = vadd.f32 %v1229, 1e-05
      %v1232 = vrsqrt.pop %v1230
      %v1233 = vrsqrt.pop %v1231
      %v1234 = vmul.f32 %v1219, %v1232
      %v1235 = vmul.f32 %v1220, %v1233
      %v1237 = vlaneseq
      %v1238 = vshrl.u32 %v1237, 7
      %v1239 = vsub.s32 0, %v1238
      %v1240 = vrot.slane %v1208, %v1239
      %v1242 = vmul.f32 %v1234, %v1240
      %v1243 = vmul.f32 %v1235, %v1240
      %v1245 = vlaneseq
      %v1246 = vshrl.u32 %v1245, 7
      %v1247 = vsub.s32 0, %v1246
      %v1248 = vrot.slane %v1209, %v1247
      %v1250 = vadd.f32 %v1242, %v1248
      %v1251 = vadd.f32 %v1243, %v1248
      %v1252 = vld [vmem:[%s3] sm:$0xff]
      %v1253 = vld [vmem:[%s3 + $0x8] sm:$0x3]
      %v1254 = vld [vmem:[%s6] sm:$0x1]
      %v1255 = vld [vmem:[%s7] sm:$0x1]
      %1256 = vadd.xlane.f32.xlu0 %v1250
      %v1257 = vpop.xlane.xlu0 %1256
      %v1258 = vsel %vm1212, %v1251, 0.0
      %1259 = vadd.xlane.f32.xlu0 %v1258
      %v1260 = vpop.xlane.xlu0 %1259
      %v1261 = vmul.f32 %v1257, %v1216
      %v1262 = vmul.f32 %v1260, %v1216
      %v1263 = vsub.f32 %v1250, %v1261
      %v1264 = vsub.f32 %v1251, %v1262
      %v1265 = vmul.f32 %v1263, %v1263
      %v1266 = vmul.f32 %v1264, %v1264
      %1267 = vadd.xlane.f32.xlu0 %v1265
      %v1268 = vpop.xlane.xlu0 %1267
      %v1269 = vsel %vm1212, %v1266, 0.0
      %1270 = vadd.xlane.f32.xlu0 %v1269
      %v1271 = vpop.xlane.xlu0 %1270
      %v1272 = vmul.f32 %v1268, %v1216
      %v1273 = vmul.f32 %v1271, %v1216
      %v1274 = vadd.f32 %v1272, 1e-05
      %v1275 = vadd.f32 %v1273, 1e-05
      %v1276 = vrsqrt.pop %v1274
      %v1277 = vrsqrt.pop %v1275
      %v1278 = vmul.f32 %v1263, %v1276
      %v1279 = vmul.f32 %v1264, %v1277
      %v1281 = vlaneseq
      %v1282 = vshrl.u32 %v1281, 7
      %v1283 = vsub.s32 0, %v1282
      %v1284 = vrot.slane %v1254, %v1283
      %v1286 = vmul.f32 %v1278, %v1284
      %v1287 = vmul.f32 %v1279, %v1284
      %v1289 = vlaneseq
      %v1290 = vshrl.u32 %v1289, 7
      %v1291 = vsub.s32 0, %v1290
      %v1292 = vrot.slane %v1255, %v1291
      %v1294 = vadd.f32 %v1286, %v1292
      %v1295 = vadd.f32 %v1287, %v1292
      %v1296 = vpack.c.bf16 %v1295, %v1294
      %v1297 = vld [vmem:[%s8] sm:$0xff]
      %v1298 = vld [vmem:[%s8 + $0x8] sm:$0xf]
      %v1299 = vld [vmem:[%s8 + $0xc] sm:$0xff]
      %v1300 = vld [vmem:[%s8 + $0x14] sm:$0xf]
      %v1301 = vld [vmem:[%s8 + $0x18] sm:$0xff]
      %v1302 = vld [vmem:[%s8 + $0x20] sm:$0xf]
      %v1303 = vld [vmem:[%s8 + $0x24] sm:$0xff]
      %v1304 = vld [vmem:[%s8 + $0x2c] sm:$0xf]
      %v1305 = vld [vmem:[%s8 + $0x30] sm:$0xff]
      %v1306 = vld [vmem:[%s8 + $0x38] sm:$0xf]
      %v1307 = vld [vmem:[%s8 + $0x3c] sm:$0xff]
      %v1308 = vld [vmem:[%s8 + $0x44] sm:$0xf]
      %v1309 = vld [vmem:[%s8 + $0x48] sm:$0xff]
      %v1310 = vld [vmem:[%s8 + $0x50] sm:$0xf]
      %v1311 = vld [vmem:[%s8 + $0x54] sm:$0xff]
      %v1312 = vld [vmem:[%s8 + $0x5c] sm:$0xf]
      %v1313 = vld [vmem:[%s8 + $0x60] sm:$0xff]
      %v1314 = vld [vmem:[%s8 + $0x68] sm:$0xf]
      %v1315 = vld [vmem:[%s8 + $0x6c] sm:$0xff]
      %v1316 = vld [vmem:[%s8 + $0x74] sm:$0xf]
      %v1317 = vld [vmem:[%s8 + $0x78] sm:$0xff]
      %v1318 = vld [vmem:[%s8 + $0x80] sm:$0xf]
      %v1319 = vld [vmem:[%s8 + $0x84] sm:$0xff]
      %v1320 = vld [vmem:[%s8 + $0x8c] sm:$0xf]
      %v1321 = vld [vmem:[%s8 + $0x90] sm:$0xff]
      %v1322 = vld [vmem:[%s8 + $0x98] sm:$0xf]
      %v1323 = vld [vmem:[%s8 + $0x9c] sm:$0xff]
      %v1324 = vld [vmem:[%s8 + $0xa4] sm:$0xf]
      %v1325 = vld [vmem:[%s8 + $0xa8] sm:$0xff]
      %v1326 = vld [vmem:[%s8 + $0xb0] sm:$0xf]
      %v1327 = vld [vmem:[%s8 + $0xb4] sm:$0xff]
      %v1328 = vld [vmem:[%s8 + $0xbc] sm:$0xf]
      %v1361 = vunpack.c.l.b16 %v1297
      %v1362 = vunpack.c.h.b16 %v1297
      %v1363 = vunpack.c.l.b16 %v1298
      %v1364 = vunpack.c.l.b16 %v1299
      %v1365 = vunpack.c.h.b16 %v1299
      %v1366 = vunpack.c.l.b16 %v1300
      %v1367 = vunpack.c.l.b16 %v1301
      %v1368 = vunpack.c.h.b16 %v1301
      %v1369 = vunpack.c.l.b16 %v1302
      %v1370 = vunpack.c.l.b16 %v1303
      %v1371 = vunpack.c.h.b16 %v1303
      %v1372 = vunpack.c.l.b16 %v1304
      %v1373 = vunpack.c.l.b16 %v1305
      %v1374 = vunpack.c.h.b16 %v1305
      %v1375 = vunpack.c.l.b16 %v1306
      %v1376 = vunpack.c.l.b16 %v1307
      %v1377 = vunpack.c.h.b16 %v1307
      %v1378 = vunpack.c.l.b16 %v1308
      %v1379 = vunpack.c.l.b16 %v1309
      %v1380 = vunpack.c.h.b16 %v1309
      %v1381 = vunpack.c.l.b16 %v1310
      %v1382 = vunpack.c.l.b16 %v1311
      %v1383 = vunpack.c.h.b16 %v1311
      %v1384 = vunpack.c.l.b16 %v1312
      %v1385 = vunpack.c.l.b16 %v1313
      %v1386 = vunpack.c.h.b16 %v1313
      %v1387 = vunpack.c.l.b16 %v1314
      %v1388 = vunpack.c.l.b16 %v1315
      %v1389 = vunpack.c.h.b16 %v1315
      %v1390 = vunpack.c.l.b16 %v1316
      %v1391 = vunpack.c.l.b16 %v1317
      %v1392 = vunpack.c.h.b16 %v1317
      %v1393 = vunpack.c.l.b16 %v1318
      %v1394 = vunpack.c.l.b16 %v1319
      %v1395 = vunpack.c.h.b16 %v1319
      %v1396 = vunpack.c.l.b16 %v1320
      %v1397 = vunpack.c.l.b16 %v1321
      %v1398 = vunpack.c.h.b16 %v1321
      %v1399 = vunpack.c.l.b16 %v1322
      %v1400 = vunpack.c.l.b16 %v1323
      %v1401 = vunpack.c.h.b16 %v1323
      %v1402 = vunpack.c.l.b16 %v1324
      %v1403 = vunpack.c.l.b16 %v1325
      %v1404 = vunpack.c.h.b16 %v1325
      %v1405 = vunpack.c.l.b16 %v1326
      %v1406 = vunpack.c.l.b16 %v1327
      %v1407 = vunpack.c.h.b16 %v1327
      %v1408 = vunpack.c.l.b16 %v1328
      %v1409 = vpack.c.b16 %v1364, %v1361
      %v1410 = vpack.c.b16 %v1365, %v1362
      %v1411 = vpack.c.b16 %v1366, %v1363
      %v1412 = vpack.c.b16 %v1370, %v1367
      %v1413 = vpack.c.b16 %v1371, %v1368
      %v1414 = vpack.c.b16 %v1372, %v1369
      %v1415 = vpack.c.b16 %v1376, %v1373
      %v1416 = vpack.c.b16 %v1377, %v1374
      %v1417 = vpack.c.b16 %v1378, %v1375
      %v1418 = vpack.c.b16 %v1382, %v1379
      %v1419 = vpack.c.b16 %v1383, %v1380
      %v1420 = vpack.c.b16 %v1384, %v1381
      %v1421 = vpack.c.b16 %v1388, %v1385
      %v1422 = vpack.c.b16 %v1389, %v1386
      %v1423 = vpack.c.b16 %v1390, %v1387
      %v1424 = vpack.c.b16 %v1394, %v1391
      %v1425 = vpack.c.b16 %v1395, %v1392
      %v1426 = vpack.c.b16 %v1396, %v1393
      %v1427 = vpack.c.b16 %v1400, %v1397
      %v1428 = vpack.c.b16 %v1401, %v1398
      %v1429 = vpack.c.b16 %v1402, %v1399
      %v1430 = vpack.c.b16 %v1406, %v1403
      %v1431 = vpack.c.b16 %v1407, %v1404
      %v1432 = vpack.c.b16 %v1408, %v1405
      %1457 = vmatprep.subr.bf16.mxu0 %v1410
      %1458 = vmatpush1.bf16.msra.mxu0 %v1409
      %1459 = vmatprep.subr.bf16.mxu0 %v1413
      %1460 = vmatpush1.bf16.msra.mxu0 %v1412
      %1461 = vmatprep.subr.bf16.mxu0 %v1416
      %1462 = vmatpush1.bf16.msra.mxu0 %v1415
      %1463 = vmatprep.subr.bf16.mxu0 %v1419
      %1464 = vmatpush1.bf16.msra.mxu0 %v1418
      %1465 = vmatprep.subr.bf16.mxu0 %v1422
      %1466 = vmatpush1.bf16.msra.mxu0 %v1421
      %1467 = vmatprep.subr.bf16.mxu0 %v1425
      %1468 = vmatpush1.bf16.msra.mxu0 %v1424
      %1469 = vmatprep.subr.bf16.mxu0 %v1428
      %1470 = vmatpush1.bf16.msra.mxu0 %v1427
      %1471 = vmatprep.subr.bf16.mxu0 %v1431
      %1472 = vmatpush1.bf16.msra.mxu0 %v1430
      %1473 = vmatprep.subr.bf16.mxu0 0
      %1474 = vmatpush1.bf16.msra.mxu0 0
      %1475 = vmatprep.subr.bf16.mxu0 0
      %1476 = vmatpush1.bf16.msra.mxu0 0
      %1477 = vmatprep.subr.bf16.mxu0 0
      %1478 = vmatpush1.bf16.msra.mxu0 0
      %1479 = vmatprep.subr.bf16.mxu0 0
      %1480 = vmatpush1.bf16.msra.mxu0 0
      %1481 = vmatprep.subr.bf16.mxu0 0
      %1482 = vmatpush1.bf16.msra.mxu0 0
      %1483 = vmatprep.subr.bf16.mxu0 0
      %1484 = vmatpush1.bf16.msra.mxu0 0
      %1485 = vmatprep.subr.bf16.mxu0 0
      %1486 = vmatpush1.bf16.msra.mxu0 0
      %1487 = vmatprep.subr.bf16.mxu0 0
      %1488 = vmatpush1.bf16.msra.mxu0 0
      %1489 = vmatprep.mubr.bf16.mxu0 0
      %1490 = vmatmul.mubr.bf16.gmra.mrb[0].mxu0 %v1296
      %v1491 = vpop.f32.mrb[0].mxu0
      %v1492 = vadd.f32 0.0, %v1491
      %v1493 = vpop.f32.mrb[0].mxu0
      %v1494 = vadd.f32 0.0, %v1493
      %v1495 = vpop.f32.mrb[0].mxu0
      %v1496 = vadd.f32 0.0, %v1495
      %v1497 = vpop.f32.mrb[0].mxu0
      %v1498 = vadd.f32 0.0, %v1497
      %1499 = vdwg.mxu0
      %1500 = vmatprep.subr.bf16.mxu0 0
      %1501 = vmatpush1.bf16.msra.mxu0 %v1411
      %1502 = vmatprep.subr.bf16.mxu0 0
      %1503 = vmatpush1.bf16.msra.mxu0 %v1414
      %1504 = vmatprep.subr.bf16.mxu0 0
      %1505 = vmatpush1.bf16.msra.mxu0 %v1417
      %1506 = vmatprep.subr.bf16.mxu0 0
      %1507 = vmatpush1.bf16.msra.mxu0 %v1420
      %1508 = vmatprep.subr.bf16.mxu0 0
      %1509 = vmatpush1.bf16.msra.mxu0 %v1423
      %1510 = vmatprep.subr.bf16.mxu0 0
      %1511 = vmatpush1.bf16.msra.mxu0 %v1426
      %1512 = vmatprep.subr.bf16.mxu0 0
      %1513 = vmatpush1.bf16.msra.mxu0 %v1429
      %1514 = vmatprep.subr.bf16.mxu0 0
      %1515 = vmatpush1.bf16.msra.mxu0 %v1432
      %1516 = vmatprep.subr.bf16.mxu0 0
      %1517 = vmatpush1.bf16.msra.mxu0 0
      %1518 = vmatprep.subr.bf16.mxu0 0
      %1519 = vmatpush1.bf16.msra.mxu0 0
      %1520 = vmatprep.subr.bf16.mxu0 0
      %1521 = vmatpush1.bf16.msra.mxu0 0
      %1522 = vmatprep.subr.bf16.mxu0 0
      %1523 = vmatpush1.bf16.msra.mxu0 0
      %1524 = vmatprep.subr.bf16.mxu0 0
      %1525 = vmatpush1.bf16.msra.mxu0 0
      %1526 = vmatprep.subr.bf16.mxu0 0
      %1527 = vmatpush1.bf16.msra.mxu0 0
      %1528 = vmatprep.subr.bf16.mxu0 0
      %1529 = vmatpush1.bf16.msra.mxu0 0
      %1530 = vmatprep.subr.bf16.mxu0 0
      %1531 = vmatpush1.bf16.msra.mxu0 0
      %1532 = vmatprep.mubr.bf16.mxu0 0
      %1533 = vmatmul.mubr.bf16.gmra.mrb[0].mxu0 %v1296
      %v1534 = vpop.f32.mrb[0].mxu0
      %v1535 = vadd.f32 0.0, %v1534
      %v1536 = vpop.f32.mrb[0].mxu0
      %v1537 = vpop.f32.mrb[0].mxu0
      %v1538 = vadd.f32 0.0, %v1537
      %v1539 = vpop.f32.mrb[0].mxu0
      %1540 = vdwg.mxu0
      %v1541 = vpack.c.bf16 %v1496, %v1492
      %v1542 = vpack.c.bf16 %v1498, %v1494
      %v1543 = vpack.c.bf16 %v1538, %v1535
      %vm1544 = vcmask 523264
      %v1546 = vsel %vm1544, %v1541, 0
      %v1549 = vsel %vm1544, %v1542, 0
      %1551 = vmatprep.subr.bf16.mxu0 0
      %1552 = vmatpush1.bf16.xpose.msra.mxu0 %v1549
      %1553 = vmatprep.subr.bf16.mxu0 0
      %1554 = vmatpush1.bf16.xpose.msra.mxu0 0
      %1555 = vmatprep.subr.bf16.mxu0 0
      %1556 = vmatpush1.bf16.xpose.msra.mxu0 0
      %1557 = vmatprep.subr.bf16.mxu0 0
      %1558 = vmatpush1.bf16.xpose.msra.mxu0 0
      %1559 = vmatprep.subr.bf16.mxu0 0
      %1560 = vmatpush1.bf16.xpose.msra.mxu0 0
      %1561 = vmatprep.subr.bf16.mxu0 0
      %1562 = vmatpush1.bf16.xpose.msra.mxu0 0
      %1563 = vmatprep.subr.bf16.mxu0 0
      %1564 = vmatpush1.bf16.xpose.msra.mxu0 0
      %1565 = vmatprep.subr.bf16.mxu0 0
      %1566 = vmatpush1.bf16.xpose.msra.mxu0 0
      %1567 = vmatprep.subr.bf16.mxu0 0
      %1568 = vmatpush1.bf16.xpose.msra.mxu0 0
      %1569 = vmatprep.subr.bf16.mxu0 0
      %1570 = vmatpush1.bf16.xpose.msra.mxu0 0
      %1571 = vmatprep.subr.bf16.mxu0 0
      %1572 = vmatpush1.bf16.xpose.msra.mxu0 0
      %1573 = vmatprep.subr.bf16.mxu0 0
      %1574 = vmatpush1.bf16.xpose.msra.mxu0 0
      %1575 = vmatprep.subr.bf16.mxu0 0
      %1576 = vmatpush1.bf16.xpose.msra.mxu0 0
      %1577 = vmatprep.subr.bf16.mxu0 0
      %1578 = vmatpush1.bf16.xpose.msra.mxu0 0
      %1579 = vmatprep.subr.bf16.mxu0 0
      %1580 = vmatpush1.bf16.xpose.msra.mxu0 0
      %1581 = vmatprep.subr.bf16.mxu0 0
      %1582 = vmatpush1.bf16.xpose.msra.mxu0 0
      %1583 = vmatprep.mubr.bf16.mxu0 0
      %1584 = vmatmul.mubr.bf16.gmra.mrb[0].mxu0 %v1546
      %v1585 = vpop.f32.mrb[0].mxu0
      %v1586 = vadd.f32 0.0, %v1585
      %v1587 = vpop.f32.mrb[0].mxu0
      %v1588 = vpop.f32.mrb[0].mxu0
      %v1589 = vadd.f32 0.0, %v1588
      %v1590 = vpop.f32.mrb[0].mxu0
      %1591 = vdwg.mxu0
      %v1592 = vmul.f32 %v1586, 0.125
      %v1593 = vmul.f32 %v1589, 0.125
      %v1594 = vadd.f32 %v1592, %v1252
      %v1595 = vadd.f32 %v1593, %v1253
      %vm1596 = vcmask 80896
      %v1597 = vsel %vm1596, %v1594, -inf
      %1598 = vmax.xlane.f32.xlu0 %v1597
      %v1599 = vpop.xlane.xlu0 %1598
      %vm1600 = vcmask 74752
      %v1601 = vsel %vm1600, %v1595, -inf
      %1602 = vmax.xlane.f32.xlu0 %v1601
      %v1603 = vpop.xlane.xlu0 %1602
      %v1604 = vsub.f32 %v1594, %v1599
      %v1605 = vsub.f32 %v1595, %v1603
      %v1606 = vmul.f32 %v1604, 1.442695
      %v1607 = vpow.pop %v1606
      %v1608 = vmul.f32 %v1605, 1.442695
      %v1609 = vpow.pop %v1608
      %v1610 = vsel %vm1596, %v1607, 0.0
      %1611 = vadd.xlane.f32.xlu0 %v1610
      %v1612 = vpop.xlane.xlu0 %1611
      %v1613 = vsel %vm1600, %v1609, 0.0
      %1614 = vadd.xlane.f32.xlu0 %v1613
      %v1615 = vpop.xlane.xlu0 %1614
      %v1616 = vrcp.pop %v1612
      %v1617 = vrcp.pop %v1615
      %v1618 = vmul.f32 %v1607, %v1616
      %v1619 = vmul.f32 %v1609, %v1617
      %v1620 = vpack.c.bf16 %v1619, %v1618
      %v1622 = vsel %vm1596, %v1620, 0
      %vm1624 = vcmask 1044480
      %v1626 = vsel %vm1624, %v1543, 0
      %1628 = vmatprep.subr.bf16.mxu0 0
      %1629 = vmatpush1.bf16.msra.mxu0 %v1626
      %1630 = vmatprep.subr.bf16.mxu0 0
      %1631 = vmatpush1.bf16.msra.mxu0 0
      %1632 = vmatprep.subr.bf16.mxu0 0
      %1633 = vmatpush1.bf16.msra.mxu0 0
      %1634 = vmatprep.subr.bf16.mxu0 0
      %1635 = vmatpush1.bf16.msra.mxu0 0
      %1636 = vmatprep.subr.bf16.mxu0 0
      %1637 = vmatpush1.bf16.msra.mxu0 0
      %1638 = vmatprep.subr.bf16.mxu0 0
      %1639 = vmatpush1.bf16.msra.mxu0 0
      %1640 = vmatprep.subr.bf16.mxu0 0
      %1641 = vmatpush1.bf16.msra.mxu0 0
      %1642 = vmatprep.subr.bf16.mxu0 0
      %1643 = vmatpush1.bf16.msra.mxu0 0
      %1644 = vmatprep.subr.bf16.mxu0 0
      %1645 = vmatpush1.bf16.msra.mxu0 0
      %1646 = vmatprep.subr.bf16.mxu0 0
      %1647 = vmatpush1.bf16.msra.mxu0 0
      %1648 = vmatprep.subr.bf16.mxu0 0
      %1649 = vmatpush1.bf16.msra.mxu0 0
      %1650 = vmatprep.subr.bf16.mxu0 0
      %1651 = vmatpush1.bf16.msra.mxu0 0
      %1652 = vmatprep.subr.bf16.mxu0 0
      %1653 = vmatpush1.bf16.msra.mxu0 0
      %1654 = vmatprep.subr.bf16.mxu0 0
      %1655 = vmatpush1.bf16.msra.mxu0 0
      %1656 = vmatprep.subr.bf16.mxu0 0
      %1657 = vmatpush1.bf16.msra.mxu0 0
      %1658 = vmatprep.subr.bf16.mxu0 0
      %1659 = vmatpush1.bf16.msra.mxu0 0
      %1660 = vmatprep.mubr.bf16.mxu0 0
      %1661 = vmatmul.mubr.bf16.gmra.mrb[0].mxu0 %v1622
      %v1662 = vpop.f32.mrb[0].mxu0
      %v1663 = vadd.f32 0.0, %v1662
      %v1664 = vpop.f32.mrb[0].mxu0
      %v1665 = vpop.f32.mrb[0].mxu0
      %v1666 = vadd.f32 0.0, %v1665
      %v1667 = vpop.f32.mrb[0].mxu0
      %1668 = vdwg.mxu0
      %1670 = vrot.lane.b32.xlu0 %v1541, 64
      %v1671 = vpop.permute.xlu0 %1670
      %1673 = vrot.lane.b32.xlu0 %v1542, 64
      %v1674 = vpop.permute.xlu0 %1673
      %v1676 = vsel %vm1544, %v1671, 0
      %v1679 = vsel %vm1544, %v1674, 0
      %1681 = vmatprep.subr.bf16.mxu0 0
      %1682 = vmatpush1.bf16.xpose.msra.mxu0 %v1679
      %1683 = vmatprep.subr.bf16.mxu0 0
      %1684 = vmatpush1.bf16.xpose.msra.mxu0 0
      %1685 = vmatprep.subr.bf16.mxu0 0
      %1686 = vmatpush1.bf16.xpose.msra.mxu0 0
      %1687 = vmatprep.subr.bf16.mxu0 0
      %1688 = vmatpush1.bf16.xpose.msra.mxu0 0
      %1689 = vmatprep.subr.bf16.mxu0 0
      %1690 = vmatpush1.bf16.xpose.msra.mxu0 0
      %1691 = vmatprep.subr.bf16.mxu0 0
      %1692 = vmatpush1.bf16.xpose.msra.mxu0 0
      %1693 = vmatprep.subr.bf16.mxu0 0
      %1694 = vmatpush1.bf16.xpose.msra.mxu0 0
      %1695 = vmatprep.subr.bf16.mxu0 0
      %1696 = vmatpush1.bf16.xpose.msra.mxu0 0
      %1697 = vmatprep.subr.bf16.mxu0 0
      %1698 = vmatpush1.bf16.xpose.msra.mxu0 0
      %1699 = vmatprep.subr.bf16.mxu0 0
      %1700 = vmatpush1.bf16.xpose.msra.mxu0 0
      %1701 = vmatprep.subr.bf16.mxu0 0
      %1702 = vmatpush1.bf16.xpose.msra.mxu0 0
      %1703 = vmatprep.subr.bf16.mxu0 0
      %1704 = vmatpush1.bf16.xpose.msra.mxu0 0
      %1705 = vmatprep.subr.bf16.mxu0 0
      %1706 = vmatpush1.bf16.xpose.msra.mxu0 0
      %1707 = vmatprep.subr.bf16.mxu0 0
      %1708 = vmatpush1.bf16.xpose.msra.mxu0 0
      %1709 = vmatprep.subr.bf16.mxu0 0
      %1710 = vmatpush1.bf16.xpose.msra.mxu0 0
      %1711 = vmatprep.subr.bf16.mxu0 0
      %1712 = vmatpush1.bf16.xpose.msra.mxu0 0
      %1713 = vmatprep.mubr.bf16.mxu0 0
      %1714 = vmatmul.mubr.bf16.gmra.mrb[0].mxu0 %v1676
      %v1715 = vpop.f32.mrb[0].mxu0
      %v1716 = vadd.f32 0.0, %v1715
      %v1717 = vpop.f32.mrb[0].mxu0
      %v1718 = vpop.f32.mrb[0].mxu0
      %v1719 = vadd.f32 0.0, %v1718
      %v1720 = vpop.f32.mrb[0].mxu0
      %1721 = vdwg.mxu0
      %v1722 = vmul.f32 %v1716, 0.125
      %v1723 = vmul.f32 %v1719, 0.125
      %v1724 = vadd.f32 %v1722, %v1252
      %v1725 = vadd.f32 %v1723, %v1253
      %v1726 = vsel %vm1596, %v1724, -inf
      %1727 = vmax.xlane.f32.xlu0 %v1726
      %v1728 = vpop.xlane.xlu0 %1727
      %v1729 = vsel %vm1600, %v1725, -inf
      %1730 = vmax.xlane.f32.xlu0 %v1729
      %v1731 = vpop.xlane.xlu0 %1730
      %v1732 = vsub.f32 %v1724, %v1728
      %v1733 = vsub.f32 %v1725, %v1731
      %v1734 = vmul.f32 %v1732, 1.442695
      %v1735 = vpow.pop %v1734
      %v1736 = vmul.f32 %v1733, 1.442695
      %v1737 = vpow.pop %v1736
      %v1738 = vsel %vm1596, %v1735, 0.0
      %1739 = vadd.xlane.f32.xlu0 %v1738
      %v1740 = vpop.xlane.xlu0 %1739
      %v1741 = vsel %vm1600, %v1737, 0.0
      %1742 = vadd.xlane.f32.xlu0 %v1741
      %v1743 = vpop.xlane.xlu0 %1742
      %v1744 = vrcp.pop %v1740
      %v1745 = vrcp.pop %v1743
      %v1746 = vmul.f32 %v1735, %v1744
      %v1747 = vmul.f32 %v1737, %v1745
      %v1748 = vpack.c.bf16 %v1747, %v1746
      %1750 = vrot.lane.b32.xlu0 %v1543, 64
      %v1751 = vpop.permute.xlu0 %1750
      %v1753 = vsel %vm1596, %v1748, 0
      %v1756 = vsel %vm1624, %v1751, 0
      %1758 = vmatprep.subr.bf16.mxu0 0
      %1759 = vmatpush1.bf16.msra.mxu0 %v1756
      %1760 = vmatprep.subr.bf16.mxu0 0
      %1761 = vmatpush1.bf16.msra.mxu0 0
      %1762 = vmatprep.subr.bf16.mxu0 0
      %1763 = vmatpush1.bf16.msra.mxu0 0
      %1764 = vmatprep.subr.bf16.mxu0 0
      %1765 = vmatpush1.bf16.msra.mxu0 0
      %1766 = vmatprep.subr.bf16.mxu0 0
      %1767 = vmatpush1.bf16.msra.mxu0 0
      %1768 = vmatprep.subr.bf16.mxu0 0
      %1769 = vmatpush1.bf16.msra.mxu0 0
      %1770 = vmatprep.subr.bf16.mxu0 0
      %1771 = vmatpush1.bf16.msra.mxu0 0
      %1772 = vmatprep.subr.bf16.mxu0 0
      %1773 = vmatpush1.bf16.msra.mxu0 0
      %1774 = vmatprep.subr.bf16.mxu0 0
      %1775 = vmatpush1.bf16.msra.mxu0 0
      %1776 = vmatprep.subr.bf16.mxu0 0
      %1777 = vmatpush1.bf16.msra.mxu0 0
      %1778 = vmatprep.subr.bf16.mxu0 0
      %1779 = vmatpush1.bf16.msra.mxu0 0
      %1780 = vmatprep.subr.bf16.mxu0 0
      %1781 = vmatpush1.bf16.msra.mxu0 0
      %1782 = vmatprep.subr.bf16.mxu0 0
      %1783 = vmatpush1.bf16.msra.mxu0 0
      %1784 = vmatprep.subr.bf16.mxu0 0
      %1785 = vmatpush1.bf16.msra.mxu0 0
      %1786 = vmatprep.subr.bf16.mxu0 0
      %1787 = vmatpush1.bf16.msra.mxu0 0
      %1788 = vmatprep.subr.bf16.mxu0 0
      %1789 = vmatpush1.bf16.msra.mxu0 0
      %1790 = vmatprep.mubr.bf16.mxu0 0
      %1791 = vmatmul.mubr.bf16.gmra.mrb[0].mxu0 %v1753
      %v1792 = vpop.f32.mrb[0].mxu0
      %v1793 = vadd.f32 0.0, %v1792
      %v1794 = vpop.f32.mrb[0].mxu0
      %v1795 = vpop.f32.mrb[0].mxu0
      %v1796 = vadd.f32 0.0, %v1795
      %v1797 = vpop.f32.mrb[0].mxu0
      %1798 = vdwg.mxu0
      %1801 = vrot.lane.b32.xlu0 %v1793, 64
      %v1802 = vpop.permute.xlu0 %1801
      %1803 = vrot.lane.b32.xlu0 %v1796, 64
      %v1804 = vpop.permute.xlu0 %1803
      %v1807 = vsel %vm1544, %v1663, %v1802
      %v1808 = vsel %vm1544, %v1666, %v1804
      %v1809 = vpack.c.bf16 %v1808, %v1807
      %v1810 = vld [vmem:[%s9] sm:$0xf]
      %v1811 = vld [vmem:[%s9 + $0x4] sm:$0xf]
      %v1812 = vld [vmem:[%s9 + $0x8] sm:$0xf]
      %v1813 = vld [vmem:[%s9 + $0xc] sm:$0xf]
      %v1814 = vld [vmem:[%s9 + $0x10] sm:$0xf]
      %v1815 = vld [vmem:[%s9 + $0x14] sm:$0xf]
      %v1816 = vld [vmem:[%s9 + $0x18] sm:$0xf]
      %v1817 = vld [vmem:[%s9 + $0x1c] sm:$0xf]
      %v1818 = vld [vmem:[%s9 + $0x20] sm:$0xf]
      %v1819 = vld [vmem:[%s9 + $0x24] sm:$0xf]
      %v1820 = vld [vmem:[%s9 + $0x28] sm:$0xf]
      %v1821 = vld [vmem:[%s9 + $0x2c] sm:$0xf]
      %v1822 = vld [vmem:[%s9 + $0x30] sm:$0xf]
      %v1823 = vld [vmem:[%s9 + $0x34] sm:$0xf]
      %v1824 = vld [vmem:[%s9 + $0x38] sm:$0xf]
      %v1825 = vld [vmem:[%s9 + $0x3c] sm:$0xf]
      %v1842 = vunpack.c.l.b16 %v1810
      %v1843 = vunpack.c.l.b16 %v1811
      %v1844 = vunpack.c.l.b16 %v1812
      %v1845 = vunpack.c.l.b16 %v1813
      %v1846 = vunpack.c.l.b16 %v1814
      %v1847 = vunpack.c.l.b16 %v1815
      %v1848 = vunpack.c.l.b16 %v1816
      %v1849 = vunpack.c.l.b16 %v1817
      %v1850 = vunpack.c.l.b16 %v1818
      %v1851 = vunpack.c.l.b16 %v1819
      %v1852 = vunpack.c.l.b16 %v1820
      %v1853 = vunpack.c.l.b16 %v1821
      %v1854 = vunpack.c.l.b16 %v1822
      %v1855 = vunpack.c.l.b16 %v1823
      %v1856 = vunpack.c.l.b16 %v1824
      %v1857 = vunpack.c.l.b16 %v1825
      %v1858 = vpack.c.b16 %v1843, %v1842
      %v1859 = vpack.c.b16 %v1845, %v1844
      %v1860 = vpack.c.b16 %v1847, %v1846
      %v1861 = vpack.c.b16 %v1849, %v1848
      %v1862 = vpack.c.b16 %v1851, %v1850
      %v1863 = vpack.c.b16 %v1853, %v1852
      %v1864 = vpack.c.b16 %v1855, %v1854
      %v1865 = vpack.c.b16 %v1857, %v1856
      %1874 = vmatprep.subr.bf16.mxu0 0
      %1875 = vmatpush1.bf16.msra.mxu0 %v1858
      %1876 = vmatprep.subr.bf16.mxu0 0
      %1877 = vmatpush1.bf16.msra.mxu0 %v1859
      %1878 = vmatprep.subr.bf16.mxu0 0
      %1879 = vmatpush1.bf16.msra.mxu0 %v1860
      %1880 = vmatprep.subr.bf16.mxu0 0
      %1881 = vmatpush1.bf16.msra.mxu0 %v1861
      %1882 = vmatprep.subr.bf16.mxu0 0
      %1883 = vmatpush1.bf16.msra.mxu0 %v1862
      %1884 = vmatprep.subr.bf16.mxu0 0
      %1885 = vmatpush1.bf16.msra.mxu0 %v1863
      %1886 = vmatprep.subr.bf16.mxu0 0
      %1887 = vmatpush1.bf16.msra.mxu0 %v1864
      %1888 = vmatprep.subr.bf16.mxu0 0
      %1889 = vmatpush1.bf16.msra.mxu0 %v1865
      %1890 = vmatprep.subr.bf16.mxu0 0
      %1891 = vmatpush1.bf16.msra.mxu0 0
      %1892 = vmatprep.subr.bf16.mxu0 0
      %1893 = vmatpush1.bf16.msra.mxu0 0
      %1894 = vmatprep.subr.bf16.mxu0 0
      %1895 = vmatpush1.bf16.msra.mxu0 0
      %1896 = vmatprep.subr.bf16.mxu0 0
      %1897 = vmatpush1.bf16.msra.mxu0 0
      %1898 = vmatprep.subr.bf16.mxu0 0
      %1899 = vmatpush1.bf16.msra.mxu0 0
      %1900 = vmatprep.subr.bf16.mxu0 0
      %1901 = vmatpush1.bf16.msra.mxu0 0
      %1902 = vmatprep.subr.bf16.mxu0 0
      %1903 = vmatpush1.bf16.msra.mxu0 0
      %1904 = vmatprep.subr.bf16.mxu0 0
      %1905 = vmatpush1.bf16.msra.mxu0 0
      %1906 = vmatprep.mubr.bf16.mxu0 0
      %1907 = vmatmul.mubr.bf16.gmra.mrb[0].mxu0 %v1809
      %v1908 = vpop.f32.mrb[0].mxu0
      %v1909 = vadd.f32 0.0, %v1908
      %v1910 = vpop.f32.mrb[0].mxu0
      %v1911 = vpop.f32.mrb[0].mxu0
      %v1912 = vadd.f32 0.0, %v1911
      %v1913 = vpop.f32.mrb[0].mxu0
      %1914 = vdwg.mxu0
      %v1915 = vadd.f32 %v1250, %v1909
      %v1916 = vadd.f32 %v1251, %v1912
      %v1917 = vld [vmem:[%s10] sm:$0x1]
      %v1918 = vld [vmem:[%s11] sm:$0x1]
      %1919 = vadd.xlane.f32.xlu0 %v1915
      %v1920 = vpop.xlane.xlu0 %1919
      %v1921 = vsel %vm1212, %v1916, 0.0
      %1922 = vadd.xlane.f32.xlu0 %v1921
      %v1923 = vpop.xlane.xlu0 %1922
      %v1924 = vmul.f32 %v1920, %v1216
      %v1925 = vmul.f32 %v1923, %v1216
      %v1926 = vsub.f32 %v1915, %v1924
      %v1927 = vsub.f32 %v1916, %v1925
      %v1928 = vmul.f32 %v1926, %v1926
      %v1929 = vmul.f32 %v1927, %v1927
      %1930 = vadd.xlane.f32.xlu0 %v1928
      %v1931 = vpop.xlane.xlu0 %1930
      %v1932 = vsel %vm1212, %v1929, 0.0
      %1933 = vadd.xlane.f32.xlu0 %v1932
      %v1934 = vpop.xlane.xlu0 %1933
      %v1935 = vmul.f32 %v1931, %v1216
      %v1936 = vmul.f32 %v1934, %v1216
      %v1937 = vadd.f32 %v1935, 1e-05
      %v1938 = vadd.f32 %v1936, 1e-05
      %v1939 = vrsqrt.pop %v1937
      %v1940 = vrsqrt.pop %v1938
      %v1941 = vmul.f32 %v1926, %v1939
      %v1942 = vmul.f32 %v1927, %v1940
      %v1944 = vlaneseq
      %v1945 = vshrl.u32 %v1944, 7
      %v1946 = vsub.s32 0, %v1945
      %v1947 = vrot.slane %v1917, %v1946
      %v1949 = vmul.f32 %v1941, %v1947
      %v1950 = vmul.f32 %v1942, %v1947
      %v1952 = vlaneseq
      %v1953 = vshrl.u32 %v1952, 7
      %v1954 = vsub.s32 0, %v1953
      %v1955 = vrot.slane %v1918, %v1954
      %v1957 = vadd.f32 %v1949, %v1955
      %v1958 = vadd.f32 %v1950, %v1955
      %v1959 = vpack.c.bf16 %v1958, %v1957
      %v1960 = vld [vmem:[%s12] sm:$0xff]
      %v1961 = vld [vmem:[%s12 + $0x8] sm:$0xff]
      %v1962 = vld [vmem:[%s12 + $0x10] sm:$0xff]
      %v1963 = vld [vmem:[%s12 + $0x18] sm:$0xff]
      %v1964 = vld [vmem:[%s12 + $0x20] sm:$0xff]
      %v1965 = vld [vmem:[%s12 + $0x28] sm:$0xff]
      %v1966 = vld [vmem:[%s12 + $0x30] sm:$0xff]
      %v1967 = vld [vmem:[%s12 + $0x38] sm:$0xff]
      %v1968 = vld [vmem:[%s12 + $0x40] sm:$0xff]
      %v1969 = vld [vmem:[%s12 + $0x48] sm:$0xff]
      %v1970 = vld [vmem:[%s12 + $0x50] sm:$0xff]
      %v1971 = vld [vmem:[%s12 + $0x58] sm:$0xff]
      %v1972 = vld [vmem:[%s12 + $0x60] sm:$0xff]
      %v1973 = vld [vmem:[%s12 + $0x68] sm:$0xff]
      %v1974 = vld [vmem:[%s12 + $0x70] sm:$0xff]
      %v1975 = vld [vmem:[%s12 + $0x78] sm:$0xff]
      %v1976 = vld [vmem:[%s12 + $0x80] sm:$0xff]
      %v1977 = vld [vmem:[%s12 + $0x88] sm:$0xff]
      %v1978 = vld [vmem:[%s12 + $0x90] sm:$0xff]
      %v1979 = vld [vmem:[%s12 + $0x98] sm:$0xff]
      %v1980 = vld [vmem:[%s12 + $0xa0] sm:$0xff]
      %v1981 = vld [vmem:[%s12 + $0xa8] sm:$0xff]
      %v1982 = vld [vmem:[%s12 + $0xb0] sm:$0xff]
      %v1983 = vld [vmem:[%s12 + $0xb8] sm:$0xff]
      %v1984 = vld [vmem:[%s12 + $0xc0] sm:$0xff]
      %v1985 = vld [vmem:[%s12 + $0xc8] sm:$0xff]
      %v1986 = vld [vmem:[%s12 + $0xd0] sm:$0xff]
      %v1987 = vld [vmem:[%s12 + $0xd8] sm:$0xff]
      %v1988 = vld [vmem:[%s12 + $0xe0] sm:$0xff]
      %v1989 = vld [vmem:[%s12 + $0xe8] sm:$0xff]
      %v1990 = vld [vmem:[%s12 + $0xf0] sm:$0xff]
      %v1991 = vld [vmem:[%s12 + $0xf8] sm:$0xff]
      %v2024 = vunpack.c.l.b16 %v1960
      %v2025 = vunpack.c.h.b16 %v1960
      %v2026 = vunpack.c.l.b16 %v1961
      %v2027 = vunpack.c.h.b16 %v1961
      %v2028 = vunpack.c.l.b16 %v1962
      %v2029 = vunpack.c.h.b16 %v1962
      %v2030 = vunpack.c.l.b16 %v1963
      %v2031 = vunpack.c.h.b16 %v1963
      %v2032 = vunpack.c.l.b16 %v1964
      %v2033 = vunpack.c.h.b16 %v1964
      %v2034 = vunpack.c.l.b16 %v1965
      %v2035 = vunpack.c.h.b16 %v1965
      %v2036 = vunpack.c.l.b16 %v1966
      %v2037 = vunpack.c.h.b16 %v1966
      %v2038 = vunpack.c.l.b16 %v1967
      %v2039 = vunpack.c.h.b16 %v1967
      %v2040 = vunpack.c.l.b16 %v1968
      %v2041 = vunpack.c.h.b16 %v1968
      %v2042 = vunpack.c.l.b16 %v1969
      %v2043 = vunpack.c.h.b16 %v1969
      %v2044 = vunpack.c.l.b16 %v1970
      %v2045 = vunpack.c.h.b16 %v1970
      %v2046 = vunpack.c.l.b16 %v1971
      %v2047 = vunpack.c.h.b16 %v1971
      %v2048 = vunpack.c.l.b16 %v1972
      %v2049 = vunpack.c.h.b16 %v1972
      %v2050 = vunpack.c.l.b16 %v1973
      %v2051 = vunpack.c.h.b16 %v1973
      %v2052 = vunpack.c.l.b16 %v1974
      %v2053 = vunpack.c.h.b16 %v1974
      %v2054 = vunpack.c.l.b16 %v1975
      %v2055 = vunpack.c.h.b16 %v1975
      %v2056 = vunpack.c.l.b16 %v1976
      %v2057 = vunpack.c.h.b16 %v1976
      %v2058 = vunpack.c.l.b16 %v1977
      %v2059 = vunpack.c.h.b16 %v1977
      %v2060 = vunpack.c.l.b16 %v1978
      %v2061 = vunpack.c.h.b16 %v1978
      %v2062 = vunpack.c.l.b16 %v1979
      %v2063 = vunpack.c.h.b16 %v1979
      %v2064 = vunpack.c.l.b16 %v1980
      %v2065 = vunpack.c.h.b16 %v1980
      %v2066 = vunpack.c.l.b16 %v1981
      %v2067 = vunpack.c.h.b16 %v1981
      %v2068 = vunpack.c.l.b16 %v1982
      %v2069 = vunpack.c.h.b16 %v1982
      %v2070 = vunpack.c.l.b16 %v1983
      %v2071 = vunpack.c.h.b16 %v1983
      %v2072 = vunpack.c.l.b16 %v1984
      %v2073 = vunpack.c.h.b16 %v1984
      %v2074 = vunpack.c.l.b16 %v1985
      %v2075 = vunpack.c.h.b16 %v1985
      %v2076 = vunpack.c.l.b16 %v1986
      %v2077 = vunpack.c.h.b16 %v1986
      %v2078 = vunpack.c.l.b16 %v1987
      %v2079 = vunpack.c.h.b16 %v1987
      %v2080 = vunpack.c.l.b16 %v1988
      %v2081 = vunpack.c.h.b16 %v1988
      %v2082 = vunpack.c.l.b16 %v1989
      %v2083 = vunpack.c.h.b16 %v1989
      %v2084 = vunpack.c.l.b16 %v1990
      %v2085 = vunpack.c.h.b16 %v1990
      %v2086 = vunpack.c.l.b16 %v1991
      %v2087 = vunpack.c.h.b16 %v1991
      %v2088 = vpack.c.b16 %v2028, %v2024
      %v2089 = vpack.c.b16 %v2029, %v2025
      %v2090 = vpack.c.b16 %v2030, %v2026
      %v2091 = vpack.c.b16 %v2031, %v2027
      %v2092 = vpack.c.b16 %v2036, %v2032
      %v2093 = vpack.c.b16 %v2037, %v2033
      %v2094 = vpack.c.b16 %v2038, %v2034
      %v2095 = vpack.c.b16 %v2039, %v2035
      %v2096 = vpack.c.b16 %v2044, %v2040
      %v2097 = vpack.c.b16 %v2045, %v2041
      %v2098 = vpack.c.b16 %v2046, %v2042
      %v2099 = vpack.c.b16 %v2047, %v2043
      %v2100 = vpack.c.b16 %v2052, %v2048
      %v2101 = vpack.c.b16 %v2053, %v2049
      %v2102 = vpack.c.b16 %v2054, %v2050
      %v2103 = vpack.c.b16 %v2055, %v2051
      %v2104 = vpack.c.b16 %v2060, %v2056
      %v2105 = vpack.c.b16 %v2061, %v2057
      %v2106 = vpack.c.b16 %v2062, %v2058
      %v2107 = vpack.c.b16 %v2063, %v2059
      %v2108 = vpack.c.b16 %v2068, %v2064
      %v2109 = vpack.c.b16 %v2069, %v2065
      %v2110 = vpack.c.b16 %v2070, %v2066
      %v2111 = vpack.c.b16 %v2071, %v2067
      %v2112 = vpack.c.b16 %v2076, %v2072
      %v2113 = vpack.c.b16 %v2077, %v2073
      %v2114 = vpack.c.b16 %v2078, %v2074
      %v2115 = vpack.c.b16 %v2079, %v2075
      %v2116 = vpack.c.b16 %v2084, %v2080
      %v2117 = vpack.c.b16 %v2085, %v2081
      %v2118 = vpack.c.b16 %v2086, %v2082
      %v2119 = vpack.c.b16 %v2087, %v2083
      %2152 = vmatprep.subr.bf16.mxu0 %v2089
      %2153 = vmatpush1.bf16.msra.mxu0 %v2088
      %2154 = vmatprep.subr.bf16.mxu0 %v2093
      %2155 = vmatpush1.bf16.msra.mxu0 %v2092
      %2156 = vmatprep.subr.bf16.mxu0 %v2097
      %2157 = vmatpush1.bf16.msra.mxu0 %v2096
      %2158 = vmatprep.subr.bf16.mxu0 %v2101
      %2159 = vmatpush1.bf16.msra.mxu0 %v2100
      %2160 = vmatprep.subr.bf16.mxu0 %v2105
      %2161 = vmatpush1.bf16.msra.mxu0 %v2104
      %2162 = vmatprep.subr.bf16.mxu0 %v2109
      %2163 = vmatpush1.bf16.msra.mxu0 %v2108
      %2164 = vmatprep.subr.bf16.mxu0 %v2113
      %2165 = vmatpush1.bf16.msra.mxu0 %v2112
      %2166 = vmatprep.subr.bf16.mxu0 %v2117
      %2167 = vmatpush1.bf16.msra.mxu0 %v2116
      %2168 = vmatprep.subr.bf16.mxu0 0
      %2169 = vmatpush1.bf16.msra.mxu0 0
      %2170 = vmatprep.subr.bf16.mxu0 0
      %2171 = vmatpush1.bf16.msra.mxu0 0
      %2172 = vmatprep.subr.bf16.mxu0 0
      %2173 = vmatpush1.bf16.msra.mxu0 0
      %2174 = vmatprep.subr.bf16.mxu0 0
      %2175 = vmatpush1.bf16.msra.mxu0 0
      %2176 = vmatprep.subr.bf16.mxu0 0
      %2177 = vmatpush1.bf16.msra.mxu0 0
      %2178 = vmatprep.subr.bf16.mxu0 0
      %2179 = vmatpush1.bf16.msra.mxu0 0
      %2180 = vmatprep.subr.bf16.mxu0 0
      %2181 = vmatpush1.bf16.msra.mxu0 0
      %2182 = vmatprep.subr.bf16.mxu0 0
      %2183 = vmatpush1.bf16.msra.mxu0 0
      %2184 = vmatprep.mubr.bf16.mxu0 0
      %2185 = vmatmul.mubr.bf16.gmra.mrb[0].mxu0 %v1959
      %v2186 = vpop.f32.mrb[0].mxu0
      %v2187 = vadd.f32 0.0, %v2186
      %v2188 = vpop.f32.mrb[0].mxu0
      %v2189 = vadd.f32 0.0, %v2188
      %v2190 = vpop.f32.mrb[0].mxu0
      %v2191 = vadd.f32 0.0, %v2190
      %v2192 = vpop.f32.mrb[0].mxu0
      %v2193 = vadd.f32 0.0, %v2192
      %2194 = vdwg.mxu0
      %2195 = vmatprep.subr.bf16.mxu0 %v2091
      %2196 = vmatpush1.bf16.msra.mxu0 %v2090
      %2197 = vmatprep.subr.bf16.mxu0 %v2095
      %2198 = vmatpush1.bf16.msra.mxu0 %v2094
      %2199 = vmatprep.subr.bf16.mxu0 %v2099
      %2200 = vmatpush1.bf16.msra.mxu0 %v2098
      %2201 = vmatprep.subr.bf16.mxu0 %v2103
      %2202 = vmatpush1.bf16.msra.mxu0 %v2102
      %2203 = vmatprep.subr.bf16.mxu0 %v2107
      %2204 = vmatpush1.bf16.msra.mxu0 %v2106
      %2205 = vmatprep.subr.bf16.mxu0 %v2111
      %2206 = vmatpush1.bf16.msra.mxu0 %v2110
      %2207 = vmatprep.subr.bf16.mxu0 %v2115
      %2208 = vmatpush1.bf16.msra.mxu0 %v2114
      %2209 = vmatprep.subr.bf16.mxu0 %v2119
      %2210 = vmatpush1.bf16.msra.mxu0 %v2118
      %2211 = vmatprep.subr.bf16.mxu0 0
      %2212 = vmatpush1.bf16.msra.mxu0 0
      %2213 = vmatprep.subr.bf16.mxu0 0
      %2214 = vmatpush1.bf16.msra.mxu0 0
      %2215 = vmatprep.subr.bf16.mxu0 0
      %2216 = vmatpush1.bf16.msra.mxu0 0
      %2217 = vmatprep.subr.bf16.mxu0 0
      %2218 = vmatpush1.bf16.msra.mxu0 0
      %2219 = vmatprep.subr.bf16.mxu0 0
      %2220 = vmatpush1.bf16.msra.mxu0 0
      %2221 = vmatprep.subr.bf16.mxu0 0
      %2222 = vmatpush1.bf16.msra.mxu0 0
      %2223 = vmatprep.subr.bf16.mxu0 0
      %2224 = vmatpush1.bf16.msra.mxu0 0
      %2225 = vmatprep.subr.bf16.mxu0 0
      %2226 = vmatpush1.bf16.msra.mxu0 0
      %2227 = vmatprep.mubr.bf16.mxu0 0
      %2228 = vmatmul.mubr.bf16.gmra.mrb[0].mxu0 %v1959
      %v2229 = vpop.f32.mrb[0].mxu0
      %v2230 = vadd.f32 0.0, %v2229
      %v2231 = vpop.f32.mrb[0].mxu0
      %v2232 = vadd.f32 0.0, %v2231
      %v2233 = vpop.f32.mrb[0].mxu0
      %v2234 = vadd.f32 0.0, %v2233
      %v2235 = vpop.f32.mrb[0].mxu0
      %v2236 = vadd.f32 0.0, %v2235
      %2237 = vdwg.mxu0
      %v2238 = vmul.f32 %v2187, 1.702
      %v2239 = vmul.f32 %v2189, 1.702
      %v2240 = vmul.f32 %v2230, 1.702
      %v2241 = vmul.f32 %v2232, 1.702
      %v2242 = vmul.f32 %v2191, 1.702
      %v2243 = vmul.f32 %v2193, 1.702
      %v2244 = vmul.f32 %v2234, 1.702
      %v2245 = vmul.f32 %v2236, 1.702
      %v2246 = vxor.u32 %v2238, 2147483648
      %v2247 = vxor.u32 %v2239, 2147483648
      %v2248 = vxor.u32 %v2240, 2147483648
      %v2249 = vxor.u32 %v2241, 2147483648
      %v2250 = vxor.u32 %v2242, 2147483648
      %v2251 = vxor.u32 %v2243, 2147483648
      %v2252 = vxor.u32 %v2244, 2147483648
      %v2253 = vxor.u32 %v2245, 2147483648
      %v2254 = vmul.f32 %v2246, 1.442695
      %v2255 = vpow.pop %v2254
      %v2256 = vmul.f32 %v2247, 1.442695
      %v2257 = vpow.pop %v2256
      %v2258 = vmul.f32 %v2248, 1.442695
      %v2259 = vpow.pop %v2258
      %v2260 = vmul.f32 %v2249, 1.442695
      %v2261 = vpow.pop %v2260
      %v2262 = vmul.f32 %v2250, 1.442695
      %v2263 = vpow.pop %v2262
      %v2264 = vmul.f32 %v2251, 1.442695
      %v2265 = vpow.pop %v2264
      %v2266 = vmul.f32 %v2252, 1.442695
      %v2267 = vpow.pop %v2266
      %v2268 = vmul.f32 %v2253, 1.442695
      %v2269 = vpow.pop %v2268
      %v2270 = vadd.f32 %v2255, 1.0
      %v2271 = vadd.f32 %v2257, 1.0
      %v2272 = vadd.f32 %v2259, 1.0
      %v2273 = vadd.f32 %v2261, 1.0
      %v2274 = vadd.f32 %v2263, 1.0
      %v2275 = vadd.f32 %v2265, 1.0
      %v2276 = vadd.f32 %v2267, 1.0
      %v2277 = vadd.f32 %v2269, 1.0
      %v2278 = vrcp.pop %v2270
      %v2279 = vmul.f32 1.0, %v2278
      %v2280 = vrcp.pop %v2271
      %v2281 = vmul.f32 1.0, %v2280
      %v2282 = vrcp.pop %v2272
      %v2283 = vmul.f32 1.0, %v2282
      %v2284 = vrcp.pop %v2273
      %v2285 = vmul.f32 1.0, %v2284
      %v2286 = vrcp.pop %v2274
      %v2287 = vmul.f32 1.0, %v2286
      %v2288 = vrcp.pop %v2275
      %v2289 = vmul.f32 1.0, %v2288
      %v2290 = vrcp.pop %v2276
      %v2291 = vmul.f32 1.0, %v2290
      %v2292 = vrcp.pop %v2277
      %v2293 = vmul.f32 1.0, %v2292
      %v2294 = vmul.f32 %v2187, %v2279
      %v2295 = vmul.f32 %v2189, %v2281
      %v2296 = vmul.f32 %v2230, %v2283
      %v2297 = vmul.f32 %v2232, %v2285
      %v2298 = vmul.f32 %v2191, %v2287
      %v2299 = vmul.f32 %v2193, %v2289
      %v2300 = vmul.f32 %v2234, %v2291
      %v2301 = vmul.f32 %v2236, %v2293
      %v2302 = vpack.c.bf16 %v2298, %v2294
      %v2303 = vpack.c.bf16 %v2299, %v2295
      %v2304 = vpack.c.bf16 %v2300, %v2296
      %v2305 = vpack.c.bf16 %v2301, %v2297
      %v2306 = vld [vmem:[%s13] sm:$0xf]
      %v2307 = vld [vmem:[%s13 + $0x4] sm:$0xf]
      %v2308 = vld [vmem:[%s13 + $0x8] sm:$0xf]
      %v2309 = vld [vmem:[%s13 + $0xc] sm:$0xf]
      %v2310 = vld [vmem:[%s13 + $0x10] sm:$0xf]
      %v2311 = vld [vmem:[%s13 + $0x14] sm:$0xf]
      %v2312 = vld [vmem:[%s13 + $0x18] sm:$0xf]
      %v2313 = vld [vmem:[%s13 + $0x1c] sm:$0xf]
      %v2314 = vld [vmem:[%s13 + $0x20] sm:$0xf]
      %v2315 = vld [vmem:[%s13 + $0x24] sm:$0xf]
      %v2316 = vld [vmem:[%s13 + $0x28] sm:$0xf]
      %v2317 = vld [vmem:[%s13 + $0x2c] sm:$0xf]
      %v2318 = vld [vmem:[%s13 + $0x30] sm:$0xf]
      %v2319 = vld [vmem:[%s13 + $0x34] sm:$0xf]
      %v2320 = vld [vmem:[%s13 + $0x38] sm:$0xf]
      %v2321 = vld [vmem:[%s13 + $0x3c] sm:$0xf]
      %v2322 = vld [vmem:[%s13 + $0x40] sm:$0xf]
      %v2323 = vld [vmem:[%s13 + $0x44] sm:$0xf]
      %v2324 = vld [vmem:[%s13 + $0x48] sm:$0xf]
      %v2325 = vld [vmem:[%s13 + $0x4c] sm:$0xf]
      %v2326 = vld [vmem:[%s13 + $0x50] sm:$0xf]
      %v2327 = vld [vmem:[%s13 + $0x54] sm:$0xf]
      %v2328 = vld [vmem:[%s13 + $0x58] sm:$0xf]
      %v2329 = vld [vmem:[%s13 + $0x5c] sm:$0xf]
      %v2330 = vld [vmem:[%s13 + $0x60] sm:$0xf]
      %v2331 = vld [vmem:[%s13 + $0x64] sm:$0xf]
      %v2332 = vld [vmem:[%s13 + $0x68] sm:$0xf]
      %v2333 = vld [vmem:[%s13 + $0x6c] sm:$0xf]
      %v2334 = vld [vmem:[%s13 + $0x70] sm:$0xf]
      %v2335 = vld [vmem:[%s13 + $0x74] sm:$0xf]
      %v2336 = vld [vmem:[%s13 + $0x78] sm:$0xf]
      %v2337 = vld [vmem:[%s13 + $0x7c] sm:$0xf]
      %v2338 = vld [vmem:[%s13 + $0x80] sm:$0xf]
      %v2339 = vld [vmem:[%s13 + $0x84] sm:$0xf]
      %v2340 = vld [vmem:[%s13 + $0x88] sm:$0xf]
      %v2341 = vld [vmem:[%s13 + $0x8c] sm:$0xf]
      %v2342 = vld [vmem:[%s13 + $0x90] sm:$0xf]
      %v2343 = vld [vmem:[%s13 + $0x94] sm:$0xf]
      %v2344 = vld [vmem:[%s13 + $0x98] sm:$0xf]
      %v2345 = vld [vmem:[%s13 + $0x9c] sm:$0xf]
      %v2346 = vld [vmem:[%s13 + $0xa0] sm:$0xf]
      %v2347 = vld [vmem:[%s13 + $0xa4] sm:$0xf]
      %v2348 = vld [vmem:[%s13 + $0xa8] sm:$0xf]
      %v2349 = vld [vmem:[%s13 + $0xac] sm:$0xf]
      %v2350 = vld [vmem:[%s13 + $0xb0] sm:$0xf]
      %v2351 = vld [vmem:[%s13 + $0xb4] sm:$0xf]
      %v2352 = vld [vmem:[%s13 + $0xb8] sm:$0xf]
      %v2353 = vld [vmem:[%s13 + $0xbc] sm:$0xf]
      %v2354 = vld [vmem:[%s13 + $0xc0] sm:$0xf]
      %v2355 = vld [vmem:[%s13 + $0xc4] sm:$0xf]
      %v2356 = vld [vmem:[%s13 + $0xc8] sm:$0xf]
      %v2357 = vld [vmem:[%s13 + $0xcc] sm:$0xf]
      %v2358 = vld [vmem:[%s13 + $0xd0] sm:$0xf]
      %v2359 = vld [vmem:[%s13 + $0xd4] sm:$0xf]
      %v2360 = vld [vmem:[%s13 + $0xd8] sm:$0xf]
      %v2361 = vld [vmem:[%s13 + $0xdc] sm:$0xf]
      %v2362 = vld [vmem:[%s13 + $0xe0] sm:$0xf]
      %v2363 = vld [vmem:[%s13 + $0xe4] sm:$0xf]
      %v2364 = vld [vmem:[%s13 + $0xe8] sm:$0xf]
      %v2365 = vld [vmem:[%s13 + $0xec] sm:$0xf]
      %v2366 = vld [vmem:[%s13 + $0xf0] sm:$0xf]
      %v2367 = vld [vmem:[%s13 + $0xf4] sm:$0xf]
      %v2368 = vld [vmem:[%s13 + $0xf8] sm:$0xf]
      %v2369 = vld [vmem:[%s13 + $0xfc] sm:$0xf]
      %v2434 = vunpack.c.l.b16 %v2306
      %v2435 = vunpack.c.l.b16 %v2307
      %v2436 = vunpack.c.l.b16 %v2308
      %v2437 = vunpack.c.l.b16 %v2309
      %v2438 = vunpack.c.l.b16 %v2310
      %v2439 = vunpack.c.l.b16 %v2311
      %v2440 = vunpack.c.l.b16 %v2312
      %v2441 = vunpack.c.l.b16 %v2313
      %v2442 = vunpack.c.l.b16 %v2314
      %v2443 = vunpack.c.l.b16 %v2315
      %v2444 = vunpack.c.l.b16 %v2316
      %v2445 = vunpack.c.l.b16 %v2317
      %v2446 = vunpack.c.l.b16 %v2318
      %v2447 = vunpack.c.l.b16 %v2319
      %v2448 = vunpack.c.l.b16 %v2320
      %v2449 = vunpack.c.l.b16 %v2321
      %v2450 = vunpack.c.l.b16 %v2322
      %v2451 = vunpack.c.l.b16 %v2323
      %v2452 = vunpack.c.l.b16 %v2324
      %v2453 = vunpack.c.l.b16 %v2325
      %v2454 = vunpack.c.l.b16 %v2326
      %v2455 = vunpack.c.l.b16 %v2327
      %v2456 = vunpack.c.l.b16 %v2328
      %v2457 = vunpack.c.l.b16 %v2329
      %v2458 = vunpack.c.l.b16 %v2330
      %v2459 = vunpack.c.l.b16 %v2331
      %v2460 = vunpack.c.l.b16 %v2332
      %v2461 = vunpack.c.l.b16 %v2333
      %v2462 = vunpack.c.l.b16 %v2334
      %v2463 = vunpack.c.l.b16 %v2335
      %v2464 = vunpack.c.l.b16 %v2336
      %v2465 = vunpack.c.l.b16 %v2337
      %v2466 = vunpack.c.l.b16 %v2338
      %v2467 = vunpack.c.l.b16 %v2339
      %v2468 = vunpack.c.l.b16 %v2340
      %v2469 = vunpack.c.l.b16 %v2341
      %v2470 = vunpack.c.l.b16 %v2342
      %v2471 = vunpack.c.l.b16 %v2343
      %v2472 = vunpack.c.l.b16 %v2344
      %v2473 = vunpack.c.l.b16 %v2345
      %v2474 = vunpack.c.l.b16 %v2346
      %v2475 = vunpack.c.l.b16 %v2347
      %v2476 = vunpack.c.l.b16 %v2348
      %v2477 = vunpack.c.l.b16 %v2349
      %v2478 = vunpack.c.l.b16 %v2350
      %v2479 = vunpack.c.l.b16 %v2351
      %v2480 = vunpack.c.l.b16 %v2352
      %v2481 = vunpack.c.l.b16 %v2353
      %v2482 = vunpack.c.l.b16 %v2354
      %v2483 = vunpack.c.l.b16 %v2355
      %v2484 = vunpack.c.l.b16 %v2356
      %v2485 = vunpack.c.l.b16 %v2357
      %v2486 = vunpack.c.l.b16 %v2358
      %v2487 = vunpack.c.l.b16 %v2359
      %v2488 = vunpack.c.l.b16 %v2360
      %v2489 = vunpack.c.l.b16 %v2361
      %v2490 = vunpack.c.l.b16 %v2362
      %v2491 = vunpack.c.l.b16 %v2363
      %v2492 = vunpack.c.l.b16 %v2364
      %v2493 = vunpack.c.l.b16 %v2365
      %v2494 = vunpack.c.l.b16 %v2366
      %v2495 = vunpack.c.l.b16 %v2367
      %v2496 = vunpack.c.l.b16 %v2368
      %v2497 = vunpack.c.l.b16 %v2369
      %v2498 = vpack.c.b16 %v2435, %v2434
      %v2499 = vpack.c.b16 %v2437, %v2436
      %v2500 = vpack.c.b16 %v2439, %v2438
      %v2501 = vpack.c.b16 %v2441, %v2440
      %v2502 = vpack.c.b16 %v2443, %v2442
      %v2503 = vpack.c.b16 %v2445, %v2444
      %v2504 = vpack.c.b16 %v2447, %v2446
      %v2505 = vpack.c.b16 %v2449, %v2448
      %v2506 = vpack.c.b16 %v2451, %v2450
      %v2507 = vpack.c.b16 %v2453, %v2452
      %v2508 = vpack.c.b16 %v2455, %v2454
      %v2509 = vpack.c.b16 %v2457, %v2456
      %v2510 = vpack.c.b16 %v2459, %v2458
      %v2511 = vpack.c.b16 %v2461, %v2460
      %v2512 = vpack.c.b16 %v2463, %v2462
      %v2513 = vpack.c.b16 %v2465, %v2464
      %v2514 = vpack.c.b16 %v2467, %v2466
      %v2515 = vpack.c.b16 %v2469, %v2468
      %v2516 = vpack.c.b16 %v2471, %v2470
      %v2517 = vpack.c.b16 %v2473, %v2472
      %v2518 = vpack.c.b16 %v2475, %v2474
      %v2519 = vpack.c.b16 %v2477, %v2476
      %v2520 = vpack.c.b16 %v2479, %v2478
      %v2521 = vpack.c.b16 %v2481, %v2480
      %v2522 = vpack.c.b16 %v2483, %v2482
      %v2523 = vpack.c.b16 %v2485, %v2484
      %v2524 = vpack.c.b16 %v2487, %v2486
      %v2525 = vpack.c.b16 %v2489, %v2488
      %v2526 = vpack.c.b16 %v2491, %v2490
      %v2527 = vpack.c.b16 %v2493, %v2492
      %v2528 = vpack.c.b16 %v2495, %v2494
      %v2529 = vpack.c.b16 %v2497, %v2496
      %2562 = vmatprep.subr.bf16.mxu0 0
      %2563 = vmatpush1.bf16.msra.mxu0 %v2498
      %2564 = vmatprep.subr.bf16.mxu0 0
      %2565 = vmatpush1.bf16.msra.mxu0 %v2499
      %2566 = vmatprep.subr.bf16.mxu0 0
      %2567 = vmatpush1.bf16.msra.mxu0 %v2500
      %2568 = vmatprep.subr.bf16.mxu0 0
      %2569 = vmatpush1.bf16.msra.mxu0 %v2501
      %2570 = vmatprep.subr.bf16.mxu0 0
      %2571 = vmatpush1.bf16.msra.mxu0 %v2502
      %2572 = vmatprep.subr.bf16.mxu0 0
      %2573 = vmatpush1.bf16.msra.mxu0 %v2503
      %2574 = vmatprep.subr.bf16.mxu0 0
      %2575 = vmatpush1.bf16.msra.mxu0 %v2504
      %2576 = vmatprep.subr.bf16.mxu0 0
      %2577 = vmatpush1.bf16.msra.mxu0 %v2505
      %2578 = vmatprep.subr.bf16.mxu0 0
      %2579 = vmatpush1.bf16.msra.mxu0 %v2506
      %2580 = vmatprep.subr.bf16.mxu0 0
      %2581 = vmatpush1.bf16.msra.mxu0 %v2507
      %2582 = vmatprep.subr.bf16.mxu0 0
      %2583 = vmatpush1.bf16.msra.mxu0 %v2508
      %2584 = vmatprep.subr.bf16.mxu0 0
      %2585 = vmatpush1.bf16.msra.mxu0 %v2509
      %2586 = vmatprep.subr.bf16.mxu0 0
      %2587 = vmatpush1.bf16.msra.mxu0 %v2510
      %2588 = vmatprep.subr.bf16.mxu0 0
      %2589 = vmatpush1.bf16.msra.mxu0 %v2511
      %2590 = vmatprep.subr.bf16.mxu0 0
      %2591 = vmatpush1.bf16.msra.mxu0 %v2512
      %2592 = vmatprep.subr.bf16.mxu0 0
      %2593 = vmatpush1.bf16.msra.mxu0 %v2513
      %2594 = vmatprep.mubr.bf16.mxu0 %v2303
      %2595 = vmatmul.mubr.bf16.gmra.mrb[0].mxu0 %v2302
      %v2596 = vpop.f32.mrb[0].mxu0
      %v2597 = vadd.f32 0.0, %v2596
      %v2598 = vpop.f32.mrb[0].mxu0
      %v2599 = vpop.f32.mrb[0].mxu0
      %v2600 = vadd.f32 0.0, %v2599
      %v2601 = vpop.f32.mrb[0].mxu0
      %2602 = vdwg.mxu0
      %2603 = vmatprep.subr.bf16.mxu0 0
      %2604 = vmatpush1.bf16.msra.mxu0 %v2514
      %2605 = vmatprep.subr.bf16.mxu0 0
      %2606 = vmatpush1.bf16.msra.mxu0 %v2515
      %2607 = vmatprep.subr.bf16.mxu0 0
      %2608 = vmatpush1.bf16.msra.mxu0 %v2516
      %2609 = vmatprep.subr.bf16.mxu0 0
      %2610 = vmatpush1.bf16.msra.mxu0 %v2517
      %2611 = vmatprep.subr.bf16.mxu0 0
      %2612 = vmatpush1.bf16.msra.mxu0 %v2518
      %2613 = vmatprep.subr.bf16.mxu0 0
      %2614 = vmatpush1.bf16.msra.mxu0 %v2519
      %2615 = vmatprep.subr.bf16.mxu0 0
      %2616 = vmatpush1.bf16.msra.mxu0 %v2520
      %2617 = vmatprep.subr.bf16.mxu0 0
      %2618 = vmatpush1.bf16.msra.mxu0 %v2521
      %2619 = vmatprep.subr.bf16.mxu0 0
      %2620 = vmatpush1.bf16.msra.mxu0 %v2522
      %2621 = vmatprep.subr.bf16.mxu0 0
      %2622 = vmatpush1.bf16.msra.mxu0 %v2523
      %2623 = vmatprep.subr.bf16.mxu0 0
      %2624 = vmatpush1.bf16.msra.mxu0 %v2524
      %2625 = vmatprep.subr.bf16.mxu0 0
      %2626 = vmatpush1.bf16.msra.mxu0 %v2525
      %2627 = vmatprep.subr.bf16.mxu0 0
      %2628 = vmatpush1.bf16.msra.mxu0 %v2526
      %2629 = vmatprep.subr.bf16.mxu0 0
      %2630 = vmatpush1.bf16.msra.mxu0 %v2527
      %2631 = vmatprep.subr.bf16.mxu0 0
      %2632 = vmatpush1.bf16.msra.mxu0 %v2528
      %2633 = vmatprep.subr.bf16.mxu0 0
      %2634 = vmatpush1.bf16.msra.mxu0 %v2529
      %2635 = vmatprep.mubr.bf16.mxu0 %v2305
      %2636 = vmatmul.mubr.bf16.gmra.mrb[0].mxu0 %v2304
      %v2637 = vpop.f32.mrb[0].mxu0
      %v2638 = vadd.f32 %v2597, %v2637
      %v2639 = vpop.f32.mrb[0].mxu0
      %v2640 = vpop.f32.mrb[0].mxu0
      %v2641 = vadd.f32 %v2600, %v2640
      %v2642 = vpop.f32.mrb[0].mxu0
      %2643 = vdwg.mxu0
      %v2644 = vadd.f32 %v1915, %v2638
      %v2645 = vadd.f32 %v1916, %v2641
      %s2646 = scalar_lea.vmem %s6, 1
      %v2647 = vld [vmem:[%s2646] sm:$0x1]
      %s2648 = scalar_lea.vmem %s7, 1
      %v2649 = vld [vmem:[%s2648] sm:$0x1]
      %2650 = vadd.xlane.f32.xlu0 %v2644
      %v2651 = vpop.xlane.xlu0 %2650
      %v2652 = vsel %vm1212, %v2645, 0.0
      %2653 = vadd.xlane.f32.xlu0 %v2652
      %v2654 = vpop.xlane.xlu0 %2653
      %v2655 = vmul.f32 %v2651, %v1216
      %v2656 = vmul.f32 %v2654, %v1216
      %v2657 = vsub.f32 %v2644, %v2655
      %v2658 = vsub.f32 %v2645, %v2656
      %v2659 = vmul.f32 %v2657, %v2657
      %v2660 = vmul.f32 %v2658, %v2658
      %2661 = vadd.xlane.f32.xlu0 %v2659
      %v2662 = vpop.xlane.xlu0 %2661
      %v2663 = vsel %vm1212, %v2660, 0.0
      %2664 = vadd.xlane.f32.xlu0 %v2663
      %v2665 = vpop.xlane.xlu0 %2664
      %v2666 = vmul.f32 %v2662, %v1216
      %v2667 = vmul.f32 %v2665, %v1216
      %v2668 = vadd.f32 %v2666, 1e-05
      %v2669 = vadd.f32 %v2667, 1e-05
      %v2670 = vrsqrt.pop %v2668
      %v2671 = vrsqrt.pop %v2669
      %v2672 = vmul.f32 %v2657, %v2670
      %v2673 = vmul.f32 %v2658, %v2671
      %v2675 = vlaneseq
      %v2676 = vshrl.u32 %v2675, 7
      %v2677 = vsub.s32 0, %v2676
      %v2678 = vrot.slane %v2647, %v2677
      %v2680 = vmul.f32 %v2672, %v2678
      %v2681 = vmul.f32 %v2673, %v2678
      %v2683 = vlaneseq
      %v2684 = vshrl.u32 %v2683, 7
      %v2685 = vsub.s32 0, %v2684
      %v2686 = vrot.slane %v2649, %v2685
      %v2688 = vadd.f32 %v2680, %v2686
      %v2689 = vadd.f32 %v2681, %v2686
      %v2690 = vpack.c.bf16 %v2689, %v2688
      %s2691 = scalar_lea.vmem %s8, 192
      %v2692 = vld [vmem:[%s2691] sm:$0xff]
      %v2693 = vld [vmem:[%s2691 + $0x8] sm:$0xf]
      %v2694 = vld [vmem:[%s2691 + $0xc] sm:$0xff]
      %v2695 = vld [vmem:[%s2691 + $0x14] sm:$0xf]
      %v2696 = vld [vmem:[%s2691 + $0x18] sm:$0xff]
      %v2697 = vld [vmem:[%s2691 + $0x20] sm:$0xf]
      %v2698 = vld [vmem:[%s2691 + $0x24] sm:$0xff]
      %v2699 = vld [vmem:[%s2691 + $0x2c] sm:$0xf]
      %v2700 = vld [vmem:[%s2691 + $0x30] sm:$0xff]
      %v2701 = vld [vmem:[%s2691 + $0x38] sm:$0xf]
      %v2702 = vld [vmem:[%s2691 + $0x3c] sm:$0xff]
      %v2703 = vld [vmem:[%s2691 + $0x44] sm:$0xf]
      %v2704 = vld [vmem:[%s2691 + $0x48] sm:$0xff]
      %v2705 = vld [vmem:[%s2691 + $0x50] sm:$0xf]
      %v2706 = vld [vmem:[%s2691 + $0x54] sm:$0xff]
      %v2707 = vld [vmem:[%s2691 + $0x5c] sm:$0xf]
      %v2708 = vld [vmem:[%s2691 + $0x60] sm:$0xff]
      %v2709 = vld [vmem:[%s2691 + $0x68] sm:$0xf]
      %v2710 = vld [vmem:[%s2691 + $0x6c] sm:$0xff]
      %v2711 = vld [vmem:[%s2691 + $0x74] sm:$0xf]
      %v2712 = vld [vmem:[%s2691 + $0x78] sm:$0xff]
      %v2713 = vld [vmem:[%s2691 + $0x80] sm:$0xf]
      %v2714 = vld [vmem:[%s2691 + $0x84] sm:$0xff]
      %v2715 = vld [vmem:[%s2691 + $0x8c] sm:$0xf]
      %v2716 = vld [vmem:[%s2691 + $0x90] sm:$0xff]
      %v2717 = vld [vmem:[%s2691 + $0x98] sm:$0xf]
      %v2718 = vld [vmem:[%s2691 + $0x9c] sm:$0xff]
      %v2719 = vld [vmem:[%s2691 + $0xa4] sm:$0xf]
      %v2720 = vld [vmem:[%s2691 + $0xa8] sm:$0xff]
      %v2721 = vld [vmem:[%s2691 + $0xb0] sm:$0xf]
      %v2722 = vld [vmem:[%s2691 + $0xb4] sm:$0xff]
      %v2723 = vld [vmem:[%s2691 + $0xbc] sm:$0xf]
      %v2756 = vunpack.c.l.b16 %v2692
      %v2757 = vunpack.c.h.b16 %v2692
      %v2758 = vunpack.c.l.b16 %v2693
      %v2759 = vunpack.c.l.b16 %v2694
      %v2760 = vunpack.c.h.b16 %v2694
      %v2761 = vunpack.c.l.b16 %v2695
      %v2762 = vunpack.c.l.b16 %v2696
      %v2763 = vunpack.c.h.b16 %v2696
      %v2764 = vunpack.c.l.b16 %v2697
      %v2765 = vunpack.c.l.b16 %v2698
      %v2766 = vunpack.c.h.b16 %v2698
      %v2767 = vunpack.c.l.b16 %v2699
      %v2768 = vunpack.c.l.b16 %v2700
      %v2769 = vunpack.c.h.b16 %v2700
      %v2770 = vunpack.c.l.b16 %v2701
      %v2771 = vunpack.c.l.b16 %v2702
      %v2772 = vunpack.c.h.b16 %v2702
      %v2773 = vunpack.c.l.b16 %v2703
      %v2774 = vunpack.c.l.b16 %v2704
      %v2775 = vunpack.c.h.b16 %v2704
      %v2776 = vunpack.c.l.b16 %v2705
      %v2777 = vunpack.c.l.b16 %v2706
      %v2778 = vunpack.c.h.b16 %v2706
      %v2779 = vunpack.c.l.b16 %v2707
      %v2780 = vunpack.c.l.b16 %v2708
      %v2781 = vunpack.c.h.b16 %v2708
      %v2782 = vunpack.c.l.b16 %v2709
      %v2783 = vunpack.c.l.b16 %v2710
      %v2784 = vunpack.c.h.b16 %v2710
      %v2785 = vunpack.c.l.b16 %v2711
      %v2786 = vunpack.c.l.b16 %v2712
      %v2787 = vunpack.c.h.b16 %v2712
      %v2788 = vunpack.c.l.b16 %v2713
      %v2789 = vunpack.c.l.b16 %v2714
      %v2790 = vunpack.c.h.b16 %v2714
      %v2791 = vunpack.c.l.b16 %v2715
      %v2792 = vunpack.c.l.b16 %v2716
      %v2793 = vunpack.c.h.b16 %v2716
      %v2794 = vunpack.c.l.b16 %v2717
      %v2795 = vunpack.c.l.b16 %v2718
      %v2796 = vunpack.c.h.b16 %v2718
      %v2797 = vunpack.c.l.b16 %v2719
      %v2798 = vunpack.c.l.b16 %v2720
      %v2799 = vunpack.c.h.b16 %v2720
      %v2800 = vunpack.c.l.b16 %v2721
      %v2801 = vunpack.c.l.b16 %v2722
      %v2802 = vunpack.c.h.b16 %v2722
      %v2803 = vunpack.c.l.b16 %v2723
      %v2804 = vpack.c.b16 %v2759, %v2756
      %v2805 = vpack.c.b16 %v2760, %v2757
      %v2806 = vpack.c.b16 %v2761, %v2758
      %v2807 = vpack.c.b16 %v2765, %v2762
      %v2808 = vpack.c.b16 %v2766, %v2763
      %v2809 = vpack.c.b16 %v2767, %v2764
      %v2810 = vpack.c.b16 %v2771, %v2768
      %v2811 = vpack.c.b16 %v2772, %v2769
      %v2812 = vpack.c.b16 %v2773, %v2770
      %v2813 = vpack.c.b16 %v2777, %v2774
      %v2814 = vpack.c.b16 %v2778, %v2775
      %v2815 = vpack.c.b16 %v2779, %v2776
      %v2816 = vpack.c.b16 %v2783, %v2780
      %v2817 = vpack.c.b16 %v2784, %v2781
      %v2818 = vpack.c.b16 %v2785, %v2782
      %v2819 = vpack.c.b16 %v2789, %v2786
      %v2820 = vpack.c.b16 %v2790, %v2787
      %v2821 = vpack.c.b16 %v2791, %v2788
      %v2822 = vpack.c.b16 %v2795, %v2792
      %v2823 = vpack.c.b16 %v2796, %v2793
      %v2824 = vpack.c.b16 %v2797, %v2794
      %v2825 = vpack.c.b16 %v2801, %v2798
      %v2826 = vpack.c.b16 %v2802, %v2799
      %v2827 = vpack.c.b16 %v2803, %v2800
      %2852 = vmatprep.subr.bf16.mxu0 %v2805
      %2853 = vmatpush1.bf16.msra.mxu0 %v2804
      %2854 = vmatprep.subr.bf16.mxu0 %v2808
      %2855 = vmatpush1.bf16.msra.mxu0 %v2807
      %2856 = vmatprep.subr.bf16.mxu0 %v2811
      %2857 = vmatpush1.bf16.msra.mxu0 %v2810
      %2858 = vmatprep.subr.bf16.mxu0 %v2814
      %2859 = vmatpush1.bf16.msra.mxu0 %v2813
      %2860 = vmatprep.subr.bf16.mxu0 %v2817
      %2861 = vmatpush1.bf16.msra.mxu0 %v2816
      %2862 = vmatprep.subr.bf16.mxu0 %v2820
      %2863 = vmatpush1.bf16.msra.mxu0 %v2819
      %2864 = vmatprep.subr.bf16.mxu0 %v2823
      %2865 = vmatpush1.bf16.msra.mxu0 %v2822
      %2866 = vmatprep.subr.bf16.mxu0 %v2826
      %2867 = vmatpush1.bf16.msra.mxu0 %v2825
      %2868 = vmatprep.subr.bf16.mxu0 0
      %2869 = vmatpush1.bf16.msra.mxu0 0
      %2870 = vmatprep.subr.bf16.mxu0 0
      %2871 = vmatpush1.bf16.msra.mxu0 0
      %2872 = vmatprep.subr.bf16.mxu0 0
      %2873 = vmatpush1.bf16.msra.mxu0 0
      %2874 = vmatprep.subr.bf16.mxu0 0
      %2875 = vmatpush1.bf16.msra.mxu0 0
      %2876 = vmatprep.subr.bf16.mxu0 0
      %2877 = vmatpush1.bf16.msra.mxu0 0
      %2878 = vmatprep.subr.bf16.mxu0 0
      %2879 = vmatpush1.bf16.msra.mxu0 0
      %2880 = vmatprep.subr.bf16.mxu0 0
      %2881 = vmatpush1.bf16.msra.mxu0 0
      %2882 = vmatprep.subr.bf16.mxu0 0
      %2883 = vmatpush1.bf16.msra.mxu0 0
      %2884 = vmatprep.mubr.bf16.mxu0 0
      %2885 = vmatmul.mubr.bf16.gmra.mrb[0].mxu0 %v2690
      %v2886 = vpop.f32.mrb[0].mxu0
      %v2887 = vadd.f32 0.0, %v2886
      %v2888 = vpop.f32.mrb[0].mxu0
      %v2889 = vadd.f32 0.0, %v2888
      %v2890 = vpop.f32.mrb[0].mxu0
      %v2891 = vadd.f32 0.0, %v2890
      %v2892 = vpop.f32.mrb[0].mxu0
      %v2893 = vadd.f32 0.0, %v2892
      %2894 = vdwg.mxu0
      %2895 = vmatprep.subr.bf16.mxu0 0
      %2896 = vmatpush1.bf16.msra.mxu0 %v2806
      %2897 = vmatprep.subr.bf16.mxu0 0
      %2898 = vmatpush1.bf16.msra.mxu0 %v2809
      %2899 = vmatprep.subr.bf16.mxu0 0
      %2900 = vmatpush1.bf16.msra.mxu0 %v2812
      %2901 = vmatprep.subr.bf16.mxu0 0
      %2902 = vmatpush1.bf16.msra.mxu0 %v2815
      %2903 = vmatprep.subr.bf16.mxu0 0
      %2904 = vmatpush1.bf16.msra.mxu0 %v2818
      %2905 = vmatprep.subr.bf16.mxu0 0
      %2906 = vmatpush1.bf16.msra.mxu0 %v2821
      %2907 = vmatprep.subr.bf16.mxu0 0
      %2908 = vmatpush1.bf16.msra.mxu0 %v2824
      %2909 = vmatprep.subr.bf16.mxu0 0
      %2910 = vmatpush1.bf16.msra.mxu0 %v2827
      %2911 = vmatprep.subr.bf16.mxu0 0
      %2912 = vmatpush1.bf16.msra.mxu0 0
      %2913 = vmatprep.subr.bf16.mxu0 0
      %2914 = vmatpush1.bf16.msra.mxu0 0
      %2915 = vmatprep.subr.bf16.mxu0 0
      %2916 = vmatpush1.bf16.msra.mxu0 0
      %2917 = vmatprep.subr.bf16.mxu0 0
      %2918 = vmatpush1.bf16.msra.mxu0 0
      %2919 = vmatprep.subr.bf16.mxu0 0
      %2920 = vmatpush1.bf16.msra.mxu0 0
      %2921 = vmatprep.subr.bf16.mxu0 0
      %2922 = vmatpush1.bf16.msra.mxu0 0
      %2923 = vmatprep.subr.bf16.mxu0 0
      %2924 = vmatpush1.bf16.msra.mxu0 0
      %2925 = vmatprep.subr.bf16.mxu0 0
      %2926 = vmatpush1.bf16.msra.mxu0 0
      %2927 = vmatprep.mubr.bf16.mxu0 0
      %2928 = vmatmul.mubr.bf16.gmra.mrb[0].mxu0 %v2690
      %v2929 = vpop.f32.mrb[0].mxu0
      %v2930 = vadd.f32 0.0, %v2929
      %v2931 = vpop.f32.mrb[0].mxu0
      %v2932 = vpop.f32.mrb[0].mxu0
      %v2933 = vadd.f32 0.0, %v2932
      %v2934 = vpop.f32.mrb[0].mxu0
      %2935 = vdwg.mxu0
      %v2936 = vpack.c.bf16 %v2891, %v2887
      %v2937 = vpack.c.bf16 %v2893, %v2889
      %v2938 = vpack.c.bf16 %v2933, %v2930
      %v2940 = vsel %vm1544, %v2936, 0
      %v2943 = vsel %vm1544, %v2937, 0
      %2945 = vmatprep.subr.bf16.mxu0 0
      %2946 = vmatpush1.bf16.xpose.msra.mxu0 %v2943
      %2947 = vmatprep.subr.bf16.mxu0 0
      %2948 = vmatpush1.bf16.xpose.msra.mxu0 0
      %2949 = vmatprep.subr.bf16.mxu0 0
      %2950 = vmatpush1.bf16.xpose.msra.mxu0 0
      %2951 = vmatprep.subr.bf16.mxu0 0
      %2952 = vmatpush1.bf16.xpose.msra.mxu0 0
      %2953 = vmatprep.subr.bf16.mxu0 0
      %2954 = vmatpush1.bf16.xpose.msra.mxu0 0
      %2955 = vmatprep.subr.bf16.mxu0 0
      %2956 = vmatpush1.bf16.xpose.msra.mxu0 0
      %2957 = vmatprep.subr.bf16.mxu0 0
      %2958 = vmatpush1.bf16.xpose.msra.mxu0 0
      %2959 = vmatprep.subr.bf16.mxu0 0
      %2960 = vmatpush1.bf16.xpose.msra.mxu0 0
      %2961 = vmatprep.subr.bf16.mxu0 0
      %2962 = vmatpush1.bf16.xpose.msra.mxu0 0
      %2963 = vmatprep.subr.bf16.mxu0 0
      %2964 = vmatpush1.bf16.xpose.msra.mxu0 0
      %2965 = vmatprep.subr.bf16.mxu0 0
      %2966 = vmatpush1.bf16.xpose.msra.mxu0 0
      %2967 = vmatprep.subr.bf16.mxu0 0
      %2968 = vmatpush1.bf16.xpose.msra.mxu0 0
      %2969 = vmatprep.subr.bf16.mxu0 0
      %2970 = vmatpush1.bf16.xpose.msra.mxu0 0
      %2971 = vmatprep.subr.bf16.mxu0 0
      %2972 = vmatpush1.bf16.xpose.msra.mxu0 0
      %2973 = vmatprep.subr.bf16.mxu0 0
      %2974 = vmatpush1.bf16.xpose.msra.mxu0 0
      %2975 = vmatprep.subr.bf16.mxu0 0
      %2976 = vmatpush1.bf16.xpose.msra.mxu0 0
      %2977 = vmatprep.mubr.bf16.mxu0 0
      %2978 = vmatmul.mubr.bf16.gmra.mrb[0].mxu0 %v2940
      %v2979 = vpop.f32.mrb[0].mxu0
      %v2980 = vadd.f32 0.0, %v2979
      %v2981 = vpop.f32.mrb[0].mxu0
      %v2982 = vpop.f32.mrb[0].mxu0
      %v2983 = vadd.f32 0.0, %v2982
      %v2984 = vpop.f32.mrb[0].mxu0
      %2985 = vdwg.mxu0
      %v2986 = vmul.f32 %v2980, 0.125
      %v2987 = vmul.f32 %v2983, 0.125
      %v2988 = vadd.f32 %v2986, %v1252
      %v2989 = vadd.f32 %v2987, %v1253
      %v2990 = vsel %vm1596, %v2988, -inf
      %2991 = vmax.xlane.f32.xlu0 %v2990
      %v2992 = vpop.xlane.xlu0 %2991
      %v2993 = vsel %vm1600, %v2989, -inf
      %2994 = vmax.xlane.f32.xlu0 %v2993
      %v2995 = vpop.xlane.xlu0 %2994
      %v2996 = vsub.f32 %v2988, %v2992
      %v2997 = vsub.f32 %v2989, %v2995
      %v2998 = vmul.f32 %v2996, 1.442695
      %v2999 = vpow.pop %v2998
      %v3000 = vmul.f32 %v2997, 1.442695
      %v3001 = vpow.pop %v3000
      %v3002 = vsel %vm1596, %v2999, 0.0
      %3003 = vadd.xlane.f32.xlu0 %v3002
      %v3004 = vpop.xlane.xlu0 %3003
      %v3005 = vsel %vm1600, %v3001, 0.0
      %3006 = vadd.xlane.f32.xlu0 %v3005
      %v3007 = vpop.xlane.xlu0 %3006
      %v3008 = vrcp.pop %v3004
      %v3009 = vrcp.pop %v3007
      %v3010 = vmul.f32 %v2999, %v3008
      %v3011 = vmul.f32 %v3001, %v3009
      %v3012 = vpack.c.bf16 %v3011, %v3010
      %v3014 = vsel %vm1596, %v3012, 0
      %v3017 = vsel %vm1624, %v2938, 0
      %3019 = vmatprep.subr.bf16.mxu0 0
      %3020 = vmatpush1.bf16.msra.mxu0 %v3017
      %3021 = vmatprep.subr.bf16.mxu0 0
      %3022 = vmatpush1.bf16.msra.mxu0 0
      %3023 = vmatprep.subr.bf16.mxu0 0
      %3024 = vmatpush1.bf16.msra.mxu0 0
      %3025 = vmatprep.subr.bf16.mxu0 0
      %3026 = vmatpush1.bf16.msra.mxu0 0
      %3027 = vmatprep.subr.bf16.mxu0 0
      %3028 = vmatpush1.bf16.msra.mxu0 0
      %3029 = vmatprep.subr.bf16.mxu0 0
      %3030 = vmatpush1.bf16.msra.mxu0 0
      %3031 = vmatprep.subr.bf16.mxu0 0
      %3032 = vmatpush1.bf16.msra.mxu0 0
      %3033 = vmatprep.subr.bf16.mxu0 0
      %3034 = vmatpush1.bf16.msra.mxu0 0
      %3035 = vmatprep.subr.bf16.mxu0 0
      %3036 = vmatpush1.bf16.msra.mxu0 0
      %3037 = vmatprep.subr.bf16.mxu0 0
      %3038 = vmatpush1.bf16.msra.mxu0 0
      %3039 = vmatprep.subr.bf16.mxu0 0
      %3040 = vmatpush1.bf16.msra.mxu0 0
      %3041 = vmatprep.subr.bf16.mxu0 0
      %3042 = vmatpush1.bf16.msra.mxu0 0
      %3043 = vmatprep.subr.bf16.mxu0 0
      %3044 = vmatpush1.bf16.msra.mxu0 0
      %3045 = vmatprep.subr.bf16.mxu0 0
      %3046 = vmatpush1.bf16.msra.mxu0 0
      %3047 = vmatprep.subr.bf16.mxu0 0
      %3048 = vmatpush1.bf16.msra.mxu0 0
      %3049 = vmatprep.subr.bf16.mxu0 0
      %3050 = vmatpush1.bf16.msra.mxu0 0
      %3051 = vmatprep.mubr.bf16.mxu0 0
      %3052 = vmatmul.mubr.bf16.gmra.mrb[0].mxu0 %v3014
      %v3053 = vpop.f32.mrb[0].mxu0
      %v3054 = vadd.f32 0.0, %v3053
      %v3055 = vpop.f32.mrb[0].mxu0
      %v3056 = vpop.f32.mrb[0].mxu0
      %v3057 = vadd.f32 0.0, %v3056
      %v3058 = vpop.f32.mrb[0].mxu0
      %3059 = vdwg.mxu0
      %3061 = vrot.lane.b32.xlu0 %v2936, 64
      %v3062 = vpop.permute.xlu0 %3061
      %3064 = vrot.lane.b32.xlu0 %v2937, 64
      %v3065 = vpop.permute.xlu0 %3064
      %v3067 = vsel %vm1544, %v3062, 0
      %v3070 = vsel %vm1544, %v3065, 0
      %3072 = vmatprep.subr.bf16.mxu0 0
      %3073 = vmatpush1.bf16.xpose.msra.mxu0 %v3070
      %3074 = vmatprep.subr.bf16.mxu0 0
      %3075 = vmatpush1.bf16.xpose.msra.mxu0 0
      %3076 = vmatprep.subr.bf16.mxu0 0
      %3077 = vmatpush1.bf16.xpose.msra.mxu0 0
      %3078 = vmatprep.subr.bf16.mxu0 0
      %3079 = vmatpush1.bf16.xpose.msra.mxu0 0
      %3080 = vmatprep.subr.bf16.mxu0 0
      %3081 = vmatpush1.bf16.xpose.msra.mxu0 0
      %3082 = vmatprep.subr.bf16.mxu0 0
      %3083 = vmatpush1.bf16.xpose.msra.mxu0 0
      %3084 = vmatprep.subr.bf16.mxu0 0
      %3085 = vmatpush1.bf16.xpose.msra.mxu0 0
      %3086 = vmatprep.subr.bf16.mxu0 0
      %3087 = vmatpush1.bf16.xpose.msra.mxu0 0
      %3088 = vmatprep.subr.bf16.mxu0 0
      %3089 = vmatpush1.bf16.xpose.msra.mxu0 0
      %3090 = vmatprep.subr.bf16.mxu0 0
      %3091 = vmatpush1.bf16.xpose.msra.mxu0 0
      %3092 = vmatprep.subr.bf16.mxu0 0
      %3093 = vmatpush1.bf16.xpose.msra.mxu0 0
      %3094 = vmatprep.subr.bf16.mxu0 0
      %3095 = vmatpush1.bf16.xpose.msra.mxu0 0
      %3096 = vmatprep.subr.bf16.mxu0 0
      %3097 = vmatpush1.bf16.xpose.msra.mxu0 0
      %3098 = vmatprep.subr.bf16.mxu0 0
      %3099 = vmatpush1.bf16.xpose.msra.mxu0 0
      %3100 = vmatprep.subr.bf16.mxu0 0
      %3101 = vmatpush1.bf16.xpose.msra.mxu0 0
      %3102 = vmatprep.subr.bf16.mxu0 0
      %3103 = vmatpush1.bf16.xpose.msra.mxu0 0
      %3104 = vmatprep.mubr.bf16.mxu0 0
      %3105 = vmatmul.mubr.bf16.gmra.mrb[0].mxu0 %v3067
      %v3106 = vpop.f32.mrb[0].mxu0
      %v3107 = vadd.f32 0.0, %v3106
      %v3108 = vpop.f32.mrb[0].mxu0
      %v3109 = vpop.f32.mrb[0].mxu0
      %v3110 = vadd.f32 0.0, %v3109
      %v3111 = vpop.f32.mrb[0].mxu0
      %3112 = vdwg.mxu0
      %v3113 = vmul.f32 %v3107, 0.125
      %v3114 = vmul.f32 %v3110, 0.125
      %v3115 = vadd.f32 %v3113, %v1252
      %v3116 = vadd.f32 %v3114, %v1253
      %v3117 = vsel %vm1596, %v3115, -inf
      %3118 = vmax.xlane.f32.xlu0 %v3117
      %v3119 = vpop.xlane.xlu0 %3118
      %v3120 = vsel %vm1600, %v3116, -inf
      %3121 = vmax.xlane.f32.xlu0 %v3120
      %v3122 = vpop.xlane.xlu0 %3121
      %v3123 = vsub.f32 %v3115, %v3119
      %v3124 = vsub.f32 %v3116, %v3122
      %v3125 = vmul.f32 %v3123, 1.442695
      %v3126 = vpow.pop %v3125
      %v3127 = vmul.f32 %v3124, 1.442695
      %v3128 = vpow.pop %v3127
      %v3129 = vsel %vm1596, %v3126, 0.0
      %3130 = vadd.xlane.f32.xlu0 %v3129
      %v3131 = vpop.xlane.xlu0 %3130
      %v3132 = vsel %vm1600, %v3128, 0.0
      %3133 = vadd.xlane.f32.xlu0 %v3132
      %v3134 = vpop.xlane.xlu0 %3133
      %v3135 = vrcp.pop %v3131
      %v3136 = vrcp.pop %v3134
      %v3137 = vmul.f32 %v3126, %v3135
      %v3138 = vmul.f32 %v3128, %v3136
      %v3139 = vpack.c.bf16 %v3138, %v3137
      %3141 = vrot.lane.b32.xlu0 %v2938, 64
      %v3142 = vpop.permute.xlu0 %3141
      %v3144 = vsel %vm1596, %v3139, 0
      %v3147 = vsel %vm1624, %v3142, 0
      %3149 = vmatprep.subr.bf16.mxu0 0
      %3150 = vmatpush1.bf16.msra.mxu0 %v3147
      %3151 = vmatprep.subr.bf16.mxu0 0
      %3152 = vmatpush1.bf16.msra.mxu0 0
      %3153 = vmatprep.subr.bf16.mxu0 0
      %3154 = vmatpush1.bf16.msra.mxu0 0
      %3155 = vmatprep.subr.bf16.mxu0 0
      %3156 = vmatpush1.bf16.msra.mxu0 0
      %3157 = vmatprep.subr.bf16.mxu0 0
      %3158 = vmatpush1.bf16.msra.mxu0 0
      %3159 = vmatprep.subr.bf16.mxu0 0
      %3160 = vmatpush1.bf16.msra.mxu0 0
      %3161 = vmatprep.subr.bf16.mxu0 0
      %3162 = vmatpush1.bf16.msra.mxu0 0
      %3163 = vmatprep.subr.bf16.mxu0 0
      %3164 = vmatpush1.bf16.msra.mxu0 0
      %3165 = vmatprep.subr.bf16.mxu0 0
      %3166 = vmatpush1.bf16.msra.mxu0 0
      %3167 = vmatprep.subr.bf16.mxu0 0
      %3168 = vmatpush1.bf16.msra.mxu0 0
      %3169 = vmatprep.subr.bf16.mxu0 0
      %3170 = vmatpush1.bf16.msra.mxu0 0
      %3171 = vmatprep.subr.bf16.mxu0 0
      %3172 = vmatpush1.bf16.msra.mxu0 0
      %3173 = vmatprep.subr.bf16.mxu0 0
      %3174 = vmatpush1.bf16.msra.mxu0 0
      %3175 = vmatprep.subr.bf16.mxu0 0
      %3176 = vmatpush1.bf16.msra.mxu0 0
      %3177 = vmatprep.subr.bf16.mxu0 0
      %3178 = vmatpush1.bf16.msra.mxu0 0
      %3179 = vmatprep.subr.bf16.mxu0 0
      %3180 = vmatpush1.bf16.msra.mxu0 0
      %3181 = vmatprep.mubr.bf16.mxu0 0
      %3182 = vmatmul.mubr.bf16.gmra.mrb[0].mxu0 %v3144
      %v3183 = vpop.f32.mrb[0].mxu0
      %v3184 = vadd.f32 0.0, %v3183
      %v3185 = vpop.f32.mrb[0].mxu0
      %v3186 = vpop.f32.mrb[0].mxu0
      %v3187 = vadd.f32 0.0, %v3186
      %v3188 = vpop.f32.mrb[0].mxu0
      %3189 = vdwg.mxu0
      %3192 = vrot.lane.b32.xlu0 %v3184, 64
      %v3193 = vpop.permute.xlu0 %3192
      %3194 = vrot.lane.b32.xlu0 %v3187, 64
      %v3195 = vpop.permute.xlu0 %3194
      %v3198 = vsel %vm1544, %v3054, %v3193
      %v3199 = vsel %vm1544, %v3057, %v3195
      %v3200 = vpack.c.bf16 %v3199, %v3198
      %s3201 = scalar_lea.vmem %s9, 64
      %v3202 = vld [vmem:[%s3201] sm:$0xf]
      %v3203 = vld [vmem:[%s3201 + $0x4] sm:$0xf]
      %v3204 = vld [vmem:[%s3201 + $0x8] sm:$0xf]
      %v3205 = vld [vmem:[%s3201 + $0xc] sm:$0xf]
      %v3206 = vld [vmem:[%s3201 + $0x10] sm:$0xf]
      %v3207 = vld [vmem:[%s3201 + $0x14] sm:$0xf]
      %v3208 = vld [vmem:[%s3201 + $0x18] sm:$0xf]
      %v3209 = vld [vmem:[%s3201 + $0x1c] sm:$0xf]
      %v3210 = vld [vmem:[%s3201 + $0x20] sm:$0xf]
      %v3211 = vld [vmem:[%s3201 + $0x24] sm:$0xf]
      %v3212 = vld [vmem:[%s3201 + $0x28] sm:$0xf]
      %v3213 = vld [vmem:[%s3201 + $0x2c] sm:$0xf]
      %v3214 = vld [vmem:[%s3201 + $0x30] sm:$0xf]
      %v3215 = vld [vmem:[%s3201 + $0x34] sm:$0xf]
      %v3216 = vld [vmem:[%s3201 + $0x38] sm:$0xf]
      %v3217 = vld [vmem:[%s3201 + $0x3c] sm:$0xf]
      %v3234 = vunpack.c.l.b16 %v3202
      %v3235 = vunpack.c.l.b16 %v3203
      %v3236 = vunpack.c.l.b16 %v3204
      %v3237 = vunpack.c.l.b16 %v3205
      %v3238 = vunpack.c.l.b16 %v3206
      %v3239 = vunpack.c.l.b16 %v3207
      %v3240 = vunpack.c.l.b16 %v3208
      %v3241 = vunpack.c.l.b16 %v3209
      %v3242 = vunpack.c.l.b16 %v3210
      %v3243 = vunpack.c.l.b16 %v3211
      %v3244 = vunpack.c.l.b16 %v3212
      %v3245 = vunpack.c.l.b16 %v3213
      %v3246 = vunpack.c.l.b16 %v3214
      %v3247 = vunpack.c.l.b16 %v3215
      %v3248 = vunpack.c.l.b16 %v3216
      %v3249 = vunpack.c.l.b16 %v3217
      %v3250 = vpack.c.b16 %v3235, %v3234
      %v3251 = vpack.c.b16 %v3237, %v3236
      %v3252 = vpack.c.b16 %v3239, %v3238
      %v3253 = vpack.c.b16 %v3241, %v3240
      %v3254 = vpack.c.b16 %v3243, %v3242
      %v3255 = vpack.c.b16 %v3245, %v3244
      %v3256 = vpack.c.b16 %v3247, %v3246
      %v3257 = vpack.c.b16 %v3249, %v3248
      %3266 = vmatprep.subr.bf16.mxu0 0
      %3267 = vmatpush1.bf16.msra.mxu0 %v3250
      %3268 = vmatprep.subr.bf16.mxu0 0
      %3269 = vmatpush1.bf16.msra.mxu0 %v3251
      %3270 = vmatprep.subr.bf16.mxu0 0
      %3271 = vmatpush1.bf16.msra.mxu0 %v3252
      %3272 = vmatprep.subr.bf16.mxu0 0
      %3273 = vmatpush1.bf16.msra.mxu0 %v3253
      %3274 = vmatprep.subr.bf16.mxu0 0
      %3275 = vmatpush1.bf16.msra.mxu0 %v3254
      %3276 = vmatprep.subr.bf16.mxu0 0
      %3277 = vmatpush1.bf16.msra.mxu0 %v3255
      %3278 = vmatprep.subr.bf16.mxu0 0
      %3279 = vmatpush1.bf16.msra.mxu0 %v3256
      %3280 = vmatprep.subr.bf16.mxu0 0
      %3281 = vmatpush1.bf16.msra.mxu0 %v3257
      %3282 = vmatprep.subr.bf16.mxu0 0
      %3283 = vmatpush1.bf16.msra.mxu0 0
      %3284 = vmatprep.subr.bf16.mxu0 0
      %3285 = vmatpush1.bf16.msra.mxu0 0
      %3286 = vmatprep.subr.bf16.mxu0 0
      %3287 = vmatpush1.bf16.msra.mxu0 0
      %3288 = vmatprep.subr.bf16.mxu0 0
      %3289 = vmatpush1.bf16.msra.mxu0 0
      %3290 = vmatprep.subr.bf16.mxu0 0
      %3291 = vmatpush1.bf16.msra.mxu0 0
      %3292 = vmatprep.subr.bf16.mxu0 0
      %3293 = vmatpush1.bf16.msra.mxu0 0
      %3294 = vmatprep.subr.bf16.mxu0 0
      %3295 = vmatpush1.bf16.msra.mxu0 0
      %3296 = vmatprep.subr.bf16.mxu0 0
      %3297 = vmatpush1.bf16.msra.mxu0 0
      %3298 = vmatprep.mubr.bf16.mxu0 0
      %3299 = vmatmul.mubr.bf16.gmra.mrb[0].mxu0 %v3200
      %v3300 = vpop.f32.mrb[0].mxu0
      %v3301 = vadd.f32 0.0, %v3300
      %v3302 = vpop.f32.mrb[0].mxu0
      %v3303 = vpop.f32.mrb[0].mxu0
      %v3304 = vadd.f32 0.0, %v3303
      %v3305 = vpop.f32.mrb[0].mxu0
      %3306 = vdwg.mxu0
      %v3307 = vadd.f32 %v2644, %v3301
      %v3308 = vadd.f32 %v2645, %v3304
      %s3309 = scalar_lea.vmem %s10, 1
      %v3310 = vld [vmem:[%s3309] sm:$0x1]
      %s3311 = scalar_lea.vmem %s11, 1
      %v3312 = vld [vmem:[%s3311] sm:$0x1]
      %3313 = vadd.xlane.f32.xlu0 %v3307
      %v3314 = vpop.xlane.xlu0 %3313
      %v3315 = vsel %vm1212, %v3308, 0.0
      %3316 = vadd.xlane.f32.xlu0 %v3315
      %v3317 = vpop.xlane.xlu0 %3316
      %v3318 = vmul.f32 %v3314, %v1216
      %v3319 = vmul.f32 %v3317, %v1216
      %v3320 = vsub.f32 %v3307, %v3318
      %v3321 = vsub.f32 %v3308, %v3319
      %v3322 = vmul.f32 %v3320, %v3320
      %v3323 = vmul.f32 %v3321, %v3321
      %3324 = vadd.xlane.f32.xlu0 %v3322
      %v3325 = vpop.xlane.xlu0 %3324
      %v3326 = vsel %vm1212, %v3323, 0.0
      %3327 = vadd.xlane.f32.xlu0 %v3326
      %v3328 = vpop.xlane.xlu0 %3327
      %v3329 = vmul.f32 %v3325, %v1216
      %v3330 = vmul.f32 %v3328, %v1216
      %v3331 = vadd.f32 %v3329, 1e-05
      %v3332 = vadd.f32 %v3330, 1e-05
      %v3333 = vrsqrt.pop %v3331
      %v3334 = vrsqrt.pop %v3332
      %v3335 = vmul.f32 %v3320, %v3333
      %v3336 = vmul.f32 %v3321, %v3334
      %v3338 = vlaneseq
      %v3339 = vshrl.u32 %v3338, 7
      %v3340 = vsub.s32 0, %v3339
      %v3341 = vrot.slane %v3310, %v3340
      %v3343 = vmul.f32 %v3335, %v3341
      %v3344 = vmul.f32 %v3336, %v3341
      %v3346 = vlaneseq
      %v3347 = vshrl.u32 %v3346, 7
      %v3348 = vsub.s32 0, %v3347
      %v3349 = vrot.slane %v3312, %v3348
      %v3351 = vadd.f32 %v3343, %v3349
      %v3352 = vadd.f32 %v3344, %v3349
      %v3353 = vpack.c.bf16 %v3352, %v3351
      %s3354 = scalar_lea.vmem %s12, 256
      %v3355 = vld [vmem:[%s3354] sm:$0xff]
      %v3356 = vld [vmem:[%s3354 + $0x8] sm:$0xff]
      %v3357 = vld [vmem:[%s3354 + $0x10] sm:$0xff]
      %v3358 = vld [vmem:[%s3354 + $0x18] sm:$0xff]
      %v3359 = vld [vmem:[%s3354 + $0x20] sm:$0xff]
      %v3360 = vld [vmem:[%s3354 + $0x28] sm:$0xff]
      %v3361 = vld [vmem:[%s3354 + $0x30] sm:$0xff]
      %v3362 = vld [vmem:[%s3354 + $0x38] sm:$0xff]
      %v3363 = vld [vmem:[%s3354 + $0x40] sm:$0xff]
      %v3364 = vld [vmem:[%s3354 + $0x48] sm:$0xff]
      %v3365 = vld [vmem:[%s3354 + $0x50] sm:$0xff]
      %v3366 = vld [vmem:[%s3354 + $0x58] sm:$0xff]
      %v3367 = vld [vmem:[%s3354 + $0x60] sm:$0xff]
      %v3368 = vld [vmem:[%s3354 + $0x68] sm:$0xff]
      %v3369 = vld [vmem:[%s3354 + $0x70] sm:$0xff]
      %v3370 = vld [vmem:[%s3354 + $0x78] sm:$0xff]
      %v3371 = vld [vmem:[%s3354 + $0x80] sm:$0xff]
      %v3372 = vld [vmem:[%s3354 + $0x88] sm:$0xff]
      %v3373 = vld [vmem:[%s3354 + $0x90] sm:$0xff]
      %v3374 = vld [vmem:[%s3354 + $0x98] sm:$0xff]
      %v3375 = vld [vmem:[%s3354 + $0xa0] sm:$0xff]
      %v3376 = vld [vmem:[%s3354 + $0xa8] sm:$0xff]
      %v3377 = vld [vmem:[%s3354 + $0xb0] sm:$0xff]
      %v3378 = vld [vmem:[%s3354 + $0xb8] sm:$0xff]
      %v3379 = vld [vmem:[%s3354 + $0xc0] sm:$0xff]
      %v3380 = vld [vmem:[%s3354 + $0xc8] sm:$0xff]
      %v3381 = vld [vmem:[%s3354 + $0xd0] sm:$0xff]
      %v3382 = vld [vmem:[%s3354 + $0xd8] sm:$0xff]
      %v3383 = vld [vmem:[%s3354 + $0xe0] sm:$0xff]
      %v3384 = vld [vmem:[%s3354 + $0xe8] sm:$0xff]
      %v3385 = vld [vmem:[%s3354 + $0xf0] sm:$0xff]
      %v3386 = vld [vmem:[%s3354 + $0xf8] sm:$0xff]
      %v3419 = vunpack.c.l.b16 %v3355
      %v3420 = vunpack.c.h.b16 %v3355
      %v3421 = vunpack.c.l.b16 %v3356
      %v3422 = vunpack.c.h.b16 %v3356
      %v3423 = vunpack.c.l.b16 %v3357
      %v3424 = vunpack.c.h.b16 %v3357
      %v3425 = vunpack.c.l.b16 %v3358
      %v3426 = vunpack.c.h.b16 %v3358
      %v3427 = vunpack.c.l.b16 %v3359
      %v3428 = vunpack.c.h.b16 %v3359
      %v3429 = vunpack.c.l.b16 %v3360
      %v3430 = vunpack.c.h.b16 %v3360
      %v3431 = vunpack.c.l.b16 %v3361
      %v3432 = vunpack.c.h.b16 %v3361
      %v3433 = vunpack.c.l.b16 %v3362
      %v3434 = vunpack.c.h.b16 %v3362
      %v3435 = vunpack.c.l.b16 %v3363
      %v3436 = vunpack.c.h.b16 %v3363
      %v3437 = vunpack.c.l.b16 %v3364
      %v3438 = vunpack.c.h.b16 %v3364
      %v3439 = vunpack.c.l.b16 %v3365
      %v3440 = vunpack.c.h.b16 %v3365
      %v3441 = vunpack.c.l.b16 %v3366
      %v3442 = vunpack.c.h.b16 %v3366
      %v3443 = vunpack.c.l.b16 %v3367
      %v3444 = vunpack.c.h.b16 %v3367
      %v3445 = vunpack.c.l.b16 %v3368
      %v3446 = vunpack.c.h.b16 %v3368
      %v3447 = vunpack.c.l.b16 %v3369
      %v3448 = vunpack.c.h.b16 %v3369
      %v3449 = vunpack.c.l.b16 %v3370
      %v3450 = vunpack.c.h.b16 %v3370
      %v3451 = vunpack.c.l.b16 %v3371
      %v3452 = vunpack.c.h.b16 %v3371
      %v3453 = vunpack.c.l.b16 %v3372
      %v3454 = vunpack.c.h.b16 %v3372
      %v3455 = vunpack.c.l.b16 %v3373
      %v3456 = vunpack.c.h.b16 %v3373
      %v3457 = vunpack.c.l.b16 %v3374
      %v3458 = vunpack.c.h.b16 %v3374
      %v3459 = vunpack.c.l.b16 %v3375
      %v3460 = vunpack.c.h.b16 %v3375
      %v3461 = vunpack.c.l.b16 %v3376
      %v3462 = vunpack.c.h.b16 %v3376
      %v3463 = vunpack.c.l.b16 %v3377
      %v3464 = vunpack.c.h.b16 %v3377
      %v3465 = vunpack.c.l.b16 %v3378
      %v3466 = vunpack.c.h.b16 %v3378
      %v3467 = vunpack.c.l.b16 %v3379
      %v3468 = vunpack.c.h.b16 %v3379
      %v3469 = vunpack.c.l.b16 %v3380
      %v3470 = vunpack.c.h.b16 %v3380
      %v3471 = vunpack.c.l.b16 %v3381
      %v3472 = vunpack.c.h.b16 %v3381
      %v3473 = vunpack.c.l.b16 %v3382
      %v3474 = vunpack.c.h.b16 %v3382
      %v3475 = vunpack.c.l.b16 %v3383
      %v3476 = vunpack.c.h.b16 %v3383
      %v3477 = vunpack.c.l.b16 %v3384
      %v3478 = vunpack.c.h.b16 %v3384
      %v3479 = vunpack.c.l.b16 %v3385
      %v3480 = vunpack.c.h.b16 %v3385
      %v3481 = vunpack.c.l.b16 %v3386
      %v3482 = vunpack.c.h.b16 %v3386
      %v3483 = vpack.c.b16 %v3423, %v3419
      %v3484 = vpack.c.b16 %v3424, %v3420
      %v3485 = vpack.c.b16 %v3425, %v3421
      %v3486 = vpack.c.b16 %v3426, %v3422
      %v3487 = vpack.c.b16 %v3431, %v3427
      %v3488 = vpack.c.b16 %v3432, %v3428
      %v3489 = vpack.c.b16 %v3433, %v3429
      %v3490 = vpack.c.b16 %v3434, %v3430
      %v3491 = vpack.c.b16 %v3439, %v3435
      %v3492 = vpack.c.b16 %v3440, %v3436
      %v3493 = vpack.c.b16 %v3441, %v3437
      %v3494 = vpack.c.b16 %v3442, %v3438
      %v3495 = vpack.c.b16 %v3447, %v3443
      %v3496 = vpack.c.b16 %v3448, %v3444
      %v3497 = vpack.c.b16 %v3449, %v3445
      %v3498 = vpack.c.b16 %v3450, %v3446
      %v3499 = vpack.c.b16 %v3455, %v3451
      %v3500 = vpack.c.b16 %v3456, %v3452
      %v3501 = vpack.c.b16 %v3457, %v3453
      %v3502 = vpack.c.b16 %v3458, %v3454
      %v3503 = vpack.c.b16 %v3463, %v3459
      %v3504 = vpack.c.b16 %v3464, %v3460
      %v3505 = vpack.c.b16 %v3465, %v3461
      %v3506 = vpack.c.b16 %v3466, %v3462
      %v3507 = vpack.c.b16 %v3471, %v3467
      %v3508 = vpack.c.b16 %v3472, %v3468
      %v3509 = vpack.c.b16 %v3473, %v3469
      %v3510 = vpack.c.b16 %v3474, %v3470
      %v3511 = vpack.c.b16 %v3479, %v3475
      %v3512 = vpack.c.b16 %v3480, %v3476
      %v3513 = vpack.c.b16 %v3481, %v3477
      %v3514 = vpack.c.b16 %v3482, %v3478
      %3547 = vmatprep.subr.bf16.mxu0 %v3484
      %3548 = vmatpush1.bf16.msra.mxu0 %v3483
      %3549 = vmatprep.subr.bf16.mxu0 %v3488
      %3550 = vmatpush1.bf16.msra.mxu0 %v3487
      %3551 = vmatprep.subr.bf16.mxu0 %v3492
      %3552 = vmatpush1.bf16.msra.mxu0 %v3491
      %3553 = vmatprep.subr.bf16.mxu0 %v3496
      %3554 = vmatpush1.bf16.msra.mxu0 %v3495
      %3555 = vmatprep.subr.bf16.mxu0 %v3500
      %3556 = vmatpush1.bf16.msra.mxu0 %v3499
      %3557 = vmatprep.subr.bf16.mxu0 %v3504
      %3558 = vmatpush1.bf16.msra.mxu0 %v3503
      %3559 = vmatprep.subr.bf16.mxu0 %v3508
      %3560 = vmatpush1.bf16.msra.mxu0 %v3507
      %3561 = vmatprep.subr.bf16.mxu0 %v3512
      %3562 = vmatpush1.bf16.msra.mxu0 %v3511
      %3563 = vmatprep.subr.bf16.mxu0 0
      %3564 = vmatpush1.bf16.msra.mxu0 0
      %3565 = vmatprep.subr.bf16.mxu0 0
      %3566 = vmatpush1.bf16.msra.mxu0 0
      %3567 = vmatprep.subr.bf16.mxu0 0
      %3568 = vmatpush1.bf16.msra.mxu0 0
      %3569 = vmatprep.subr.bf16.mxu0 0
      %3570 = vmatpush1.bf16.msra.mxu0 0
      %3571 = vmatprep.subr.bf16.mxu0 0
      %3572 = vmatpush1.bf16.msra.mxu0 0
      %3573 = vmatprep.subr.bf16.mxu0 0
      %3574 = vmatpush1.bf16.msra.mxu0 0
      %3575 = vmatprep.subr.bf16.mxu0 0
      %3576 = vmatpush1.bf16.msra.mxu0 0
      %3577 = vmatprep.subr.bf16.mxu0 0
      %3578 = vmatpush1.bf16.msra.mxu0 0
      %3579 = vmatprep.mubr.bf16.mxu0 0
      %3580 = vmatmul.mubr.bf16.gmra.mrb[0].mxu0 %v3353
      %v3581 = vpop.f32.mrb[0].mxu0
      %v3582 = vadd.f32 0.0, %v3581
      %v3583 = vpop.f32.mrb[0].mxu0
      %v3584 = vadd.f32 0.0, %v3583
      %v3585 = vpop.f32.mrb[0].mxu0
      %v3586 = vadd.f32 0.0, %v3585
      %v3587 = vpop.f32.mrb[0].mxu0
      %v3588 = vadd.f32 0.0, %v3587
      %3589 = vdwg.mxu0
      %3590 = vmatprep.subr.bf16.mxu0 %v3486
      %3591 = vmatpush1.bf16.msra.mxu0 %v3485
      %3592 = vmatprep.subr.bf16.mxu0 %v3490
      %3593 = vmatpush1.bf16.msra.mxu0 %v3489
      %3594 = vmatprep.subr.bf16.mxu0 %v3494
      %3595 = vmatpush1.bf16.msra.mxu0 %v3493
      %3596 = vmatprep.subr.bf16.mxu0 %v3498
      %3597 = vmatpush1.bf16.msra.mxu0 %v3497
      %3598 = vmatprep.subr.bf16.mxu0 %v3502
      %3599 = vmatpush1.bf16.msra.mxu0 %v3501
      %3600 = vmatprep.subr.bf16.mxu0 %v3506
      %3601 = vmatpush1.bf16.msra.mxu0 %v3505
      %3602 = vmatprep.subr.bf16.mxu0 %v3510
      %3603 = vmatpush1.bf16.msra.mxu0 %v3509
      %3604 = vmatprep.subr.bf16.mxu0 %v3514
      %3605 = vmatpush1.bf16.msra.mxu0 %v3513
      %3606 = vmatprep.subr.bf16.mxu0 0
      %3607 = vmatpush1.bf16.msra.mxu0 0
      %3608 = vmatprep.subr.bf16.mxu0 0
      %3609 = vmatpush1.bf16.msra.mxu0 0
      %3610 = vmatprep.subr.bf16.mxu0 0
      %3611 = vmatpush1.bf16.msra.mxu0 0
      %3612 = vmatprep.subr.bf16.mxu0 0
      %3613 = vmatpush1.bf16.msra.mxu0 0
      %3614 = vmatprep.subr.bf16.mxu0 0
      %3615 = vmatpush1.bf16.msra.mxu0 0
      %3616 = vmatprep.subr.bf16.mxu0 0
      %3617 = vmatpush1.bf16.msra.mxu0 0
      %3618 = vmatprep.subr.bf16.mxu0 0
      %3619 = vmatpush1.bf16.msra.mxu0 0
      %3620 = vmatprep.subr.bf16.mxu0 0
      %3621 = vmatpush1.bf16.msra.mxu0 0
      %3622 = vmatprep.mubr.bf16.mxu0 0
      %3623 = vmatmul.mubr.bf16.gmra.mrb[0].mxu0 %v3353
      %v3624 = vpop.f32.mrb[0].mxu0
      %v3625 = vadd.f32 0.0, %v3624
      %v3626 = vpop.f32.mrb[0].mxu0
      %v3627 = vadd.f32 0.0, %v3626
      %v3628 = vpop.f32.mrb[0].mxu0
      %v3629 = vadd.f32 0.0, %v3628
      %v3630 = vpop.f32.mrb[0].mxu0
      %v3631 = vadd.f32 0.0, %v3630
      %3632 = vdwg.mxu0
      %v3633 = vmul.f32 %v3582, 1.702
      %v3634 = vmul.f32 %v3584, 1.702
      %v3635 = vmul.f32 %v3625, 1.702
      %v3636 = vmul.f32 %v3627, 1.702
      %v3637 = vmul.f32 %v3586, 1.702
      %v3638 = vmul.f32 %v3588, 1.702
      %v3639 = vmul.f32 %v3629, 1.702
      %v3640 = vmul.f32 %v3631, 1.702
      %v3641 = vxor.u32 %v3633, 2147483648
      %v3642 = vxor.u32 %v3634, 2147483648
      %v3643 = vxor.u32 %v3635, 2147483648
      %v3644 = vxor.u32 %v3636, 2147483648
      %v3645 = vxor.u32 %v3637, 2147483648
      %v3646 = vxor.u32 %v3638, 2147483648
      %v3647 = vxor.u32 %v3639, 2147483648
      %v3648 = vxor.u32 %v3640, 2147483648
      %v3649 = vmul.f32 %v3641, 1.442695
      %v3650 = vpow.pop %v3649
      %v3651 = vmul.f32 %v3642, 1.442695
      %v3652 = vpow.pop %v3651
      %v3653 = vmul.f32 %v3643, 1.442695
      %v3654 = vpow.pop %v3653
      %v3655 = vmul.f32 %v3644, 1.442695
      %v3656 = vpow.pop %v3655
      %v3657 = vmul.f32 %v3645, 1.442695
      %v3658 = vpow.pop %v3657
      %v3659 = vmul.f32 %v3646, 1.442695
      %v3660 = vpow.pop %v3659
      %v3661 = vmul.f32 %v3647, 1.442695
      %v3662 = vpow.pop %v3661
      %v3663 = vmul.f32 %v3648, 1.442695
      %v3664 = vpow.pop %v3663
      %v3665 = vadd.f32 %v3650, 1.0
      %v3666 = vadd.f32 %v3652, 1.0
      %v3667 = vadd.f32 %v3654, 1.0
      %v3668 = vadd.f32 %v3656, 1.0
      %v3669 = vadd.f32 %v3658, 1.0
      %v3670 = vadd.f32 %v3660, 1.0
      %v3671 = vadd.f32 %v3662, 1.0
      %v3672 = vadd.f32 %v3664, 1.0
      %v3673 = vrcp.pop %v3665
      %v3674 = vmul.f32 1.0, %v3673
      %v3675 = vrcp.pop %v3666
      %v3676 = vmul.f32 1.0, %v3675
      %v3677 = vrcp.pop %v3667
      %v3678 = vmul.f32 1.0, %v3677
      %v3679 = vrcp.pop %v3668
      %v3680 = vmul.f32 1.0, %v3679
      %v3681 = vrcp.pop %v3669
      %v3682 = vmul.f32 1.0, %v3681
      %v3683 = vrcp.pop %v3670
      %v3684 = vmul.f32 1.0, %v3683
      %v3685 = vrcp.pop %v3671
      %v3686 = vmul.f32 1.0, %v3685
      %v3687 = vrcp.pop %v3672
      %v3688 = vmul.f32 1.0, %v3687
      %v3689 = vmul.f32 %v3582, %v3674
      %v3690 = vmul.f32 %v3584, %v3676
      %v3691 = vmul.f32 %v3625, %v3678
      %v3692 = vmul.f32 %v3627, %v3680
      %v3693 = vmul.f32 %v3586, %v3682
      %v3694 = vmul.f32 %v3588, %v3684
      %v3695 = vmul.f32 %v3629, %v3686
      %v3696 = vmul.f32 %v3631, %v3688
      %v3697 = vpack.c.bf16 %v3693, %v3689
      %v3698 = vpack.c.bf16 %v3694, %v3690
      %v3699 = vpack.c.bf16 %v3695, %v3691
      %v3700 = vpack.c.bf16 %v3696, %v3692
      %s3701 = scalar_lea.vmem %s13, 256
      %v3702 = vld [vmem:[%s3701] sm:$0xf]
      %v3703 = vld [vmem:[%s3701 + $0x4] sm:$0xf]
      %v3704 = vld [vmem:[%s3701 + $0x8] sm:$0xf]
      %v3705 = vld [vmem:[%s3701 + $0xc] sm:$0xf]
      %v3706 = vld [vmem:[%s3701 + $0x10] sm:$0xf]
      %v3707 = vld [vmem:[%s3701 + $0x14] sm:$0xf]
      %v3708 = vld [vmem:[%s3701 + $0x18] sm:$0xf]
      %v3709 = vld [vmem:[%s3701 + $0x1c] sm:$0xf]
      %v3710 = vld [vmem:[%s3701 + $0x20] sm:$0xf]
      %v3711 = vld [vmem:[%s3701 + $0x24] sm:$0xf]
      %v3712 = vld [vmem:[%s3701 + $0x28] sm:$0xf]
      %v3713 = vld [vmem:[%s3701 + $0x2c] sm:$0xf]
      %v3714 = vld [vmem:[%s3701 + $0x30] sm:$0xf]
      %v3715 = vld [vmem:[%s3701 + $0x34] sm:$0xf]
      %v3716 = vld [vmem:[%s3701 + $0x38] sm:$0xf]
      %v3717 = vld [vmem:[%s3701 + $0x3c] sm:$0xf]
      %v3718 = vld [vmem:[%s3701 + $0x40] sm:$0xf]
      %v3719 = vld [vmem:[%s3701 + $0x44] sm:$0xf]
      %v3720 = vld [vmem:[%s3701 + $0x48] sm:$0xf]
      %v3721 = vld [vmem:[%s3701 + $0x4c] sm:$0xf]
      %v3722 = vld [vmem:[%s3701 + $0x50] sm:$0xf]
      %v3723 = vld [vmem:[%s3701 + $0x54] sm:$0xf]
      %v3724 = vld [vmem:[%s3701 + $0x58] sm:$0xf]
      %v3725 = vld [vmem:[%s3701 + $0x5c] sm:$0xf]
      %v3726 = vld [vmem:[%s3701 + $0x60] sm:$0xf]
      %v3727 = vld [vmem:[%s3701 + $0x64] sm:$0xf]
      %v3728 = vld [vmem:[%s3701 + $0x68] sm:$0xf]
      %v3729 = vld [vmem:[%s3701 + $0x6c] sm:$0xf]
      %v3730 = vld [vmem:[%s3701 + $0x70] sm:$0xf]
      %v3731 = vld [vmem:[%s3701 + $0x74] sm:$0xf]
      %v3732 = vld [vmem:[%s3701 + $0x78] sm:$0xf]
      %v3733 = vld [vmem:[%s3701 + $0x7c] sm:$0xf]
      %v3734 = vld [vmem:[%s3701 + $0x80] sm:$0xf]
      %v3735 = vld [vmem:[%s3701 + $0x84] sm:$0xf]
      %v3736 = vld [vmem:[%s3701 + $0x88] sm:$0xf]
      %v3737 = vld [vmem:[%s3701 + $0x8c] sm:$0xf]
      %v3738 = vld [vmem:[%s3701 + $0x90] sm:$0xf]
      %v3739 = vld [vmem:[%s3701 + $0x94] sm:$0xf]
      %v3740 = vld [vmem:[%s3701 + $0x98] sm:$0xf]
      %v3741 = vld [vmem:[%s3701 + $0x9c] sm:$0xf]
      %v3742 = vld [vmem:[%s3701 + $0xa0] sm:$0xf]
      %v3743 = vld [vmem:[%s3701 + $0xa4] sm:$0xf]
      %v3744 = vld [vmem:[%s3701 + $0xa8] sm:$0xf]
      %v3745 = vld [vmem:[%s3701 + $0xac] sm:$0xf]
      %v3746 = vld [vmem:[%s3701 + $0xb0] sm:$0xf]
      %v3747 = vld [vmem:[%s3701 + $0xb4] sm:$0xf]
      %v3748 = vld [vmem:[%s3701 + $0xb8] sm:$0xf]
      %v3749 = vld [vmem:[%s3701 + $0xbc] sm:$0xf]
      %v3750 = vld [vmem:[%s3701 + $0xc0] sm:$0xf]
      %v3751 = vld [vmem:[%s3701 + $0xc4] sm:$0xf]
      %v3752 = vld [vmem:[%s3701 + $0xc8] sm:$0xf]
      %v3753 = vld [vmem:[%s3701 + $0xcc] sm:$0xf]
      %v3754 = vld [vmem:[%s3701 + $0xd0] sm:$0xf]
      %v3755 = vld [vmem:[%s3701 + $0xd4] sm:$0xf]
      %v3756 = vld [vmem:[%s3701 + $0xd8] sm:$0xf]
      %v3757 = vld [vmem:[%s3701 + $0xdc] sm:$0xf]
      %v3758 = vld [vmem:[%s3701 + $0xe0] sm:$0xf]
      %v3759 = vld [vmem:[%s3701 + $0xe4] sm:$0xf]
      %v3760 = vld [vmem:[%s3701 + $0xe8] sm:$0xf]
      %v3761 = vld [vmem:[%s3701 + $0xec] sm:$0xf]
      %v3762 = vld [vmem:[%s3701 + $0xf0] sm:$0xf]
      %v3763 = vld [vmem:[%s3701 + $0xf4] sm:$0xf]
      %v3764 = vld [vmem:[%s3701 + $0xf8] sm:$0xf]
      %v3765 = vld [vmem:[%s3701 + $0xfc] sm:$0xf]
      %v3830 = vunpack.c.l.b16 %v3702
      %v3831 = vunpack.c.l.b16 %v3703
      %v3832 = vunpack.c.l.b16 %v3704
      %v3833 = vunpack.c.l.b16 %v3705
      %v3834 = vunpack.c.l.b16 %v3706
      %v3835 = vunpack.c.l.b16 %v3707
      %v3836 = vunpack.c.l.b16 %v3708
      %v3837 = vunpack.c.l.b16 %v3709
      %v3838 = vunpack.c.l.b16 %v3710
      %v3839 = vunpack.c.l.b16 %v3711
      %v3840 = vunpack.c.l.b16 %v3712
      %v3841 = vunpack.c.l.b16 %v3713
      %v3842 = vunpack.c.l.b16 %v3714
      %v3843 = vunpack.c.l.b16 %v3715
      %v3844 = vunpack.c.l.b16 %v3716
      %v3845 = vunpack.c.l.b16 %v3717
      %v3846 = vunpack.c.l.b16 %v3718
      %v3847 = vunpack.c.l.b16 %v3719
      %v3848 = vunpack.c.l.b16 %v3720
      %v3849 = vunpack.c.l.b16 %v3721
      %v3850 = vunpack.c.l.b16 %v3722
      %v3851 = vunpack.c.l.b16 %v3723
      %v3852 = vunpack.c.l.b16 %v3724
      %v3853 = vunpack.c.l.b16 %v3725
      %v3854 = vunpack.c.l.b16 %v3726
      %v3855 = vunpack.c.l.b16 %v3727
      %v3856 = vunpack.c.l.b16 %v3728
      %v3857 = vunpack.c.l.b16 %v3729
      %v3858 = vunpack.c.l.b16 %v3730
      %v3859 = vunpack.c.l.b16 %v3731
      %v3860 = vunpack.c.l.b16 %v3732
      %v3861 = vunpack.c.l.b16 %v3733
      %v3862 = vunpack.c.l.b16 %v3734
      %v3863 = vunpack.c.l.b16 %v3735
      %v3864 = vunpack.c.l.b16 %v3736
      %v3865 = vunpack.c.l.b16 %v3737
      %v3866 = vunpack.c.l.b16 %v3738
      %v3867 = vunpack.c.l.b16 %v3739
      %v3868 = vunpack.c.l.b16 %v3740
      %v3869 = vunpack.c.l.b16 %v3741
      %v3870 = vunpack.c.l.b16 %v3742
      %v3871 = vunpack.c.l.b16 %v3743
      %v3872 = vunpack.c.l.b16 %v3744
      %v3873 = vunpack.c.l.b16 %v3745
      %v3874 = vunpack.c.l.b16 %v3746
      %v3875 = vunpack.c.l.b16 %v3747
      %v3876 = vunpack.c.l.b16 %v3748
      %v3877 = vunpack.c.l.b16 %v3749
      %v3878 = vunpack.c.l.b16 %v3750
      %v3879 = vunpack.c.l.b16 %v3751
      %v3880 = vunpack.c.l.b16 %v3752
      %v3881 = vunpack.c.l.b16 %v3753
      %v3882 = vunpack.c.l.b16 %v3754
      %v3883 = vunpack.c.l.b16 %v3755
      %v3884 = vunpack.c.l.b16 %v3756
      %v3885 = vunpack.c.l.b16 %v3757
      %v3886 = vunpack.c.l.b16 %v3758
      %v3887 = vunpack.c.l.b16 %v3759
      %v3888 = vunpack.c.l.b16 %v3760
      %v3889 = vunpack.c.l.b16 %v3761
      %v3890 = vunpack.c.l.b16 %v3762
      %v3891 = vunpack.c.l.b16 %v3763
      %v3892 = vunpack.c.l.b16 %v3764
      %v3893 = vunpack.c.l.b16 %v3765
      %v3894 = vpack.c.b16 %v3831, %v3830
      %v3895 = vpack.c.b16 %v3833, %v3832
      %v3896 = vpack.c.b16 %v3835, %v3834
      %v3897 = vpack.c.b16 %v3837, %v3836
      %v3898 = vpack.c.b16 %v3839, %v3838
      %v3899 = vpack.c.b16 %v3841, %v3840
      %v3900 = vpack.c.b16 %v3843, %v3842
      %v3901 = vpack.c.b16 %v3845, %v3844
      %v3902 = vpack.c.b16 %v3847, %v3846
      %v3903 = vpack.c.b16 %v3849, %v3848
      %v3904 = vpack.c.b16 %v3851, %v3850
      %v3905 = vpack.c.b16 %v3853, %v3852
      %v3906 = vpack.c.b16 %v3855, %v3854
      %v3907 = vpack.c.b16 %v3857, %v3856
      %v3908 = vpack.c.b16 %v3859, %v3858
      %v3909 = vpack.c.b16 %v3861, %v3860
      %v3910 = vpack.c.b16 %v3863, %v3862
      %v3911 = vpack.c.b16 %v3865, %v3864
      %v3912 = vpack.c.b16 %v3867, %v3866
      %v3913 = vpack.c.b16 %v3869, %v3868
      %v3914 = vpack.c.b16 %v3871, %v3870
      %v3915 = vpack.c.b16 %v3873, %v3872
      %v3916 = vpack.c.b16 %v3875, %v3874
      %v3917 = vpack.c.b16 %v3877, %v3876
      %v3918 = vpack.c.b16 %v3879, %v3878
      %v3919 = vpack.c.b16 %v3881, %v3880
      %v3920 = vpack.c.b16 %v3883, %v3882
      %v3921 = vpack.c.b16 %v3885, %v3884
      %v3922 = vpack.c.b16 %v3887, %v3886
      %v3923 = vpack.c.b16 %v3889, %v3888
      %v3924 = vpack.c.b16 %v3891, %v3890
      %v3925 = vpack.c.b16 %v3893, %v3892
      %3958 = vmatprep.subr.bf16.mxu0 0
      %3959 = vmatpush1.bf16.msra.mxu0 %v3894
      %3960 = vmatprep.subr.bf16.mxu0 0
      %3961 = vmatpush1.bf16.msra.mxu0 %v3895
      %3962 = vmatprep.subr.bf16.mxu0 0
      %3963 = vmatpush1.bf16.msra.mxu0 %v3896
      %3964 = vmatprep.subr.bf16.mxu0 0
      %3965 = vmatpush1.bf16.msra.mxu0 %v3897
      %3966 = vmatprep.subr.bf16.mxu0 0
      %3967 = vmatpush1.bf16.msra.mxu0 %v3898
      %3968 = vmatprep.subr.bf16.mxu0 0
      %3969 = vmatpush1.bf16.msra.mxu0 %v3899
      %3970 = vmatprep.subr.bf16.mxu0 0
      %3971 = vmatpush1.bf16.msra.mxu0 %v3900
      %3972 = vmatprep.subr.bf16.mxu0 0
      %3973 = vmatpush1.bf16.msra.mxu0 %v3901
      %3974 = vmatprep.subr.bf16.mxu0 0
      %3975 = vmatpush1.bf16.msra.mxu0 %v3902
      %3976 = vmatprep.subr.bf16.mxu0 0
      %3977 = vmatpush1.bf16.msra.mxu0 %v3903
      %3978 = vmatprep.subr.bf16.mxu0 0
      %3979 = vmatpush1.bf16.msra.mxu0 %v3904
      %3980 = vmatprep.subr.bf16.mxu0 0
      %3981 = vmatpush1.bf16.msra.mxu0 %v3905
      %3982 = vmatprep.subr.bf16.mxu0 0
      %3983 = vmatpush1.bf16.msra.mxu0 %v3906
      %3984 = vmatprep.subr.bf16.mxu0 0
      %3985 = vmatpush1.bf16.msra.mxu0 %v3907
      %3986 = vmatprep.subr.bf16.mxu0 0
      %3987 = vmatpush1.bf16.msra.mxu0 %v3908
      %3988 = vmatprep.subr.bf16.mxu0 0
      %3989 = vmatpush1.bf16.msra.mxu0 %v3909
      %3990 = vmatprep.mubr.bf16.mxu0 %v3698
      %3991 = vmatmul.mubr.bf16.gmra.mrb[0].mxu0 %v3697
      %v3992 = vpop.f32.mrb[0].mxu0
      %v3993 = vadd.f32 0.0, %v3992
      %v3994 = vpop.f32.mrb[0].mxu0
      %v3995 = vpop.f32.mrb[0].mxu0
      %v3996 = vadd.f32 0.0, %v3995
      %v3997 = vpop.f32.mrb[0].mxu0
      %3998 = vdwg.mxu0
      %3999 = vmatprep.subr.bf16.mxu0 0
      %4000 = vmatpush1.bf16.msra.mxu0 %v3910
      %4001 = vmatprep.subr.bf16.mxu0 0
      %4002 = vmatpush1.bf16.msra.mxu0 %v3911
      %4003 = vmatprep.subr.bf16.mxu0 0
      %4004 = vmatpush1.bf16.msra.mxu0 %v3912
      %4005 = vmatprep.subr.bf16.mxu0 0
      %4006 = vmatpush1.bf16.msra.mxu0 %v3913
      %4007 = vmatprep.subr.bf16.mxu0 0
      %4008 = vmatpush1.bf16.msra.mxu0 %v3914
      %4009 = vmatprep.subr.bf16.mxu0 0
      %4010 = vmatpush1.bf16.msra.mxu0 %v3915
      %4011 = vmatprep.subr.bf16.mxu0 0
      %4012 = vmatpush1.bf16.msra.mxu0 %v3916
      %4013 = vmatprep.subr.bf16.mxu0 0
      %4014 = vmatpush1.bf16.msra.mxu0 %v3917
      %4015 = vmatprep.subr.bf16.mxu0 0
      %4016 = vmatpush1.bf16.msra.mxu0 %v3918
      %4017 = vmatprep.subr.bf16.mxu0 0
      %4018 = vmatpush1.bf16.msra.mxu0 %v3919
      %4019 = vmatprep.subr.bf16.mxu0 0
      %4020 = vmatpush1.bf16.msra.mxu0 %v3920
      %4021 = vmatprep.subr.bf16.mxu0 0
      %4022 = vmatpush1.bf16.msra.mxu0 %v3921
      %4023 = vmatprep.subr.bf16.mxu0 0
      %4024 = vmatpush1.bf16.msra.mxu0 %v3922
      %4025 = vmatprep.subr.bf16.mxu0 0
      %4026 = vmatpush1.bf16.msra.mxu0 %v3923
      %4027 = vmatprep.subr.bf16.mxu0 0
      %4028 = vmatpush1.bf16.msra.mxu0 %v3924
      %4029 = vmatprep.subr.bf16.mxu0 0
      %4030 = vmatpush1.bf16.msra.mxu0 %v3925
      %4031 = vmatprep.mubr.bf16.mxu0 %v3700
      %4032 = vmatmul.mubr.bf16.gmra.mrb[0].mxu0 %v3699
      %v4033 = vpop.f32.mrb[0].mxu0
      %v4034 = vadd.f32 %v3993, %v4033
      %v4035 = vpop.f32.mrb[0].mxu0
      %v4036 = vpop.f32.mrb[0].mxu0
      %v4037 = vadd.f32 %v3996, %v4036
      %v4038 = vpop.f32.mrb[0].mxu0
      %4039 = vdwg.mxu0
      %v4040 = vadd.f32 %v3307, %v4034
      %v4041 = vadd.f32 %v3308, %v4037
      %v4042 = vld [vmem:[%s14] sm:$0x1]
      %v4043 = vld [vmem:[%s15] sm:$0x1]
      %4044 = vadd.xlane.f32.xlu0 %v4040
      %v4045 = vpop.xlane.xlu0 %4044
      %v4046 = vsel %vm1212, %v4041, 0.0
      %4047 = vadd.xlane.f32.xlu0 %v4046
      %v4048 = vpop.xlane.xlu0 %4047
      %v4049 = vmul.f32 %v4045, %v1216
      %v4050 = vmul.f32 %v4048, %v1216
      %v4051 = vsub.f32 %v4040, %v4049
      %v4052 = vsub.f32 %v4041, %v4050
      %v4053 = vmul.f32 %v4051, %v4051
      %v4054 = vmul.f32 %v4052, %v4052
      %4055 = vadd.xlane.f32.xlu0 %v4053
      %v4056 = vpop.xlane.xlu0 %4055
      %v4057 = vsel %vm1212, %v4054, 0.0
      %4058 = vadd.xlane.f32.xlu0 %v4057
      %v4059 = vpop.xlane.xlu0 %4058
      %v4060 = vmul.f32 %v4056, %v1216
      %v4061 = vmul.f32 %v4059, %v1216
      %v4062 = vadd.f32 %v4060, 1e-05
      %v4063 = vadd.f32 %v4061, 1e-05
      %v4064 = vrsqrt.pop %v4062
      %v4065 = vrsqrt.pop %v4063
      %v4066 = vmul.f32 %v4051, %v4064
      %v4067 = vmul.f32 %v4052, %v4065
      %v4069 = vlaneseq
      %v4070 = vshrl.u32 %v4069, 7
      %v4071 = vsub.s32 0, %v4070
      %v4072 = vrot.slane %v4042, %v4071
      %v4074 = vmul.f32 %v4066, %v4072
      %v4075 = vmul.f32 %v4067, %v4072
      %v4077 = vlaneseq
      %v4078 = vshrl.u32 %v4077, 7
      %v4079 = vsub.s32 0, %v4078
      %v4080 = vrot.slane %v4043, %v4079
      %v4082 = vadd.f32 %v4074, %v4080
      %v4083 = vadd.f32 %v4075, %v4080
      %v4084 = vpack.c.bf16 %v4083, %v4082
      %v4085 = vld [vmem:[%s16] sm:$0xf]
      %v4086 = vld [vmem:[%s16 + $0x4] sm:$0xf]
      %v4087 = vld [vmem:[%s16 + $0x8] sm:$0xf]
      %v4088 = vld [vmem:[%s16 + $0xc] sm:$0xf]
      %v4089 = vld [vmem:[%s16 + $0x10] sm:$0xf]
      %v4090 = vld [vmem:[%s16 + $0x14] sm:$0xf]
      %v4091 = vld [vmem:[%s16 + $0x18] sm:$0xf]
      %v4092 = vld [vmem:[%s16 + $0x1c] sm:$0xf]
      %v4093 = vld [vmem:[%s16 + $0x20] sm:$0xf]
      %v4094 = vld [vmem:[%s16 + $0x24] sm:$0xf]
      %v4095 = vld [vmem:[%s16 + $0x28] sm:$0xf]
      %v4096 = vld [vmem:[%s16 + $0x2c] sm:$0xf]
      %v4097 = vld [vmem:[%s16 + $0x30] sm:$0xf]
      %v4098 = vld [vmem:[%s16 + $0x34] sm:$0xf]
      %v4099 = vld [vmem:[%s16 + $0x38] sm:$0xf]
      %v4100 = vld [vmem:[%s16 + $0x3c] sm:$0xf]
      %v4117 = vunpack.c.l.b16 %v4085
      %v4118 = vunpack.c.l.b16 %v4086
      %v4119 = vunpack.c.l.b16 %v4087
      %v4120 = vunpack.c.l.b16 %v4088
      %v4121 = vunpack.c.l.b16 %v4089
      %v4122 = vunpack.c.l.b16 %v4090
      %v4123 = vunpack.c.l.b16 %v4091
      %v4124 = vunpack.c.l.b16 %v4092
      %v4125 = vunpack.c.l.b16 %v4093
      %v4126 = vunpack.c.l.b16 %v4094
      %v4127 = vunpack.c.l.b16 %v4095
      %v4128 = vunpack.c.l.b16 %v4096
      %v4129 = vunpack.c.l.b16 %v4097
      %v4130 = vunpack.c.l.b16 %v4098
      %v4131 = vunpack.c.l.b16 %v4099
      %v4132 = vunpack.c.l.b16 %v4100
      %v4133 = vpack.c.b16 %v4118, %v4117
      %v4134 = vpack.c.b16 %v4120, %v4119
      %v4135 = vpack.c.b16 %v4122, %v4121
      %v4136 = vpack.c.b16 %v4124, %v4123
      %v4137 = vpack.c.b16 %v4126, %v4125
      %v4138 = vpack.c.b16 %v4128, %v4127
      %v4139 = vpack.c.b16 %v4130, %v4129
      %v4140 = vpack.c.b16 %v4132, %v4131
      %4149 = vmatprep.subr.bf16.mxu0 0
      %4150 = vmatpush1.bf16.msra.mxu0 %v4133
      %4151 = vmatprep.subr.bf16.mxu0 0
      %4152 = vmatpush1.bf16.msra.mxu0 %v4134
      %4153 = vmatprep.subr.bf16.mxu0 0
      %4154 = vmatpush1.bf16.msra.mxu0 %v4135
      %4155 = vmatprep.subr.bf16.mxu0 0
      %4156 = vmatpush1.bf16.msra.mxu0 %v4136
      %4157 = vmatprep.subr.bf16.mxu0 0
      %4158 = vmatpush1.bf16.msra.mxu0 %v4137
      %4159 = vmatprep.subr.bf16.mxu0 0
      %4160 = vmatpush1.bf16.msra.mxu0 %v4138
      %4161 = vmatprep.subr.bf16.mxu0 0
      %4162 = vmatpush1.bf16.msra.mxu0 %v4139
      %4163 = vmatprep.subr.bf16.mxu0 0
      %4164 = vmatpush1.bf16.msra.mxu0 %v4140
      %4165 = vmatprep.subr.bf16.mxu0 0
      %4166 = vmatpush1.bf16.msra.mxu0 0
      %4167 = vmatprep.subr.bf16.mxu0 0
      %4168 = vmatpush1.bf16.msra.mxu0 0
      %4169 = vmatprep.subr.bf16.mxu0 0
      %4170 = vmatpush1.bf16.msra.mxu0 0
      %4171 = vmatprep.subr.bf16.mxu0 0
      %4172 = vmatpush1.bf16.msra.mxu0 0
      %4173 = vmatprep.subr.bf16.mxu0 0
      %4174 = vmatpush1.bf16.msra.mxu0 0
      %4175 = vmatprep.subr.bf16.mxu0 0
      %4176 = vmatpush1.bf16.msra.mxu0 0
      %4177 = vmatprep.subr.bf16.mxu0 0
      %4178 = vmatpush1.bf16.msra.mxu0 0
      %4179 = vmatprep.subr.bf16.mxu0 0
      %4180 = vmatpush1.bf16.msra.mxu0 0
      %4181 = vmatprep.mubr.bf16.mxu0 0
      %4182 = vmatmul.mubr.bf16.gmra.mrb[0].mxu0 %v4084
      %v4183 = vpop.f32.mrb[0].mxu0
      %v4184 = vadd.f32 0.0, %v4183
      %v4185 = vpop.f32.mrb[0].mxu0
      %v4186 = vpop.f32.mrb[0].mxu0
      %v4187 = vadd.f32 0.0, %v4186
      %v4188 = vpop.f32.mrb[0].mxu0
      %4189 = vdwg.mxu0
      %4190 = vst [vmem:[%s548] sm:$0xff] %v4184
      %4191 = vst [vmem:[%s548 + $0x8] sm:$0x3] %v4187
      %p4192 = scmp.lt.s32.totalorder %s28, 1
      %s4193 = scalar_select %p4192, %s28, 1
      %s4194 = smul.addr %s4193, 2
      %s4195 = smul.addr %s4194, 8
      %s4196 = scalar_lea.vmem %s17, %s4195
      // Predicated region
      $region89: #{_lambda_.2} parent=87 // pred_check
        %p4197 = pneg %p408
      $region90: #{_lambda_.2} parent=87 // pred_check_branch
        %4199 = sbr.rel (%p4197) target = $region92
      $region91: #{_lambda_.2} parent=87 // pred_region
        _
      $region92: #{_lambda_.2} parent=87 // pred_fallthru
        _
    $region88: #{_lambda_.2} parent=5 // pred_fallthru
      _
    %p4200 = scmp.le.s32.totalorder 2, %s23
    // Predicated region
    $region93: #{_lambda_.2} parent=5 // pred_check
      %p4201 = pneg %p4200
    $region94: #{_lambda_.2} parent=5 // pred_check_branch
      %4203 = sbr.rel (%p4201) target = $region96
    $region95: #{_lambda_.2} parent=5 // pred_region
      %s4204 = ssub.s32 %s23, 2
      // Predicated region
      $region97: #{_lambda_.2} parent=95 // pred_check
        %p4205 = pneg %p414
      $region98: #{_lambda_.2} parent=95 // pred_check_branch
        %4207 = sbr.rel (%p4205) target = $region100
      $region99: #{_lambda_.2} parent=95 // pred_region
        %p4208 = scmp.lt.s32.totalorder %s29, 1
        %s4209 = scalar_select %p4208, %s29, 1
        %s4210 = smul.addr %s4209, 2
        %s4211 = smul.addr %s4210, 8
        %s4212 = scalar_lea.vmem %s17, %s4211
      $region100: #{_lambda_.2} parent=95 // pred_fallthru
        _
    $region96: #{_lambda_.2} parent=5 // pred_fallthru
      _
  $region6: #{_lambda_.2} parent=0 // loop_footer
    %s27 = sadd.s32 1, %s23
  $region7: #{_lambda_.2} parent=0 // loop_footer_branch
    %22 = sbr.rel target = $region3
  $region8: #{_lambda_.2} parent=0 // loop_exit
    _

</llo_original>
